<compile_context>
chip_gen: v6e
topology: v6e:2x2x1
jax: 0.10.0
libtpu: 0.0.40
codegen_flags: <defaults>
</compile_context>

<pallas_src>
import math
from functools import partial

import numpy as np
import jax
import jax.numpy as jnp
from jax.experimental import pallas as pl
from jax.experimental.pallas import tpu as pltpu

_LANE = 128          # lane width: matmul N (weight columns) padded to this
_TM = 256            # M tile for large layers


def _round_up(x, m):
    return -(-x // m) * m


# ----------------------------------------------------------------------------
# Pallas kernel 1: fused  out = act(A @ W + b)   (bf16 operands, f32 accum)
# Stores only the first n_out columns (valid, unpadded part of N).
# ----------------------------------------------------------------------------
def _mm_bias_act_kernel(a_ref, w_ref, b_ref, o_ref, *, act, n_out):
    acc = jnp.dot(a_ref[...], w_ref[...], preferred_element_type=jnp.float32)
    acc = acc + b_ref[...]                      # (1, Np) bias broadcasts over rows
    if act == "relu":
        acc = jnp.maximum(acc, 0.0)
    elif act == "sigmoid":
        # Exact sigmoid: approx reciprocal can round above 1.0 / below 0.0.
        acc = 1.0 / (1.0 + jnp.exp(-acc))
    o_ref[...] = acc[:, :n_out].astype(o_ref.dtype)


def matmul_bias_act(a, w_pad, b_pad, act="none", n_out=None, out_dtype=jnp.bfloat16):
    """act(a @ w_pad + b_pad)[:, :n_out].
    a:(M,K); w_pad:(K,Np) bf16 with Np%128==0; b_pad:(1,Np) f32.
    Returns (M, n_out) in out_dtype (bf16 for hidden layers, f32 for output)."""
    M, K = a.shape
    Kw, Np = w_pad.shape
    assert K == Kw and Np % _LANE == 0
    if n_out is None:
        n_out = Np
    assert 0 < n_out <= Np

    a = a.astype(jnp.bfloat16)                  # no-op when already bf16

    # M tiling: cdiv grid; last block may be partial (masked writes).
    if M >= 2 * _TM:
        tm = _TM
    elif M > _TM:
        tm = _TM // 2                           # >=2 blocks so both v7x TCs get work
    else:
        tm = M                                  # single full-extent block (always legal)
    grid = (pl.cdiv(M, tm),)

    return pl.pallas_call(
        partial(_mm_bias_act_kernel, act=act, n_out=n_out),
        out_shape=jax.ShapeDtypeStruct((M, n_out), out_dtype),
        grid_spec=pltpu.PrefetchScalarGridSpec(
            num_scalar_prefetch=0,
            grid=grid,
            in_specs=[
                pl.BlockSpec((tm, K), lambda i: (i, 0)),
                pl.BlockSpec((K, Np), lambda i: (0, 0)),
                pl.BlockSpec((1, Np), lambda i: (0, 0)),
            ],
            out_specs=pl.BlockSpec((tm, n_out), lambda i: (i, 0)),
        ),
        compiler_params=pltpu.CompilerParams(
            dimension_semantics=("parallel",),
        ),
    )(a, w_pad, b_pad)


# ----------------------------------------------------------------------------
# Pallas kernel 2: fused bottleneck  h = (flat @ W1 + b1) @ W2 + b2
# (encoder Linear 2048->8 and decoder Linear 8->2048 in ONE dispatch;
#  latent dim padded 8 -> 128 with zeros; latent kept in f32; batch-tiled)
# ----------------------------------------------------------------------------
def _bottleneck_kernel(flat_ref, w1_ref, b1_ref, w2_ref, b2_ref, h_ref):
    z = jnp.dot(flat_ref[...], w1_ref[...], preferred_element_type=jnp.float32)
    z = z + b1_ref[...]                                   # (tb, 128) f32; cols 8.. are 0
    h = jnp.dot(z, w2_ref[...], preferred_element_type=jnp.float32)   # f32 x f32
    h_ref[...] = (h + b2_ref[...]).astype(h_ref.dtype)


def bottleneck(flat, w1, b1, w2, b2):
    B, K = flat.shape          # (B, 2048)
    _, L = w1.shape            # (2048, 128)
    _, N = w2.shape            # (128, 2048)
    tb = _TM if B > _TM else B
    grid = (pl.cdiv(B, tb),)
    return pl.pallas_call(
        _bottleneck_kernel,
        out_shape=jax.ShapeDtypeStruct((B, N), jnp.bfloat16),
        grid_spec=pltpu.PrefetchScalarGridSpec(
            num_scalar_prefetch=0,
            grid=grid,
            in_specs=[
                pl.BlockSpec((tb, K), lambda i: (i, 0)),
                pl.BlockSpec((K, L), lambda i: (0, 0)),
                pl.BlockSpec((1, L), lambda i: (0, 0)),
                pl.BlockSpec((L, N), lambda i: (0, 0)),
                pl.BlockSpec((1, N), lambda i: (0, 0)),
            ],
            out_specs=pl.BlockSpec((tb, N), lambda i: (i, 0)),
        ),
        compiler_params=pltpu.CompilerParams(
            dimension_semantics=("parallel",),
        ),
    )(flat.astype(jnp.bfloat16), w1, b1, w2, b2)


# ----------------------------------------------------------------------------
# JAX glue: im2col + layer wrappers
# ----------------------------------------------------------------------------
def _im2col(x, kh, kw, stride, pad):
    # x: (B, H, W, C) -> (B*Ho*Wo, kh*kw*C), plus Ho, Wo
    B, H, W, C = x.shape
    xp = jnp.pad(x, ((0, 0), (pad, pad), (pad, pad), (0, 0)))
    Ho = (H + 2 * pad - kh) // stride + 1
    Wo = (W + 2 * pad - kw) // stride + 1
    patches = []
    for i in range(kh):
        for j in range(kw):
            patches.append(xp[:, i:i + stride * Ho:stride, j:j + stride * Wo:stride, :])
    p = jnp.stack(patches, axis=3)              # (B, Ho, Wo, kh*kw, C)
    return p.reshape(B * Ho * Wo, kh * kw * C), Ho, Wo


def conv2d(x, layer, stride, pad, act, out_dtype=jnp.bfloat16):
    wmat, bpad, cout, kh, kw = layer
    cols, Ho, Wo = _im2col(x, kh, kw, stride, pad)
    out = matmul_bias_act(cols, wmat, bpad, act, n_out=cout, out_dtype=out_dtype)
    return out.reshape(x.shape[0], Ho, Wo, cout)


def conv_transpose2d_s2(x, layer, act):
    """ConvTranspose2d(k=4, stride=2, pad=1) via 4-phase subpixel decomposition.
    One 2x2/stride-1 im2col over the padded input + one matmul with the four
    phase kernels concatenated on N, then an interleave of the phase outputs."""
    wmat, bpad, cout = layer
    B, H, W, _ = x.shape
    cols, Hp, Wp = _im2col(x, 2, 2, 1, 1)                 # Hp=H+1, Wp=W+1
    y = matmul_bias_act(cols, wmat, bpad, act, n_out=4 * cout,
                        out_dtype=jnp.bfloat16)
    y = y.reshape(B, Hp, Wp, 2, 2, cout)                  # (..., po, qo, Cout)
    # phase (po,qo) output pixel (mo,no) comes from patch (mo+po, no+qo)
    ph = [[y[:, po:po + H, qo:qo + W, po, qo, :] for qo in (0, 1)] for po in (0, 1)]
    row0 = jnp.stack([ph[0][0], ph[0][1]], axis=3)        # (B,H,W,2,C)
    row1 = jnp.stack([ph[1][0], ph[1][1]], axis=3)
    out = jnp.stack([row0, row1], axis=2)                 # (B,H,2,W,2,C)
    return out.reshape(B, 2 * H, 2 * W, cout)


# ----------------------------------------------------------------------------
# One-time parameter preparation (outside jit): reshape / permute / pad / cast
# ----------------------------------------------------------------------------
def _pack(wmat, b):
    K, N = wmat.shape
    Np = _round_up(N, _LANE)
    if Np != N:
        wmat = jnp.pad(wmat, ((0, 0), (0, Np - N)))
        b = jnp.pad(b, (0, Np - N))
    return wmat.astype(jnp.bfloat16), b.reshape(1, Np).astype(jnp.float32)


def _prep_conv(w, b):
    # torch Conv2d weight layout: (Cout, Cin, kh, kw)
    cout, cin, kh, kw = w.shape
    wmat = jnp.transpose(w, (2, 3, 1, 0)).reshape(kh * kw * cin, cout)
    wp, bp = _pack(wmat, b)
    return (wp, bp, cout, kh, kw)


def _prep_convT(w, b):
    # torch ConvTranspose2d weight layout: (Cin, Cout, 4, 4); stride=2, pad=1
    cin, cout = w.shape[0], w.shape[1]
    cols = []
    for po in (0, 1):
        khs = [3, 1] if po == 0 else [2, 0]       # kernel rows for taps t=0,1
        for qo in (0, 1):
            kws = [3, 1] if qo == 0 else [2, 0]   # kernel cols for taps u=0,1
            sub = w[:, :, khs, :][:, :, :, kws]   # (Cin, Cout, 2, 2)
            sub = jnp.transpose(sub, (2, 3, 0, 1))          # (t, u, Cin, Cout)
            cols.append(sub.reshape(4 * cin, cout))
    wmat = jnp.concatenate(cols, axis=1)                    # (4*Cin, 4*Cout)
    bcomb = jnp.tile(b, 4)
    wp, bp = _pack(wmat, bcomb)
    return (wp, bp, cout)


def _prep_bottleneck(ewd, ebd, dwd, dbd):
    # Fold the NCHW-flatten ordering of the (128,4,4) feature map into the
    # dense weights so the runtime works directly on NHWC-flattened activations.
    C, Hs, Ws = 128, 4, 4
    j = np.arange(C * Hs * Ws)
    hh, ww, c = j // (Ws * C), (j // C) % Ws, j % C
    k = c * (Hs * Ws) + hh * Ws + ww              # NCHW flat index for NHWC index j

    w1 = ewd.T[k, :]                              # (2048, 8), rows in NHWC order
    w2 = dwd.T[:, k]                              # (8, 2048), cols in NHWC order
    b2 = dbd[k]

    L = _round_up(w1.shape[1], _LANE)             # pad latent 8 -> 128
    w1 = jnp.pad(w1, ((0, 0), (0, L - w1.shape[1])))
    b1 = jnp.pad(ebd, (0, L - ebd.shape[0]))
    w2 = jnp.pad(w2, ((0, L - w2.shape[0]), (0, 0)))
    # w1 feeds an MXU bf16 matmul; w2 is small (1 MiB f32) -> keep f32 for parity.
    return (w1.astype(jnp.bfloat16), b1.reshape(1, L).astype(jnp.float32),
            w2.astype(jnp.float32), b2.reshape(1, -1).astype(jnp.float32))


def prepare_params(p):
    return {
        "e1": _prep_conv(p["ew1"], p["eb1"]),
        "e2": _prep_conv(p["ew2"], p["eb2"]),
        "e3": _prep_conv(p["ew3"], p["eb3"]),
        "bn": _prep_bottleneck(p["ewd"], p["ebd"], p["dwd"], p["dbd"]),
        "d1": _prep_convT(p["dw1"], p["db1"]),
        "d2": _prep_convT(p["dw2"], p["db2"]),
        "d3": _prep_convT(p["dw3"], p["db3"]),
        "dout": _prep_conv(p["dwo"], p["dbo"]),
    }


# ----------------------------------------------------------------------------
# Autoencoder forward (matches the PyTorch module's semantics)
# ----------------------------------------------------------------------------
def autoencoder_forward(x_nchw, pp):
    B = x_nchw.shape[0]
    x = jnp.transpose(x_nchw, (0, 2, 3, 1))                  # NCHW -> NHWC

    # ---- Encoder ----
    x = conv2d(x, pp["e1"], 2, 1, "relu")                    # (B,16,16, 32) bf16
    x = conv2d(x, pp["e2"], 2, 1, "relu")                    # (B, 8, 8, 64) bf16
    x = conv2d(x, pp["e3"], 2, 1, "relu")                    # (B, 4, 4,128) bf16
    flat = x.reshape(B, -1)                                  # NHWC flatten (perm folded into weights)

    # ---- Bottleneck: Linear(2048->8) + Linear(8->2048) fused in one call ----
    h = bottleneck(flat, *pp["bn"])                          # (B, 2048) bf16, NHWC order
    h = h.reshape(B, 4, 4, 128)

    # ---- Decoder ----
    h = conv_transpose2d_s2(h, pp["d1"], "relu")             # (B, 8, 8,128) bf16
    h = conv_transpose2d_s2(h, pp["d2"], "relu")             # (B,16,16, 64) bf16
    h = conv_transpose2d_s2(h, pp["d3"], "relu")             # (B,32,32, 32) bf16
    y = conv2d(h, pp["dout"], 1, 1, "sigmoid",
               out_dtype=jnp.float32)                        # (B,32,32,  1) f32
    # Cout == 1 -> NHWC->NCHW is a pure reshape (no transpose copy).
    return y.reshape(B, 1, 32, 32)


# ----------------------------------------------------------------------------
# Deterministic parameter init (PyTorch-style uniform bounds, torch layouts)
# ----------------------------------------------------------------------------
def init_params(key):
    keys = iter(jax.random.split(key, 32))

    def uni(shape, fan_in):
        bound = 1.0 / math.sqrt(fan_in)
        return jax.random.uniform(next(keys), shape, jnp.float32, -bound, bound)

    p = {}
    # Encoder convs (Cout, Cin, kh, kw)
    p["ew1"] = uni((32, 1, 3, 3), 1 * 9);    p["eb1"] = uni((32,), 1 * 9)
    p["ew2"] = uni((64, 32, 3, 3), 32 * 9);  p["eb2"] = uni((64,), 32 * 9)
    p["ew3"] = uni((128, 64, 3, 3), 64 * 9); p["eb3"] = uni((128,), 64 * 9)
    # Encoder linear (out, in) = (8, 2048)
    p["ewd"] = uni((8, 2048), 2048); p["ebd"] = uni((8,), 2048)
    # Decoder linear (out, in) = (2048, 8)
    p["dwd"] = uni((2048, 8), 8); p["dbd"] = uni((2048,), 8)
    # Decoder conv-transposes (Cin, Cout, kh, kw)
    p["dw1"] = uni((128, 128, 4, 4), 128 * 16); p["db1"] = uni((128,), 128 * 16)
    p["dw2"] = uni((128, 64, 4, 4), 128 * 16);  p["db2"] = uni((64,), 128 * 16)
    p["dw3"] = uni((64, 32, 4, 4), 64 * 16);    p["db3"] = uni((32,), 64 * 16)
    # Decoder output conv (Cout, Cin, kh, kw)
    p["dwo"] = uni((1, 32, 3, 3), 32 * 9); p["dbo"] = uni((1,), 32 * 9)
    return p


if __name__ == "__main__":
    key = jax.random.PRNGKey(0)
    kx, kp = jax.random.split(key)
    # MNIST-style input: batch=2, 1 channel, 32x32 (NCHW, like PyTorch)
    x = jax.random.normal(kx, (2, 1, 32, 32), jnp.float32)
    params = init_params(kp)
    pp = prepare_params(params)          # one-time weight prep, outside jit

    fwd = jax.jit(lambda inp: autoencoder_forward(inp, pp))
    out = fwd(x)
    jax.block_until_ready(out)

    assert out.shape == (2, 1, 32, 32), out.shape
    assert out.dtype == jnp.float32
    assert bool(jnp.all(jnp.isfinite(out)))
    # exact sigmoid output must be in [0, 1]
    assert bool(jnp.all((out >= 0.0) & (out <= 1.0)))
    print("KERNEL_OK")
</pallas_src>

<mosaic_0001>
module attributes {stable_mosaic.version = 11 : i64} {
  func.func @_mm_bias_act_kernel(%arg0: i32, %arg1: memref<256x9xbf16, #tpu.memory_space<vmem>>, %arg2: memref<9x128xbf16, #tpu.memory_space<vmem>>, %arg3: memref<1x128xf32, #tpu.memory_space<vmem>>, %arg4: memref<256x32xbf16, #tpu.memory_space<vmem>>) attributes {dimension_semantics = [#tpu.dimension_semantics<parallel>], iteration_bounds = array<i64: 2>, scalar_prefetch = 0 : i64, scratch_operands = 0 : i64, tpu.core_type = #tpu.core_type<tc>, window_params = [{transform_indices = @transform_0, window_bounds = array<i64: 256, 9>}, {pipeline_mode = #tpu.pipeline_mode<synchronous>, transform_indices = @transform_1, window_bounds = array<i64: 9, 128>}, {pipeline_mode = #tpu.pipeline_mode<synchronous>, transform_indices = @transform_2, window_bounds = array<i64: 1, 128>}, {transform_indices = @transform_3, window_bounds = array<i64: 256, 32>}]} {
    %c0 = arith.constant 0 : index
    %c0_0 = arith.constant 0 : index
    %0 = vector.load %arg1[%c0, %c0_0] : memref<256x9xbf16, #tpu.memory_space<vmem>>, vector<256x9xbf16>
    %c0_1 = arith.constant 0 : index
    %c0_2 = arith.constant 0 : index
    %1 = vector.load %arg2[%c0_1, %c0_2] : memref<9x128xbf16, #tpu.memory_space<vmem>>, vector<9x128xbf16>
    %cst = arith.constant dense<0.000000e+00> : vector<256x128xf32>
    %2 = tpu.matmul %0, %1, %cst {dimension_numbers = #tpu.dot_dimension_numbers<[1], [0], [0], [1], [0, 0, 1, 1], [], []>} : vector<256x9xbf16>, vector<9x128xbf16>, vector<256x128xf32> -> vector<256x128xf32>
    %c0_3 = arith.constant 0 : index
    %c0_4 = arith.constant 0 : index
    %3 = vector.load %arg3[%c0_3, %c0_4] : memref<1x128xf32, #tpu.memory_space<vmem>>, vector<1x128xf32>
    %4 = vector.broadcast %3 : vector<1x128xf32> to vector<256x128xf32>
    %5 = arith.addf %2, %4 : vector<256x128xf32>
    %cst_5 = arith.constant 0.000000e+00 : f32
    %6 = vector.broadcast %cst_5 : f32 to vector<256x128xf32>
    %7 = arith.maximumf %5, %6 : vector<256x128xf32>
    %8 = vector.extract_strided_slice %7 {offsets = [0, 0], sizes = [256, 32], strides = [1, 1]} : vector<256x128xf32> to vector<256x32xf32>
    %9 = arith.truncf %8 : vector<256x32xf32> to vector<256x32xbf16>
    %c0_6 = arith.constant 0 : index
    %c0_7 = arith.constant 0 : index
    %10 = vector.load %arg4[%c0_6, %c0_7] : memref<256x32xbf16, #tpu.memory_space<vmem>>, vector<256x32xbf16>
    tpu.vector_store %arg4[%c0_6, %c0_7], %9 {strides = array<i32>} : memref<256x32xbf16, #tpu.memory_space<vmem>>, vector<256x32xbf16>,
    return
  }
  func.func @transform_0(%arg0: i32) -> (i32, i32) {
    %c0_i32 = arith.constant 0 : i32
    %c0_i32_0 = arith.constant 0 : i32
    return %arg0, %c0_i32 : i32, i32
  }
  func.func @transform_1(%arg0: i32) -> (i32, i32) {
    %c0_i32 = arith.constant 0 : i32
    %c0_i32_0 = arith.constant 0 : i32
    %c0_i32_1 = arith.constant 0 : i32
    return %c0_i32, %c0_i32_0 : i32, i32
  }
  func.func @transform_2(%arg0: i32) -> (i32, i32) {
    %c0_i32 = arith.constant 0 : i32
    %c0_i32_0 = arith.constant 0 : i32
    %c0_i32_1 = arith.constant 0 : i32
    return %c0_i32, %c0_i32_0 : i32, i32
  }
  func.func @transform_3(%arg0: i32) -> (i32, i32) {
    %c0_i32 = arith.constant 0 : i32
    %c0_i32_0 = arith.constant 0 : i32
    return %arg0, %c0_i32 : i32, i32
  }
}

module attributes {stable_mosaic.version = 11 : i64} {
  func.func @_mm_bias_act_kernel(%arg0: i32, %arg1: memref<128x288xbf16, #tpu.memory_space<vmem>>, %arg2: memref<288x128xbf16, #tpu.memory_space<vmem>>, %arg3: memref<1x128xf32, #tpu.memory_space<vmem>>, %arg4: memref<128x64xbf16, #tpu.memory_space<vmem>>) attributes {dimension_semantics = [#tpu.dimension_semantics<parallel>], iteration_bounds = array<i64: 1>, scalar_prefetch = 0 : i64, scratch_operands = 0 : i64, tpu.core_type = #tpu.core_type<tc>, window_params = [{transform_indices = @transform_0, window_bounds = array<i64: 128, 288>}, {pipeline_mode = #tpu.pipeline_mode<synchronous>, transform_indices = @transform_1, window_bounds = array<i64: 288, 128>}, {pipeline_mode = #tpu.pipeline_mode<synchronous>, transform_indices = @transform_2, window_bounds = array<i64: 1, 128>}, {transform_indices = @transform_3, window_bounds = array<i64: 128, 64>}]} {
    %c0 = arith.constant 0 : index
    %c0_0 = arith.constant 0 : index
    %0 = vector.load %arg1[%c0, %c0_0] : memref<128x288xbf16, #tpu.memory_space<vmem>>, vector<128x288xbf16>
    %c0_1 = arith.constant 0 : index
    %c0_2 = arith.constant 0 : index
    %1 = vector.load %arg2[%c0_1, %c0_2] : memref<288x128xbf16, #tpu.memory_space<vmem>>, vector<288x128xbf16>
    %cst = arith.constant dense<0.000000e+00> : vector<128x128xf32>
    %2 = tpu.matmul %0, %1, %cst {dimension_numbers = #tpu.dot_dimension_numbers<[1], [0], [0], [1], [0, 0, 1, 1], [], []>} : vector<128x288xbf16>, vector<288x128xbf16>, vector<128x128xf32> -> vector<128x128xf32>
    %c0_3 = arith.constant 0 : index
    %c0_4 = arith.constant 0 : index
    %3 = vector.load %arg3[%c0_3, %c0_4] : memref<1x128xf32, #tpu.memory_space<vmem>>, vector<1x128xf32>
    %4 = vector.broadcast %3 : vector<1x128xf32> to vector<128x128xf32>
    %5 = arith.addf %2, %4 : vector<128x128xf32>
    %cst_5 = arith.constant 0.000000e+00 : f32
    %6 = vector.broadcast %cst_5 : f32 to vector<128x128xf32>
    %7 = arith.maximumf %5, %6 : vector<128x128xf32>
    %8 = vector.extract_strided_slice %7 {offsets = [0, 0], sizes = [128, 64], strides = [1, 1]} : vector<128x128xf32> to vector<128x64xf32>
    %9 = arith.truncf %8 : vector<128x64xf32> to vector<128x64xbf16>
    %c0_6 = arith.constant 0 : index
    %c0_7 = arith.constant 0 : index
    %10 = vector.load %arg4[%c0_6, %c0_7] : memref<128x64xbf16, #tpu.memory_space<vmem>>, vector<128x64xbf16>
    tpu.vector_store %arg4[%c0_6, %c0_7], %9 {strides = array<i32>} : memref<128x64xbf16, #tpu.memory_space<vmem>>, vector<128x64xbf16>,
    return
  }
  func.func @transform_0(%arg0: i32) -> (i32, i32) {
    %c0_i32 = arith.constant 0 : i32
    %c0_i32_0 = arith.constant 0 : i32
    return %arg0, %c0_i32 : i32, i32
  }
  func.func @transform_1(%arg0: i32) -> (i32, i32) {
    %c0_i32 = arith.constant 0 : i32
    %c0_i32_0 = arith.constant 0 : i32
    %c0_i32_1 = arith.constant 0 : i32
    return %c0_i32, %c0_i32_0 : i32, i32
  }
  func.func @transform_2(%arg0: i32) -> (i32, i32) {
    %c0_i32 = arith.constant 0 : i32
    %c0_i32_0 = arith.constant 0 : i32
    %c0_i32_1 = arith.constant 0 : i32
    return %c0_i32, %c0_i32_0 : i32, i32
  }
  func.func @transform_3(%arg0: i32) -> (i32, i32) {
    %c0_i32 = arith.constant 0 : i32
    %c0_i32_0 = arith.constant 0 : i32
    return %arg0, %c0_i32 : i32, i32
  }
}

module attributes {stable_mosaic.version = 11 : i64} {
  func.func @_mm_bias_act_kernel(%arg0: i32, %arg1: memref<32x576xbf16, #tpu.memory_space<vmem>>, %arg2: memref<576x128xbf16, #tpu.memory_space<vmem>>, %arg3: memref<1x128xf32, #tpu.memory_space<vmem>>, %arg4: memref<32x128xbf16, #tpu.memory_space<vmem>>) attributes {dimension_semantics = [#tpu.dimension_semantics<parallel>], iteration_bounds = array<i64: 1>, scalar_prefetch = 0 : i64, scratch_operands = 0 : i64, tpu.core_type = #tpu.core_type<tc>, window_params = [{transform_indices = @transform_0, window_bounds = array<i64: 32, 576>}, {pipeline_mode = #tpu.pipeline_mode<synchronous>, transform_indices = @transform_1, window_bounds = array<i64: 576, 128>}, {pipeline_mode = #tpu.pipeline_mode<synchronous>, transform_indices = @transform_2, window_bounds = array<i64: 1, 128>}, {transform_indices = @transform_3, window_bounds = array<i64: 32, 128>}]} {
    %c0 = arith.constant 0 : index
    %c0_0 = arith.constant 0 : index
    %0 = vector.load %arg1[%c0, %c0_0] : memref<32x576xbf16, #tpu.memory_space<vmem>>, vector<32x576xbf16>
    %c0_1 = arith.constant 0 : index
    %c0_2 = arith.constant 0 : index
    %1 = vector.load %arg2[%c0_1, %c0_2] : memref<576x128xbf16, #tpu.memory_space<vmem>>, vector<576x128xbf16>
    %cst = arith.constant dense<0.000000e+00> : vector<32x128xf32>
    %2 = tpu.matmul %0, %1, %cst {dimension_numbers = #tpu.dot_dimension_numbers<[1], [0], [0], [1], [0, 0, 1, 1], [], []>} : vector<32x576xbf16>, vector<576x128xbf16>, vector<32x128xf32> -> vector<32x128xf32>
    %c0_3 = arith.constant 0 : index
    %c0_4 = arith.constant 0 : index
    %3 = vector.load %arg3[%c0_3, %c0_4] : memref<1x128xf32, #tpu.memory_space<vmem>>, vector<1x128xf32>
    %4 = vector.broadcast %3 : vector<1x128xf32> to vector<32x128xf32>
    %5 = arith.addf %2, %4 : vector<32x128xf32>
    %cst_5 = arith.constant 0.000000e+00 : f32
    %6 = vector.broadcast %cst_5 : f32 to vector<32x128xf32>
    %7 = arith.maximumf %5, %6 : vector<32x128xf32>
    %8 = arith.truncf %7 : vector<32x128xf32> to vector<32x128xbf16>
    %c0_6 = arith.constant 0 : index
    %c0_7 = arith.constant 0 : index
    %9 = vector.load %arg4[%c0_6, %c0_7] : memref<32x128xbf16, #tpu.memory_space<vmem>>, vector<32x128xbf16>
    tpu.vector_store %arg4[%c0_6, %c0_7], %8 {strides = array<i32>} : memref<32x128xbf16, #tpu.memory_space<vmem>>, vector<32x128xbf16>,
    return
  }
  func.func @transform_0(%arg0: i32) -> (i32, i32) {
    %c0_i32 = arith.constant 0 : i32
    %c0_i32_0 = arith.constant 0 : i32
    return %arg0, %c0_i32 : i32, i32
  }
  func.func @transform_1(%arg0: i32) -> (i32, i32) {
    %c0_i32 = arith.constant 0 : i32
    %c0_i32_0 = arith.constant 0 : i32
    %c0_i32_1 = arith.constant 0 : i32
    return %c0_i32, %c0_i32_0 : i32, i32
  }
  func.func @transform_2(%arg0: i32) -> (i32, i32) {
    %c0_i32 = arith.constant 0 : i32
    %c0_i32_0 = arith.constant 0 : i32
    %c0_i32_1 = arith.constant 0 : i32
    return %c0_i32, %c0_i32_0 : i32, i32
  }
  func.func @transform_3(%arg0: i32) -> (i32, i32) {
    %c0_i32 = arith.constant 0 : i32
    %c0_i32_0 = arith.constant 0 : i32
    return %arg0, %c0_i32 : i32, i32
  }
}

module attributes {stable_mosaic.version = 11 : i64} {
  func.func @_bottleneck_kernel(%arg0: i32, %arg1: memref<2x2048xbf16, #tpu.memory_space<vmem>>, %arg2: memref<2048x128xbf16, #tpu.memory_space<vmem>>, %arg3: memref<1x128xf32, #tpu.memory_space<vmem>>, %arg4: memref<128x2048xf32, #tpu.memory_space<vmem>>, %arg5: memref<1x2048xf32, #tpu.memory_space<vmem>>, %arg6: memref<2x2048xbf16, #tpu.memory_space<vmem>>) attributes {dimension_semantics = [#tpu.dimension_semantics<parallel>], iteration_bounds = array<i64: 1>, scalar_prefetch = 0 : i64, scratch_operands = 0 : i64, tpu.core_type = #tpu.core_type<tc>, window_params = [{transform_indices = @transform_0, window_bounds = array<i64: 2, 2048>}, {pipeline_mode = #tpu.pipeline_mode<synchronous>, transform_indices = @transform_1, window_bounds = array<i64: 2048, 128>}, {pipeline_mode = #tpu.pipeline_mode<synchronous>, transform_indices = @transform_2, window_bounds = array<i64: 1, 128>}, {pipeline_mode = #tpu.pipeline_mode<synchronous>, transform_indices = @transform_3, window_bounds = array<i64: 128, 2048>}, {pipeline_mode = #tpu.pipeline_mode<synchronous>, transform_indices = @transform_4, window_bounds = array<i64: 1, 2048>}, {transform_indices = @transform_5, window_bounds = array<i64: 2, 2048>}]} {
    %c0 = arith.constant 0 : index
    %c0_0 = arith.constant 0 : index
    %0 = vector.load %arg1[%c0, %c0_0] : memref<2x2048xbf16, #tpu.memory_space<vmem>>, vector<2x2048xbf16>
    %c0_1 = arith.constant 0 : index
    %c0_2 = arith.constant 0 : index
    %1 = vector.load %arg2[%c0_1, %c0_2] : memref<2048x128xbf16, #tpu.memory_space<vmem>>, vector<2048x128xbf16>
    %cst = arith.constant dense<0.000000e+00> : vector<2x128xf32>
    %2 = tpu.matmul %0, %1, %cst {dimension_numbers = #tpu.dot_dimension_numbers<[1], [0], [0], [1], [0, 0, 1, 1], [], []>} : vector<2x2048xbf16>, vector<2048x128xbf16>, vector<2x128xf32> -> vector<2x128xf32>
    %c0_3 = arith.constant 0 : index
    %c0_4 = arith.constant 0 : index
    %3 = vector.load %arg3[%c0_3, %c0_4] : memref<1x128xf32, #tpu.memory_space<vmem>>, vector<1x128xf32>
    %4 = vector.broadcast %3 : vector<1x128xf32> to vector<2x128xf32>
    %5 = arith.addf %2, %4 : vector<2x128xf32>
    %c0_5 = arith.constant 0 : index
    %c0_6 = arith.constant 0 : index
    %6 = vector.load %arg4[%c0_5, %c0_6] : memref<128x2048xf32, #tpu.memory_space<vmem>>, vector<128x2048xf32>
    %cst_7 = arith.constant dense<0.000000e+00> : vector<2x2048xf32>
    %7 = tpu.matmul %5, %6, %cst_7 {dimension_numbers = #tpu.dot_dimension_numbers<[1], [0], [0], [1], [0, 0, 1, 1], [], []>} : vector<2x128xf32>, vector<128x2048xf32>, vector<2x2048xf32> -> vector<2x2048xf32>
    %c0_8 = arith.constant 0 : index
    %c0_9 = arith.constant 0 : index
    %8 = vector.load %arg5[%c0_8, %c0_9] : memref<1x2048xf32, #tpu.memory_space<vmem>>, vector<1x2048xf32>
    %9 = vector.broadcast %8 : vector<1x2048xf32> to vector<2x2048xf32>
    %10 = arith.addf %7, %9 : vector<2x2048xf32>
    %11 = arith.truncf %10 : vector<2x2048xf32> to vector<2x2048xbf16>
    %c0_10 = arith.constant 0 : index
    %c0_11 = arith.constant 0 : index
    %12 = vector.load %arg6[%c0_10, %c0_11] : memref<2x2048xbf16, #tpu.memory_space<vmem>>, vector<2x2048xbf16>
    tpu.vector_store %arg6[%c0_10, %c0_11], %11 {strides = array<i32>} : memref<2x2048xbf16, #tpu.memory_space<vmem>>, vector<2x2048xbf16>,
    return
  }
  func.func @transform_0(%arg0: i32) -> (i32, i32) {
    %c0_i32 = arith.constant 0 : i32
    %c0_i32_0 = arith.constant 0 : i32
    return %arg0, %c0_i32 : i32, i32
  }
  func.func @transform_1(%arg0: i32) -> (i32, i32) {
    %c0_i32 = arith.constant 0 : i32
    %c0_i32_0 = arith.constant 0 : i32
    %c0_i32_1 = arith.constant 0 : i32
    return %c0_i32, %c0_i32_0 : i32, i32
  }
  func.func @transform_2(%arg0: i32) -> (i32, i32) {
    %c0_i32 = arith.constant 0 : i32
    %c0_i32_0 = arith.constant 0 : i32
    %c0_i32_1 = arith.constant 0 : i32
    return %c0_i32, %c0_i32_0 : i32, i32
  }
  func.func @transform_3(%arg0: i32) -> (i32, i32) {
    %c0_i32 = arith.constant 0 : i32
    %c0_i32_0 = arith.constant 0 : i32
    %c0_i32_1 = arith.constant 0 : i32
    return %c0_i32, %c0_i32_0 : i32, i32
  }
  func.func @transform_4(%arg0: i32) -> (i32, i32) {
    %c0_i32 = arith.constant 0 : i32
    %c0_i32_0 = arith.constant 0 : i32
    %c0_i32_1 = arith.constant 0 : i32
    return %c0_i32, %c0_i32_0 : i32, i32
  }
  func.func @transform_5(%arg0: i32) -> (i32, i32) {
    %c0_i32 = arith.constant 0 : i32
    %c0_i32_0 = arith.constant 0 : i32
    return %arg0, %c0_i32 : i32, i32
  }
}

module attributes {stable_mosaic.version = 11 : i64} {
  func.func @_mm_bias_act_kernel(%arg0: i32, %arg1: memref<50x512xbf16, #tpu.memory_space<vmem>>, %arg2: memref<512x512xbf16, #tpu.memory_space<vmem>>, %arg3: memref<1x512xf32, #tpu.memory_space<vmem>>, %arg4: memref<50x512xbf16, #tpu.memory_space<vmem>>) attributes {dimension_semantics = [#tpu.dimension_semantics<parallel>], iteration_bounds = array<i64: 1>, scalar_prefetch = 0 : i64, scratch_operands = 0 : i64, tpu.core_type = #tpu.core_type<tc>, window_params = [{transform_indices = @transform_0, window_bounds = array<i64: 50, 512>}, {pipeline_mode = #tpu.pipeline_mode<synchronous>, transform_indices = @transform_1, window_bounds = array<i64: 512, 512>}, {pipeline_mode = #tpu.pipeline_mode<synchronous>, transform_indices = @transform_2, window_bounds = array<i64: 1, 512>}, {transform_indices = @transform_3, window_bounds = array<i64: 50, 512>}]} {
    %c0 = arith.constant 0 : index
    %c0_0 = arith.constant 0 : index
    %0 = vector.load %arg1[%c0, %c0_0] : memref<50x512xbf16, #tpu.memory_space<vmem>>, vector<50x512xbf16>
    %c0_1 = arith.constant 0 : index
    %c0_2 = arith.constant 0 : index
    %1 = vector.load %arg2[%c0_1, %c0_2] : memref<512x512xbf16, #tpu.memory_space<vmem>>, vector<512x512xbf16>
    %cst = arith.constant dense<0.000000e+00> : vector<50x512xf32>
    %2 = tpu.matmul %0, %1, %cst {dimension_numbers = #tpu.dot_dimension_numbers<[1], [0], [0], [1], [0, 0, 1, 1], [], []>} : vector<50x512xbf16>, vector<512x512xbf16>, vector<50x512xf32> -> vector<50x512xf32>
    %c0_3 = arith.constant 0 : index
    %c0_4 = arith.constant 0 : index
    %3 = vector.load %arg3[%c0_3, %c0_4] : memref<1x512xf32, #tpu.memory_space<vmem>>, vector<1x512xf32>
    %4 = vector.broadcast %3 : vector<1x512xf32> to vector<50x512xf32>
    %5 = arith.addf %2, %4 : vector<50x512xf32>
    %cst_5 = arith.constant 0.000000e+00 : f32
    %6 = vector.broadcast %cst_5 : f32 to vector<50x512xf32>
    %7 = arith.maximumf %5, %6 : vector<50x512xf32>
    %8 = arith.truncf %7 : vector<50x512xf32> to vector<50x512xbf16>
    %c0_6 = arith.constant 0 : index
    %c0_7 = arith.constant 0 : index
    %9 = vector.load %arg4[%c0_6, %c0_7] : memref<50x512xbf16, #tpu.memory_space<vmem>>, vector<50x512xbf16>
    tpu.vector_store %arg4[%c0_6, %c0_7], %8 {strides = array<i32>} : memref<50x512xbf16, #tpu.memory_space<vmem>>, vector<50x512xbf16>,
    return
  }
  func.func @transform_0(%arg0: i32) -> (i32, i32) {
    %c0_i32 = arith.constant 0 : i32
    %c0_i32_0 = arith.constant 0 : i32
    return %arg0, %c0_i32 : i32, i32
  }
  func.func @transform_1(%arg0: i32) -> (i32, i32) {
    %c0_i32 = arith.constant 0 : i32
    %c0_i32_0 = arith.constant 0 : i32
    %c0_i32_1 = arith.constant 0 : i32
    return %c0_i32, %c0_i32_0 : i32, i32
  }
  func.func @transform_2(%arg0: i32) -> (i32, i32) {
    %c0_i32 = arith.constant 0 : i32
    %c0_i32_0 = arith.constant 0 : i32
    %c0_i32_1 = arith.constant 0 : i32
    return %c0_i32, %c0_i32_0 : i32, i32
  }
  func.func @transform_3(%arg0: i32) -> (i32, i32) {
    %c0_i32 = arith.constant 0 : i32
    %c0_i32_0 = arith.constant 0 : i32
    return %arg0, %c0_i32 : i32, i32
  }
}

module attributes {stable_mosaic.version = 11 : i64} {
  func.func @_mm_bias_act_kernel(%arg0: i32, %arg1: memref<162x512xbf16, #tpu.memory_space<vmem>>, %arg2: memref<512x256xbf16, #tpu.memory_space<vmem>>, %arg3: memref<1x256xf32, #tpu.memory_space<vmem>>, %arg4: memref<162x256xbf16, #tpu.memory_space<vmem>>) attributes {dimension_semantics = [#tpu.dimension_semantics<parallel>], iteration_bounds = array<i64: 1>, scalar_prefetch = 0 : i64, scratch_operands = 0 : i64, tpu.core_type = #tpu.core_type<tc>, window_params = [{transform_indices = @transform_0, window_bounds = array<i64: 162, 512>}, {pipeline_mode = #tpu.pipeline_mode<synchronous>, transform_indices = @transform_1, window_bounds = array<i64: 512, 256>}, {pipeline_mode = #tpu.pipeline_mode<synchronous>, transform_indices = @transform_2, window_bounds = array<i64: 1, 256>}, {transform_indices = @transform_3, window_bounds = array<i64: 162, 256>}]} {
    %c0 = arith.constant 0 : index
    %c0_0 = arith.constant 0 : index
    %0 = vector.load %arg1[%c0, %c0_0] : memref<162x512xbf16, #tpu.memory_space<vmem>>, vector<162x512xbf16>
    %c0_1 = arith.constant 0 : index
    %c0_2 = arith.constant 0 : index
    %1 = vector.load %arg2[%c0_1, %c0_2] : memref<512x256xbf16, #tpu.memory_space<vmem>>, vector<512x256xbf16>
    %cst = arith.constant dense<0.000000e+00> : vector<162x256xf32>
    %2 = tpu.matmul %0, %1, %cst {dimension_numbers = #tpu.dot_dimension_numbers<[1], [0], [0], [1], [0, 0, 1, 1], [], []>} : vector<162x512xbf16>, vector<512x256xbf16>, vector<162x256xf32> -> vector<162x256xf32>
    %c0_3 = arith.constant 0 : index
    %c0_4 = arith.constant 0 : index
    %3 = vector.load %arg3[%c0_3, %c0_4] : memref<1x256xf32, #tpu.memory_space<vmem>>, vector<1x256xf32>
    %4 = vector.broadcast %3 : vector<1x256xf32> to vector<162x256xf32>
    %5 = arith.addf %2, %4 : vector<162x256xf32>
    %cst_5 = arith.constant 0.000000e+00 : f32
    %6 = vector.broadcast %cst_5 : f32 to vector<162x256xf32>
    %7 = arith.maximumf %5, %6 : vector<162x256xf32>
    %8 = arith.truncf %7 : vector<162x256xf32> to vector<162x256xbf16>
    %c0_6 = arith.constant 0 : index
    %c0_7 = arith.constant 0 : index
    %9 = vector.load %arg4[%c0_6, %c0_7] : memref<162x256xbf16, #tpu.memory_space<vmem>>, vector<162x256xbf16>
    tpu.vector_store %arg4[%c0_6, %c0_7], %8 {strides = array<i32>} : memref<162x256xbf16, #tpu.memory_space<vmem>>, vector<162x256xbf16>,
    return
  }
  func.func @transform_0(%arg0: i32) -> (i32, i32) {
    %c0_i32 = arith.constant 0 : i32
    %c0_i32_0 = arith.constant 0 : i32
    return %arg0, %c0_i32 : i32, i32
  }
  func.func @transform_1(%arg0: i32) -> (i32, i32) {
    %c0_i32 = arith.constant 0 : i32
    %c0_i32_0 = arith.constant 0 : i32
    %c0_i32_1 = arith.constant 0 : i32
    return %c0_i32, %c0_i32_0 : i32, i32
  }
  func.func @transform_2(%arg0: i32) -> (i32, i32) {
    %c0_i32 = arith.constant 0 : i32
    %c0_i32_0 = arith.constant 0 : i32
    %c0_i32_1 = arith.constant 0 : i32
    return %c0_i32, %c0_i32_0 : i32, i32
  }
  func.func @transform_3(%arg0: i32) -> (i32, i32) {
    %c0_i32 = arith.constant 0 : i32
    %c0_i32_0 = arith.constant 0 : i32
    return %arg0, %c0_i32 : i32, i32
  }
}

module attributes {stable_mosaic.version = 11 : i64} {
  func.func @_mm_bias_act_kernel(%arg0: i32, %arg1: memref<256x256xbf16, #tpu.memory_space<vmem>>, %arg2: memref<256x128xbf16, #tpu.memory_space<vmem>>, %arg3: memref<1x128xf32, #tpu.memory_space<vmem>>, %arg4: memref<256x128xbf16, #tpu.memory_space<vmem>>) attributes {dimension_semantics = [#tpu.dimension_semantics<parallel>], iteration_bounds = array<i64: 3>, scalar_prefetch = 0 : i64, scratch_operands = 0 : i64, tpu.core_type = #tpu.core_type<tc>, window_params = [{transform_indices = @transform_0, window_bounds = array<i64: 256, 256>}, {pipeline_mode = #tpu.pipeline_mode<synchronous>, transform_indices = @transform_1, window_bounds = array<i64: 256, 128>}, {pipeline_mode = #tpu.pipeline_mode<synchronous>, transform_indices = @transform_2, window_bounds = array<i64: 1, 128>}, {transform_indices = @transform_3, window_bounds = array<i64: 256, 128>}]} {
    %c0 = arith.constant 0 : index
    %c0_0 = arith.constant 0 : index
    %0 = vector.load %arg1[%c0, %c0_0] : memref<256x256xbf16, #tpu.memory_space<vmem>>, vector<256x256xbf16>
    %c0_1 = arith.constant 0 : index
    %c0_2 = arith.constant 0 : index
    %1 = vector.load %arg2[%c0_1, %c0_2] : memref<256x128xbf16, #tpu.memory_space<vmem>>, vector<256x128xbf16>
    %cst = arith.constant dense<0.000000e+00> : vector<256x128xf32>
    %2 = tpu.matmul %0, %1, %cst {dimension_numbers = #tpu.dot_dimension_numbers<[1], [0], [0], [1], [0, 0, 1, 1], [], []>} : vector<256x256xbf16>, vector<256x128xbf16>, vector<256x128xf32> -> vector<256x128xf32>
    %c0_3 = arith.constant 0 : index
    %c0_4 = arith.constant 0 : index
    %3 = vector.load %arg3[%c0_3, %c0_4] : memref<1x128xf32, #tpu.memory_space<vmem>>, vector<1x128xf32>
    %4 = vector.broadcast %3 : vector<1x128xf32> to vector<256x128xf32>
    %5 = arith.addf %2, %4 : vector<256x128xf32>
    %cst_5 = arith.constant 0.000000e+00 : f32
    %6 = vector.broadcast %cst_5 : f32 to vector<256x128xf32>
    %7 = arith.maximumf %5, %6 : vector<256x128xf32>
    %8 = arith.truncf %7 : vector<256x128xf32> to vector<256x128xbf16>
    %c0_6 = arith.constant 0 : index
    %c0_7 = arith.constant 0 : index
    %9 = vector.load %arg4[%c0_6, %c0_7] : memref<256x128xbf16, #tpu.memory_space<vmem>>, vector<256x128xbf16>
    tpu.vector_store %arg4[%c0_6, %c0_7], %8 {strides = array<i32>} : memref<256x128xbf16, #tpu.memory_space<vmem>>, vector<256x128xbf16>,
    return
  }
  func.func @transform_0(%arg0: i32) -> (i32, i32) {
    %c0_i32 = arith.constant 0 : i32
    %c0_i32_0 = arith.constant 0 : i32
    return %arg0, %c0_i32 : i32, i32
  }
  func.func @transform_1(%arg0: i32) -> (i32, i32) {
    %c0_i32 = arith.constant 0 : i32
    %c0_i32_0 = arith.constant 0 : i32
    %c0_i32_1 = arith.constant 0 : i32
    return %c0_i32, %c0_i32_0 : i32, i32
  }
  func.func @transform_2(%arg0: i32) -> (i32, i32) {
    %c0_i32 = arith.constant 0 : i32
    %c0_i32_0 = arith.constant 0 : i32
    %c0_i32_1 = arith.constant 0 : i32
    return %c0_i32, %c0_i32_0 : i32, i32
  }
  func.func @transform_3(%arg0: i32) -> (i32, i32) {
    %c0_i32 = arith.constant 0 : i32
    %c0_i32_0 = arith.constant 0 : i32
    return %arg0, %c0_i32 : i32, i32
  }
}

module attributes {stable_mosaic.version = 11 : i64} {
  func.func @_mm_bias_act_kernel(%arg0: i32, %arg1: memref<256x288xbf16, #tpu.memory_space<vmem>>, %arg2: memref<288x128xbf16, #tpu.memory_space<vmem>>, %arg3: memref<1x128xf32, #tpu.memory_space<vmem>>, %arg4: memref<256x1xf32, #tpu.memory_space<vmem>>) attributes {dimension_semantics = [#tpu.dimension_semantics<parallel>], iteration_bounds = array<i64: 8>, scalar_prefetch = 0 : i64, scratch_operands = 0 : i64, tpu.core_type = #tpu.core_type<tc>, window_params = [{transform_indices = @transform_0, window_bounds = array<i64: 256, 288>}, {pipeline_mode = #tpu.pipeline_mode<synchronous>, transform_indices = @transform_1, window_bounds = array<i64: 288, 128>}, {pipeline_mode = #tpu.pipeline_mode<synchronous>, transform_indices = @transform_2, window_bounds = array<i64: 1, 128>}, {transform_indices = @transform_3, window_bounds = array<i64: 256, 1>}]} {
    %c0 = arith.constant 0 : index
    %c0_0 = arith.constant 0 : index
    %0 = vector.load %arg1[%c0, %c0_0] : memref<256x288xbf16, #tpu.memory_space<vmem>>, vector<256x288xbf16>
    %c0_1 = arith.constant 0 : index
    %c0_2 = arith.constant 0 : index
    %1 = vector.load %arg2[%c0_1, %c0_2] : memref<288x128xbf16, #tpu.memory_space<vmem>>, vector<288x128xbf16>
    %cst = arith.constant dense<0.000000e+00> : vector<256x128xf32>
    %2 = tpu.matmul %0, %1, %cst {dimension_numbers = #tpu.dot_dimension_numbers<[1], [0], [0], [1], [0, 0, 1, 1], [], []>} : vector<256x288xbf16>, vector<288x128xbf16>, vector<256x128xf32> -> vector<256x128xf32>
    %c0_3 = arith.constant 0 : index
    %c0_4 = arith.constant 0 : index
    %3 = vector.load %arg3[%c0_3, %c0_4] : memref<1x128xf32, #tpu.memory_space<vmem>>, vector<1x128xf32>
    %4 = vector.broadcast %3 : vector<1x128xf32> to vector<256x128xf32>
    %5 = arith.addf %2, %4 : vector<256x128xf32>
    %cst_5 = arith.constant 0.000000e+00 : f32
    %6 = vector.broadcast %cst_5 : f32 to vector<256x128xf32>
    %7 = arith.subf %6, %5 : vector<256x128xf32>
    %8 = math.exp %7 : vector<256x128xf32>
    %cst_6 = arith.constant 1.000000e+00 : f32
    %9 = vector.broadcast %cst_6 : f32 to vector<256x128xf32>
    %10 = arith.addf %9, %8 : vector<256x128xf32>
    %cst_7 = arith.constant 1.000000e+00 : f32
    %11 = vector.broadcast %cst_7 : f32 to vector<256x128xf32>
    %12 = arith.divf %11, %10 : vector<256x128xf32>
    %13 = vector.extract_strided_slice %12 {offsets = [0, 0], sizes = [256, 1], strides = [1, 1]} : vector<256x128xf32> to vector<256x1xf32>
    %c0_8 = arith.constant 0 : index
    %c0_9 = arith.constant 0 : index
    %14 = vector.load %arg4[%c0_8, %c0_9] : memref<256x1xf32, #tpu.memory_space<vmem>>, vector<256x1xf32>
    tpu.vector_store %arg4[%c0_8, %c0_9], %13 {strides = array<i32>} : memref<256x1xf32, #tpu.memory_space<vmem>>, vector<256x1xf32>,
    return
  }
  func.func @transform_0(%arg0: i32) -> (i32, i32) {
    %c0_i32 = arith.constant 0 : i32
    %c0_i32_0 = arith.constant 0 : i32
    return %arg0, %c0_i32 : i32, i32
  }
  func.func @transform_1(%arg0: i32) -> (i32, i32) {
    %c0_i32 = arith.constant 0 : i32
    %c0_i32_0 = arith.constant 0 : i32
    %c0_i32_1 = arith.constant 0 : i32
    return %c0_i32, %c0_i32_0 : i32, i32
  }
  func.func @transform_2(%arg0: i32) -> (i32, i32) {
    %c0_i32 = arith.constant 0 : i32
    %c0_i32_0 = arith.constant 0 : i32
    %c0_i32_1 = arith.constant 0 : i32
    return %c0_i32, %c0_i32_0 : i32, i32
  }
  func.func @transform_3(%arg0: i32) -> (i32, i32) {
    %c0_i32 = arith.constant 0 : i32
    %c0_i32_0 = arith.constant 0 : i32
    return %arg0, %c0_i32 : i32, i32
  }
}

</mosaic_0001>

<llo_original>
// kernel: _lambda_.8
$region0: #{_lambda_.8}
  #allocation0 [shape = 'u32[]', space=smem, size = 0x4, offset = 0x4, fixed_abs, tag = 'smem constant byte address 0x4 - core index']
  #allocation1 [shape = 'u32[144,128]{1,0:T(1,128)}', space=vmem, size = 0x12000, scoped, tag = 'internal scratch']
  %s0 = inlined_call_operand.vmem [shape: bf16[512,9], index: 0, kind: input, shape index: {}]
  %s1 = inlined_call_operand.hbm [shape: bf16[9,128], index: 1, kind: input, shape index: {}]
  %s2 = inlined_call_operand.hbm [shape: f32[1,128], index: 2, kind: input, shape index: {}]
  %s3 = inlined_call_operand.vmem [shape: bf16[512,32], index: 3, kind: output, shape index: {}]
  %s4 = sld [smem:[#allocation0]]
  $region53: #{_lambda_.8} parent=0
    _
  %s6 = ssub.s32 1, %s4
  %s7 = scalar_select 0, %s6, %s4
  $region1: #{_lambda_.8} parent=0
    #allocation2 [shape = 'u8[4096]{0}', space=vmem, size = 0x1000, scoped, tag = 'input window, operand 1, single buffered']
    #allocation3 [shape = 's32[2]{0}', space=sflag, size = 0x8, scoped, tag = 'scoped memory for _lambda_.8']
    #allocation4 [shape = 'u8[512]{0}', space=vmem, size = 0x400, scoped, tag = 'input window, operand 2, single buffered']
    #allocation5 [shape = 's32[1]{0}', space=sflag, size = 0x4, scoped, tag = 'scoped memory for _lambda_.8']
    %8 = vsyncpa [#allocation3], 0
    %9 = vsyncpa [#allocation5], 0
    loop: start=0, step=1, limit=4
    $region2: #{_lambda_.8} parent=1 // loop_pre_header
      _
    $region3: #{_lambda_.8} parent=1 // loop_header
      %s11 = sphi 0, %s15
      %p12 = scmp.ge.s32.totalorder %s11, 4
      %s21 = sphi 0, %s23
      %s24 = sphi 0, %s21
      %s25 = sphi 0, %s24
      %s41 = sphi 0, %s25
      %s45 = sphi 0, %s45
      %s47 = sphi 0, %s45
      %s48 = sphi 0, %s47
      %s62 = sphi 0, %s48
      %s66 = sphi 0, %s66
      %s68 = sphi 0, %s66
      %s69 = sphi 0, %s68
      %s83 = sphi 0, %s69
      %s89 = sphi 0, %s91
      %s92 = sphi 0, %s89
      %s93 = sphi 0, %s92
      %s109 = sphi 0, %s93
    $region4: #{_lambda_.8} parent=1 // loop_header_branch
      %14 = sbr.rel (%p12) target = $region8
    $region5: #{_lambda_.8} parent=1 // loop_body
      %s16 = ssub.s32 %s11, 1
      %s17 = ssub.s32 %s11, 2
      %s18 = sadd.s32 %s11, 1
      %s19 = ssub.s32 %s11, %s18
      %p20 = scmp.eq.s32.totalorder %s19, 0
      %s22 = sadd.s32 %s21, 1
      %s23 = scalar_select %p20, %s21, %s22
      %p26 = pneg %p20
      %p27 = scmp.eq.s32.totalorder %s11, 1
      %p28 = por %p26, %p27
      %p29 = scmp.ne.s32.totalorder %s21, %s24
      %p30 = scmp.eq.s32.totalorder %s11, 0
      %p31 = por %p29, %p30
      %p32 = scmp.ne.s32.totalorder %s21, %s24
      %p33 = scmp.eq.s32.totalorder %s16, 1
      %p34 = por %p32, %p33
      %p35 = scmp.ne.s32.totalorder %s24, %s25
      %p36 = scmp.eq.s32.totalorder %s16, 0
      %p37 = por %p35, %p36
      %p38 = scmp.ne.s32.totalorder %s24, %s25
      %p39 = scmp.eq.s32.totalorder %s17, 1
      %p40 = por %p38, %p39
      %p42 = scmp.ne.s32.totalorder %s25, %s41
      %p43 = scmp.eq.s32.totalorder %s17, 0
      %p44 = por %p42, %p43
      %s46 = sadd.s32 %s45, 1
      %p49 = scmp.eq.s32.totalorder %s11, 1
      %p50 = scmp.ne.s32.totalorder %s45, %s47
      %p51 = scmp.eq.s32.totalorder %s11, 0
      %p52 = por %p50, %p51
      %p53 = scmp.ne.s32.totalorder %s45, %s47
      %p54 = scmp.eq.s32.totalorder %s16, 1
      %p55 = por %p53, %p54
      %p56 = scmp.ne.s32.totalorder %s47, %s48
      %p57 = scmp.eq.s32.totalorder %s16, 0
      %p58 = por %p56, %p57
      %p59 = scmp.ne.s32.totalorder %s47, %s48
      %p60 = scmp.eq.s32.totalorder %s17, 1
      %p61 = por %p59, %p60
      %p63 = scmp.ne.s32.totalorder %s48, %s62
      %p64 = scmp.eq.s32.totalorder %s17, 0
      %p65 = por %p63, %p64
      %s67 = sadd.s32 %s66, 1
      %p70 = scmp.eq.s32.totalorder %s11, 1
      %p71 = scmp.ne.s32.totalorder %s66, %s68
      %p72 = scmp.eq.s32.totalorder %s11, 0
      %p73 = por %p71, %p72
      %p74 = scmp.ne.s32.totalorder %s66, %s68
      %p75 = scmp.eq.s32.totalorder %s16, 1
      %p76 = por %p74, %p75
      %p77 = scmp.ne.s32.totalorder %s68, %s69
      %p78 = scmp.eq.s32.totalorder %s16, 0
      %p79 = por %p77, %p78
      %p80 = scmp.ne.s32.totalorder %s68, %s69
      %p81 = scmp.eq.s32.totalorder %s17, 1
      %p82 = por %p80, %p81
      %p84 = scmp.ne.s32.totalorder %s69, %s83
      %p85 = scmp.eq.s32.totalorder %s17, 0
      %p86 = por %p84, %p85
      %s87 = ssub.s32 %s11, %s18
      %p88 = scmp.eq.s32.totalorder %s87, 0
      %s90 = sadd.s32 %s89, 1
      %s91 = scalar_select %p88, %s89, %s90
      %p94 = pneg %p88
      %p95 = scmp.eq.s32.totalorder %s11, 1
      %p96 = por %p94, %p95
      %p97 = scmp.ne.s32.totalorder %s89, %s92
      %p98 = scmp.eq.s32.totalorder %s11, 0
      %p99 = por %p97, %p98
      %p100 = scmp.ne.s32.totalorder %s89, %s92
      %p101 = scmp.eq.s32.totalorder %s16, 1
      %p102 = por %p100, %p101
      %p103 = scmp.ne.s32.totalorder %s92, %s93
      %p104 = scmp.eq.s32.totalorder %s16, 0
      %p105 = por %p103, %p104
      %p106 = scmp.ne.s32.totalorder %s92, %s93
      %p107 = scmp.eq.s32.totalorder %s17, 1
      %p108 = por %p106, %p107
      %p110 = scmp.ne.s32.totalorder %s93, %s109
      %p111 = scmp.eq.s32.totalorder %s17, 0
      %p112 = por %p110, %p111
      %p113 = scmp.le.s32.totalorder 1, %s11
      %p114 = scmp.lt.s32.totalorder %s11, 3
      %p115 = pnand %p113, %p114
      %p116 = pneg %p115
      // Predicated region
      $region9: #{_lambda_.8} parent=5 // pred_check
        _
      $region10: #{_lambda_.8} parent=5 // pred_check_branch
        %118 = sbr.rel (%p115) target = $region12
      $region11: #{_lambda_.8} parent=5 // pred_region
        %s119 = ssub.s32 %s11, 1
        // Predicated region
        $region13: #{_lambda_.8} parent=11 // pred_check
          %p120 = pneg %p58
        $region14: #{_lambda_.8} parent=11 // pred_check_branch
          %122 = sbr.rel (%p120) target = $region16
        $region15: #{_lambda_.8} parent=11 // pred_region
          %s124 = ssub.s32 128, 128
          %125 = vsyncadd [#allocation3], %s124
          %s126 = sshll.u32 [#allocation2], 4
          %s127 = int_to_ptr.vmem [resolvable:$true] %s126
          %132 = dma.hbm_to_vmem [thread:$0]  %s1, 128, %s127, [#allocation3], 64, 64, 4
        $region16: #{_lambda_.8} parent=11 // pred_fallthru
          _
        // Predicated region
        $region17: #{_lambda_.8} parent=11 // pred_check
          %p133 = pneg %p79
        $region18: #{_lambda_.8} parent=11 // pred_check_branch
          %135 = sbr.rel (%p133) target = $region20
        $region19: #{_lambda_.8} parent=11 // pred_region
          %s137 = ssub.s32 16, 16
          %138 = vsyncadd [#allocation5], %s137
          %s140 = sshll.u32 [#allocation4], 4
          %s141 = int_to_ptr.vmem [resolvable:$true] %s140
          %143 = dma.hbm_to_vmem [thread:$0]  %s2, 16, %s141, [#allocation5]
        $region20: #{_lambda_.8} parent=11 // pred_fallthru
          _
      $region12: #{_lambda_.8} parent=5 // pred_fallthru
        _
      %p144 = scmp.lt.s32.totalorder %s11, 2
      // Predicated region
      $region21: #{_lambda_.8} parent=5 // pred_check
        %p145 = pneg %p144
      $region22: #{_lambda_.8} parent=5 // pred_check_branch
        %147 = sbr.rel (%p145) target = $region24
      $region23: #{_lambda_.8} parent=5 // pred_region
        // Predicated region
        $region25: #{_lambda_.8} parent=23 // pred_check
          %p148 = pneg %p31
        $region26: #{_lambda_.8} parent=23 // pred_check_branch
          %150 = sbr.rel (%p148) target = $region28
        $region27: #{_lambda_.8} parent=23 // pred_region
          %s151 = smul.u32 32, %s11
          %p152 = scmp.lt.s32.totalorder %s151, 63
          %s153 = scalar_select %p152, %s151, 63
          %s154 = smul.addr %s153, 4
          %s155 = scalar_lea.vmem %s0, %s154
          %s156 = smul.u32 32, %s11
        $region28: #{_lambda_.8} parent=23 // pred_fallthru
          _
      $region24: #{_lambda_.8} parent=5 // pred_fallthru
        _
      %p157 = scmp.le.s32.totalorder 1, %s11
      %p158 = scmp.lt.s32.totalorder %s11, 3
      %p159 = pnand %p157, %p158
      %p160 = pneg %p159
      // Predicated region
      $region29: #{_lambda_.8} parent=5 // pred_check
        _
      $region30: #{_lambda_.8} parent=5 // pred_check_branch
        %162 = sbr.rel (%p159) target = $region32
      $region31: #{_lambda_.8} parent=5 // pred_region
        %s163 = ssub.s32 %s11, 1
        // Predicated region
        $region33: #{_lambda_.8} parent=31 // pred_check
          %p164 = pneg %p58
        $region34: #{_lambda_.8} parent=31 // pred_check_branch
          %166 = sbr.rel (%p164) target = $region36
        $region35: #{_lambda_.8} parent=31 // pred_region
          %167 = dma.done [#allocation3], 128
        $region36: #{_lambda_.8} parent=31 // pred_fallthru
          _
        // Predicated region
        $region37: #{_lambda_.8} parent=31 // pred_check
          %p168 = pneg %p79
        $region38: #{_lambda_.8} parent=31 // pred_check_branch
          %170 = sbr.rel (%p168) target = $region40
        $region39: #{_lambda_.8} parent=31 // pred_region
          %171 = dma.done [#allocation5], 16
        $region40: #{_lambda_.8} parent=31 // pred_fallthru
          _
        %s172 = smul.u32 32, %s16
        %p173 = scmp.lt.s32.totalorder %s172, 63
        %s174 = scalar_select %p173, %s172, 63
        %s175 = smul.addr %s174, 4
        %s176 = scalar_lea.vmem %s0, %s175
        %p177 = pneg %p37
        %p178 = pneg %p34
        %p179 = pneg %p58
        %p180 = pneg %p55
        %p181 = pneg %p79
        %p182 = pneg %p76
        %p183 = pneg %p105
        %p184 = pneg %p102
        %s185 = smul.u32 32, %s16
        %p186 = scmp.lt.s32.totalorder %s185, 63
        %s187 = scalar_select %p186, %s185, 63
        %s188 = smul.addr %s187, 4
        %s189 = scalar_lea.vmem %s3, %s188
        %s190 = smul.u32 32, %s16
        %p191 = scmp.lt.s32.totalorder %s190, 63
        %s192 = scalar_select %p191, %s190, 63
        %s193 = smul.addr %s192, 4
        %s194 = scalar_lea.vmem %s0, %s193
        %s195 = smul.u32 32, %s16
        %s196 = smul.u32 32, %s16
        %p197 = scmp.lt.s32.totalorder %s196, 63
        %s198 = scalar_select %p197, %s196, 63
        %s199 = smul.addr %s198, 4
        %s200 = scalar_lea.vmem %s3, %s199
        %s201 = smul.u32 32, %s16
        %v203 = vld [vmem:[%s194] sm:$0xf]
        %v204 = vld [vmem:[%s194 + $0x4] sm:$0xf]
        %v205 = vld [vmem:[%s194 + $0x8] sm:$0xf]
        %v206 = vld [vmem:[%s194 + $0xc] sm:$0xf]
        %v207 = vld [vmem:[%s194 + $0x10] sm:$0xf]
        %v208 = vld [vmem:[%s194 + $0x14] sm:$0xf]
        %v209 = vld [vmem:[%s194 + $0x18] sm:$0xf]
        %v210 = vld [vmem:[%s194 + $0x1c] sm:$0xf]
        %v211 = vld [vmem:[%s194 + $0x20] sm:$0xf]
        %v212 = vld [vmem:[%s194 + $0x24] sm:$0xf]
        %v213 = vld [vmem:[%s194 + $0x28] sm:$0xf]
        %v214 = vld [vmem:[%s194 + $0x2c] sm:$0xf]
        %v215 = vld [vmem:[%s194 + $0x30] sm:$0xf]
        %v216 = vld [vmem:[%s194 + $0x34] sm:$0xf]
        %v217 = vld [vmem:[%s194 + $0x38] sm:$0xf]
        %v218 = vld [vmem:[%s194 + $0x3c] sm:$0xf]
        %v219 = vld [vmem:[%s194 + $0x40] sm:$0xf]
        %v220 = vld [vmem:[%s194 + $0x44] sm:$0xf]
        %v221 = vld [vmem:[%s194 + $0x48] sm:$0xf]
        %v222 = vld [vmem:[%s194 + $0x4c] sm:$0xf]
        %v223 = vld [vmem:[%s194 + $0x50] sm:$0xf]
        %v224 = vld [vmem:[%s194 + $0x54] sm:$0xf]
        %v225 = vld [vmem:[%s194 + $0x58] sm:$0xf]
        %v226 = vld [vmem:[%s194 + $0x5c] sm:$0xf]
        %v227 = vld [vmem:[%s194 + $0x60] sm:$0xf]
        %v228 = vld [vmem:[%s194 + $0x64] sm:$0xf]
        %v229 = vld [vmem:[%s194 + $0x68] sm:$0xf]
        %v230 = vld [vmem:[%s194 + $0x6c] sm:$0xf]
        %v231 = vld [vmem:[%s194 + $0x70] sm:$0xf]
        %v232 = vld [vmem:[%s194 + $0x74] sm:$0xf]
        %v233 = vld [vmem:[%s194 + $0x78] sm:$0xf]
        %v234 = vld [vmem:[%s194 + $0x7c] sm:$0xf]
        %v235 = vld [vmem:[#allocation2] sm:$0xf]
        %v236 = vld [vmem:[#allocation2 + $0x4] sm:$0x1]
        %v237 = vld [vmem:[#allocation4] sm:$0x1]
        %v239 = vlaneseq
        %v240 = vshrl.u32 %v239, 7
        %v241 = vsub.s32 0, %v240
        %v242 = vrot.slane %v237, %v241
        %v276 = vunpack.c.l.b16 %v203
        %v277 = vunpack.c.l.b16 %v204
        %v278 = vunpack.c.l.b16 %v205
        %v279 = vunpack.c.l.b16 %v206
        %v280 = vunpack.c.l.b16 %v207
        %v281 = vunpack.c.l.b16 %v208
        %v282 = vunpack.c.l.b16 %v209
        %v283 = vunpack.c.l.b16 %v210
        %v284 = vunpack.c.l.b16 %v211
        %v285 = vunpack.c.l.b16 %v212
        %v286 = vunpack.c.l.b16 %v213
        %v287 = vunpack.c.l.b16 %v214
        %v288 = vunpack.c.l.b16 %v215
        %v289 = vunpack.c.l.b16 %v216
        %v290 = vunpack.c.l.b16 %v217
        %v291 = vunpack.c.l.b16 %v218
        %v292 = vunpack.c.l.b16 %v219
        %v293 = vunpack.c.l.b16 %v220
        %v294 = vunpack.c.l.b16 %v221
        %v295 = vunpack.c.l.b16 %v222
        %v296 = vunpack.c.l.b16 %v223
        %v297 = vunpack.c.l.b16 %v224
        %v298 = vunpack.c.l.b16 %v225
        %v299 = vunpack.c.l.b16 %v226
        %v300 = vunpack.c.l.b16 %v227
        %v301 = vunpack.c.l.b16 %v228
        %v302 = vunpack.c.l.b16 %v229
        %v303 = vunpack.c.l.b16 %v230
        %v304 = vunpack.c.l.b16 %v231
        %v305 = vunpack.c.l.b16 %v232
        %v306 = vunpack.c.l.b16 %v233
        %v307 = vunpack.c.l.b16 %v234
        %v308 = vpack.c.b16 %v277, %v276
        %v309 = vpack.c.b16 %v279, %v278
        %v310 = vpack.c.b16 %v281, %v280
        %v311 = vpack.c.b16 %v283, %v282
        %v312 = vpack.c.b16 %v285, %v284
        %v313 = vpack.c.b16 %v287, %v286
        %v314 = vpack.c.b16 %v289, %v288
        %v315 = vpack.c.b16 %v291, %v290
        %v316 = vpack.c.b16 %v293, %v292
        %v317 = vpack.c.b16 %v295, %v294
        %v318 = vpack.c.b16 %v297, %v296
        %v319 = vpack.c.b16 %v299, %v298
        %v320 = vpack.c.b16 %v301, %v300
        %v321 = vpack.c.b16 %v303, %v302
        %v322 = vpack.c.b16 %v305, %v304
        %v323 = vpack.c.b16 %v307, %v306
        %v326 = vunpack.c.l.b16 %v235
        %v327 = vunpack.c.l.b16 %v236
        %v328 = vpack.c.b16 %v327, %v326
        %vm329 = vcmask 72704
        %v331 = vsel %vm329, %v308, 0
        %v334 = vsel %vm329, %v309, 0
        %v337 = vsel %vm329, %v310, 0
        %v340 = vsel %vm329, %v311, 0
        %v343 = vsel %vm329, %v312, 0
        %v346 = vsel %vm329, %v313, 0
        %v349 = vsel %vm329, %v314, 0
        %v352 = vsel %vm329, %v315, 0
        %v355 = vsel %vm329, %v316, 0
        %v358 = vsel %vm329, %v317, 0
        %v361 = vsel %vm329, %v318, 0
        %v364 = vsel %vm329, %v319, 0
        %v367 = vsel %vm329, %v320, 0
        %v370 = vsel %vm329, %v321, 0
        %v373 = vsel %vm329, %v322, 0
        %v376 = vsel %vm329, %v323, 0
        %vm378 = vcmask 1043456
        %vm379 = vcmask 1044480
        %v380 = vsel %vm378, 4294967295, 65535
        %v381 = vsel %vm379, %v380, 0
        %v383 = vand.u32 %v328, %v381
        %385 = vmatprep.subr.bf16.mxu0 0
        %386 = vmatpush1.bf16.msra.mxu0 0
        %387 = vmatprep.subr.bf16.mxu0 0
        %388 = vmatpush1.bf16.msra.mxu0 0
        %389 = vmatprep.subr.bf16.mxu0 0
        %390 = vmatpush1.bf16.msra.mxu0 0
        %391 = vmatprep.subr.bf16.mxu0 0
        %392 = vmatpush1.bf16.msra.mxu0 0
        %393 = vmatprep.subr.bf16.mxu0 0
        %394 = vmatpush1.bf16.msra.mxu0 0
        %395 = vmatprep.subr.bf16.mxu0 0
        %396 = vmatpush1.bf16.msra.mxu0 0
        %397 = vmatprep.subr.bf16.mxu0 0
        %398 = vmatpush1.bf16.msra.mxu0 0
        %399 = vmatprep.subr.bf16.mxu0 0
        %400 = vmatpush1.bf16.msra.mxu0 %v383
        %401 = vmatprep.subr.bf16.mxu0 0
        %402 = vmatpush2.bf16.msra.mxu0 0
        %403 = vmatprep.subr.bf16.mxu0 0
        %404 = vmatpush2.bf16.msra.mxu0 0
        %405 = vmatprep.subr.bf16.mxu0 0
        %406 = vmatpush2.bf16.msra.mxu0 0
        %407 = vmatprep.subr.bf16.mxu0 0
        %408 = vmatpush2.bf16.msra.mxu0 0
        %409 = vmatprep.subr.bf16.mxu0 0
        %410 = vmatpush2.bf16.msra.mxu0 0
        %411 = vmatprep.subr.bf16.mxu0 0
        %412 = vmatpush2.bf16.msra.mxu0 0
        %413 = vmatprep.subr.bf16.mxu0 0
        %414 = vmatpush2.bf16.msra.mxu0 0
        %415 = vmatprep.subr.bf16.mxu0 0
        %416 = vmatpush2.bf16.msra.mxu0 0
        %417 = vmatprep.mubr.bf16.mxu0 0
        %418 = vmatmul.mubr.bf16.gmra.mxu0 %v331
        %v419 = vpop.f32.mrf.mxu0
        %v420 = vadd.f32 %v242, %v419
        %v421 = vpop.f32.mrf.mxu0
        %v422 = vpop.f32.mrf.mxu0
        %v423 = vadd.f32 %v242, %v422
        %v424 = vpop.f32.mrf.mxu0
        %425 = vmatprep.mubr.bf16.mxu0 0
        %426 = vmatmul.mubr.bf16.gmra.mxu0 %v334
        %v427 = vpop.f32.mrf.mxu0
        %v428 = vadd.f32 %v242, %v427
        %v429 = vpop.f32.mrf.mxu0
        %v430 = vpop.f32.mrf.mxu0
        %v431 = vadd.f32 %v242, %v430
        %v432 = vpop.f32.mrf.mxu0
        %433 = vmatprep.mubr.bf16.mxu0 0
        %434 = vmatmul.mubr.bf16.gmra.mxu0 %v337
        %v435 = vpop.f32.mrf.mxu0
        %v436 = vadd.f32 %v242, %v435
        %v437 = vpop.f32.mrf.mxu0
        %v438 = vpop.f32.mrf.mxu0
        %v439 = vadd.f32 %v242, %v438
        %v440 = vpop.f32.mrf.mxu0
        %441 = vmatprep.mubr.bf16.mxu0 0
        %442 = vmatmul.mubr.bf16.gmra.mxu0 %v340
        %v443 = vpop.f32.mrf.mxu0
        %v444 = vadd.f32 %v242, %v443
        %v445 = vpop.f32.mrf.mxu0
        %v446 = vpop.f32.mrf.mxu0
        %v447 = vadd.f32 %v242, %v446
        %v448 = vpop.f32.mrf.mxu0
        %449 = vmatprep.mubr.bf16.mxu0 0
        %450 = vmatmul.mubr.bf16.gmra.mxu0 %v343
        %v451 = vpop.f32.mrf.mxu0
        %v452 = vadd.f32 %v242, %v451
        %v453 = vpop.f32.mrf.mxu0
        %v454 = vpop.f32.mrf.mxu0
        %v455 = vadd.f32 %v242, %v454
        %v456 = vpop.f32.mrf.mxu0
        %457 = vmatprep.mubr.bf16.mxu0 0
        %458 = vmatmul.mubr.bf16.gmra.mxu0 %v346
        %v459 = vpop.f32.mrf.mxu0
        %v460 = vadd.f32 %v242, %v459
        %v461 = vpop.f32.mrf.mxu0
        %v462 = vpop.f32.mrf.mxu0
        %v463 = vadd.f32 %v242, %v462
        %v464 = vpop.f32.mrf.mxu0
        %465 = vmatprep.mubr.bf16.mxu0 0
        %466 = vmatmul.mubr.bf16.gmra.mxu0 %v349
        %v467 = vpop.f32.mrf.mxu0
        %v468 = vadd.f32 %v242, %v467
        %v469 = vpop.f32.mrf.mxu0
        %v470 = vpop.f32.mrf.mxu0
        %v471 = vadd.f32 %v242, %v470
        %v472 = vpop.f32.mrf.mxu0
        %473 = vmatprep.mubr.bf16.mxu0 0
        %474 = vmatmul.mubr.bf16.gmra.mxu0 %v352
        %v475 = vpop.f32.mrf.mxu0
        %v476 = vadd.f32 %v242, %v475
        %v477 = vpop.f32.mrf.mxu0
        %v478 = vpop.f32.mrf.mxu0
        %v479 = vadd.f32 %v242, %v478
        %v480 = vpop.f32.mrf.mxu0
        %481 = vmatprep.mubr.bf16.mxu0 0
        %482 = vmatmul.mubr.bf16.gmra.mxu0 %v355
        %v483 = vpop.f32.mrf.mxu0
        %v484 = vadd.f32 %v242, %v483
        %v485 = vpop.f32.mrf.mxu0
        %v486 = vpop.f32.mrf.mxu0
        %v487 = vadd.f32 %v242, %v486
        %v488 = vpop.f32.mrf.mxu0
        %489 = vmatprep.mubr.bf16.mxu0 0
        %490 = vmatmul.mubr.bf16.gmra.mxu0 %v358
        %v491 = vpop.f32.mrf.mxu0
        %v492 = vadd.f32 %v242, %v491
        %v493 = vpop.f32.mrf.mxu0
        %v494 = vpop.f32.mrf.mxu0
        %v495 = vadd.f32 %v242, %v494
        %v496 = vpop.f32.mrf.mxu0
        %497 = vmatprep.mubr.bf16.mxu0 0
        %498 = vmatmul.mubr.bf16.gmra.mxu0 %v361
        %v499 = vpop.f32.mrf.mxu0
        %v500 = vadd.f32 %v242, %v499
        %v501 = vpop.f32.mrf.mxu0
        %v502 = vpop.f32.mrf.mxu0
        %v503 = vadd.f32 %v242, %v502
        %v504 = vpop.f32.mrf.mxu0
        %505 = vmatprep.mubr.bf16.mxu0 0
        %506 = vmatmul.mubr.bf16.gmra.mxu0 %v364
        %v507 = vpop.f32.mrf.mxu0
        %v508 = vadd.f32 %v242, %v507
        %v509 = vpop.f32.mrf.mxu0
        %v510 = vpop.f32.mrf.mxu0
        %v511 = vadd.f32 %v242, %v510
        %v512 = vpop.f32.mrf.mxu0
        %513 = vmatprep.mubr.bf16.mxu0 0
        %514 = vmatmul.mubr.bf16.gmra.mxu0 %v367
        %v515 = vpop.f32.mrf.mxu0
        %v516 = vadd.f32 %v242, %v515
        %v517 = vpop.f32.mrf.mxu0
        %v518 = vpop.f32.mrf.mxu0
        %v519 = vadd.f32 %v242, %v518
        %v520 = vpop.f32.mrf.mxu0
        %521 = vmatprep.mubr.bf16.mxu0 0
        %522 = vmatmul.mubr.bf16.gmra.mxu0 %v370
        %v523 = vpop.f32.mrf.mxu0
        %v524 = vadd.f32 %v242, %v523
        %v525 = vpop.f32.mrf.mxu0
        %v526 = vpop.f32.mrf.mxu0
        %v527 = vadd.f32 %v242, %v526
        %v528 = vpop.f32.mrf.mxu0
        %529 = vmatprep.mubr.bf16.mxu0 0
        %530 = vmatmul.mubr.bf16.gmra.mxu0 %v373
        %v531 = vpop.f32.mrf.mxu0
        %v532 = vadd.f32 %v242, %v531
        %v533 = vpop.f32.mrf.mxu0
        %v534 = vpop.f32.mrf.mxu0
        %v535 = vadd.f32 %v242, %v534
        %v536 = vpop.f32.mrf.mxu0
        %537 = vmatprep.mubr.bf16.mxu0 0
        %538 = vmatmul.mubr.bf16.gmra.mxu0 %v376
        %v539 = vpop.f32.mrf.mxu0
        %v540 = vadd.f32 %v242, %v539
        %v541 = vpop.f32.mrf.mxu0
        %v542 = vpop.f32.mrf.mxu0
        %v543 = vadd.f32 %v242, %v542
        %v544 = vpop.f32.mrf.mxu0
        %545 = vdwg.mxu0
        %v546 = vmax.f32 %v420, 0.0
        %v547 = vmax.f32 %v423, 0.0
        %v548 = vmax.f32 %v428, 0.0
        %v549 = vmax.f32 %v431, 0.0
        %v550 = vmax.f32 %v436, 0.0
        %v551 = vmax.f32 %v439, 0.0
        %v552 = vmax.f32 %v444, 0.0
        %v553 = vmax.f32 %v447, 0.0
        %v554 = vmax.f32 %v452, 0.0
        %v555 = vmax.f32 %v455, 0.0
        %v556 = vmax.f32 %v460, 0.0
        %v557 = vmax.f32 %v463, 0.0
        %v558 = vmax.f32 %v468, 0.0
        %v559 = vmax.f32 %v471, 0.0
        %v560 = vmax.f32 %v476, 0.0
        %v561 = vmax.f32 %v479, 0.0
        %v562 = vmax.f32 %v484, 0.0
        %v563 = vmax.f32 %v487, 0.0
        %v564 = vmax.f32 %v492, 0.0
        %v565 = vmax.f32 %v495, 0.0
        %v566 = vmax.f32 %v500, 0.0
        %v567 = vmax.f32 %v503, 0.0
        %v568 = vmax.f32 %v508, 0.0
        %v569 = vmax.f32 %v511, 0.0
        %v570 = vmax.f32 %v516, 0.0
        %v571 = vmax.f32 %v519, 0.0
        %v572 = vmax.f32 %v524, 0.0
        %v573 = vmax.f32 %v527, 0.0
        %v574 = vmax.f32 %v532, 0.0
        %v575 = vmax.f32 %v535, 0.0
        %v576 = vmax.f32 %v540, 0.0
        %v577 = vmax.f32 %v543, 0.0
        %v578 = vpack.c.bf16 %v547, %v546
        %v579 = vpack.c.bf16 %v549, %v548
        %v580 = vpack.c.bf16 %v551, %v550
        %v581 = vpack.c.bf16 %v553, %v552
        %v582 = vpack.c.bf16 %v555, %v554
        %v583 = vpack.c.bf16 %v557, %v556
        %v584 = vpack.c.bf16 %v559, %v558
        %v585 = vpack.c.bf16 %v561, %v560
        %v586 = vpack.c.bf16 %v563, %v562
        %v587 = vpack.c.bf16 %v565, %v564
        %v588 = vpack.c.bf16 %v567, %v566
        %v589 = vpack.c.bf16 %v569, %v568
        %v590 = vpack.c.bf16 %v571, %v570
        %v591 = vpack.c.bf16 %v573, %v572
        %v592 = vpack.c.bf16 %v575, %v574
        %v593 = vpack.c.bf16 %v577, %v576
        %v610 = vunpack.c.l.b16 %v578
        %v611 = vunpack.c.h.b16 %v578
        %v612 = vunpack.c.l.b16 %v579
        %v613 = vunpack.c.h.b16 %v579
        %v614 = vunpack.c.l.b16 %v580
        %v615 = vunpack.c.h.b16 %v580
        %v616 = vunpack.c.l.b16 %v581
        %v617 = vunpack.c.h.b16 %v581
        %v618 = vunpack.c.l.b16 %v582
        %v619 = vunpack.c.h.b16 %v582
        %v620 = vunpack.c.l.b16 %v583
        %v621 = vunpack.c.h.b16 %v583
        %v622 = vunpack.c.l.b16 %v584
        %v623 = vunpack.c.h.b16 %v584
        %v624 = vunpack.c.l.b16 %v585
        %v625 = vunpack.c.h.b16 %v585
        %v626 = vunpack.c.l.b16 %v586
        %v627 = vunpack.c.h.b16 %v586
        %v628 = vunpack.c.l.b16 %v587
        %v629 = vunpack.c.h.b16 %v587
        %v630 = vunpack.c.l.b16 %v588
        %v631 = vunpack.c.h.b16 %v588
        %v632 = vunpack.c.l.b16 %v589
        %v633 = vunpack.c.h.b16 %v589
        %v634 = vunpack.c.l.b16 %v590
        %v635 = vunpack.c.h.b16 %v590
        %v636 = vunpack.c.l.b16 %v591
        %v637 = vunpack.c.h.b16 %v591
        %v638 = vunpack.c.l.b16 %v592
        %v639 = vunpack.c.h.b16 %v592
        %v640 = vunpack.c.l.b16 %v593
        %v641 = vunpack.c.h.b16 %v593
        %v642 = vpack.c.b16 %v610, %v610
        %v643 = vpack.c.b16 %v611, %v611
        %v644 = vpack.c.b16 %v612, %v612
        %v645 = vpack.c.b16 %v613, %v613
        %v646 = vpack.c.b16 %v614, %v614
        %v647 = vpack.c.b16 %v615, %v615
        %v648 = vpack.c.b16 %v616, %v616
        %v649 = vpack.c.b16 %v617, %v617
        %v650 = vpack.c.b16 %v618, %v618
        %v651 = vpack.c.b16 %v619, %v619
        %v652 = vpack.c.b16 %v620, %v620
        %v653 = vpack.c.b16 %v621, %v621
        %v654 = vpack.c.b16 %v622, %v622
        %v655 = vpack.c.b16 %v623, %v623
        %v656 = vpack.c.b16 %v624, %v624
        %v657 = vpack.c.b16 %v625, %v625
        %v658 = vpack.c.b16 %v626, %v626
        %v659 = vpack.c.b16 %v627, %v627
        %v660 = vpack.c.b16 %v628, %v628
        %v661 = vpack.c.b16 %v629, %v629
        %v662 = vpack.c.b16 %v630, %v630
        %v663 = vpack.c.b16 %v631, %v631
        %v664 = vpack.c.b16 %v632, %v632
        %v665 = vpack.c.b16 %v633, %v633
        %v666 = vpack.c.b16 %v634, %v634
        %v667 = vpack.c.b16 %v635, %v635
        %v668 = vpack.c.b16 %v636, %v636
        %v669 = vpack.c.b16 %v637, %v637
        %v670 = vpack.c.b16 %v638, %v638
        %v671 = vpack.c.b16 %v639, %v639
        %v672 = vpack.c.b16 %v640, %v640
        %v673 = vpack.c.b16 %v641, %v641
        %vm706 = vcmask 257024
        %707 = vst.msk [vmem:[%s200] sm:$0xf] %vm706, %v642
        %708 = vst.msk [vmem:[%s200 + $0x4] sm:$0xf] %vm706, %v643
        %709 = vst.msk [vmem:[%s200 + $0x8] sm:$0xf] %vm706, %v644
        %710 = vst.msk [vmem:[%s200 + $0xc] sm:$0xf] %vm706, %v645
        %711 = vst.msk [vmem:[%s200 + $0x10] sm:$0xf] %vm706, %v646
        %712 = vst.msk [vmem:[%s200 + $0x14] sm:$0xf] %vm706, %v647
        %713 = vst.msk [vmem:[%s200 + $0x18] sm:$0xf] %vm706, %v648
        %714 = vst.msk [vmem:[%s200 + $0x1c] sm:$0xf] %vm706, %v649
        %715 = vst.msk [vmem:[%s200 + $0x20] sm:$0xf] %vm706, %v650
        %716 = vst.msk [vmem:[%s200 + $0x24] sm:$0xf] %vm706, %v651
        %717 = vst.msk [vmem:[%s200 + $0x28] sm:$0xf] %vm706, %v652
        %718 = vst.msk [vmem:[%s200 + $0x2c] sm:$0xf] %vm706, %v653
        %719 = vst.msk [vmem:[%s200 + $0x30] sm:$0xf] %vm706, %v654
        %720 = vst.msk [vmem:[%s200 + $0x34] sm:$0xf] %vm706, %v655
        %721 = vst.msk [vmem:[%s200 + $0x38] sm:$0xf] %vm706, %v656
        %722 = vst.msk [vmem:[%s200 + $0x3c] sm:$0xf] %vm706, %v657
        %723 = vst.msk [vmem:[%s200 + $0x40] sm:$0xf] %vm706, %v658
        %724 = vst.msk [vmem:[%s200 + $0x44] sm:$0xf] %vm706, %v659
        %725 = vst.msk [vmem:[%s200 + $0x48] sm:$0xf] %vm706, %v660
        %726 = vst.msk [vmem:[%s200 + $0x4c] sm:$0xf] %vm706, %v661
        %727 = vst.msk [vmem:[%s200 + $0x50] sm:$0xf] %vm706, %v662
        %728 = vst.msk [vmem:[%s200 + $0x54] sm:$0xf] %vm706, %v663
        %729 = vst.msk [vmem:[%s200 + $0x58] sm:$0xf] %vm706, %v664
        %730 = vst.msk [vmem:[%s200 + $0x5c] sm:$0xf] %vm706, %v665
        %731 = vst.msk [vmem:[%s200 + $0x60] sm:$0xf] %vm706, %v666
        %732 = vst.msk [vmem:[%s200 + $0x64] sm:$0xf] %vm706, %v667
        %733 = vst.msk [vmem:[%s200 + $0x68] sm:$0xf] %vm706, %v668
        %734 = vst.msk [vmem:[%s200 + $0x6c] sm:$0xf] %vm706, %v669
        %735 = vst.msk [vmem:[%s200 + $0x70] sm:$0xf] %vm706, %v670
        %736 = vst.msk [vmem:[%s200 + $0x74] sm:$0xf] %vm706, %v671
        %737 = vst.msk [vmem:[%s200 + $0x78] sm:$0xf] %vm706, %v672
        %738 = vst.msk [vmem:[%s200 + $0x7c] sm:$0xf] %vm706, %v673
        %s739 = smul.u32 32, %s16
        %p740 = scmp.lt.s32.totalorder %s739, 63
        %s741 = scalar_select %p740, %s739, 63
        %s742 = smul.addr %s741, 4
        %s743 = scalar_lea.vmem %s3, %s742
        // Predicated region
        $region41: #{_lambda_.8} parent=31 // pred_check
          %p744 = pneg %p102
        $region42: #{_lambda_.8} parent=31 // pred_check_branch
          %746 = sbr.rel (%p744) target = $region44
        $region43: #{_lambda_.8} parent=31 // pred_region
          %s747 = smul.u32 32, %s16
        $region44: #{_lambda_.8} parent=31 // pred_fallthru
          _
      $region32: #{_lambda_.8} parent=5 // pred_fallthru
        _
      %p748 = scmp.le.s32.totalorder 2, %s11
      // Predicated region
      $region45: #{_lambda_.8} parent=5 // pred_check
        %p749 = pneg %p748
      $region46: #{_lambda_.8} parent=5 // pred_check_branch
        %751 = sbr.rel (%p749) target = $region48
      $region47: #{_lambda_.8} parent=5 // pred_region
        %s752 = ssub.s32 %s11, 2
        // Predicated region
        $region49: #{_lambda_.8} parent=47 // pred_check
          %p753 = pneg %p108
        $region50: #{_lambda_.8} parent=47 // pred_check_branch
          %755 = sbr.rel (%p753) target = $region52
        $region51: #{_lambda_.8} parent=47 // pred_region
          %s756 = smul.u32 32, %s17
          %p757 = scmp.lt.s32.totalorder %s756, 63
          %s758 = scalar_select %p757, %s756, 63
          %s759 = smul.addr %s758, 4
          %s760 = scalar_lea.vmem %s3, %s759
        $region52: #{_lambda_.8} parent=47 // pred_fallthru
          _
      $region48: #{_lambda_.8} parent=5 // pred_fallthru
        _
    $region6: #{_lambda_.8} parent=1 // loop_footer
      %s15 = sadd.s32 1, %s11
    $region7: #{_lambda_.8} parent=1 // loop_footer_branch
      %10 = sbr.rel target = $region3
    $region8: #{_lambda_.8} parent=1 // loop_exit
      _
    %761 = vsyncpa [#allocation3], 1
    %s762 = scalar_lea.sflag [#allocation3], 1
    %763 = vsyncpa %s762, 1
    %764 = vsyncpa [#allocation5], 1

// kernel: _lambda_.9
$region0: #{_lambda_.9}
  #allocation0 [shape = 'u32[]', space=smem, size = 0x4, offset = 0x4, fixed_abs, tag = 'smem constant byte address 0x4 - core index']
  #allocation1 [shape = 'u32[144,128]{1,0:T(1,128)}', space=vmem, size = 0x12000, scoped, tag = 'internal scratch']
  %s0 = inlined_call_operand.vmem [shape: bf16[128,288], index: 0, kind: input, shape index: {}]
  %s1 = inlined_call_operand.hbm [shape: bf16[288,128], index: 1, kind: input, shape index: {}]
  %s2 = inlined_call_operand.hbm [shape: f32[1,128], index: 2, kind: input, shape index: {}]
  %s3 = inlined_call_operand.vmem [shape: bf16[128,64], index: 3, kind: output, shape index: {}]
  %s4 = sld [smem:[#allocation0]]
  $region30: #{_lambda_.9} parent=0
    _
  %s6 = ssub.s32 1, %s4
  %s7 = scalar_select 0, %s6, %s4
  $region1: #{_lambda_.9} parent=0
    #allocation2 [shape = 'u8[73728]{0}', space=vmem, size = 0x12000, scoped, tag = 'input window, operand 1, single buffered']
    #allocation3 [shape = 's32[1]{0}', space=sflag, size = 0x4, scoped, tag = 'scoped memory for _lambda_.9']
    #allocation4 [shape = 'u8[512]{0}', space=vmem, size = 0x400, scoped, tag = 'input window, operand 2, single buffered']
    #allocation5 [shape = 's32[1]{0}', space=sflag, size = 0x4, scoped, tag = 'scoped memory for _lambda_.9']
    %8 = vsyncpa [#allocation3], 0
    %9 = vsyncpa [#allocation5], 0
    // Predicated region
    $region2: #{_lambda_.9} parent=1 // pred_check
      _
    $region3: #{_lambda_.9} parent=1 // pred_check_branch
      %11 = sbr.rel (0) target = $region5
    $region4: #{_lambda_.9} parent=1 // pred_region
      _
    $region5: #{_lambda_.9} parent=1 // pred_fallthru
      _
    // Predicated region
    $region6: #{_lambda_.9} parent=1 // pred_check
      _
    $region7: #{_lambda_.9} parent=1 // pred_check_branch
      %13 = sbr.rel (0) target = $region9
    $region8: #{_lambda_.9} parent=1 // pred_region
      %s15 = ssub.s32 2304, 2304
      %16 = vsyncadd [#allocation3], %s15
      %s17 = sshll.u32 [#allocation2], 4
      %s18 = int_to_ptr.vmem [resolvable:$true] %s17
      %23 = dma.hbm_to_vmem [thread:$0]  %s1, 2304, %s18, [#allocation3], 64, 64, 4
    $region9: #{_lambda_.9} parent=1 // pred_fallthru
      _
    // Predicated region
    $region10: #{_lambda_.9} parent=1 // pred_check
      _
    $region11: #{_lambda_.9} parent=1 // pred_check_branch
      %25 = sbr.rel (0) target = $region13
    $region12: #{_lambda_.9} parent=1 // pred_region
      %s27 = ssub.s32 16, 16
      %28 = vsyncadd [#allocation5], %s27
      %s30 = sshll.u32 [#allocation4], 4
      %s31 = int_to_ptr.vmem [resolvable:$true] %s30
      %33 = dma.hbm_to_vmem [thread:$0]  %s2, 16, %s31, [#allocation5]
    $region13: #{_lambda_.9} parent=1 // pred_fallthru
      _
    // Predicated region
    $region14: #{_lambda_.9} parent=1 // pred_check
      _
    $region15: #{_lambda_.9} parent=1 // pred_check_branch
      %35 = sbr.rel (0) target = $region17
    $region16: #{_lambda_.9} parent=1 // pred_region
      %36 = dma.done [#allocation3], 2304
    $region17: #{_lambda_.9} parent=1 // pred_fallthru
      _
    // Predicated region
    $region18: #{_lambda_.9} parent=1 // pred_check
      _
    $region19: #{_lambda_.9} parent=1 // pred_check_branch
      %38 = sbr.rel (0) target = $region21
    $region20: #{_lambda_.9} parent=1 // pred_region
      %39 = dma.done [#allocation5], 16
    $region21: #{_lambda_.9} parent=1 // pred_fallthru
      _
    %v41 = vld [vmem:[%s0] sm:$0xff]
    %v42 = vld [vmem:[%s0 + $0x8] sm:$0xf]
    %v43 = vld [vmem:[%s0 + $0xc] sm:$0xff]
    %v44 = vld [vmem:[%s0 + $0x14] sm:$0xf]
    %v45 = vld [vmem:[%s0 + $0x18] sm:$0xff]
    %v46 = vld [vmem:[%s0 + $0x20] sm:$0xf]
    %v47 = vld [vmem:[%s0 + $0x24] sm:$0xff]
    %v48 = vld [vmem:[%s0 + $0x2c] sm:$0xf]
    %v49 = vld [vmem:[%s0 + $0x30] sm:$0xff]
    %v50 = vld [vmem:[%s0 + $0x38] sm:$0xf]
    %v51 = vld [vmem:[%s0 + $0x3c] sm:$0xff]
    %v52 = vld [vmem:[%s0 + $0x44] sm:$0xf]
    %v53 = vld [vmem:[%s0 + $0x48] sm:$0xff]
    %v54 = vld [vmem:[%s0 + $0x50] sm:$0xf]
    %v55 = vld [vmem:[%s0 + $0x54] sm:$0xff]
    %v56 = vld [vmem:[%s0 + $0x5c] sm:$0xf]
    %v57 = vld [vmem:[%s0 + $0x60] sm:$0xff]
    %v58 = vld [vmem:[%s0 + $0x68] sm:$0xf]
    %v59 = vld [vmem:[%s0 + $0x6c] sm:$0xff]
    %v60 = vld [vmem:[%s0 + $0x74] sm:$0xf]
    %v61 = vld [vmem:[%s0 + $0x78] sm:$0xff]
    %v62 = vld [vmem:[%s0 + $0x80] sm:$0xf]
    %v63 = vld [vmem:[%s0 + $0x84] sm:$0xff]
    %v64 = vld [vmem:[%s0 + $0x8c] sm:$0xf]
    %v65 = vld [vmem:[%s0 + $0x90] sm:$0xff]
    %v66 = vld [vmem:[%s0 + $0x98] sm:$0xf]
    %v67 = vld [vmem:[%s0 + $0x9c] sm:$0xff]
    %v68 = vld [vmem:[%s0 + $0xa4] sm:$0xf]
    %v69 = vld [vmem:[%s0 + $0xa8] sm:$0xff]
    %v70 = vld [vmem:[%s0 + $0xb0] sm:$0xf]
    %v71 = vld [vmem:[%s0 + $0xb4] sm:$0xff]
    %v72 = vld [vmem:[%s0 + $0xbc] sm:$0xf]
    %v73 = vld [vmem:[#allocation2] sm:$0xf]
    %v74 = vld [vmem:[#allocation2 + $0x4] sm:$0xf]
    %v75 = vld [vmem:[#allocation2 + $0x8] sm:$0xf]
    %v76 = vld [vmem:[#allocation2 + $0xc] sm:$0xf]
    %v77 = vld [vmem:[#allocation2 + $0x10] sm:$0xf]
    %v78 = vld [vmem:[#allocation2 + $0x14] sm:$0xf]
    %v79 = vld [vmem:[#allocation2 + $0x18] sm:$0xf]
    %v80 = vld [vmem:[#allocation2 + $0x1c] sm:$0xf]
    %v81 = vld [vmem:[#allocation2 + $0x20] sm:$0xf]
    %v82 = vld [vmem:[#allocation2 + $0x24] sm:$0xf]
    %v83 = vld [vmem:[#allocation2 + $0x28] sm:$0xf]
    %v84 = vld [vmem:[#allocation2 + $0x2c] sm:$0xf]
    %v85 = vld [vmem:[#allocation2 + $0x30] sm:$0xf]
    %v86 = vld [vmem:[#allocation2 + $0x34] sm:$0xf]
    %v87 = vld [vmem:[#allocation2 + $0x38] sm:$0xf]
    %v88 = vld [vmem:[#allocation2 + $0x3c] sm:$0xf]
    %v89 = vld [vmem:[#allocation2 + $0x40] sm:$0xf]
    %v90 = vld [vmem:[#allocation2 + $0x44] sm:$0xf]
    %v91 = vld [vmem:[#allocation2 + $0x48] sm:$0xf]
    %v92 = vld [vmem:[#allocation2 + $0x4c] sm:$0xf]
    %v93 = vld [vmem:[#allocation2 + $0x50] sm:$0xf]
    %v94 = vld [vmem:[#allocation2 + $0x54] sm:$0xf]
    %v95 = vld [vmem:[#allocation2 + $0x58] sm:$0xf]
    %v96 = vld [vmem:[#allocation2 + $0x5c] sm:$0xf]
    %v97 = vld [vmem:[#allocation2 + $0x60] sm:$0xf]
    %v98 = vld [vmem:[#allocation2 + $0x64] sm:$0xf]
    %v99 = vld [vmem:[#allocation2 + $0x68] sm:$0xf]
    %v100 = vld [vmem:[#allocation2 + $0x6c] sm:$0xf]
    %v101 = vld [vmem:[#allocation2 + $0x70] sm:$0xf]
    %v102 = vld [vmem:[#allocation2 + $0x74] sm:$0xf]
    %v103 = vld [vmem:[#allocation2 + $0x78] sm:$0xf]
    %v104 = vld [vmem:[#allocation2 + $0x7c] sm:$0xf]
    %v105 = vld [vmem:[#allocation2 + $0x80] sm:$0xf]
    %v106 = vld [vmem:[#allocation2 + $0x84] sm:$0xf]
    %v107 = vld [vmem:[#allocation2 + $0x88] sm:$0xf]
    %v108 = vld [vmem:[#allocation2 + $0x8c] sm:$0xf]
    %v109 = vld [vmem:[#allocation4] sm:$0x1]
    %v111 = vlaneseq
    %v112 = vshrl.u32 %v111, 7
    %v113 = vsub.s32 0, %v112
    %v114 = vrot.slane %v109, %v113
    %v148 = vunpack.c.l.b16 %v41
    %v149 = vunpack.c.h.b16 %v41
    %v150 = vunpack.c.l.b16 %v42
    %v151 = vunpack.c.l.b16 %v43
    %v152 = vunpack.c.h.b16 %v43
    %v153 = vunpack.c.l.b16 %v44
    %v154 = vunpack.c.l.b16 %v45
    %v155 = vunpack.c.h.b16 %v45
    %v156 = vunpack.c.l.b16 %v46
    %v157 = vunpack.c.l.b16 %v47
    %v158 = vunpack.c.h.b16 %v47
    %v159 = vunpack.c.l.b16 %v48
    %v160 = vunpack.c.l.b16 %v49
    %v161 = vunpack.c.h.b16 %v49
    %v162 = vunpack.c.l.b16 %v50
    %v163 = vunpack.c.l.b16 %v51
    %v164 = vunpack.c.h.b16 %v51
    %v165 = vunpack.c.l.b16 %v52
    %v166 = vunpack.c.l.b16 %v53
    %v167 = vunpack.c.h.b16 %v53
    %v168 = vunpack.c.l.b16 %v54
    %v169 = vunpack.c.l.b16 %v55
    %v170 = vunpack.c.h.b16 %v55
    %v171 = vunpack.c.l.b16 %v56
    %v172 = vunpack.c.l.b16 %v57
    %v173 = vunpack.c.h.b16 %v57
    %v174 = vunpack.c.l.b16 %v58
    %v175 = vunpack.c.l.b16 %v59
    %v176 = vunpack.c.h.b16 %v59
    %v177 = vunpack.c.l.b16 %v60
    %v178 = vunpack.c.l.b16 %v61
    %v179 = vunpack.c.h.b16 %v61
    %v180 = vunpack.c.l.b16 %v62
    %v181 = vunpack.c.l.b16 %v63
    %v182 = vunpack.c.h.b16 %v63
    %v183 = vunpack.c.l.b16 %v64
    %v184 = vunpack.c.l.b16 %v65
    %v185 = vunpack.c.h.b16 %v65
    %v186 = vunpack.c.l.b16 %v66
    %v187 = vunpack.c.l.b16 %v67
    %v188 = vunpack.c.h.b16 %v67
    %v189 = vunpack.c.l.b16 %v68
    %v190 = vunpack.c.l.b16 %v69
    %v191 = vunpack.c.h.b16 %v69
    %v192 = vunpack.c.l.b16 %v70
    %v193 = vunpack.c.l.b16 %v71
    %v194 = vunpack.c.h.b16 %v71
    %v195 = vunpack.c.l.b16 %v72
    %v196 = vpack.c.b16 %v151, %v148
    %v197 = vpack.c.b16 %v152, %v149
    %v198 = vpack.c.b16 %v153, %v150
    %v199 = vpack.c.b16 %v157, %v154
    %v200 = vpack.c.b16 %v158, %v155
    %v201 = vpack.c.b16 %v159, %v156
    %v202 = vpack.c.b16 %v163, %v160
    %v203 = vpack.c.b16 %v164, %v161
    %v204 = vpack.c.b16 %v165, %v162
    %v205 = vpack.c.b16 %v169, %v166
    %v206 = vpack.c.b16 %v170, %v167
    %v207 = vpack.c.b16 %v171, %v168
    %v208 = vpack.c.b16 %v175, %v172
    %v209 = vpack.c.b16 %v176, %v173
    %v210 = vpack.c.b16 %v177, %v174
    %v211 = vpack.c.b16 %v181, %v178
    %v212 = vpack.c.b16 %v182, %v179
    %v213 = vpack.c.b16 %v183, %v180
    %v214 = vpack.c.b16 %v187, %v184
    %v215 = vpack.c.b16 %v188, %v185
    %v216 = vpack.c.b16 %v189, %v186
    %v217 = vpack.c.b16 %v193, %v190
    %v218 = vpack.c.b16 %v194, %v191
    %v219 = vpack.c.b16 %v195, %v192
    %v272 = vunpack.c.l.b16 %v73
    %v273 = vunpack.c.l.b16 %v74
    %v274 = vunpack.c.l.b16 %v75
    %v275 = vunpack.c.l.b16 %v76
    %v276 = vunpack.c.l.b16 %v77
    %v277 = vunpack.c.l.b16 %v78
    %v278 = vunpack.c.l.b16 %v79
    %v279 = vunpack.c.l.b16 %v80
    %v280 = vunpack.c.l.b16 %v81
    %v281 = vunpack.c.l.b16 %v82
    %v282 = vunpack.c.l.b16 %v83
    %v283 = vunpack.c.l.b16 %v84
    %v284 = vunpack.c.l.b16 %v85
    %v285 = vunpack.c.l.b16 %v86
    %v286 = vunpack.c.l.b16 %v87
    %v287 = vunpack.c.l.b16 %v88
    %v288 = vunpack.c.l.b16 %v89
    %v289 = vunpack.c.l.b16 %v90
    %v290 = vunpack.c.l.b16 %v91
    %v291 = vunpack.c.l.b16 %v92
    %v292 = vunpack.c.l.b16 %v93
    %v293 = vunpack.c.l.b16 %v94
    %v294 = vunpack.c.l.b16 %v95
    %v295 = vunpack.c.l.b16 %v96
    %v296 = vunpack.c.l.b16 %v97
    %v297 = vunpack.c.l.b16 %v98
    %v298 = vunpack.c.l.b16 %v99
    %v299 = vunpack.c.l.b16 %v100
    %v300 = vunpack.c.l.b16 %v101
    %v301 = vunpack.c.l.b16 %v102
    %v302 = vunpack.c.l.b16 %v103
    %v303 = vunpack.c.l.b16 %v104
    %v304 = vunpack.c.l.b16 %v105
    %v305 = vunpack.c.l.b16 %v106
    %v306 = vunpack.c.l.b16 %v107
    %v307 = vunpack.c.l.b16 %v108
    %v308 = vpack.c.b16 %v273, %v272
    %v309 = vpack.c.b16 %v275, %v274
    %v310 = vpack.c.b16 %v277, %v276
    %v311 = vpack.c.b16 %v279, %v278
    %v312 = vpack.c.b16 %v281, %v280
    %v313 = vpack.c.b16 %v283, %v282
    %v314 = vpack.c.b16 %v285, %v284
    %v315 = vpack.c.b16 %v287, %v286
    %v316 = vpack.c.b16 %v289, %v288
    %v317 = vpack.c.b16 %v291, %v290
    %v318 = vpack.c.b16 %v293, %v292
    %v319 = vpack.c.b16 %v295, %v294
    %v320 = vpack.c.b16 %v297, %v296
    %v321 = vpack.c.b16 %v299, %v298
    %v322 = vpack.c.b16 %v301, %v300
    %v323 = vpack.c.b16 %v303, %v302
    %v324 = vpack.c.b16 %v305, %v304
    %v325 = vpack.c.b16 %v307, %v306
    %vm344 = vcmask 261120
    %v346 = vsel %vm344, %v198, 0
    %v349 = vsel %vm344, %v201, 0
    %v352 = vsel %vm344, %v204, 0
    %v355 = vsel %vm344, %v207, 0
    %v358 = vsel %vm344, %v210, 0
    %v361 = vsel %vm344, %v213, 0
    %v364 = vsel %vm344, %v216, 0
    %v367 = vsel %vm344, %v219, 0
    %369 = vmatprep.subr.bf16.mxu0 0
    %370 = vmatpush1.bf16.msra.mxu0 %v315
    %371 = vmatprep.subr.bf16.mxu0 0
    %372 = vmatpush1.bf16.msra.mxu0 %v314
    %373 = vmatprep.subr.bf16.mxu0 0
    %374 = vmatpush1.bf16.msra.mxu0 %v313
    %375 = vmatprep.subr.bf16.mxu0 0
    %376 = vmatpush1.bf16.msra.mxu0 %v312
    %377 = vmatprep.subr.bf16.mxu0 0
    %378 = vmatpush1.bf16.msra.mxu0 %v311
    %379 = vmatprep.subr.bf16.mxu0 0
    %380 = vmatpush1.bf16.msra.mxu0 %v310
    %381 = vmatprep.subr.bf16.mxu0 0
    %382 = vmatpush1.bf16.msra.mxu0 %v309
    %383 = vmatprep.subr.bf16.mxu0 0
    %384 = vmatpush1.bf16.msra.mxu0 %v308
    %385 = vmatprep.subr.bf16.mxu0 0
    %386 = vmatpush2.bf16.msra.mxu0 %v323
    %387 = vmatprep.subr.bf16.mxu0 0
    %388 = vmatpush2.bf16.msra.mxu0 %v322
    %389 = vmatprep.subr.bf16.mxu0 0
    %390 = vmatpush2.bf16.msra.mxu0 %v321
    %391 = vmatprep.subr.bf16.mxu0 0
    %392 = vmatpush2.bf16.msra.mxu0 %v320
    %393 = vmatprep.subr.bf16.mxu0 0
    %394 = vmatpush2.bf16.msra.mxu0 %v319
    %395 = vmatprep.subr.bf16.mxu0 0
    %396 = vmatpush2.bf16.msra.mxu0 %v318
    %397 = vmatprep.subr.bf16.mxu0 0
    %398 = vmatpush2.bf16.msra.mxu0 %v317
    %399 = vmatprep.subr.bf16.mxu0 0
    %400 = vmatpush2.bf16.msra.mxu0 %v316
    %401 = vmatprep.mubr.bf16.mxu0 %v197
    %402 = vmatmul.mubr.bf16.gmra.mxu0 %v196
    %v403 = vpop.f32.mrf.mxu0
    %v404 = vadd.f32 %v114, %v403
    %v405 = vpop.f32.mrf.mxu0
    %v406 = vpop.f32.mrf.mxu0
    %v407 = vadd.f32 %v114, %v406
    %v408 = vpop.f32.mrf.mxu0
    %409 = vmatprep.mubr.bf16.mxu0 %v200
    %410 = vmatmul.mubr.bf16.gmra.mxu0 %v199
    %v411 = vpop.f32.mrf.mxu0
    %v412 = vadd.f32 %v114, %v411
    %v413 = vpop.f32.mrf.mxu0
    %v414 = vpop.f32.mrf.mxu0
    %v415 = vadd.f32 %v114, %v414
    %v416 = vpop.f32.mrf.mxu0
    %417 = vmatprep.mubr.bf16.mxu0 %v203
    %418 = vmatmul.mubr.bf16.gmra.mxu0 %v202
    %v419 = vpop.f32.mrf.mxu0
    %v420 = vadd.f32 %v114, %v419
    %v421 = vpop.f32.mrf.mxu0
    %v422 = vpop.f32.mrf.mxu0
    %v423 = vadd.f32 %v114, %v422
    %v424 = vpop.f32.mrf.mxu0
    %425 = vmatprep.mubr.bf16.mxu0 %v206
    %426 = vmatmul.mubr.bf16.gmra.mxu0 %v205
    %v427 = vpop.f32.mrf.mxu0
    %v428 = vadd.f32 %v114, %v427
    %v429 = vpop.f32.mrf.mxu0
    %v430 = vpop.f32.mrf.mxu0
    %v431 = vadd.f32 %v114, %v430
    %v432 = vpop.f32.mrf.mxu0
    %433 = vmatprep.mubr.bf16.mxu0 %v209
    %434 = vmatmul.mubr.bf16.gmra.mxu0 %v208
    %v435 = vpop.f32.mrf.mxu0
    %v436 = vadd.f32 %v114, %v435
    %v437 = vpop.f32.mrf.mxu0
    %v438 = vpop.f32.mrf.mxu0
    %v439 = vadd.f32 %v114, %v438
    %v440 = vpop.f32.mrf.mxu0
    %441 = vmatprep.mubr.bf16.mxu0 %v212
    %442 = vmatmul.mubr.bf16.gmra.mxu0 %v211
    %v443 = vpop.f32.mrf.mxu0
    %v444 = vadd.f32 %v114, %v443
    %v445 = vpop.f32.mrf.mxu0
    %v446 = vpop.f32.mrf.mxu0
    %v447 = vadd.f32 %v114, %v446
    %v448 = vpop.f32.mrf.mxu0
    %449 = vmatprep.mubr.bf16.mxu0 %v215
    %450 = vmatmul.mubr.bf16.gmra.mxu0 %v214
    %v451 = vpop.f32.mrf.mxu0
    %v452 = vadd.f32 %v114, %v451
    %v453 = vpop.f32.mrf.mxu0
    %v454 = vpop.f32.mrf.mxu0
    %v455 = vadd.f32 %v114, %v454
    %v456 = vpop.f32.mrf.mxu0
    %457 = vmatprep.mubr.bf16.mxu0 %v218
    %458 = vmatmul.mubr.bf16.gmra.mxu0 %v217
    %v459 = vpop.f32.mrf.mxu0
    %v460 = vadd.f32 %v114, %v459
    %v461 = vpop.f32.mrf.mxu0
    %v462 = vpop.f32.mrf.mxu0
    %v463 = vadd.f32 %v114, %v462
    %v464 = vpop.f32.mrf.mxu0
    %465 = vdwg.mxu0
    %466 = vmatprep.subr.bf16.mxu0 0
    %467 = vmatpush1.bf16.msra.mxu0 0
    %468 = vmatprep.subr.bf16.mxu0 0
    %469 = vmatpush1.bf16.msra.mxu0 0
    %470 = vmatprep.subr.bf16.mxu0 0
    %471 = vmatpush1.bf16.msra.mxu0 0
    %472 = vmatprep.subr.bf16.mxu0 0
    %473 = vmatpush1.bf16.msra.mxu0 0
    %474 = vmatprep.subr.bf16.mxu0 0
    %475 = vmatpush1.bf16.msra.mxu0 0
    %476 = vmatprep.subr.bf16.mxu0 0
    %477 = vmatpush1.bf16.msra.mxu0 0
    %478 = vmatprep.subr.bf16.mxu0 0
    %479 = vmatpush1.bf16.msra.mxu0 %v325
    %480 = vmatprep.subr.bf16.mxu0 0
    %481 = vmatpush1.bf16.msra.mxu0 %v324
    %482 = vmatprep.subr.bf16.mxu0 0
    %483 = vmatpush2.bf16.msra.mxu0 0
    %484 = vmatprep.subr.bf16.mxu0 0
    %485 = vmatpush2.bf16.msra.mxu0 0
    %486 = vmatprep.subr.bf16.mxu0 0
    %487 = vmatpush2.bf16.msra.mxu0 0
    %488 = vmatprep.subr.bf16.mxu0 0
    %489 = vmatpush2.bf16.msra.mxu0 0
    %490 = vmatprep.subr.bf16.mxu0 0
    %491 = vmatpush2.bf16.msra.mxu0 0
    %492 = vmatprep.subr.bf16.mxu0 0
    %493 = vmatpush2.bf16.msra.mxu0 0
    %494 = vmatprep.subr.bf16.mxu0 0
    %495 = vmatpush2.bf16.msra.mxu0 0
    %496 = vmatprep.subr.bf16.mxu0 0
    %497 = vmatpush2.bf16.msra.mxu0 0
    %498 = vmatprep.mubr.bf16.mxu0 0
    %499 = vmatmul.mubr.bf16.gmra.mxu0 %v346
    %v500 = vpop.f32.mrf.mxu0
    %v501 = vadd.f32 %v404, %v500
    %v502 = vpop.f32.mrf.mxu0
    %v503 = vpop.f32.mrf.mxu0
    %v504 = vadd.f32 %v407, %v503
    %v505 = vpop.f32.mrf.mxu0
    %506 = vmatprep.mubr.bf16.mxu0 0
    %507 = vmatmul.mubr.bf16.gmra.mxu0 %v349
    %v508 = vpop.f32.mrf.mxu0
    %v509 = vadd.f32 %v412, %v508
    %v510 = vpop.f32.mrf.mxu0
    %v511 = vpop.f32.mrf.mxu0
    %v512 = vadd.f32 %v415, %v511
    %v513 = vpop.f32.mrf.mxu0
    %514 = vmatprep.mubr.bf16.mxu0 0
    %515 = vmatmul.mubr.bf16.gmra.mxu0 %v352
    %v516 = vpop.f32.mrf.mxu0
    %v517 = vadd.f32 %v420, %v516
    %v518 = vpop.f32.mrf.mxu0
    %v519 = vpop.f32.mrf.mxu0
    %v520 = vadd.f32 %v423, %v519
    %v521 = vpop.f32.mrf.mxu0
    %522 = vmatprep.mubr.bf16.mxu0 0
    %523 = vmatmul.mubr.bf16.gmra.mxu0 %v355
    %v524 = vpop.f32.mrf.mxu0
    %v525 = vadd.f32 %v428, %v524
    %v526 = vpop.f32.mrf.mxu0
    %v527 = vpop.f32.mrf.mxu0
    %v528 = vadd.f32 %v431, %v527
    %v529 = vpop.f32.mrf.mxu0
    %530 = vmatprep.mubr.bf16.mxu0 0
    %531 = vmatmul.mubr.bf16.gmra.mxu0 %v358
    %v532 = vpop.f32.mrf.mxu0
    %v533 = vadd.f32 %v436, %v532
    %v534 = vpop.f32.mrf.mxu0
    %v535 = vpop.f32.mrf.mxu0
    %v536 = vadd.f32 %v439, %v535
    %v537 = vpop.f32.mrf.mxu0
    %538 = vmatprep.mubr.bf16.mxu0 0
    %539 = vmatmul.mubr.bf16.gmra.mxu0 %v361
    %v540 = vpop.f32.mrf.mxu0
    %v541 = vadd.f32 %v444, %v540
    %v542 = vpop.f32.mrf.mxu0
    %v543 = vpop.f32.mrf.mxu0
    %v544 = vadd.f32 %v447, %v543
    %v545 = vpop.f32.mrf.mxu0
    %546 = vmatprep.mubr.bf16.mxu0 0
    %547 = vmatmul.mubr.bf16.gmra.mxu0 %v364
    %v548 = vpop.f32.mrf.mxu0
    %v549 = vadd.f32 %v452, %v548
    %v550 = vpop.f32.mrf.mxu0
    %v551 = vpop.f32.mrf.mxu0
    %v552 = vadd.f32 %v455, %v551
    %v553 = vpop.f32.mrf.mxu0
    %554 = vmatprep.mubr.bf16.mxu0 0
    %555 = vmatmul.mubr.bf16.gmra.mxu0 %v367
    %v556 = vpop.f32.mrf.mxu0
    %v557 = vadd.f32 %v460, %v556
    %v558 = vpop.f32.mrf.mxu0
    %v559 = vpop.f32.mrf.mxu0
    %v560 = vadd.f32 %v463, %v559
    %v561 = vpop.f32.mrf.mxu0
    %562 = vdwg.mxu0
    %v563 = vmax.f32 %v501, 0.0
    %v564 = vmax.f32 %v504, 0.0
    %v565 = vmax.f32 %v509, 0.0
    %v566 = vmax.f32 %v512, 0.0
    %v567 = vmax.f32 %v517, 0.0
    %v568 = vmax.f32 %v520, 0.0
    %v569 = vmax.f32 %v525, 0.0
    %v570 = vmax.f32 %v528, 0.0
    %v571 = vmax.f32 %v533, 0.0
    %v572 = vmax.f32 %v536, 0.0
    %v573 = vmax.f32 %v541, 0.0
    %v574 = vmax.f32 %v544, 0.0
    %v575 = vmax.f32 %v549, 0.0
    %v576 = vmax.f32 %v552, 0.0
    %v577 = vmax.f32 %v557, 0.0
    %v578 = vmax.f32 %v560, 0.0
    %v579 = vpack.c.bf16 %v564, %v563
    %v580 = vpack.c.bf16 %v566, %v565
    %v581 = vpack.c.bf16 %v568, %v567
    %v582 = vpack.c.bf16 %v570, %v569
    %v583 = vpack.c.bf16 %v572, %v571
    %v584 = vpack.c.bf16 %v574, %v573
    %v585 = vpack.c.bf16 %v576, %v575
    %v586 = vpack.c.bf16 %v578, %v577
    %v595 = vunpack.c.l.b16 %v579
    %v596 = vunpack.c.h.b16 %v579
    %v597 = vunpack.c.l.b16 %v580
    %v598 = vunpack.c.h.b16 %v580
    %v599 = vunpack.c.l.b16 %v581
    %v600 = vunpack.c.h.b16 %v581
    %v601 = vunpack.c.l.b16 %v582
    %v602 = vunpack.c.h.b16 %v582
    %v603 = vunpack.c.l.b16 %v583
    %v604 = vunpack.c.h.b16 %v583
    %v605 = vunpack.c.l.b16 %v584
    %v606 = vunpack.c.h.b16 %v584
    %v607 = vunpack.c.l.b16 %v585
    %v608 = vunpack.c.h.b16 %v585
    %v609 = vunpack.c.l.b16 %v586
    %v610 = vunpack.c.h.b16 %v586
    %v611 = vpack.c.b16 %v595, %v595
    %v612 = vpack.c.b16 %v596, %v596
    %v613 = vpack.c.b16 %v597, %v597
    %v614 = vpack.c.b16 %v598, %v598
    %v615 = vpack.c.b16 %v599, %v599
    %v616 = vpack.c.b16 %v600, %v600
    %v617 = vpack.c.b16 %v601, %v601
    %v618 = vpack.c.b16 %v602, %v602
    %v619 = vpack.c.b16 %v603, %v603
    %v620 = vpack.c.b16 %v604, %v604
    %v621 = vpack.c.b16 %v605, %v605
    %v622 = vpack.c.b16 %v606, %v606
    %v623 = vpack.c.b16 %v607, %v607
    %v624 = vpack.c.b16 %v608, %v608
    %v625 = vpack.c.b16 %v609, %v609
    %v626 = vpack.c.b16 %v610, %v610
    %vm643 = vcmask 519168
    %644 = vst.msk [vmem:[%s3] sm:$0xf] %vm643, %v611
    %645 = vst.msk [vmem:[%s3 + $0x4] sm:$0xf] %vm643, %v612
    %646 = vst.msk [vmem:[%s3 + $0x8] sm:$0xf] %vm643, %v613
    %647 = vst.msk [vmem:[%s3 + $0xc] sm:$0xf] %vm643, %v614
    %648 = vst.msk [vmem:[%s3 + $0x10] sm:$0xf] %vm643, %v615
    %649 = vst.msk [vmem:[%s3 + $0x14] sm:$0xf] %vm643, %v616
    %650 = vst.msk [vmem:[%s3 + $0x18] sm:$0xf] %vm643, %v617
    %651 = vst.msk [vmem:[%s3 + $0x1c] sm:$0xf] %vm643, %v618
    %652 = vst.msk [vmem:[%s3 + $0x20] sm:$0xf] %vm643, %v619
    %653 = vst.msk [vmem:[%s3 + $0x24] sm:$0xf] %vm643, %v620
    %654 = vst.msk [vmem:[%s3 + $0x28] sm:$0xf] %vm643, %v621
    %655 = vst.msk [vmem:[%s3 + $0x2c] sm:$0xf] %vm643, %v622
    %656 = vst.msk [vmem:[%s3 + $0x30] sm:$0xf] %vm643, %v623
    %657 = vst.msk [vmem:[%s3 + $0x34] sm:$0xf] %vm643, %v624
    %658 = vst.msk [vmem:[%s3 + $0x38] sm:$0xf] %vm643, %v625
    %659 = vst.msk [vmem:[%s3 + $0x3c] sm:$0xf] %vm643, %v626
    // Predicated region
    $region22: #{_lambda_.9} parent=1 // pred_check
      _
    $region23: #{_lambda_.9} parent=1 // pred_check_branch
      %661 = sbr.rel (0) target = $region25
    $region24: #{_lambda_.9} parent=1 // pred_region
      _
    $region25: #{_lambda_.9} parent=1 // pred_fallthru
      _
    // Predicated region
    $region26: #{_lambda_.9} parent=1 // pred_check
      _
    $region27: #{_lambda_.9} parent=1 // pred_check_branch
      %663 = sbr.rel (0) target = $region29
    $region28: #{_lambda_.9} parent=1 // pred_region
      _
    $region29: #{_lambda_.9} parent=1 // pred_fallthru
      _
    %664 = vsyncpa [#allocation3], 1
    %665 = vsyncpa [#allocation5], 1

// kernel: _lambda_.10
$region0: #{_lambda_.10}
  #allocation0 [shape = 'u32[]', space=smem, size = 0x4, offset = 0x4, fixed_abs, tag = 'smem constant byte address 0x4 - core index']
  #allocation1 [shape = 'u32[144,128]{1,0:T(1,128)}', space=vmem, size = 0x12000, scoped, tag = 'internal scratch']
  %s0 = inlined_call_operand.vmem [shape: bf16[32,576], index: 0, kind: input, shape index: {}]
  %s1 = inlined_call_operand.vmem [shape: bf16[576,128], index: 1, kind: input, shape index: {}]
  %s2 = inlined_call_operand.vmem [shape: f32[1,128], index: 2, kind: input, shape index: {}]
  %s3 = inlined_call_operand.vmem [shape: bf16[32,128], index: 3, kind: output, shape index: {}]
  %s4 = sld [smem:[#allocation0]]
  $region22: #{_lambda_.10} parent=0
    _
  %s6 = ssub.s32 1, %s4
  %s7 = scalar_select 0, %s6, %s4
  // Predicated region
  $region2: #{_lambda_.10} parent=0 // pred_check
    _
  $region3: #{_lambda_.10} parent=0 // pred_check_branch
    %9 = sbr.rel (0) target = $region5
  $region4: #{_lambda_.10} parent=0 // pred_region
    _
  $region5: #{_lambda_.10} parent=0 // pred_fallthru
    _
  // Predicated region
  $region6: #{_lambda_.10} parent=0 // pred_check
    _
  $region7: #{_lambda_.10} parent=0 // pred_check_branch
    %11 = sbr.rel (0) target = $region9
  $region8: #{_lambda_.10} parent=0 // pred_region
    _
  $region9: #{_lambda_.10} parent=0 // pred_fallthru
    _
  // Predicated region
  $region10: #{_lambda_.10} parent=0 // pred_check
    _
  $region11: #{_lambda_.10} parent=0 // pred_check_branch
    %13 = sbr.rel (0) target = $region13
  $region12: #{_lambda_.10} parent=0 // pred_region
    _
  $region13: #{_lambda_.10} parent=0 // pred_fallthru
    _
  %v15 = vld [vmem:[%s0] sm:$0xff]
  %v16 = vld [vmem:[%s0 + $0x8] sm:$0xff]
  %v17 = vld [vmem:[%s0 + $0x10] sm:$0xf]
  %v18 = vld [vmem:[%s0 + $0x14] sm:$0xff]
  %v19 = vld [vmem:[%s0 + $0x1c] sm:$0xff]
  %v20 = vld [vmem:[%s0 + $0x24] sm:$0xf]
  %v21 = vld [vmem:[%s0 + $0x28] sm:$0xff]
  %v22 = vld [vmem:[%s0 + $0x30] sm:$0xff]
  %v23 = vld [vmem:[%s0 + $0x38] sm:$0xf]
  %v24 = vld [vmem:[%s0 + $0x3c] sm:$0xff]
  %v25 = vld [vmem:[%s0 + $0x44] sm:$0xff]
  %v26 = vld [vmem:[%s0 + $0x4c] sm:$0xf]
  %v27 = vld [vmem:[%s1] sm:$0xf]
  %v28 = vld [vmem:[%s1 + $0x4] sm:$0xf]
  %v29 = vld [vmem:[%s1 + $0x8] sm:$0xf]
  %v30 = vld [vmem:[%s1 + $0xc] sm:$0xf]
  %v31 = vld [vmem:[%s1 + $0x10] sm:$0xf]
  %v32 = vld [vmem:[%s1 + $0x14] sm:$0xf]
  %v33 = vld [vmem:[%s1 + $0x18] sm:$0xf]
  %v34 = vld [vmem:[%s1 + $0x1c] sm:$0xf]
  %v35 = vld [vmem:[%s1 + $0x20] sm:$0xf]
  %v36 = vld [vmem:[%s1 + $0x24] sm:$0xf]
  %v37 = vld [vmem:[%s1 + $0x28] sm:$0xf]
  %v38 = vld [vmem:[%s1 + $0x2c] sm:$0xf]
  %v39 = vld [vmem:[%s1 + $0x30] sm:$0xf]
  %v40 = vld [vmem:[%s1 + $0x34] sm:$0xf]
  %v41 = vld [vmem:[%s1 + $0x38] sm:$0xf]
  %v42 = vld [vmem:[%s1 + $0x3c] sm:$0xf]
  %v43 = vld [vmem:[%s1 + $0x40] sm:$0xf]
  %v44 = vld [vmem:[%s1 + $0x44] sm:$0xf]
  %v45 = vld [vmem:[%s1 + $0x48] sm:$0xf]
  %v46 = vld [vmem:[%s1 + $0x4c] sm:$0xf]
  %v47 = vld [vmem:[%s1 + $0x50] sm:$0xf]
  %v48 = vld [vmem:[%s1 + $0x54] sm:$0xf]
  %v49 = vld [vmem:[%s1 + $0x58] sm:$0xf]
  %v50 = vld [vmem:[%s1 + $0x5c] sm:$0xf]
  %v51 = vld [vmem:[%s1 + $0x60] sm:$0xf]
  %v52 = vld [vmem:[%s1 + $0x64] sm:$0xf]
  %v53 = vld [vmem:[%s1 + $0x68] sm:$0xf]
  %v54 = vld [vmem:[%s1 + $0x6c] sm:$0xf]
  %v55 = vld [vmem:[%s1 + $0x70] sm:$0xf]
  %v56 = vld [vmem:[%s1 + $0x74] sm:$0xf]
  %v57 = vld [vmem:[%s1 + $0x78] sm:$0xf]
  %v58 = vld [vmem:[%s1 + $0x7c] sm:$0xf]
  %v59 = vld [vmem:[%s1 + $0x80] sm:$0xf]
  %v60 = vld [vmem:[%s1 + $0x84] sm:$0xf]
  %v61 = vld [vmem:[%s1 + $0x88] sm:$0xf]
  %v62 = vld [vmem:[%s1 + $0x8c] sm:$0xf]
  %v63 = vld [vmem:[%s1 + $0x90] sm:$0xf]
  %v64 = vld [vmem:[%s1 + $0x94] sm:$0xf]
  %v65 = vld [vmem:[%s1 + $0x98] sm:$0xf]
  %v66 = vld [vmem:[%s1 + $0x9c] sm:$0xf]
  %v67 = vld [vmem:[%s1 + $0xa0] sm:$0xf]
  %v68 = vld [vmem:[%s1 + $0xa4] sm:$0xf]
  %v69 = vld [vmem:[%s1 + $0xa8] sm:$0xf]
  %v70 = vld [vmem:[%s1 + $0xac] sm:$0xf]
  %v71 = vld [vmem:[%s1 + $0xb0] sm:$0xf]
  %v72 = vld [vmem:[%s1 + $0xb4] sm:$0xf]
  %v73 = vld [vmem:[%s1 + $0xb8] sm:$0xf]
  %v74 = vld [vmem:[%s1 + $0xbc] sm:$0xf]
  %v75 = vld [vmem:[%s1 + $0xc0] sm:$0xf]
  %v76 = vld [vmem:[%s1 + $0xc4] sm:$0xf]
  %v77 = vld [vmem:[%s1 + $0xc8] sm:$0xf]
  %v78 = vld [vmem:[%s1 + $0xcc] sm:$0xf]
  %v79 = vld [vmem:[%s1 + $0xd0] sm:$0xf]
  %v80 = vld [vmem:[%s1 + $0xd4] sm:$0xf]
  %v81 = vld [vmem:[%s1 + $0xd8] sm:$0xf]
  %v82 = vld [vmem:[%s1 + $0xdc] sm:$0xf]
  %v83 = vld [vmem:[%s1 + $0xe0] sm:$0xf]
  %v84 = vld [vmem:[%s1 + $0xe4] sm:$0xf]
  %v85 = vld [vmem:[%s1 + $0xe8] sm:$0xf]
  %v86 = vld [vmem:[%s1 + $0xec] sm:$0xf]
  %v87 = vld [vmem:[%s1 + $0xf0] sm:$0xf]
  %v88 = vld [vmem:[%s1 + $0xf4] sm:$0xf]
  %v89 = vld [vmem:[%s1 + $0xf8] sm:$0xf]
  %v90 = vld [vmem:[%s1 + $0xfc] sm:$0xf]
  %v91 = vld [vmem:[%s1 + $0x100] sm:$0xf]
  %v92 = vld [vmem:[%s1 + $0x104] sm:$0xf]
  %v93 = vld [vmem:[%s1 + $0x108] sm:$0xf]
  %v94 = vld [vmem:[%s1 + $0x10c] sm:$0xf]
  %v95 = vld [vmem:[%s1 + $0x110] sm:$0xf]
  %v96 = vld [vmem:[%s1 + $0x114] sm:$0xf]
  %v97 = vld [vmem:[%s1 + $0x118] sm:$0xf]
  %v98 = vld [vmem:[%s1 + $0x11c] sm:$0xf]
  %v99 = vld [vmem:[%s2] sm:$0x1]
  %v101 = vlaneseq
  %v102 = vshrl.u32 %v101, 7
  %v103 = vsub.s32 0, %v102
  %v104 = vrot.slane %v99, %v103
  %v118 = vunpack.c.l.b16 %v15
  %v119 = vunpack.c.h.b16 %v15
  %v120 = vunpack.c.l.b16 %v16
  %v121 = vunpack.c.h.b16 %v16
  %v122 = vunpack.c.l.b16 %v17
  %v123 = vunpack.c.l.b16 %v18
  %v124 = vunpack.c.h.b16 %v18
  %v125 = vunpack.c.l.b16 %v19
  %v126 = vunpack.c.h.b16 %v19
  %v127 = vunpack.c.l.b16 %v20
  %v128 = vunpack.c.l.b16 %v21
  %v129 = vunpack.c.h.b16 %v21
  %v130 = vunpack.c.l.b16 %v22
  %v131 = vunpack.c.h.b16 %v22
  %v132 = vunpack.c.l.b16 %v23
  %v133 = vunpack.c.l.b16 %v24
  %v134 = vunpack.c.h.b16 %v24
  %v135 = vunpack.c.l.b16 %v25
  %v136 = vunpack.c.h.b16 %v25
  %v137 = vunpack.c.l.b16 %v26
  %v138 = vpack.c.b16 %v123, %v118
  %v139 = vpack.c.b16 %v124, %v119
  %v140 = vpack.c.b16 %v125, %v120
  %v141 = vpack.c.b16 %v126, %v121
  %v142 = vpack.c.b16 %v127, %v122
  %v143 = vpack.c.b16 %v133, %v128
  %v144 = vpack.c.b16 %v134, %v129
  %v145 = vpack.c.b16 %v135, %v130
  %v146 = vpack.c.b16 %v136, %v131
  %v147 = vpack.c.b16 %v137, %v132
  %v228 = vunpack.c.l.b16 %v27
  %v229 = vunpack.c.l.b16 %v28
  %v230 = vunpack.c.l.b16 %v29
  %v231 = vunpack.c.l.b16 %v30
  %v232 = vunpack.c.l.b16 %v31
  %v233 = vunpack.c.l.b16 %v32
  %v234 = vunpack.c.l.b16 %v33
  %v235 = vunpack.c.l.b16 %v34
  %v236 = vunpack.c.l.b16 %v35
  %v237 = vunpack.c.l.b16 %v36
  %v238 = vunpack.c.l.b16 %v37
  %v239 = vunpack.c.l.b16 %v38
  %v240 = vunpack.c.l.b16 %v39
  %v241 = vunpack.c.l.b16 %v40
  %v242 = vunpack.c.l.b16 %v41
  %v243 = vunpack.c.l.b16 %v42
  %v244 = vunpack.c.l.b16 %v43
  %v245 = vunpack.c.l.b16 %v44
  %v246 = vunpack.c.l.b16 %v45
  %v247 = vunpack.c.l.b16 %v46
  %v248 = vunpack.c.l.b16 %v47
  %v249 = vunpack.c.l.b16 %v48
  %v250 = vunpack.c.l.b16 %v49
  %v251 = vunpack.c.l.b16 %v50
  %v252 = vunpack.c.l.b16 %v51
  %v253 = vunpack.c.l.b16 %v52
  %v254 = vunpack.c.l.b16 %v53
  %v255 = vunpack.c.l.b16 %v54
  %v256 = vunpack.c.l.b16 %v55
  %v257 = vunpack.c.l.b16 %v56
  %v258 = vunpack.c.l.b16 %v57
  %v259 = vunpack.c.l.b16 %v58
  %v260 = vunpack.c.l.b16 %v59
  %v261 = vunpack.c.l.b16 %v60
  %v262 = vunpack.c.l.b16 %v61
  %v263 = vunpack.c.l.b16 %v62
  %v264 = vunpack.c.l.b16 %v63
  %v265 = vunpack.c.l.b16 %v64
  %v266 = vunpack.c.l.b16 %v65
  %v267 = vunpack.c.l.b16 %v66
  %v268 = vunpack.c.l.b16 %v67
  %v269 = vunpack.c.l.b16 %v68
  %v270 = vunpack.c.l.b16 %v69
  %v271 = vunpack.c.l.b16 %v70
  %v272 = vunpack.c.l.b16 %v71
  %v273 = vunpack.c.l.b16 %v72
  %v274 = vunpack.c.l.b16 %v73
  %v275 = vunpack.c.l.b16 %v74
  %v276 = vunpack.c.l.b16 %v75
  %v277 = vunpack.c.l.b16 %v76
  %v278 = vunpack.c.l.b16 %v77
  %v279 = vunpack.c.l.b16 %v78
  %v280 = vunpack.c.l.b16 %v79
  %v281 = vunpack.c.l.b16 %v80
  %v282 = vunpack.c.l.b16 %v81
  %v283 = vunpack.c.l.b16 %v82
  %v284 = vunpack.c.l.b16 %v83
  %v285 = vunpack.c.l.b16 %v84
  %v286 = vunpack.c.l.b16 %v85
  %v287 = vunpack.c.l.b16 %v86
  %v288 = vunpack.c.l.b16 %v87
  %v289 = vunpack.c.l.b16 %v88
  %v290 = vunpack.c.l.b16 %v89
  %v291 = vunpack.c.l.b16 %v90
  %v292 = vunpack.c.l.b16 %v91
  %v293 = vunpack.c.l.b16 %v92
  %v294 = vunpack.c.l.b16 %v93
  %v295 = vunpack.c.l.b16 %v94
  %v296 = vunpack.c.l.b16 %v95
  %v297 = vunpack.c.l.b16 %v96
  %v298 = vunpack.c.l.b16 %v97
  %v299 = vunpack.c.l.b16 %v98
  %v300 = vpack.c.b16 %v229, %v228
  %v301 = vpack.c.b16 %v231, %v230
  %v302 = vpack.c.b16 %v233, %v232
  %v303 = vpack.c.b16 %v235, %v234
  %v304 = vpack.c.b16 %v237, %v236
  %v305 = vpack.c.b16 %v239, %v238
  %v306 = vpack.c.b16 %v241, %v240
  %v307 = vpack.c.b16 %v243, %v242
  %v308 = vpack.c.b16 %v245, %v244
  %v309 = vpack.c.b16 %v247, %v246
  %v310 = vpack.c.b16 %v249, %v248
  %v311 = vpack.c.b16 %v251, %v250
  %v312 = vpack.c.b16 %v253, %v252
  %v313 = vpack.c.b16 %v255, %v254
  %v314 = vpack.c.b16 %v257, %v256
  %v315 = vpack.c.b16 %v259, %v258
  %v316 = vpack.c.b16 %v261, %v260
  %v317 = vpack.c.b16 %v263, %v262
  %v318 = vpack.c.b16 %v265, %v264
  %v319 = vpack.c.b16 %v267, %v266
  %v320 = vpack.c.b16 %v269, %v268
  %v321 = vpack.c.b16 %v271, %v270
  %v322 = vpack.c.b16 %v273, %v272
  %v323 = vpack.c.b16 %v275, %v274
  %v324 = vpack.c.b16 %v277, %v276
  %v325 = vpack.c.b16 %v279, %v278
  %v326 = vpack.c.b16 %v281, %v280
  %v327 = vpack.c.b16 %v283, %v282
  %v328 = vpack.c.b16 %v285, %v284
  %v329 = vpack.c.b16 %v287, %v286
  %v330 = vpack.c.b16 %v289, %v288
  %v331 = vpack.c.b16 %v291, %v290
  %v332 = vpack.c.b16 %v293, %v292
  %v333 = vpack.c.b16 %v295, %v294
  %v334 = vpack.c.b16 %v297, %v296
  %v335 = vpack.c.b16 %v299, %v298
  %vm372 = vcmask 523264
  %v374 = vsel %vm372, %v142, 0
  %v377 = vsel %vm372, %v147, 0
  %379 = vmatprep.subr.bf16.mxu0 0
  %380 = vmatpush1.bf16.msra.mxu0 %v307
  %381 = vmatprep.subr.bf16.mxu0 0
  %382 = vmatpush1.bf16.msra.mxu0 %v306
  %383 = vmatprep.subr.bf16.mxu0 0
  %384 = vmatpush1.bf16.msra.mxu0 %v305
  %385 = vmatprep.subr.bf16.mxu0 0
  %386 = vmatpush1.bf16.msra.mxu0 %v304
  %387 = vmatprep.subr.bf16.mxu0 0
  %388 = vmatpush1.bf16.msra.mxu0 %v303
  %389 = vmatprep.subr.bf16.mxu0 0
  %390 = vmatpush1.bf16.msra.mxu0 %v302
  %391 = vmatprep.subr.bf16.mxu0 0
  %392 = vmatpush1.bf16.msra.mxu0 %v301
  %393 = vmatprep.subr.bf16.mxu0 0
  %394 = vmatpush1.bf16.msra.mxu0 %v300
  %395 = vmatprep.subr.bf16.mxu0 0
  %396 = vmatpush2.bf16.msra.mxu0 %v315
  %397 = vmatprep.subr.bf16.mxu0 0
  %398 = vmatpush2.bf16.msra.mxu0 %v314
  %399 = vmatprep.subr.bf16.mxu0 0
  %400 = vmatpush2.bf16.msra.mxu0 %v313
  %401 = vmatprep.subr.bf16.mxu0 0
  %402 = vmatpush2.bf16.msra.mxu0 %v312
  %403 = vmatprep.subr.bf16.mxu0 0
  %404 = vmatpush2.bf16.msra.mxu0 %v311
  %405 = vmatprep.subr.bf16.mxu0 0
  %406 = vmatpush2.bf16.msra.mxu0 %v310
  %407 = vmatprep.subr.bf16.mxu0 0
  %408 = vmatpush2.bf16.msra.mxu0 %v309
  %409 = vmatprep.subr.bf16.mxu0 0
  %410 = vmatpush2.bf16.msra.mxu0 %v308
  %411 = vmatprep.mubr.bf16.mxu0 %v139
  %412 = vmatmul.mubr.bf16.gmra.mxu0 %v138
  %v413 = vpop.f32.mrf.mxu0
  %v414 = vadd.f32 %v104, %v413
  %v415 = vpop.f32.mrf.mxu0
  %v416 = vpop.f32.mrf.mxu0
  %v417 = vadd.f32 %v104, %v416
  %v418 = vpop.f32.mrf.mxu0
  %419 = vmatprep.mubr.bf16.mxu0 %v144
  %420 = vmatmul.mubr.bf16.gmra.mxu0 %v143
  %v421 = vpop.f32.mrf.mxu0
  %v422 = vadd.f32 %v104, %v421
  %v423 = vpop.f32.mrf.mxu0
  %v424 = vpop.f32.mrf.mxu0
  %v425 = vadd.f32 %v104, %v424
  %v426 = vpop.f32.mrf.mxu0
  %427 = vdwg.mxu0
  %428 = vmatprep.subr.bf16.mxu0 0
  %429 = vmatpush1.bf16.msra.mxu0 %v323
  %430 = vmatprep.subr.bf16.mxu0 0
  %431 = vmatpush1.bf16.msra.mxu0 %v322
  %432 = vmatprep.subr.bf16.mxu0 0
  %433 = vmatpush1.bf16.msra.mxu0 %v321
  %434 = vmatprep.subr.bf16.mxu0 0
  %435 = vmatpush1.bf16.msra.mxu0 %v320
  %436 = vmatprep.subr.bf16.mxu0 0
  %437 = vmatpush1.bf16.msra.mxu0 %v319
  %438 = vmatprep.subr.bf16.mxu0 0
  %439 = vmatpush1.bf16.msra.mxu0 %v318
  %440 = vmatprep.subr.bf16.mxu0 0
  %441 = vmatpush1.bf16.msra.mxu0 %v317
  %442 = vmatprep.subr.bf16.mxu0 0
  %443 = vmatpush1.bf16.msra.mxu0 %v316
  %444 = vmatprep.subr.bf16.mxu0 0
  %445 = vmatpush2.bf16.msra.mxu0 %v331
  %446 = vmatprep.subr.bf16.mxu0 0
  %447 = vmatpush2.bf16.msra.mxu0 %v330
  %448 = vmatprep.subr.bf16.mxu0 0
  %449 = vmatpush2.bf16.msra.mxu0 %v329
  %450 = vmatprep.subr.bf16.mxu0 0
  %451 = vmatpush2.bf16.msra.mxu0 %v328
  %452 = vmatprep.subr.bf16.mxu0 0
  %453 = vmatpush2.bf16.msra.mxu0 %v327
  %454 = vmatprep.subr.bf16.mxu0 0
  %455 = vmatpush2.bf16.msra.mxu0 %v326
  %456 = vmatprep.subr.bf16.mxu0 0
  %457 = vmatpush2.bf16.msra.mxu0 %v325
  %458 = vmatprep.subr.bf16.mxu0 0
  %459 = vmatpush2.bf16.msra.mxu0 %v324
  %460 = vmatprep.mubr.bf16.mxu0 %v141
  %461 = vmatmul.mubr.bf16.gmra.mxu0 %v140
  %v462 = vpop.f32.mrf.mxu0
  %v463 = vadd.f32 %v414, %v462
  %v464 = vpop.f32.mrf.mxu0
  %v465 = vpop.f32.mrf.mxu0
  %v466 = vadd.f32 %v417, %v465
  %v467 = vpop.f32.mrf.mxu0
  %468 = vmatprep.mubr.bf16.mxu0 %v146
  %469 = vmatmul.mubr.bf16.gmra.mxu0 %v145
  %v470 = vpop.f32.mrf.mxu0
  %v471 = vadd.f32 %v422, %v470
  %v472 = vpop.f32.mrf.mxu0
  %v473 = vpop.f32.mrf.mxu0
  %v474 = vadd.f32 %v425, %v473
  %v475 = vpop.f32.mrf.mxu0
  %476 = vdwg.mxu0
  %477 = vmatprep.subr.bf16.mxu0 0
  %478 = vmatpush1.bf16.msra.mxu0 0
  %479 = vmatprep.subr.bf16.mxu0 0
  %480 = vmatpush1.bf16.msra.mxu0 0
  %481 = vmatprep.subr.bf16.mxu0 0
  %482 = vmatpush1.bf16.msra.mxu0 0
  %483 = vmatprep.subr.bf16.mxu0 0
  %484 = vmatpush1.bf16.msra.mxu0 0
  %485 = vmatprep.subr.bf16.mxu0 0
  %486 = vmatpush1.bf16.msra.mxu0 %v335
  %487 = vmatprep.subr.bf16.mxu0 0
  %488 = vmatpush1.bf16.msra.mxu0 %v334
  %489 = vmatprep.subr.bf16.mxu0 0
  %490 = vmatpush1.bf16.msra.mxu0 %v333
  %491 = vmatprep.subr.bf16.mxu0 0
  %492 = vmatpush1.bf16.msra.mxu0 %v332
  %493 = vmatprep.subr.bf16.mxu0 0
  %494 = vmatpush2.bf16.msra.mxu0 0
  %495 = vmatprep.subr.bf16.mxu0 0
  %496 = vmatpush2.bf16.msra.mxu0 0
  %497 = vmatprep.subr.bf16.mxu0 0
  %498 = vmatpush2.bf16.msra.mxu0 0
  %499 = vmatprep.subr.bf16.mxu0 0
  %500 = vmatpush2.bf16.msra.mxu0 0
  %501 = vmatprep.subr.bf16.mxu0 0
  %502 = vmatpush2.bf16.msra.mxu0 0
  %503 = vmatprep.subr.bf16.mxu0 0
  %504 = vmatpush2.bf16.msra.mxu0 0
  %505 = vmatprep.subr.bf16.mxu0 0
  %506 = vmatpush2.bf16.msra.mxu0 0
  %507 = vmatprep.subr.bf16.mxu0 0
  %508 = vmatpush2.bf16.msra.mxu0 0
  %509 = vmatprep.mubr.bf16.mxu0 0
  %510 = vmatmul.mubr.bf16.gmra.mxu0 %v374
  %v511 = vpop.f32.mrf.mxu0
  %v512 = vadd.f32 %v463, %v511
  %v513 = vpop.f32.mrf.mxu0
  %v514 = vpop.f32.mrf.mxu0
  %v515 = vadd.f32 %v466, %v514
  %v516 = vpop.f32.mrf.mxu0
  %517 = vmatprep.mubr.bf16.mxu0 0
  %518 = vmatmul.mubr.bf16.gmra.mxu0 %v377
  %v519 = vpop.f32.mrf.mxu0
  %v520 = vadd.f32 %v471, %v519
  %v521 = vpop.f32.mrf.mxu0
  %v522 = vpop.f32.mrf.mxu0
  %v523 = vadd.f32 %v474, %v522
  %v524 = vpop.f32.mrf.mxu0
  %525 = vdwg.mxu0
  %v526 = vmax.f32 %v512, 0.0
  %v527 = vmax.f32 %v515, 0.0
  %v528 = vmax.f32 %v520, 0.0
  %v529 = vmax.f32 %v523, 0.0
  %v530 = vpack.c.bf16 %v527, %v526
  %v531 = vpack.c.bf16 %v529, %v528
  %v534 = vunpack.c.l.b16 %v530
  %v535 = vunpack.c.h.b16 %v530
  %v536 = vunpack.c.l.b16 %v531
  %v537 = vunpack.c.h.b16 %v531
  %v538 = vpack.c.b16 %v534, %v534
  %v539 = vpack.c.b16 %v535, %v535
  %v540 = vpack.c.b16 %v536, %v536
  %v541 = vpack.c.b16 %v537, %v537
  %546 = vst [vmem:[%s3] sm:$0xf] %v538
  %547 = vst [vmem:[%s3 + $0x4] sm:$0xf] %v539
  %548 = vst [vmem:[%s3 + $0x8] sm:$0xf] %v540
  %549 = vst [vmem:[%s3 + $0xc] sm:$0xf] %v541
  // Predicated region
  $region14: #{_lambda_.10} parent=0 // pred_check
    _
  $region15: #{_lambda_.10} parent=0 // pred_check_branch
    %551 = sbr.rel (0) target = $region17
  $region16: #{_lambda_.10} parent=0 // pred_region
    _
  $region17: #{_lambda_.10} parent=0 // pred_fallthru
    _
  // Predicated region
  $region18: #{_lambda_.10} parent=0 // pred_check
    _
  $region19: #{_lambda_.10} parent=0 // pred_check_branch
    %553 = sbr.rel (0) target = $region21
  $region20: #{_lambda_.10} parent=0 // pred_region
    _
  $region21: #{_lambda_.10} parent=0 // pred_fallthru
    _

// kernel: _lambda_.12
$region0: #{_lambda_.12}
  #allocation0 [shape = 'u32[]', space=smem, size = 0x4, offset = 0x4, fixed_abs, tag = 'smem constant byte address 0x4 - core index']
  #allocation1 [shape = 'u32[144,128]{1,0:T(1,128)}', space=vmem, size = 0x12000, scoped, tag = 'internal scratch']
  %s0 = inlined_call_operand.vmem [shape: bf16[50,512], index: 0, kind: input, shape index: {}]
  %s1 = inlined_call_operand.vmem [shape: bf16[512,512], index: 1, kind: input, shape index: {}]
  %s2 = inlined_call_operand.vmem [shape: f32[1,512], index: 2, kind: input, shape index: {}]
  %s3 = inlined_call_operand.vmem [shape: bf16[50,512], index: 3, kind: output, shape index: {}]
  %s4 = sld [smem:[#allocation0]]
  $region22: #{_lambda_.12} parent=0
    _
  %s6 = ssub.s32 1, %s4
  %s7 = scalar_select 0, %s6, %s4
  // Predicated region
  $region2: #{_lambda_.12} parent=0 // pred_check
    _
  $region3: #{_lambda_.12} parent=0 // pred_check_branch
    %9 = sbr.rel (0) target = $region5
  $region4: #{_lambda_.12} parent=0 // pred_region
    _
  $region5: #{_lambda_.12} parent=0 // pred_fallthru
    _
  // Predicated region
  $region6: #{_lambda_.12} parent=0 // pred_check
    _
  $region7: #{_lambda_.12} parent=0 // pred_check_branch
    %11 = sbr.rel (0) target = $region9
  $region8: #{_lambda_.12} parent=0 // pred_region
    _
  $region9: #{_lambda_.12} parent=0 // pred_fallthru
    _
  // Predicated region
  $region10: #{_lambda_.12} parent=0 // pred_check
    _
  $region11: #{_lambda_.12} parent=0 // pred_check_branch
    %13 = sbr.rel (0) target = $region13
  $region12: #{_lambda_.12} parent=0 // pred_region
    _
  $region13: #{_lambda_.12} parent=0 // pred_fallthru
    _
  %v14 = vld [vmem:[%s0] sm:$0xff]
  %v15 = vld [vmem:[%s0 + $0x8] sm:$0xff]
  %v16 = vld [vmem:[%s0 + $0x10] sm:$0xff]
  %v17 = vld [vmem:[%s0 + $0x18] sm:$0xff]
  %v18 = vld [vmem:[%s0 + $0x20] sm:$0xff]
  %v19 = vld [vmem:[%s0 + $0x28] sm:$0xff]
  %v20 = vld [vmem:[%s0 + $0x30] sm:$0xff]
  %v21 = vld [vmem:[%s0 + $0x38] sm:$0xff]
  %v22 = vld [vmem:[%s0 + $0x40] sm:$0xff]
  %v23 = vld [vmem:[%s0 + $0x48] sm:$0xff]
  %v24 = vld [vmem:[%s0 + $0x50] sm:$0xff]
  %v25 = vld [vmem:[%s0 + $0x58] sm:$0xff]
  %v26 = vld [vmem:[%s0 + $0x60] sm:$0x11]
  %v27 = vld [vmem:[%s0 + $0x68] sm:$0x11]
  %v28 = vld [vmem:[%s1] sm:$0xff]
  %v29 = vld [vmem:[%s1 + $0x8] sm:$0xff]
  %v30 = vld [vmem:[%s1 + $0x10] sm:$0xff]
  %v31 = vld [vmem:[%s1 + $0x18] sm:$0xff]
  %v32 = vld [vmem:[%s1 + $0x20] sm:$0xff]
  %v33 = vld [vmem:[%s1 + $0x28] sm:$0xff]
  %v34 = vld [vmem:[%s1 + $0x30] sm:$0xff]
  %v35 = vld [vmem:[%s1 + $0x38] sm:$0xff]
  %v36 = vld [vmem:[%s1 + $0x40] sm:$0xff]
  %v37 = vld [vmem:[%s1 + $0x48] sm:$0xff]
  %v38 = vld [vmem:[%s1 + $0x50] sm:$0xff]
  %v39 = vld [vmem:[%s1 + $0x58] sm:$0xff]
  %v40 = vld [vmem:[%s1 + $0x60] sm:$0xff]
  %v41 = vld [vmem:[%s1 + $0x68] sm:$0xff]
  %v42 = vld [vmem:[%s1 + $0x70] sm:$0xff]
  %v43 = vld [vmem:[%s1 + $0x78] sm:$0xff]
  %v44 = vld [vmem:[%s1 + $0x80] sm:$0xff]
  %v45 = vld [vmem:[%s1 + $0x88] sm:$0xff]
  %v46 = vld [vmem:[%s1 + $0x90] sm:$0xff]
  %v47 = vld [vmem:[%s1 + $0x98] sm:$0xff]
  %v48 = vld [vmem:[%s1 + $0xa0] sm:$0xff]
  %v49 = vld [vmem:[%s1 + $0xa8] sm:$0xff]
  %v50 = vld [vmem:[%s1 + $0xb0] sm:$0xff]
  %v51 = vld [vmem:[%s1 + $0xb8] sm:$0xff]
  %v52 = vld [vmem:[%s1 + $0xc0] sm:$0xff]
  %v53 = vld [vmem:[%s1 + $0xc8] sm:$0xff]
  %v54 = vld [vmem:[%s1 + $0xd0] sm:$0xff]
  %v55 = vld [vmem:[%s1 + $0xd8] sm:$0xff]
  %v56 = vld [vmem:[%s1 + $0xe0] sm:$0xff]
  %v57 = vld [vmem:[%s1 + $0xe8] sm:$0xff]
  %v58 = vld [vmem:[%s1 + $0xf0] sm:$0xff]
  %v59 = vld [vmem:[%s1 + $0xf8] sm:$0xff]
  %v60 = vld [vmem:[%s1 + $0x100] sm:$0xff]
  %v61 = vld [vmem:[%s1 + $0x108] sm:$0xff]
  %v62 = vld [vmem:[%s1 + $0x110] sm:$0xff]
  %v63 = vld [vmem:[%s1 + $0x118] sm:$0xff]
  %v64 = vld [vmem:[%s1 + $0x120] sm:$0xff]
  %v65 = vld [vmem:[%s1 + $0x128] sm:$0xff]
  %v66 = vld [vmem:[%s1 + $0x130] sm:$0xff]
  %v67 = vld [vmem:[%s1 + $0x138] sm:$0xff]
  %v68 = vld [vmem:[%s1 + $0x140] sm:$0xff]
  %v69 = vld [vmem:[%s1 + $0x148] sm:$0xff]
  %v70 = vld [vmem:[%s1 + $0x150] sm:$0xff]
  %v71 = vld [vmem:[%s1 + $0x158] sm:$0xff]
  %v72 = vld [vmem:[%s1 + $0x160] sm:$0xff]
  %v73 = vld [vmem:[%s1 + $0x168] sm:$0xff]
  %v74 = vld [vmem:[%s1 + $0x170] sm:$0xff]
  %v75 = vld [vmem:[%s1 + $0x178] sm:$0xff]
  %v76 = vld [vmem:[%s1 + $0x180] sm:$0xff]
  %v77 = vld [vmem:[%s1 + $0x188] sm:$0xff]
  %v78 = vld [vmem:[%s1 + $0x190] sm:$0xff]
  %v79 = vld [vmem:[%s1 + $0x198] sm:$0xff]
  %v80 = vld [vmem:[%s1 + $0x1a0] sm:$0xff]
  %v81 = vld [vmem:[%s1 + $0x1a8] sm:$0xff]
  %v82 = vld [vmem:[%s1 + $0x1b0] sm:$0xff]
  %v83 = vld [vmem:[%s1 + $0x1b8] sm:$0xff]
  %v84 = vld [vmem:[%s1 + $0x1c0] sm:$0xff]
  %v85 = vld [vmem:[%s1 + $0x1c8] sm:$0xff]
  %v86 = vld [vmem:[%s1 + $0x1d0] sm:$0xff]
  %v87 = vld [vmem:[%s1 + $0x1d8] sm:$0xff]
  %v88 = vld [vmem:[%s1 + $0x1e0] sm:$0xff]
  %v89 = vld [vmem:[%s1 + $0x1e8] sm:$0xff]
  %v90 = vld [vmem:[%s1 + $0x1f0] sm:$0xff]
  %v91 = vld [vmem:[%s1 + $0x1f8] sm:$0xff]
  %v92 = vld [vmem:[%s1 + $0x200] sm:$0xff]
  %v93 = vld [vmem:[%s1 + $0x208] sm:$0xff]
  %v94 = vld [vmem:[%s1 + $0x210] sm:$0xff]
  %v95 = vld [vmem:[%s1 + $0x218] sm:$0xff]
  %v96 = vld [vmem:[%s1 + $0x220] sm:$0xff]
  %v97 = vld [vmem:[%s1 + $0x228] sm:$0xff]
  %v98 = vld [vmem:[%s1 + $0x230] sm:$0xff]
  %v99 = vld [vmem:[%s1 + $0x238] sm:$0xff]
  %v100 = vld [vmem:[%s1 + $0x240] sm:$0xff]
  %v101 = vld [vmem:[%s1 + $0x248] sm:$0xff]
  %v102 = vld [vmem:[%s1 + $0x250] sm:$0xff]
  %v103 = vld [vmem:[%s1 + $0x258] sm:$0xff]
  %v104 = vld [vmem:[%s1 + $0x260] sm:$0xff]
  %v105 = vld [vmem:[%s1 + $0x268] sm:$0xff]
  %v106 = vld [vmem:[%s1 + $0x270] sm:$0xff]
  %v107 = vld [vmem:[%s1 + $0x278] sm:$0xff]
  %v108 = vld [vmem:[%s1 + $0x280] sm:$0xff]
  %v109 = vld [vmem:[%s1 + $0x288] sm:$0xff]
  %v110 = vld [vmem:[%s1 + $0x290] sm:$0xff]
  %v111 = vld [vmem:[%s1 + $0x298] sm:$0xff]
  %v112 = vld [vmem:[%s1 + $0x2a0] sm:$0xff]
  %v113 = vld [vmem:[%s1 + $0x2a8] sm:$0xff]
  %v114 = vld [vmem:[%s1 + $0x2b0] sm:$0xff]
  %v115 = vld [vmem:[%s1 + $0x2b8] sm:$0xff]
  %v116 = vld [vmem:[%s1 + $0x2c0] sm:$0xff]
  %v117 = vld [vmem:[%s1 + $0x2c8] sm:$0xff]
  %v118 = vld [vmem:[%s1 + $0x2d0] sm:$0xff]
  %v119 = vld [vmem:[%s1 + $0x2d8] sm:$0xff]
  %v120 = vld [vmem:[%s1 + $0x2e0] sm:$0xff]
  %v121 = vld [vmem:[%s1 + $0x2e8] sm:$0xff]
  %v122 = vld [vmem:[%s1 + $0x2f0] sm:$0xff]
  %v123 = vld [vmem:[%s1 + $0x2f8] sm:$0xff]
  %v124 = vld [vmem:[%s1 + $0x300] sm:$0xff]
  %v125 = vld [vmem:[%s1 + $0x308] sm:$0xff]
  %v126 = vld [vmem:[%s1 + $0x310] sm:$0xff]
  %v127 = vld [vmem:[%s1 + $0x318] sm:$0xff]
  %v128 = vld [vmem:[%s1 + $0x320] sm:$0xff]
  %v129 = vld [vmem:[%s1 + $0x328] sm:$0xff]
  %v130 = vld [vmem:[%s1 + $0x330] sm:$0xff]
  %v131 = vld [vmem:[%s1 + $0x338] sm:$0xff]
  %v132 = vld [vmem:[%s1 + $0x340] sm:$0xff]
  %v133 = vld [vmem:[%s1 + $0x348] sm:$0xff]
  %v134 = vld [vmem:[%s1 + $0x350] sm:$0xff]
  %v135 = vld [vmem:[%s1 + $0x358] sm:$0xff]
  %v136 = vld [vmem:[%s1 + $0x360] sm:$0xff]
  %v137 = vld [vmem:[%s1 + $0x368] sm:$0xff]
  %v138 = vld [vmem:[%s1 + $0x370] sm:$0xff]
  %v139 = vld [vmem:[%s1 + $0x378] sm:$0xff]
  %v140 = vld [vmem:[%s1 + $0x380] sm:$0xff]
  %v141 = vld [vmem:[%s1 + $0x388] sm:$0xff]
  %v142 = vld [vmem:[%s1 + $0x390] sm:$0xff]
  %v143 = vld [vmem:[%s1 + $0x398] sm:$0xff]
  %v144 = vld [vmem:[%s1 + $0x3a0] sm:$0xff]
  %v145 = vld [vmem:[%s1 + $0x3a8] sm:$0xff]
  %v146 = vld [vmem:[%s1 + $0x3b0] sm:$0xff]
  %v147 = vld [vmem:[%s1 + $0x3b8] sm:$0xff]
  %v148 = vld [vmem:[%s1 + $0x3c0] sm:$0xff]
  %v149 = vld [vmem:[%s1 + $0x3c8] sm:$0xff]
  %v150 = vld [vmem:[%s1 + $0x3d0] sm:$0xff]
  %v151 = vld [vmem:[%s1 + $0x3d8] sm:$0xff]
  %v152 = vld [vmem:[%s1 + $0x3e0] sm:$0xff]
  %v153 = vld [vmem:[%s1 + $0x3e8] sm:$0xff]
  %v154 = vld [vmem:[%s1 + $0x3f0] sm:$0xff]
  %v155 = vld [vmem:[%s1 + $0x3f8] sm:$0xff]
  %v156 = vld [vmem:[%s2] sm:$0xf]
  %v158 = vlaneseq
  %v159 = vshrl.u32 %v158, 7
  %v160 = vsub.s32 0, %v159
  %v161 = vrot.slane %v156, %v160
  %v162 = vlaneseq
  %v163 = vshrl.u32 %v162, 7
  %v164 = vsub.s32 1, %v163
  %v165 = vrot.slane %v156, %v164
  %v166 = vlaneseq
  %v167 = vshrl.u32 %v166, 7
  %v168 = vsub.s32 2, %v167
  %v169 = vrot.slane %v156, %v168
  %v170 = vlaneseq
  %v171 = vshrl.u32 %v170, 7
  %v172 = vsub.s32 3, %v171
  %v173 = vrot.slane %v156, %v172
  %v192 = vunpack.c.l.b16 %v14
  %v193 = vunpack.c.h.b16 %v14
  %v194 = vunpack.c.l.b16 %v15
  %v195 = vunpack.c.h.b16 %v15
  %v196 = vunpack.c.l.b16 %v16
  %v197 = vunpack.c.h.b16 %v16
  %v198 = vunpack.c.l.b16 %v17
  %v199 = vunpack.c.h.b16 %v17
  %v200 = vunpack.c.l.b16 %v18
  %v201 = vunpack.c.h.b16 %v18
  %v202 = vunpack.c.l.b16 %v19
  %v203 = vunpack.c.h.b16 %v19
  %v204 = vunpack.c.l.b16 %v20
  %v205 = vunpack.c.h.b16 %v20
  %v206 = vunpack.c.l.b16 %v21
  %v207 = vunpack.c.h.b16 %v21
  %v208 = vunpack.c.l.b16 %v22
  %v209 = vunpack.c.h.b16 %v22
  %v210 = vunpack.c.l.b16 %v23
  %v211 = vunpack.c.h.b16 %v23
  %v212 = vunpack.c.l.b16 %v24
  %v213 = vunpack.c.h.b16 %v24
  %v214 = vunpack.c.l.b16 %v25
  %v215 = vunpack.c.h.b16 %v25
  %v216 = vunpack.c.l.b16 %v26
  %v217 = vunpack.c.h.b16 %v26
  %v218 = vunpack.c.l.b16 %v27
  %v219 = vunpack.c.h.b16 %v27
  %v220 = vpack.c.b16 %v196, %v192
  %v221 = vpack.c.b16 %v197, %v193
  %v222 = vpack.c.b16 %v198, %v194
  %v223 = vpack.c.b16 %v199, %v195
  %v224 = vpack.c.b16 %v204, %v200
  %v225 = vpack.c.b16 %v205, %v201
  %v226 = vpack.c.b16 %v206, %v202
  %v227 = vpack.c.b16 %v207, %v203
  %v228 = vpack.c.b16 %v212, %v208
  %v229 = vpack.c.b16 %v213, %v209
  %v230 = vpack.c.b16 %v214, %v210
  %v231 = vpack.c.b16 %v215, %v211
  %v232 = vpack.c.b16 %v216, %v216
  %v233 = vpack.c.b16 %v217, %v217
  %v234 = vpack.c.b16 %v218, %v218
  %v235 = vpack.c.b16 %v219, %v219
  %v380 = vunpack.c.l.b16 %v28
  %v381 = vunpack.c.h.b16 %v28
  %v382 = vunpack.c.l.b16 %v29
  %v383 = vunpack.c.h.b16 %v29
  %v384 = vunpack.c.l.b16 %v30
  %v385 = vunpack.c.h.b16 %v30
  %v386 = vunpack.c.l.b16 %v31
  %v387 = vunpack.c.h.b16 %v31
  %v388 = vunpack.c.l.b16 %v32
  %v389 = vunpack.c.h.b16 %v32
  %v390 = vunpack.c.l.b16 %v33
  %v391 = vunpack.c.h.b16 %v33
  %v392 = vunpack.c.l.b16 %v34
  %v393 = vunpack.c.h.b16 %v34
  %v394 = vunpack.c.l.b16 %v35
  %v395 = vunpack.c.h.b16 %v35
  %v396 = vunpack.c.l.b16 %v36
  %v397 = vunpack.c.h.b16 %v36
  %v398 = vunpack.c.l.b16 %v37
  %v399 = vunpack.c.h.b16 %v37
  %v400 = vunpack.c.l.b16 %v38
  %v401 = vunpack.c.h.b16 %v38
  %v402 = vunpack.c.l.b16 %v39
  %v403 = vunpack.c.h.b16 %v39
  %v404 = vunpack.c.l.b16 %v40
  %v405 = vunpack.c.h.b16 %v40
  %v406 = vunpack.c.l.b16 %v41
  %v407 = vunpack.c.h.b16 %v41
  %v408 = vunpack.c.l.b16 %v42
  %v409 = vunpack.c.h.b16 %v42
  %v410 = vunpack.c.l.b16 %v43
  %v411 = vunpack.c.h.b16 %v43
  %v412 = vunpack.c.l.b16 %v44
  %v413 = vunpack.c.h.b16 %v44
  %v414 = vunpack.c.l.b16 %v45
  %v415 = vunpack.c.h.b16 %v45
  %v416 = vunpack.c.l.b16 %v46
  %v417 = vunpack.c.h.b16 %v46
  %v418 = vunpack.c.l.b16 %v47
  %v419 = vunpack.c.h.b16 %v47
  %v420 = vunpack.c.l.b16 %v48
  %v421 = vunpack.c.h.b16 %v48
  %v422 = vunpack.c.l.b16 %v49
  %v423 = vunpack.c.h.b16 %v49
  %v424 = vunpack.c.l.b16 %v50
  %v425 = vunpack.c.h.b16 %v50
  %v426 = vunpack.c.l.b16 %v51
  %v427 = vunpack.c.h.b16 %v51
  %v428 = vunpack.c.l.b16 %v52
  %v429 = vunpack.c.h.b16 %v52
  %v430 = vunpack.c.l.b16 %v53
  %v431 = vunpack.c.h.b16 %v53
  %v432 = vunpack.c.l.b16 %v54
  %v433 = vunpack.c.h.b16 %v54
  %v434 = vunpack.c.l.b16 %v55
  %v435 = vunpack.c.h.b16 %v55
  %v436 = vunpack.c.l.b16 %v56
  %v437 = vunpack.c.h.b16 %v56
  %v438 = vunpack.c.l.b16 %v57
  %v439 = vunpack.c.h.b16 %v57
  %v440 = vunpack.c.l.b16 %v58
  %v441 = vunpack.c.h.b16 %v58
  %v442 = vunpack.c.l.b16 %v59
  %v443 = vunpack.c.h.b16 %v59
  %v444 = vunpack.c.l.b16 %v60
  %v445 = vunpack.c.h.b16 %v60
  %v446 = vunpack.c.l.b16 %v61
  %v447 = vunpack.c.h.b16 %v61
  %v448 = vunpack.c.l.b16 %v62
  %v449 = vunpack.c.h.b16 %v62
  %v450 = vunpack.c.l.b16 %v63
  %v451 = vunpack.c.h.b16 %v63
  %v452 = vunpack.c.l.b16 %v64
  %v453 = vunpack.c.h.b16 %v64
  %v454 = vunpack.c.l.b16 %v65
  %v455 = vunpack.c.h.b16 %v65
  %v456 = vunpack.c.l.b16 %v66
  %v457 = vunpack.c.h.b16 %v66
  %v458 = vunpack.c.l.b16 %v67
  %v459 = vunpack.c.h.b16 %v67
  %v460 = vunpack.c.l.b16 %v68
  %v461 = vunpack.c.h.b16 %v68
  %v462 = vunpack.c.l.b16 %v69
  %v463 = vunpack.c.h.b16 %v69
  %v464 = vunpack.c.l.b16 %v70
  %v465 = vunpack.c.h.b16 %v70
  %v466 = vunpack.c.l.b16 %v71
  %v467 = vunpack.c.h.b16 %v71
  %v468 = vunpack.c.l.b16 %v72
  %v469 = vunpack.c.h.b16 %v72
  %v470 = vunpack.c.l.b16 %v73
  %v471 = vunpack.c.h.b16 %v73
  %v472 = vunpack.c.l.b16 %v74
  %v473 = vunpack.c.h.b16 %v74
  %v474 = vunpack.c.l.b16 %v75
  %v475 = vunpack.c.h.b16 %v75
  %v476 = vunpack.c.l.b16 %v76
  %v477 = vunpack.c.h.b16 %v76
  %v478 = vunpack.c.l.b16 %v77
  %v479 = vunpack.c.h.b16 %v77
  %v480 = vunpack.c.l.b16 %v78
  %v481 = vunpack.c.h.b16 %v78
  %v482 = vunpack.c.l.b16 %v79
  %v483 = vunpack.c.h.b16 %v79
  %v484 = vunpack.c.l.b16 %v80
  %v485 = vunpack.c.h.b16 %v80
  %v486 = vunpack.c.l.b16 %v81
  %v487 = vunpack.c.h.b16 %v81
  %v488 = vunpack.c.l.b16 %v82
  %v489 = vunpack.c.h.b16 %v82
  %v490 = vunpack.c.l.b16 %v83
  %v491 = vunpack.c.h.b16 %v83
  %v492 = vunpack.c.l.b16 %v84
  %v493 = vunpack.c.h.b16 %v84
  %v494 = vunpack.c.l.b16 %v85
  %v495 = vunpack.c.h.b16 %v85
  %v496 = vunpack.c.l.b16 %v86
  %v497 = vunpack.c.h.b16 %v86
  %v498 = vunpack.c.l.b16 %v87
  %v499 = vunpack.c.h.b16 %v87
  %v500 = vunpack.c.l.b16 %v88
  %v501 = vunpack.c.h.b16 %v88
  %v502 = vunpack.c.l.b16 %v89
  %v503 = vunpack.c.h.b16 %v89
  %v504 = vunpack.c.l.b16 %v90
  %v505 = vunpack.c.h.b16 %v90
  %v506 = vunpack.c.l.b16 %v91
  %v507 = vunpack.c.h.b16 %v91
  %v508 = vunpack.c.l.b16 %v92
  %v509 = vunpack.c.h.b16 %v92
  %v510 = vunpack.c.l.b16 %v93
  %v511 = vunpack.c.h.b16 %v93
  %v512 = vunpack.c.l.b16 %v94
  %v513 = vunpack.c.h.b16 %v94
  %v514 = vunpack.c.l.b16 %v95
  %v515 = vunpack.c.h.b16 %v95
  %v516 = vunpack.c.l.b16 %v96
  %v517 = vunpack.c.h.b16 %v96
  %v518 = vunpack.c.l.b16 %v97
  %v519 = vunpack.c.h.b16 %v97
  %v520 = vunpack.c.l.b16 %v98
  %v521 = vunpack.c.h.b16 %v98
  %v522 = vunpack.c.l.b16 %v99
  %v523 = vunpack.c.h.b16 %v99
  %v524 = vunpack.c.l.b16 %v100
  %v525 = vunpack.c.h.b16 %v100
  %v526 = vunpack.c.l.b16 %v101
  %v527 = vunpack.c.h.b16 %v101
  %v528 = vunpack.c.l.b16 %v102
  %v529 = vunpack.c.h.b16 %v102
  %v530 = vunpack.c.l.b16 %v103
  %v531 = vunpack.c.h.b16 %v103
  %v532 = vunpack.c.l.b16 %v104
  %v533 = vunpack.c.h.b16 %v104
  %v534 = vunpack.c.l.b16 %v105
  %v535 = vunpack.c.h.b16 %v105
  %v536 = vunpack.c.l.b16 %v106
  %v537 = vunpack.c.h.b16 %v106
  %v538 = vunpack.c.l.b16 %v107
  %v539 = vunpack.c.h.b16 %v107
  %v540 = vunpack.c.l.b16 %v108
  %v541 = vunpack.c.h.b16 %v108
  %v542 = vunpack.c.l.b16 %v109
  %v543 = vunpack.c.h.b16 %v109
  %v544 = vunpack.c.l.b16 %v110
  %v545 = vunpack.c.h.b16 %v110
  %v546 = vunpack.c.l.b16 %v111
  %v547 = vunpack.c.h.b16 %v111
  %v548 = vunpack.c.l.b16 %v112
  %v549 = vunpack.c.h.b16 %v112
  %v550 = vunpack.c.l.b16 %v113
  %v551 = vunpack.c.h.b16 %v113
  %v552 = vunpack.c.l.b16 %v114
  %v553 = vunpack.c.h.b16 %v114
  %v554 = vunpack.c.l.b16 %v115
  %v555 = vunpack.c.h.b16 %v115
  %v556 = vunpack.c.l.b16 %v116
  %v557 = vunpack.c.h.b16 %v116
  %v558 = vunpack.c.l.b16 %v117
  %v559 = vunpack.c.h.b16 %v117
  %v560 = vunpack.c.l.b16 %v118
  %v561 = vunpack.c.h.b16 %v118
  %v562 = vunpack.c.l.b16 %v119
  %v563 = vunpack.c.h.b16 %v119
  %v564 = vunpack.c.l.b16 %v120
  %v565 = vunpack.c.h.b16 %v120
  %v566 = vunpack.c.l.b16 %v121
  %v567 = vunpack.c.h.b16 %v121
  %v568 = vunpack.c.l.b16 %v122
  %v569 = vunpack.c.h.b16 %v122
  %v570 = vunpack.c.l.b16 %v123
  %v571 = vunpack.c.h.b16 %v123
  %v572 = vunpack.c.l.b16 %v124
  %v573 = vunpack.c.h.b16 %v124
  %v574 = vunpack.c.l.b16 %v125
  %v575 = vunpack.c.h.b16 %v125
  %v576 = vunpack.c.l.b16 %v126
  %v577 = vunpack.c.h.b16 %v126
  %v578 = vunpack.c.l.b16 %v127
  %v579 = vunpack.c.h.b16 %v127
  %v580 = vunpack.c.l.b16 %v128
  %v581 = vunpack.c.h.b16 %v128
  %v582 = vunpack.c.l.b16 %v129
  %v583 = vunpack.c.h.b16 %v129
  %v584 = vunpack.c.l.b16 %v130
  %v585 = vunpack.c.h.b16 %v130
  %v586 = vunpack.c.l.b16 %v131
  %v587 = vunpack.c.h.b16 %v131
  %v588 = vunpack.c.l.b16 %v132
  %v589 = vunpack.c.h.b16 %v132
  %v590 = vunpack.c.l.b16 %v133
  %v591 = vunpack.c.h.b16 %v133
  %v592 = vunpack.c.l.b16 %v134
  %v593 = vunpack.c.h.b16 %v134
  %v594 = vunpack.c.l.b16 %v135
  %v595 = vunpack.c.h.b16 %v135
  %v596 = vunpack.c.l.b16 %v136
  %v597 = vunpack.c.h.b16 %v136
  %v598 = vunpack.c.l.b16 %v137
  %v599 = vunpack.c.h.b16 %v137
  %v600 = vunpack.c.l.b16 %v138
  %v601 = vunpack.c.h.b16 %v138
  %v602 = vunpack.c.l.b16 %v139
  %v603 = vunpack.c.h.b16 %v139
  %v604 = vunpack.c.l.b16 %v140
  %v605 = vunpack.c.h.b16 %v140
  %v606 = vunpack.c.l.b16 %v141
  %v607 = vunpack.c.h.b16 %v141
  %v608 = vunpack.c.l.b16 %v142
  %v609 = vunpack.c.h.b16 %v142
  %v610 = vunpack.c.l.b16 %v143
  %v611 = vunpack.c.h.b16 %v143
  %v612 = vunpack.c.l.b16 %v144
  %v613 = vunpack.c.h.b16 %v144
  %v614 = vunpack.c.l.b16 %v145
  %v615 = vunpack.c.h.b16 %v145
  %v616 = vunpack.c.l.b16 %v146
  %v617 = vunpack.c.h.b16 %v146
  %v618 = vunpack.c.l.b16 %v147
  %v619 = vunpack.c.h.b16 %v147
  %v620 = vunpack.c.l.b16 %v148
  %v621 = vunpack.c.h.b16 %v148
  %v622 = vunpack.c.l.b16 %v149
  %v623 = vunpack.c.h.b16 %v149
  %v624 = vunpack.c.l.b16 %v150
  %v625 = vunpack.c.h.b16 %v150
  %v626 = vunpack.c.l.b16 %v151
  %v627 = vunpack.c.h.b16 %v151
  %v628 = vunpack.c.l.b16 %v152
  %v629 = vunpack.c.h.b16 %v152
  %v630 = vunpack.c.l.b16 %v153
  %v631 = vunpack.c.h.b16 %v153
  %v632 = vunpack.c.l.b16 %v154
  %v633 = vunpack.c.h.b16 %v154
  %v634 = vunpack.c.l.b16 %v155
  %v635 = vunpack.c.h.b16 %v155
  %v636 = vpack.c.b16 %v384, %v380
  %v637 = vpack.c.b16 %v385, %v381
  %v638 = vpack.c.b16 %v386, %v382
  %v639 = vpack.c.b16 %v387, %v383
  %v640 = vpack.c.b16 %v392, %v388
  %v641 = vpack.c.b16 %v393, %v389
  %v642 = vpack.c.b16 %v394, %v390
  %v643 = vpack.c.b16 %v395, %v391
  %v644 = vpack.c.b16 %v400, %v396
  %v645 = vpack.c.b16 %v401, %v397
  %v646 = vpack.c.b16 %v402, %v398
  %v647 = vpack.c.b16 %v403, %v399
  %v648 = vpack.c.b16 %v408, %v404
  %v649 = vpack.c.b16 %v409, %v405
  %v650 = vpack.c.b16 %v410, %v406
  %v651 = vpack.c.b16 %v411, %v407
  %v652 = vpack.c.b16 %v416, %v412
  %v653 = vpack.c.b16 %v417, %v413
  %v654 = vpack.c.b16 %v418, %v414
  %v655 = vpack.c.b16 %v419, %v415
  %v656 = vpack.c.b16 %v424, %v420
  %v657 = vpack.c.b16 %v425, %v421
  %v658 = vpack.c.b16 %v426, %v422
  %v659 = vpack.c.b16 %v427, %v423
  %v660 = vpack.c.b16 %v432, %v428
  %v661 = vpack.c.b16 %v433, %v429
  %v662 = vpack.c.b16 %v434, %v430
  %v663 = vpack.c.b16 %v435, %v431
  %v664 = vpack.c.b16 %v440, %v436
  %v665 = vpack.c.b16 %v441, %v437
  %v666 = vpack.c.b16 %v442, %v438
  %v667 = vpack.c.b16 %v443, %v439
  %v668 = vpack.c.b16 %v448, %v444
  %v669 = vpack.c.b16 %v449, %v445
  %v670 = vpack.c.b16 %v450, %v446
  %v671 = vpack.c.b16 %v451, %v447
  %v672 = vpack.c.b16 %v456, %v452
  %v673 = vpack.c.b16 %v457, %v453
  %v674 = vpack.c.b16 %v458, %v454
  %v675 = vpack.c.b16 %v459, %v455
  %v676 = vpack.c.b16 %v464, %v460
  %v677 = vpack.c.b16 %v465, %v461
  %v678 = vpack.c.b16 %v466, %v462
  %v679 = vpack.c.b16 %v467, %v463
  %v680 = vpack.c.b16 %v472, %v468
  %v681 = vpack.c.b16 %v473, %v469
  %v682 = vpack.c.b16 %v474, %v470
  %v683 = vpack.c.b16 %v475, %v471
  %v684 = vpack.c.b16 %v480, %v476
  %v685 = vpack.c.b16 %v481, %v477
  %v686 = vpack.c.b16 %v482, %v478
  %v687 = vpack.c.b16 %v483, %v479
  %v688 = vpack.c.b16 %v488, %v484
  %v689 = vpack.c.b16 %v489, %v485
  %v690 = vpack.c.b16 %v490, %v486
  %v691 = vpack.c.b16 %v491, %v487
  %v692 = vpack.c.b16 %v496, %v492
  %v693 = vpack.c.b16 %v497, %v493
  %v694 = vpack.c.b16 %v498, %v494
  %v695 = vpack.c.b16 %v499, %v495
  %v696 = vpack.c.b16 %v504, %v500
  %v697 = vpack.c.b16 %v505, %v501
  %v698 = vpack.c.b16 %v506, %v502
  %v699 = vpack.c.b16 %v507, %v503
  %v700 = vpack.c.b16 %v512, %v508
  %v701 = vpack.c.b16 %v513, %v509
  %v702 = vpack.c.b16 %v514, %v510
  %v703 = vpack.c.b16 %v515, %v511
  %v704 = vpack.c.b16 %v520, %v516
  %v705 = vpack.c.b16 %v521, %v517
  %v706 = vpack.c.b16 %v522, %v518
  %v707 = vpack.c.b16 %v523, %v519
  %v708 = vpack.c.b16 %v528, %v524
  %v709 = vpack.c.b16 %v529, %v525
  %v710 = vpack.c.b16 %v530, %v526
  %v711 = vpack.c.b16 %v531, %v527
  %v712 = vpack.c.b16 %v536, %v532
  %v713 = vpack.c.b16 %v537, %v533
  %v714 = vpack.c.b16 %v538, %v534
  %v715 = vpack.c.b16 %v539, %v535
  %v716 = vpack.c.b16 %v544, %v540
  %v717 = vpack.c.b16 %v545, %v541
  %v718 = vpack.c.b16 %v546, %v542
  %v719 = vpack.c.b16 %v547, %v543
  %v720 = vpack.c.b16 %v552, %v548
  %v721 = vpack.c.b16 %v553, %v549
  %v722 = vpack.c.b16 %v554, %v550
  %v723 = vpack.c.b16 %v555, %v551
  %v724 = vpack.c.b16 %v560, %v556
  %v725 = vpack.c.b16 %v561, %v557
  %v726 = vpack.c.b16 %v562, %v558
  %v727 = vpack.c.b16 %v563, %v559
  %v728 = vpack.c.b16 %v568, %v564
  %v729 = vpack.c.b16 %v569, %v565
  %v730 = vpack.c.b16 %v570, %v566
  %v731 = vpack.c.b16 %v571, %v567
  %v732 = vpack.c.b16 %v576, %v572
  %v733 = vpack.c.b16 %v577, %v573
  %v734 = vpack.c.b16 %v578, %v574
  %v735 = vpack.c.b16 %v579, %v575
  %v736 = vpack.c.b16 %v584, %v580
  %v737 = vpack.c.b16 %v585, %v581
  %v738 = vpack.c.b16 %v586, %v582
  %v739 = vpack.c.b16 %v587, %v583
  %v740 = vpack.c.b16 %v592, %v588
  %v741 = vpack.c.b16 %v593, %v589
  %v742 = vpack.c.b16 %v594, %v590
  %v743 = vpack.c.b16 %v595, %v591
  %v744 = vpack.c.b16 %v600, %v596
  %v745 = vpack.c.b16 %v601, %v597
  %v746 = vpack.c.b16 %v602, %v598
  %v747 = vpack.c.b16 %v603, %v599
  %v748 = vpack.c.b16 %v608, %v604
  %v749 = vpack.c.b16 %v609, %v605
  %v750 = vpack.c.b16 %v610, %v606
  %v751 = vpack.c.b16 %v611, %v607
  %v752 = vpack.c.b16 %v616, %v612
  %v753 = vpack.c.b16 %v617, %v613
  %v754 = vpack.c.b16 %v618, %v614
  %v755 = vpack.c.b16 %v619, %v615
  %v756 = vpack.c.b16 %v624, %v620
  %v757 = vpack.c.b16 %v625, %v621
  %v758 = vpack.c.b16 %v626, %v622
  %v759 = vpack.c.b16 %v627, %v623
  %v760 = vpack.c.b16 %v632, %v628
  %v761 = vpack.c.b16 %v633, %v629
  %v762 = vpack.c.b16 %v634, %v630
  %v763 = vpack.c.b16 %v635, %v631
  %892 = vmatprep.subr.bf16.mxu0 %v665
  %893 = vmatpush1.bf16.msra.mxu0 %v664
  %894 = vmatprep.subr.bf16.mxu0 %v661
  %895 = vmatpush1.bf16.msra.mxu0 %v660
  %896 = vmatprep.subr.bf16.mxu0 %v657
  %897 = vmatpush1.bf16.msra.mxu0 %v656
  %898 = vmatprep.subr.bf16.mxu0 %v653
  %899 = vmatpush1.bf16.msra.mxu0 %v652
  %900 = vmatprep.subr.bf16.mxu0 %v649
  %901 = vmatpush1.bf16.msra.mxu0 %v648
  %902 = vmatprep.subr.bf16.mxu0 %v645
  %903 = vmatpush1.bf16.msra.mxu0 %v644
  %904 = vmatprep.subr.bf16.mxu0 %v641
  %905 = vmatpush1.bf16.msra.mxu0 %v640
  %906 = vmatprep.subr.bf16.mxu0 %v637
  %907 = vmatpush1.bf16.msra.mxu0 %v636
  %908 = vmatprep.subr.bf16.mxu0 %v697
  %909 = vmatpush2.bf16.msra.mxu0 %v696
  %910 = vmatprep.subr.bf16.mxu0 %v693
  %911 = vmatpush2.bf16.msra.mxu0 %v692
  %912 = vmatprep.subr.bf16.mxu0 %v689
  %913 = vmatpush2.bf16.msra.mxu0 %v688
  %914 = vmatprep.subr.bf16.mxu0 %v685
  %915 = vmatpush2.bf16.msra.mxu0 %v684
  %916 = vmatprep.subr.bf16.mxu0 %v681
  %917 = vmatpush2.bf16.msra.mxu0 %v680
  %918 = vmatprep.subr.bf16.mxu0 %v677
  %919 = vmatpush2.bf16.msra.mxu0 %v676
  %920 = vmatprep.subr.bf16.mxu0 %v673
  %921 = vmatpush2.bf16.msra.mxu0 %v672
  %922 = vmatprep.subr.bf16.mxu0 %v669
  %923 = vmatpush2.bf16.msra.mxu0 %v668
  %924 = vmatprep.mubr.bf16.mxu0 %v221
  %925 = vmatmul.mubr.bf16.gmra.mxu0 %v220
  %v926 = vpop.f32.mrf.mxu0
  %v927 = vadd.f32 %v161, %v926
  %v928 = vpop.f32.mrf.mxu0
  %v929 = vadd.f32 %v165, %v928
  %v930 = vpop.f32.mrf.mxu0
  %v931 = vadd.f32 %v161, %v930
  %v932 = vpop.f32.mrf.mxu0
  %v933 = vadd.f32 %v165, %v932
  %934 = vmatprep.mubr.bf16.mxu0 %v225
  %935 = vmatmul.mubr.bf16.gmra.mxu0 %v224
  %v936 = vpop.f32.mrf.mxu0
  %v937 = vadd.f32 %v161, %v936
  %v938 = vpop.f32.mrf.mxu0
  %v939 = vadd.f32 %v165, %v938
  %v940 = vpop.f32.mrf.mxu0
  %v941 = vadd.f32 %v161, %v940
  %v942 = vpop.f32.mrf.mxu0
  %v943 = vadd.f32 %v165, %v942
  %944 = vmatprep.mubr.bf16.mxu0 %v229
  %945 = vmatmul.mubr.bf16.gmra.mxu0 %v228
  %v946 = vpop.f32.mrf.mxu0
  %v947 = vadd.f32 %v161, %v946
  %v948 = vpop.f32.mrf.mxu0
  %v949 = vadd.f32 %v165, %v948
  %v950 = vpop.f32.mrf.mxu0
  %v951 = vadd.f32 %v161, %v950
  %v952 = vpop.f32.mrf.mxu0
  %v953 = vadd.f32 %v165, %v952
  %954 = vmatprep.mubr.bf16.mxu0 %v233
  %955 = vmatmul.mubr.bf16.gmra.mxu0 %v232
  %v956 = vpop.f32.mrf.mxu0
  %v957 = vadd.f32 %v161, %v956
  %v958 = vpop.f32.mrf.mxu0
  %v959 = vadd.f32 %v165, %v958
  %v960 = vpop.f32.mrf.mxu0
  %v961 = vpop.f32.mrf.mxu0
  %962 = vdwg.mxu0
  %963 = vmatprep.subr.bf16.mxu0 %v729
  %964 = vmatpush1.bf16.msra.mxu0 %v728
  %965 = vmatprep.subr.bf16.mxu0 %v725
  %966 = vmatpush1.bf16.msra.mxu0 %v724
  %967 = vmatprep.subr.bf16.mxu0 %v721
  %968 = vmatpush1.bf16.msra.mxu0 %v720
  %969 = vmatprep.subr.bf16.mxu0 %v717
  %970 = vmatpush1.bf16.msra.mxu0 %v716
  %971 = vmatprep.subr.bf16.mxu0 %v713
  %972 = vmatpush1.bf16.msra.mxu0 %v712
  %973 = vmatprep.subr.bf16.mxu0 %v709
  %974 = vmatpush1.bf16.msra.mxu0 %v708
  %975 = vmatprep.subr.bf16.mxu0 %v705
  %976 = vmatpush1.bf16.msra.mxu0 %v704
  %977 = vmatprep.subr.bf16.mxu0 %v701
  %978 = vmatpush1.bf16.msra.mxu0 %v700
  %979 = vmatprep.subr.bf16.mxu0 %v761
  %980 = vmatpush2.bf16.msra.mxu0 %v760
  %981 = vmatprep.subr.bf16.mxu0 %v757
  %982 = vmatpush2.bf16.msra.mxu0 %v756
  %983 = vmatprep.subr.bf16.mxu0 %v753
  %984 = vmatpush2.bf16.msra.mxu0 %v752
  %985 = vmatprep.subr.bf16.mxu0 %v749
  %986 = vmatpush2.bf16.msra.mxu0 %v748
  %987 = vmatprep.subr.bf16.mxu0 %v745
  %988 = vmatpush2.bf16.msra.mxu0 %v744
  %989 = vmatprep.subr.bf16.mxu0 %v741
  %990 = vmatpush2.bf16.msra.mxu0 %v740
  %991 = vmatprep.subr.bf16.mxu0 %v737
  %992 = vmatpush2.bf16.msra.mxu0 %v736
  %993 = vmatprep.subr.bf16.mxu0 %v733
  %994 = vmatpush2.bf16.msra.mxu0 %v732
  %995 = vmatprep.mubr.bf16.mxu0 %v223
  %996 = vmatmul.mubr.bf16.gmra.mxu0 %v222
  %v997 = vpop.f32.mrf.mxu0
  %v998 = vadd.f32 %v927, %v997
  %v999 = vpop.f32.mrf.mxu0
  %v1000 = vadd.f32 %v929, %v999
  %v1001 = vpop.f32.mrf.mxu0
  %v1002 = vadd.f32 %v931, %v1001
  %v1003 = vpop.f32.mrf.mxu0
  %v1004 = vadd.f32 %v933, %v1003
  %1005 = vmatprep.mubr.bf16.mxu0 %v227
  %1006 = vmatmul.mubr.bf16.gmra.mxu0 %v226
  %v1007 = vpop.f32.mrf.mxu0
  %v1008 = vadd.f32 %v937, %v1007
  %v1009 = vpop.f32.mrf.mxu0
  %v1010 = vadd.f32 %v939, %v1009
  %v1011 = vpop.f32.mrf.mxu0
  %v1012 = vadd.f32 %v941, %v1011
  %v1013 = vpop.f32.mrf.mxu0
  %v1014 = vadd.f32 %v943, %v1013
  %1015 = vmatprep.mubr.bf16.mxu0 %v231
  %1016 = vmatmul.mubr.bf16.gmra.mxu0 %v230
  %v1017 = vpop.f32.mrf.mxu0
  %v1018 = vadd.f32 %v947, %v1017
  %v1019 = vpop.f32.mrf.mxu0
  %v1020 = vadd.f32 %v949, %v1019
  %v1021 = vpop.f32.mrf.mxu0
  %v1022 = vadd.f32 %v951, %v1021
  %v1023 = vpop.f32.mrf.mxu0
  %v1024 = vadd.f32 %v953, %v1023
  %1025 = vmatprep.mubr.bf16.mxu0 %v235
  %1026 = vmatmul.mubr.bf16.gmra.mxu0 %v234
  %v1027 = vpop.f32.mrf.mxu0
  %v1028 = vadd.f32 %v957, %v1027
  %v1029 = vpop.f32.mrf.mxu0
  %v1030 = vadd.f32 %v959, %v1029
  %v1031 = vpop.f32.mrf.mxu0
  %v1032 = vpop.f32.mrf.mxu0
  %1033 = vdwg.mxu0
  %1034 = vmatprep.subr.bf16.mxu0 %v667
  %1035 = vmatpush1.bf16.msra.mxu0 %v666
  %1036 = vmatprep.subr.bf16.mxu0 %v663
  %1037 = vmatpush1.bf16.msra.mxu0 %v662
  %1038 = vmatprep.subr.bf16.mxu0 %v659
  %1039 = vmatpush1.bf16.msra.mxu0 %v658
  %1040 = vmatprep.subr.bf16.mxu0 %v655
  %1041 = vmatpush1.bf16.msra.mxu0 %v654
  %1042 = vmatprep.subr.bf16.mxu0 %v651
  %1043 = vmatpush1.bf16.msra.mxu0 %v650
  %1044 = vmatprep.subr.bf16.mxu0 %v647
  %1045 = vmatpush1.bf16.msra.mxu0 %v646
  %1046 = vmatprep.subr.bf16.mxu0 %v643
  %1047 = vmatpush1.bf16.msra.mxu0 %v642
  %1048 = vmatprep.subr.bf16.mxu0 %v639
  %1049 = vmatpush1.bf16.msra.mxu0 %v638
  %1050 = vmatprep.subr.bf16.mxu0 %v699
  %1051 = vmatpush2.bf16.msra.mxu0 %v698
  %1052 = vmatprep.subr.bf16.mxu0 %v695
  %1053 = vmatpush2.bf16.msra.mxu0 %v694
  %1054 = vmatprep.subr.bf16.mxu0 %v691
  %1055 = vmatpush2.bf16.msra.mxu0 %v690
  %1056 = vmatprep.subr.bf16.mxu0 %v687
  %1057 = vmatpush2.bf16.msra.mxu0 %v686
  %1058 = vmatprep.subr.bf16.mxu0 %v683
  %1059 = vmatpush2.bf16.msra.mxu0 %v682
  %1060 = vmatprep.subr.bf16.mxu0 %v679
  %1061 = vmatpush2.bf16.msra.mxu0 %v678
  %1062 = vmatprep.subr.bf16.mxu0 %v675
  %1063 = vmatpush2.bf16.msra.mxu0 %v674
  %1064 = vmatprep.subr.bf16.mxu0 %v671
  %1065 = vmatpush2.bf16.msra.mxu0 %v670
  %1066 = vmatprep.mubr.bf16.mxu0 %v221
  %1067 = vmatmul.mubr.bf16.gmra.mxu0 %v220
  %v1068 = vpop.f32.mrf.mxu0
  %v1069 = vadd.f32 %v169, %v1068
  %v1070 = vpop.f32.mrf.mxu0
  %v1071 = vadd.f32 %v173, %v1070
  %v1072 = vpop.f32.mrf.mxu0
  %v1073 = vadd.f32 %v169, %v1072
  %v1074 = vpop.f32.mrf.mxu0
  %v1075 = vadd.f32 %v173, %v1074
  %1076 = vmatprep.mubr.bf16.mxu0 %v225
  %1077 = vmatmul.mubr.bf16.gmra.mxu0 %v224
  %v1078 = vpop.f32.mrf.mxu0
  %v1079 = vadd.f32 %v169, %v1078
  %v1080 = vpop.f32.mrf.mxu0
  %v1081 = vadd.f32 %v173, %v1080
  %v1082 = vpop.f32.mrf.mxu0
  %v1083 = vadd.f32 %v169, %v1082
  %v1084 = vpop.f32.mrf.mxu0
  %v1085 = vadd.f32 %v173, %v1084
  %1086 = vmatprep.mubr.bf16.mxu0 %v229
  %1087 = vmatmul.mubr.bf16.gmra.mxu0 %v228
  %v1088 = vpop.f32.mrf.mxu0
  %v1089 = vadd.f32 %v169, %v1088
  %v1090 = vpop.f32.mrf.mxu0
  %v1091 = vadd.f32 %v173, %v1090
  %v1092 = vpop.f32.mrf.mxu0
  %v1093 = vadd.f32 %v169, %v1092
  %v1094 = vpop.f32.mrf.mxu0
  %v1095 = vadd.f32 %v173, %v1094
  %1096 = vmatprep.mubr.bf16.mxu0 %v233
  %1097 = vmatmul.mubr.bf16.gmra.mxu0 %v232
  %v1098 = vpop.f32.mrf.mxu0
  %v1099 = vadd.f32 %v169, %v1098
  %v1100 = vpop.f32.mrf.mxu0
  %v1101 = vadd.f32 %v173, %v1100
  %v1102 = vpop.f32.mrf.mxu0
  %v1103 = vpop.f32.mrf.mxu0
  %1104 = vdwg.mxu0
  %1105 = vmatprep.subr.bf16.mxu0 %v731
  %1106 = vmatpush1.bf16.msra.mxu0 %v730
  %1107 = vmatprep.subr.bf16.mxu0 %v727
  %1108 = vmatpush1.bf16.msra.mxu0 %v726
  %1109 = vmatprep.subr.bf16.mxu0 %v723
  %1110 = vmatpush1.bf16.msra.mxu0 %v722
  %1111 = vmatprep.subr.bf16.mxu0 %v719
  %1112 = vmatpush1.bf16.msra.mxu0 %v718
  %1113 = vmatprep.subr.bf16.mxu0 %v715
  %1114 = vmatpush1.bf16.msra.mxu0 %v714
  %1115 = vmatprep.subr.bf16.mxu0 %v711
  %1116 = vmatpush1.bf16.msra.mxu0 %v710
  %1117 = vmatprep.subr.bf16.mxu0 %v707
  %1118 = vmatpush1.bf16.msra.mxu0 %v706
  %1119 = vmatprep.subr.bf16.mxu0 %v703
  %1120 = vmatpush1.bf16.msra.mxu0 %v702
  %1121 = vmatprep.subr.bf16.mxu0 %v763
  %1122 = vmatpush2.bf16.msra.mxu0 %v762
  %1123 = vmatprep.subr.bf16.mxu0 %v759
  %1124 = vmatpush2.bf16.msra.mxu0 %v758
  %1125 = vmatprep.subr.bf16.mxu0 %v755
  %1126 = vmatpush2.bf16.msra.mxu0 %v754
  %1127 = vmatprep.subr.bf16.mxu0 %v751
  %1128 = vmatpush2.bf16.msra.mxu0 %v750
  %1129 = vmatprep.subr.bf16.mxu0 %v747
  %1130 = vmatpush2.bf16.msra.mxu0 %v746
  %1131 = vmatprep.subr.bf16.mxu0 %v743
  %1132 = vmatpush2.bf16.msra.mxu0 %v742
  %1133 = vmatprep.subr.bf16.mxu0 %v739
  %1134 = vmatpush2.bf16.msra.mxu0 %v738
  %1135 = vmatprep.subr.bf16.mxu0 %v735
  %1136 = vmatpush2.bf16.msra.mxu0 %v734
  %1137 = vmatprep.mubr.bf16.mxu0 %v223
  %1138 = vmatmul.mubr.bf16.gmra.mxu0 %v222
  %v1139 = vpop.f32.mrf.mxu0
  %v1140 = vadd.f32 %v1069, %v1139
  %v1141 = vpop.f32.mrf.mxu0
  %v1142 = vadd.f32 %v1071, %v1141
  %v1143 = vpop.f32.mrf.mxu0
  %v1144 = vadd.f32 %v1073, %v1143
  %v1145 = vpop.f32.mrf.mxu0
  %v1146 = vadd.f32 %v1075, %v1145
  %1147 = vmatprep.mubr.bf16.mxu0 %v227
  %1148 = vmatmul.mubr.bf16.gmra.mxu0 %v226
  %v1149 = vpop.f32.mrf.mxu0
  %v1150 = vadd.f32 %v1079, %v1149
  %v1151 = vpop.f32.mrf.mxu0
  %v1152 = vadd.f32 %v1081, %v1151
  %v1153 = vpop.f32.mrf.mxu0
  %v1154 = vadd.f32 %v1083, %v1153
  %v1155 = vpop.f32.mrf.mxu0
  %v1156 = vadd.f32 %v1085, %v1155
  %1157 = vmatprep.mubr.bf16.mxu0 %v231
  %1158 = vmatmul.mubr.bf16.gmra.mxu0 %v230
  %v1159 = vpop.f32.mrf.mxu0
  %v1160 = vadd.f32 %v1089, %v1159
  %v1161 = vpop.f32.mrf.mxu0
  %v1162 = vadd.f32 %v1091, %v1161
  %v1163 = vpop.f32.mrf.mxu0
  %v1164 = vadd.f32 %v1093, %v1163
  %v1165 = vpop.f32.mrf.mxu0
  %v1166 = vadd.f32 %v1095, %v1165
  %1167 = vmatprep.mubr.bf16.mxu0 %v235
  %1168 = vmatmul.mubr.bf16.gmra.mxu0 %v234
  %v1169 = vpop.f32.mrf.mxu0
  %v1170 = vadd.f32 %v1099, %v1169
  %v1171 = vpop.f32.mrf.mxu0
  %v1172 = vadd.f32 %v1101, %v1171
  %v1173 = vpop.f32.mrf.mxu0
  %v1174 = vpop.f32.mrf.mxu0
  %1175 = vdwg.mxu0
  %v1176 = vmax.f32 %v998, 0.0
  %v1177 = vmax.f32 %v1000, 0.0
  %v1178 = vmax.f32 %v1140, 0.0
  %v1179 = vmax.f32 %v1142, 0.0
  %v1180 = vmax.f32 %v1002, 0.0
  %v1181 = vmax.f32 %v1004, 0.0
  %v1182 = vmax.f32 %v1144, 0.0
  %v1183 = vmax.f32 %v1146, 0.0
  %v1184 = vmax.f32 %v1008, 0.0
  %v1185 = vmax.f32 %v1010, 0.0
  %v1186 = vmax.f32 %v1150, 0.0
  %v1187 = vmax.f32 %v1152, 0.0
  %v1188 = vmax.f32 %v1012, 0.0
  %v1189 = vmax.f32 %v1014, 0.0
  %v1190 = vmax.f32 %v1154, 0.0
  %v1191 = vmax.f32 %v1156, 0.0
  %v1192 = vmax.f32 %v1018, 0.0
  %v1193 = vmax.f32 %v1020, 0.0
  %v1194 = vmax.f32 %v1160, 0.0
  %v1195 = vmax.f32 %v1162, 0.0
  %v1196 = vmax.f32 %v1022, 0.0
  %v1197 = vmax.f32 %v1024, 0.0
  %v1198 = vmax.f32 %v1164, 0.0
  %v1199 = vmax.f32 %v1166, 0.0
  %v1200 = vmax.f32 %v1028, 0.0
  %v1201 = vmax.f32 %v1030, 0.0
  %v1202 = vmax.f32 %v1170, 0.0
  %v1203 = vmax.f32 %v1172, 0.0
  %v1204 = vpack.c.bf16 %v1180, %v1176
  %v1205 = vpack.c.bf16 %v1181, %v1177
  %v1206 = vpack.c.bf16 %v1182, %v1178
  %v1207 = vpack.c.bf16 %v1183, %v1179
  %v1208 = vpack.c.bf16 %v1188, %v1184
  %v1209 = vpack.c.bf16 %v1189, %v1185
  %v1210 = vpack.c.bf16 %v1190, %v1186
  %v1211 = vpack.c.bf16 %v1191, %v1187
  %v1212 = vpack.c.bf16 %v1196, %v1192
  %v1213 = vpack.c.bf16 %v1197, %v1193
  %v1214 = vpack.c.bf16 %v1198, %v1194
  %v1215 = vpack.c.bf16 %v1199, %v1195
  %v1216 = vpack.c.bf16 %v1200, %v1200
  %v1217 = vpack.c.bf16 %v1201, %v1201
  %v1218 = vpack.c.bf16 %v1202, %v1202
  %v1219 = vpack.c.bf16 %v1203, %v1203
  %v1236 = vunpack.c.l.b16 %v1204
  %v1237 = vunpack.c.l.b16 %v1205
  %v1238 = vunpack.c.l.b16 %v1206
  %v1239 = vunpack.c.l.b16 %v1207
  %v1240 = vunpack.c.h.b16 %v1204
  %v1241 = vunpack.c.h.b16 %v1205
  %v1242 = vunpack.c.h.b16 %v1206
  %v1243 = vunpack.c.h.b16 %v1207
  %v1244 = vunpack.c.l.b16 %v1208
  %v1245 = vunpack.c.l.b16 %v1209
  %v1246 = vunpack.c.l.b16 %v1210
  %v1247 = vunpack.c.l.b16 %v1211
  %v1248 = vunpack.c.h.b16 %v1208
  %v1249 = vunpack.c.h.b16 %v1209
  %v1250 = vunpack.c.h.b16 %v1210
  %v1251 = vunpack.c.h.b16 %v1211
  %v1252 = vunpack.c.l.b16 %v1212
  %v1253 = vunpack.c.l.b16 %v1213
  %v1254 = vunpack.c.l.b16 %v1214
  %v1255 = vunpack.c.l.b16 %v1215
  %v1256 = vunpack.c.h.b16 %v1212
  %v1257 = vunpack.c.h.b16 %v1213
  %v1258 = vunpack.c.h.b16 %v1214
  %v1259 = vunpack.c.h.b16 %v1215
  %v1260 = vunpack.c.l.b16 %v1216
  %v1261 = vunpack.c.l.b16 %v1217
  %v1262 = vunpack.c.l.b16 %v1218
  %v1263 = vunpack.c.l.b16 %v1219
  %v1264 = vpack.c.b16 %v1237, %v1236
  %v1265 = vpack.c.b16 %v1239, %v1238
  %v1266 = vpack.c.b16 %v1241, %v1240
  %v1267 = vpack.c.b16 %v1243, %v1242
  %v1268 = vpack.c.b16 %v1245, %v1244
  %v1269 = vpack.c.b16 %v1247, %v1246
  %v1270 = vpack.c.b16 %v1249, %v1248
  %v1271 = vpack.c.b16 %v1251, %v1250
  %v1272 = vpack.c.b16 %v1253, %v1252
  %v1273 = vpack.c.b16 %v1255, %v1254
  %v1274 = vpack.c.b16 %v1257, %v1256
  %v1275 = vpack.c.b16 %v1259, %v1258
  %v1276 = vpack.c.b16 %v1261, %v1260
  %v1277 = vpack.c.b16 %v1263, %v1262
  %1292 = vst [vmem:[%s3] sm:$0xff] %v1264
  %1293 = vst [vmem:[%s3 + $0x8] sm:$0xff] %v1265
  %1294 = vst [vmem:[%s3 + $0x10] sm:$0xff] %v1266
  %1295 = vst [vmem:[%s3 + $0x18] sm:$0xff] %v1267
  %1296 = vst [vmem:[%s3 + $0x20] sm:$0xff] %v1268
  %1297 = vst [vmem:[%s3 + $0x28] sm:$0xff] %v1269
  %1298 = vst [vmem:[%s3 + $0x30] sm:$0xff] %v1270
  %1299 = vst [vmem:[%s3 + $0x38] sm:$0xff] %v1271
  %1300 = vst [vmem:[%s3 + $0x40] sm:$0xff] %v1272
  %1301 = vst [vmem:[%s3 + $0x48] sm:$0xff] %v1273
  %1302 = vst [vmem:[%s3 + $0x50] sm:$0xff] %v1274
  %1303 = vst [vmem:[%s3 + $0x58] sm:$0xff] %v1275
  %1304 = vst [vmem:[%s3 + $0x60] sm:$0x11] %v1276
  %1305 = vst [vmem:[%s3 + $0x68] sm:$0x11] %v1277
  // Predicated region
  $region14: #{_lambda_.12} parent=0 // pred_check
    _
  $region15: #{_lambda_.12} parent=0 // pred_check_branch
    %1307 = sbr.rel (0) target = $region17
  $region16: #{_lambda_.12} parent=0 // pred_region
    _
  $region17: #{_lambda_.12} parent=0 // pred_fallthru
    _
  // Predicated region
  $region18: #{_lambda_.12} parent=0 // pred_check
    _
  $region19: #{_lambda_.12} parent=0 // pred_check_branch
    %1309 = sbr.rel (0) target = $region21
  $region20: #{_lambda_.12} parent=0 // pred_region
    _
  $region21: #{_lambda_.12} parent=0 // pred_fallthru
    _

// kernel: _lambda_.11
$region0: #{_lambda_.11}
  #allocation0 [shape = 'u32[]', space=smem, size = 0x4, offset = 0x4, fixed_abs, tag = 'smem constant byte address 0x4 - core index']
  #allocation1 [shape = 'u32[144,128]{1,0:T(1,128)}', space=vmem, size = 0x12000, scoped, tag = 'internal scratch']
  %s0 = inlined_call_operand.vmem [shape: bf16[2,2048], index: 0, kind: input, shape index: {}]
  %s1 = inlined_call_operand.vmem [shape: bf16[2048,128], index: 1, kind: input, shape index: {}]
  %s2 = inlined_call_operand.vmem [shape: f32[1,128], index: 2, kind: input, shape index: {}]
  %s3 = inlined_call_operand.vmem [shape: f32[128,2048], index: 3, kind: input, shape index: {}]
  %s4 = inlined_call_operand.vmem [shape: f32[1,2048], index: 4, kind: input, shape index: {}]
  %s5 = inlined_call_operand.vmem [shape: bf16[2,2048], index: 5, kind: output, shape index: {}]
  %s6 = sld [smem:[#allocation0]]
  $region30: #{_lambda_.11} parent=0
    _
  %s8 = ssub.s32 1, %s6
  %s9 = scalar_select 0, %s8, %s6
  // Predicated region
  $region2: #{_lambda_.11} parent=0 // pred_check
    _
  $region3: #{_lambda_.11} parent=0 // pred_check_branch
    %11 = sbr.rel (0) target = $region5
  $region4: #{_lambda_.11} parent=0 // pred_region
    _
  $region5: #{_lambda_.11} parent=0 // pred_fallthru
    _
  // Predicated region
  $region6: #{_lambda_.11} parent=0 // pred_check
    _
  $region7: #{_lambda_.11} parent=0 // pred_check_branch
    %13 = sbr.rel (0) target = $region9
  $region8: #{_lambda_.11} parent=0 // pred_region
    _
  $region9: #{_lambda_.11} parent=0 // pred_fallthru
    _
  // Predicated region
  $region10: #{_lambda_.11} parent=0 // pred_check
    _
  $region11: #{_lambda_.11} parent=0 // pred_check_branch
    %15 = sbr.rel (0) target = $region13
  $region12: #{_lambda_.11} parent=0 // pred_region
    _
  $region13: #{_lambda_.11} parent=0 // pred_fallthru
    _
  // Predicated region
  $region14: #{_lambda_.11} parent=0 // pred_check
    _
  $region15: #{_lambda_.11} parent=0 // pred_check_branch
    %17 = sbr.rel (0) target = $region17
  $region16: #{_lambda_.11} parent=0 // pred_region
    _
  $region17: #{_lambda_.11} parent=0 // pred_fallthru
    _
  // Predicated region
  $region18: #{_lambda_.11} parent=0 // pred_check
    _
  $region19: #{_lambda_.11} parent=0 // pred_check_branch
    %19 = sbr.rel (0) target = $region21
  $region20: #{_lambda_.11} parent=0 // pred_region
    _
  $region21: #{_lambda_.11} parent=0 // pred_fallthru
    _
  %v21 = vld [vmem:[%s0] sm:$0xff]
  %v22 = vld [vmem:[%s0 + $0x8] sm:$0xff]
  %v23 = vld [vmem:[%s1] sm:$0xf]
  %v24 = vld [vmem:[%s1 + $0x4] sm:$0xf]
  %v25 = vld [vmem:[%s1 + $0x8] sm:$0xf]
  %v26 = vld [vmem:[%s1 + $0xc] sm:$0xf]
  %v27 = vld [vmem:[%s1 + $0x10] sm:$0xf]
  %v28 = vld [vmem:[%s1 + $0x14] sm:$0xf]
  %v29 = vld [vmem:[%s1 + $0x18] sm:$0xf]
  %v30 = vld [vmem:[%s1 + $0x1c] sm:$0xf]
  %v31 = vld [vmem:[%s1 + $0x20] sm:$0xf]
  %v32 = vld [vmem:[%s1 + $0x24] sm:$0xf]
  %v33 = vld [vmem:[%s1 + $0x28] sm:$0xf]
  %v34 = vld [vmem:[%s1 + $0x2c] sm:$0xf]
  %v35 = vld [vmem:[%s1 + $0x30] sm:$0xf]
  %v36 = vld [vmem:[%s1 + $0x34] sm:$0xf]
  %v37 = vld [vmem:[%s1 + $0x38] sm:$0xf]
  %v38 = vld [vmem:[%s1 + $0x3c] sm:$0xf]
  %v39 = vld [vmem:[%s1 + $0x40] sm:$0xf]
  %v40 = vld [vmem:[%s1 + $0x44] sm:$0xf]
  %v41 = vld [vmem:[%s1 + $0x48] sm:$0xf]
  %v42 = vld [vmem:[%s1 + $0x4c] sm:$0xf]
  %v43 = vld [vmem:[%s1 + $0x50] sm:$0xf]
  %v44 = vld [vmem:[%s1 + $0x54] sm:$0xf]
  %v45 = vld [vmem:[%s1 + $0x58] sm:$0xf]
  %v46 = vld [vmem:[%s1 + $0x5c] sm:$0xf]
  %v47 = vld [vmem:[%s1 + $0x60] sm:$0xf]
  %v48 = vld [vmem:[%s1 + $0x64] sm:$0xf]
  %v49 = vld [vmem:[%s1 + $0x68] sm:$0xf]
  %v50 = vld [vmem:[%s1 + $0x6c] sm:$0xf]
  %v51 = vld [vmem:[%s1 + $0x70] sm:$0xf]
  %v52 = vld [vmem:[%s1 + $0x74] sm:$0xf]
  %v53 = vld [vmem:[%s1 + $0x78] sm:$0xf]
  %v54 = vld [vmem:[%s1 + $0x7c] sm:$0xf]
  %v55 = vld [vmem:[%s1 + $0x80] sm:$0xf]
  %v56 = vld [vmem:[%s1 + $0x84] sm:$0xf]
  %v57 = vld [vmem:[%s1 + $0x88] sm:$0xf]
  %v58 = vld [vmem:[%s1 + $0x8c] sm:$0xf]
  %v59 = vld [vmem:[%s1 + $0x90] sm:$0xf]
  %v60 = vld [vmem:[%s1 + $0x94] sm:$0xf]
  %v61 = vld [vmem:[%s1 + $0x98] sm:$0xf]
  %v62 = vld [vmem:[%s1 + $0x9c] sm:$0xf]
  %v63 = vld [vmem:[%s1 + $0xa0] sm:$0xf]
  %v64 = vld [vmem:[%s1 + $0xa4] sm:$0xf]
  %v65 = vld [vmem:[%s1 + $0xa8] sm:$0xf]
  %v66 = vld [vmem:[%s1 + $0xac] sm:$0xf]
  %v67 = vld [vmem:[%s1 + $0xb0] sm:$0xf]
  %v68 = vld [vmem:[%s1 + $0xb4] sm:$0xf]
  %v69 = vld [vmem:[%s1 + $0xb8] sm:$0xf]
  %v70 = vld [vmem:[%s1 + $0xbc] sm:$0xf]
  %v71 = vld [vmem:[%s1 + $0xc0] sm:$0xf]
  %v72 = vld [vmem:[%s1 + $0xc4] sm:$0xf]
  %v73 = vld [vmem:[%s1 + $0xc8] sm:$0xf]
  %v74 = vld [vmem:[%s1 + $0xcc] sm:$0xf]
  %v75 = vld [vmem:[%s1 + $0xd0] sm:$0xf]
  %v76 = vld [vmem:[%s1 + $0xd4] sm:$0xf]
  %v77 = vld [vmem:[%s1 + $0xd8] sm:$0xf]
  %v78 = vld [vmem:[%s1 + $0xdc] sm:$0xf]
  %v79 = vld [vmem:[%s1 + $0xe0] sm:$0xf]
  %v80 = vld [vmem:[%s1 + $0xe4] sm:$0xf]
  %v81 = vld [vmem:[%s1 + $0xe8] sm:$0xf]
  %v82 = vld [vmem:[%s1 + $0xec] sm:$0xf]
  %v83 = vld [vmem:[%s1 + $0xf0] sm:$0xf]
  %v84 = vld [vmem:[%s1 + $0xf4] sm:$0xf]
  %v85 = vld [vmem:[%s1 + $0xf8] sm:$0xf]
  %v86 = vld [vmem:[%s1 + $0xfc] sm:$0xf]
  %v87 = vld [vmem:[%s1 + $0x100] sm:$0xf]
  %v88 = vld [vmem:[%s1 + $0x104] sm:$0xf]
  %v89 = vld [vmem:[%s1 + $0x108] sm:$0xf]
  %v90 = vld [vmem:[%s1 + $0x10c] sm:$0xf]
  %v91 = vld [vmem:[%s1 + $0x110] sm:$0xf]
  %v92 = vld [vmem:[%s1 + $0x114] sm:$0xf]
  %v93 = vld [vmem:[%s1 + $0x118] sm:$0xf]
  %v94 = vld [vmem:[%s1 + $0x11c] sm:$0xf]
  %v95 = vld [vmem:[%s1 + $0x120] sm:$0xf]
  %v96 = vld [vmem:[%s1 + $0x124] sm:$0xf]
  %v97 = vld [vmem:[%s1 + $0x128] sm:$0xf]
  %v98 = vld [vmem:[%s1 + $0x12c] sm:$0xf]
  %v99 = vld [vmem:[%s1 + $0x130] sm:$0xf]
  %v100 = vld [vmem:[%s1 + $0x134] sm:$0xf]
  %v101 = vld [vmem:[%s1 + $0x138] sm:$0xf]
  %v102 = vld [vmem:[%s1 + $0x13c] sm:$0xf]
  %v103 = vld [vmem:[%s1 + $0x140] sm:$0xf]
  %v104 = vld [vmem:[%s1 + $0x144] sm:$0xf]
  %v105 = vld [vmem:[%s1 + $0x148] sm:$0xf]
  %v106 = vld [vmem:[%s1 + $0x14c] sm:$0xf]
  %v107 = vld [vmem:[%s1 + $0x150] sm:$0xf]
  %v108 = vld [vmem:[%s1 + $0x154] sm:$0xf]
  %v109 = vld [vmem:[%s1 + $0x158] sm:$0xf]
  %v110 = vld [vmem:[%s1 + $0x15c] sm:$0xf]
  %v111 = vld [vmem:[%s1 + $0x160] sm:$0xf]
  %v112 = vld [vmem:[%s1 + $0x164] sm:$0xf]
  %v113 = vld [vmem:[%s1 + $0x168] sm:$0xf]
  %v114 = vld [vmem:[%s1 + $0x16c] sm:$0xf]
  %v115 = vld [vmem:[%s1 + $0x170] sm:$0xf]
  %v116 = vld [vmem:[%s1 + $0x174] sm:$0xf]
  %v117 = vld [vmem:[%s1 + $0x178] sm:$0xf]
  %v118 = vld [vmem:[%s1 + $0x17c] sm:$0xf]
  %v119 = vld [vmem:[%s1 + $0x180] sm:$0xf]
  %v120 = vld [vmem:[%s1 + $0x184] sm:$0xf]
  %v121 = vld [vmem:[%s1 + $0x188] sm:$0xf]
  %v122 = vld [vmem:[%s1 + $0x18c] sm:$0xf]
  %v123 = vld [vmem:[%s1 + $0x190] sm:$0xf]
  %v124 = vld [vmem:[%s1 + $0x194] sm:$0xf]
  %v125 = vld [vmem:[%s1 + $0x198] sm:$0xf]
  %v126 = vld [vmem:[%s1 + $0x19c] sm:$0xf]
  %v127 = vld [vmem:[%s1 + $0x1a0] sm:$0xf]
  %v128 = vld [vmem:[%s1 + $0x1a4] sm:$0xf]
  %v129 = vld [vmem:[%s1 + $0x1a8] sm:$0xf]
  %v130 = vld [vmem:[%s1 + $0x1ac] sm:$0xf]
  %v131 = vld [vmem:[%s1 + $0x1b0] sm:$0xf]
  %v132 = vld [vmem:[%s1 + $0x1b4] sm:$0xf]
  %v133 = vld [vmem:[%s1 + $0x1b8] sm:$0xf]
  %v134 = vld [vmem:[%s1 + $0x1bc] sm:$0xf]
  %v135 = vld [vmem:[%s1 + $0x1c0] sm:$0xf]
  %v136 = vld [vmem:[%s1 + $0x1c4] sm:$0xf]
  %v137 = vld [vmem:[%s1 + $0x1c8] sm:$0xf]
  %v138 = vld [vmem:[%s1 + $0x1cc] sm:$0xf]
  %v139 = vld [vmem:[%s1 + $0x1d0] sm:$0xf]
  %v140 = vld [vmem:[%s1 + $0x1d4] sm:$0xf]
  %v141 = vld [vmem:[%s1 + $0x1d8] sm:$0xf]
  %v142 = vld [vmem:[%s1 + $0x1dc] sm:$0xf]
  %v143 = vld [vmem:[%s1 + $0x1e0] sm:$0xf]
  %v144 = vld [vmem:[%s1 + $0x1e4] sm:$0xf]
  %v145 = vld [vmem:[%s1 + $0x1e8] sm:$0xf]
  %v146 = vld [vmem:[%s1 + $0x1ec] sm:$0xf]
  %v147 = vld [vmem:[%s1 + $0x1f0] sm:$0xf]
  %v148 = vld [vmem:[%s1 + $0x1f4] sm:$0xf]
  %v149 = vld [vmem:[%s1 + $0x1f8] sm:$0xf]
  %v150 = vld [vmem:[%s1 + $0x1fc] sm:$0xf]
  %v151 = vld [vmem:[%s1 + $0x200] sm:$0xf]
  %v152 = vld [vmem:[%s1 + $0x204] sm:$0xf]
  %v153 = vld [vmem:[%s1 + $0x208] sm:$0xf]
  %v154 = vld [vmem:[%s1 + $0x20c] sm:$0xf]
  %v155 = vld [vmem:[%s1 + $0x210] sm:$0xf]
  %v156 = vld [vmem:[%s1 + $0x214] sm:$0xf]
  %v157 = vld [vmem:[%s1 + $0x218] sm:$0xf]
  %v158 = vld [vmem:[%s1 + $0x21c] sm:$0xf]
  %v159 = vld [vmem:[%s1 + $0x220] sm:$0xf]
  %v160 = vld [vmem:[%s1 + $0x224] sm:$0xf]
  %v161 = vld [vmem:[%s1 + $0x228] sm:$0xf]
  %v162 = vld [vmem:[%s1 + $0x22c] sm:$0xf]
  %v163 = vld [vmem:[%s1 + $0x230] sm:$0xf]
  %v164 = vld [vmem:[%s1 + $0x234] sm:$0xf]
  %v165 = vld [vmem:[%s1 + $0x238] sm:$0xf]
  %v166 = vld [vmem:[%s1 + $0x23c] sm:$0xf]
  %v167 = vld [vmem:[%s1 + $0x240] sm:$0xf]
  %v168 = vld [vmem:[%s1 + $0x244] sm:$0xf]
  %v169 = vld [vmem:[%s1 + $0x248] sm:$0xf]
  %v170 = vld [vmem:[%s1 + $0x24c] sm:$0xf]
  %v171 = vld [vmem:[%s1 + $0x250] sm:$0xf]
  %v172 = vld [vmem:[%s1 + $0x254] sm:$0xf]
  %v173 = vld [vmem:[%s1 + $0x258] sm:$0xf]
  %v174 = vld [vmem:[%s1 + $0x25c] sm:$0xf]
  %v175 = vld [vmem:[%s1 + $0x260] sm:$0xf]
  %v176 = vld [vmem:[%s1 + $0x264] sm:$0xf]
  %v177 = vld [vmem:[%s1 + $0x268] sm:$0xf]
  %v178 = vld [vmem:[%s1 + $0x26c] sm:$0xf]
  %v179 = vld [vmem:[%s1 + $0x270] sm:$0xf]
  %v180 = vld [vmem:[%s1 + $0x274] sm:$0xf]
  %v181 = vld [vmem:[%s1 + $0x278] sm:$0xf]
  %v182 = vld [vmem:[%s1 + $0x27c] sm:$0xf]
  %v183 = vld [vmem:[%s1 + $0x280] sm:$0xf]
  %v184 = vld [vmem:[%s1 + $0x284] sm:$0xf]
  %v185 = vld [vmem:[%s1 + $0x288] sm:$0xf]
  %v186 = vld [vmem:[%s1 + $0x28c] sm:$0xf]
  %v187 = vld [vmem:[%s1 + $0x290] sm:$0xf]
  %v188 = vld [vmem:[%s1 + $0x294] sm:$0xf]
  %v189 = vld [vmem:[%s1 + $0x298] sm:$0xf]
  %v190 = vld [vmem:[%s1 + $0x29c] sm:$0xf]
  %v191 = vld [vmem:[%s1 + $0x2a0] sm:$0xf]
  %v192 = vld [vmem:[%s1 + $0x2a4] sm:$0xf]
  %v193 = vld [vmem:[%s1 + $0x2a8] sm:$0xf]
  %v194 = vld [vmem:[%s1 + $0x2ac] sm:$0xf]
  %v195 = vld [vmem:[%s1 + $0x2b0] sm:$0xf]
  %v196 = vld [vmem:[%s1 + $0x2b4] sm:$0xf]
  %v197 = vld [vmem:[%s1 + $0x2b8] sm:$0xf]
  %v198 = vld [vmem:[%s1 + $0x2bc] sm:$0xf]
  %v199 = vld [vmem:[%s1 + $0x2c0] sm:$0xf]
  %v200 = vld [vmem:[%s1 + $0x2c4] sm:$0xf]
  %v201 = vld [vmem:[%s1 + $0x2c8] sm:$0xf]
  %v202 = vld [vmem:[%s1 + $0x2cc] sm:$0xf]
  %v203 = vld [vmem:[%s1 + $0x2d0] sm:$0xf]
  %v204 = vld [vmem:[%s1 + $0x2d4] sm:$0xf]
  %v205 = vld [vmem:[%s1 + $0x2d8] sm:$0xf]
  %v206 = vld [vmem:[%s1 + $0x2dc] sm:$0xf]
  %v207 = vld [vmem:[%s1 + $0x2e0] sm:$0xf]
  %v208 = vld [vmem:[%s1 + $0x2e4] sm:$0xf]
  %v209 = vld [vmem:[%s1 + $0x2e8] sm:$0xf]
  %v210 = vld [vmem:[%s1 + $0x2ec] sm:$0xf]
  %v211 = vld [vmem:[%s1 + $0x2f0] sm:$0xf]
  %v212 = vld [vmem:[%s1 + $0x2f4] sm:$0xf]
  %v213 = vld [vmem:[%s1 + $0x2f8] sm:$0xf]
  %v214 = vld [vmem:[%s1 + $0x2fc] sm:$0xf]
  %v215 = vld [vmem:[%s1 + $0x300] sm:$0xf]
  %v216 = vld [vmem:[%s1 + $0x304] sm:$0xf]
  %v217 = vld [vmem:[%s1 + $0x308] sm:$0xf]
  %v218 = vld [vmem:[%s1 + $0x30c] sm:$0xf]
  %v219 = vld [vmem:[%s1 + $0x310] sm:$0xf]
  %v220 = vld [vmem:[%s1 + $0x314] sm:$0xf]
  %v221 = vld [vmem:[%s1 + $0x318] sm:$0xf]
  %v222 = vld [vmem:[%s1 + $0x31c] sm:$0xf]
  %v223 = vld [vmem:[%s1 + $0x320] sm:$0xf]
  %v224 = vld [vmem:[%s1 + $0x324] sm:$0xf]
  %v225 = vld [vmem:[%s1 + $0x328] sm:$0xf]
  %v226 = vld [vmem:[%s1 + $0x32c] sm:$0xf]
  %v227 = vld [vmem:[%s1 + $0x330] sm:$0xf]
  %v228 = vld [vmem:[%s1 + $0x334] sm:$0xf]
  %v229 = vld [vmem:[%s1 + $0x338] sm:$0xf]
  %v230 = vld [vmem:[%s1 + $0x33c] sm:$0xf]
  %v231 = vld [vmem:[%s1 + $0x340] sm:$0xf]
  %v232 = vld [vmem:[%s1 + $0x344] sm:$0xf]
  %v233 = vld [vmem:[%s1 + $0x348] sm:$0xf]
  %v234 = vld [vmem:[%s1 + $0x34c] sm:$0xf]
  %v235 = vld [vmem:[%s1 + $0x350] sm:$0xf]
  %v236 = vld [vmem:[%s1 + $0x354] sm:$0xf]
  %v237 = vld [vmem:[%s1 + $0x358] sm:$0xf]
  %v238 = vld [vmem:[%s1 + $0x35c] sm:$0xf]
  %v239 = vld [vmem:[%s1 + $0x360] sm:$0xf]
  %v240 = vld [vmem:[%s1 + $0x364] sm:$0xf]
  %v241 = vld [vmem:[%s1 + $0x368] sm:$0xf]
  %v242 = vld [vmem:[%s1 + $0x36c] sm:$0xf]
  %v243 = vld [vmem:[%s1 + $0x370] sm:$0xf]
  %v244 = vld [vmem:[%s1 + $0x374] sm:$0xf]
  %v245 = vld [vmem:[%s1 + $0x378] sm:$0xf]
  %v246 = vld [vmem:[%s1 + $0x37c] sm:$0xf]
  %v247 = vld [vmem:[%s1 + $0x380] sm:$0xf]
  %v248 = vld [vmem:[%s1 + $0x384] sm:$0xf]
  %v249 = vld [vmem:[%s1 + $0x388] sm:$0xf]
  %v250 = vld [vmem:[%s1 + $0x38c] sm:$0xf]
  %v251 = vld [vmem:[%s1 + $0x390] sm:$0xf]
  %v252 = vld [vmem:[%s1 + $0x394] sm:$0xf]
  %v253 = vld [vmem:[%s1 + $0x398] sm:$0xf]
  %v254 = vld [vmem:[%s1 + $0x39c] sm:$0xf]
  %v255 = vld [vmem:[%s1 + $0x3a0] sm:$0xf]
  %v256 = vld [vmem:[%s1 + $0x3a4] sm:$0xf]
  %v257 = vld [vmem:[%s1 + $0x3a8] sm:$0xf]
  %v258 = vld [vmem:[%s1 + $0x3ac] sm:$0xf]
  %v259 = vld [vmem:[%s1 + $0x3b0] sm:$0xf]
  %v260 = vld [vmem:[%s1 + $0x3b4] sm:$0xf]
  %v261 = vld [vmem:[%s1 + $0x3b8] sm:$0xf]
  %v262 = vld [vmem:[%s1 + $0x3bc] sm:$0xf]
  %v263 = vld [vmem:[%s1 + $0x3c0] sm:$0xf]
  %v264 = vld [vmem:[%s1 + $0x3c4] sm:$0xf]
  %v265 = vld [vmem:[%s1 + $0x3c8] sm:$0xf]
  %v266 = vld [vmem:[%s1 + $0x3cc] sm:$0xf]
  %v267 = vld [vmem:[%s1 + $0x3d0] sm:$0xf]
  %v268 = vld [vmem:[%s1 + $0x3d4] sm:$0xf]
  %v269 = vld [vmem:[%s1 + $0x3d8] sm:$0xf]
  %v270 = vld [vmem:[%s1 + $0x3dc] sm:$0xf]
  %v271 = vld [vmem:[%s1 + $0x3e0] sm:$0xf]
  %v272 = vld [vmem:[%s1 + $0x3e4] sm:$0xf]
  %v273 = vld [vmem:[%s1 + $0x3e8] sm:$0xf]
  %v274 = vld [vmem:[%s1 + $0x3ec] sm:$0xf]
  %v275 = vld [vmem:[%s1 + $0x3f0] sm:$0xf]
  %v276 = vld [vmem:[%s1 + $0x3f4] sm:$0xf]
  %v277 = vld [vmem:[%s1 + $0x3f8] sm:$0xf]
  %v278 = vld [vmem:[%s1 + $0x3fc] sm:$0xf]
  %v279 = vld [vmem:[%s2] sm:$0x1]
  %v281 = vlaneseq
  %v282 = vshrl.u32 %v281, 7
  %v283 = vsub.s32 0, %v282
  %v284 = vrot.slane %v279, %v283
  %v288 = vcombine.high %v21, %v21
  %v290 = vunpack.c.l.s4 1966171168
  %v291 = vunpack.c.0.s8 %v290
  %v292 = vlaneseq
  %v293 = vshrl.u32 %v292, 7
  %v294 = vsub.s32 %v291, %v293
  %v295 = vrot.slane %v21, %v294
  %v297 = vunpack.c.l.s4 1966171168
  %v298 = vunpack.c.0.s8 %v297
  %v299 = vlaneseq
  %v300 = vshrl.u32 %v299, 7
  %v301 = vsub.s32 %v298, %v300
  %v302 = vrot.slane %v288, %v301
  %v303 = vcombine.high %v295, %v295
  %v304 = vcombine.high %v302, %v302
  %v306 = vunpack.c.l.s4 1966171168
  %v307 = vunpack.c.0.s8 %v306
  %v308 = vlaneseq
  %v309 = vshrl.u32 %v308, 7
  %v310 = vsub.s32 %v307, %v309
  %v311 = vrot.slane %v295, %v310
  %v313 = vunpack.c.l.s4 1966171168
  %v314 = vunpack.c.0.s8 %v313
  %v315 = vlaneseq
  %v316 = vshrl.u32 %v315, 7
  %v317 = vsub.s32 %v314, %v316
  %v318 = vrot.slane %v302, %v317
  %v320 = vunpack.c.l.s4 1966171168
  %v321 = vunpack.c.0.s8 %v320
  %v322 = vlaneseq
  %v323 = vshrl.u32 %v322, 7
  %v324 = vsub.s32 %v321, %v323
  %v325 = vrot.slane %v303, %v324
  %v327 = vunpack.c.l.s4 1966171168
  %v328 = vunpack.c.0.s8 %v327
  %v329 = vlaneseq
  %v330 = vshrl.u32 %v329, 7
  %v331 = vsub.s32 %v328, %v330
  %v332 = vrot.slane %v304, %v331
  %v333 = vcombine.high %v311, %v311
  %v334 = vcombine.high %v318, %v318
  %v335 = vcombine.high %v325, %v325
  %v336 = vcombine.high %v332, %v332
  %v337 = vcombine.high %v22, %v22
  %v339 = vunpack.c.l.s4 1966171168
  %v340 = vunpack.c.0.s8 %v339
  %v341 = vlaneseq
  %v342 = vshrl.u32 %v341, 7
  %v343 = vsub.s32 %v340, %v342
  %v344 = vrot.slane %v22, %v343
  %v346 = vunpack.c.l.s4 1966171168
  %v347 = vunpack.c.0.s8 %v346
  %v348 = vlaneseq
  %v349 = vshrl.u32 %v348, 7
  %v350 = vsub.s32 %v347, %v349
  %v351 = vrot.slane %v337, %v350
  %v352 = vcombine.high %v344, %v344
  %v353 = vcombine.high %v351, %v351
  %v355 = vunpack.c.l.s4 1966171168
  %v356 = vunpack.c.0.s8 %v355
  %v357 = vlaneseq
  %v358 = vshrl.u32 %v357, 7
  %v359 = vsub.s32 %v356, %v358
  %v360 = vrot.slane %v344, %v359
  %v362 = vunpack.c.l.s4 1966171168
  %v363 = vunpack.c.0.s8 %v362
  %v364 = vlaneseq
  %v365 = vshrl.u32 %v364, 7
  %v366 = vsub.s32 %v363, %v365
  %v367 = vrot.slane %v351, %v366
  %v369 = vunpack.c.l.s4 1966171168
  %v370 = vunpack.c.0.s8 %v369
  %v371 = vlaneseq
  %v372 = vshrl.u32 %v371, 7
  %v373 = vsub.s32 %v370, %v372
  %v374 = vrot.slane %v352, %v373
  %v376 = vunpack.c.l.s4 1966171168
  %v377 = vunpack.c.0.s8 %v376
  %v378 = vlaneseq
  %v379 = vshrl.u32 %v378, 7
  %v380 = vsub.s32 %v377, %v379
  %v381 = vrot.slane %v353, %v380
  %v382 = vcombine.high %v360, %v360
  %v383 = vcombine.high %v367, %v367
  %v384 = vcombine.high %v374, %v374
  %v385 = vcombine.high %v381, %v381
  %v658 = vunpack.c.l.b16 %v23
  %v659 = vunpack.c.l.b16 %v24
  %v660 = vunpack.c.l.b16 %v25
  %v661 = vunpack.c.l.b16 %v26
  %v662 = vunpack.c.l.b16 %v27
  %v663 = vunpack.c.l.b16 %v28
  %v664 = vunpack.c.l.b16 %v29
  %v665 = vunpack.c.l.b16 %v30
  %v666 = vunpack.c.l.b16 %v31
  %v667 = vunpack.c.l.b16 %v32
  %v668 = vunpack.c.l.b16 %v33
  %v669 = vunpack.c.l.b16 %v34
  %v670 = vunpack.c.l.b16 %v35
  %v671 = vunpack.c.l.b16 %v36
  %v672 = vunpack.c.l.b16 %v37
  %v673 = vunpack.c.l.b16 %v38
  %v674 = vunpack.c.l.b16 %v39
  %v675 = vunpack.c.l.b16 %v40
  %v676 = vunpack.c.l.b16 %v41
  %v677 = vunpack.c.l.b16 %v42
  %v678 = vunpack.c.l.b16 %v43
  %v679 = vunpack.c.l.b16 %v44
  %v680 = vunpack.c.l.b16 %v45
  %v681 = vunpack.c.l.b16 %v46
  %v682 = vunpack.c.l.b16 %v47
  %v683 = vunpack.c.l.b16 %v48
  %v684 = vunpack.c.l.b16 %v49
  %v685 = vunpack.c.l.b16 %v50
  %v686 = vunpack.c.l.b16 %v51
  %v687 = vunpack.c.l.b16 %v52
  %v688 = vunpack.c.l.b16 %v53
  %v689 = vunpack.c.l.b16 %v54
  %v690 = vunpack.c.l.b16 %v55
  %v691 = vunpack.c.l.b16 %v56
  %v692 = vunpack.c.l.b16 %v57
  %v693 = vunpack.c.l.b16 %v58
  %v694 = vunpack.c.l.b16 %v59
  %v695 = vunpack.c.l.b16 %v60
  %v696 = vunpack.c.l.b16 %v61
  %v697 = vunpack.c.l.b16 %v62
  %v698 = vunpack.c.l.b16 %v63
  %v699 = vunpack.c.l.b16 %v64
  %v700 = vunpack.c.l.b16 %v65
  %v701 = vunpack.c.l.b16 %v66
  %v702 = vunpack.c.l.b16 %v67
  %v703 = vunpack.c.l.b16 %v68
  %v704 = vunpack.c.l.b16 %v69
  %v705 = vunpack.c.l.b16 %v70
  %v706 = vunpack.c.l.b16 %v71
  %v707 = vunpack.c.l.b16 %v72
  %v708 = vunpack.c.l.b16 %v73
  %v709 = vunpack.c.l.b16 %v74
  %v710 = vunpack.c.l.b16 %v75
  %v711 = vunpack.c.l.b16 %v76
  %v712 = vunpack.c.l.b16 %v77
  %v713 = vunpack.c.l.b16 %v78
  %v714 = vunpack.c.l.b16 %v79
  %v715 = vunpack.c.l.b16 %v80
  %v716 = vunpack.c.l.b16 %v81
  %v717 = vunpack.c.l.b16 %v82
  %v718 = vunpack.c.l.b16 %v83
  %v719 = vunpack.c.l.b16 %v84
  %v720 = vunpack.c.l.b16 %v85
  %v721 = vunpack.c.l.b16 %v86
  %v722 = vunpack.c.l.b16 %v87
  %v723 = vunpack.c.l.b16 %v88
  %v724 = vunpack.c.l.b16 %v89
  %v725 = vunpack.c.l.b16 %v90
  %v726 = vunpack.c.l.b16 %v91
  %v727 = vunpack.c.l.b16 %v92
  %v728 = vunpack.c.l.b16 %v93
  %v729 = vunpack.c.l.b16 %v94
  %v730 = vunpack.c.l.b16 %v95
  %v731 = vunpack.c.l.b16 %v96
  %v732 = vunpack.c.l.b16 %v97
  %v733 = vunpack.c.l.b16 %v98
  %v734 = vunpack.c.l.b16 %v99
  %v735 = vunpack.c.l.b16 %v100
  %v736 = vunpack.c.l.b16 %v101
  %v737 = vunpack.c.l.b16 %v102
  %v738 = vunpack.c.l.b16 %v103
  %v739 = vunpack.c.l.b16 %v104
  %v740 = vunpack.c.l.b16 %v105
  %v741 = vunpack.c.l.b16 %v106
  %v742 = vunpack.c.l.b16 %v107
  %v743 = vunpack.c.l.b16 %v108
  %v744 = vunpack.c.l.b16 %v109
  %v745 = vunpack.c.l.b16 %v110
  %v746 = vunpack.c.l.b16 %v111
  %v747 = vunpack.c.l.b16 %v112
  %v748 = vunpack.c.l.b16 %v113
  %v749 = vunpack.c.l.b16 %v114
  %v750 = vunpack.c.l.b16 %v115
  %v751 = vunpack.c.l.b16 %v116
  %v752 = vunpack.c.l.b16 %v117
  %v753 = vunpack.c.l.b16 %v118
  %v754 = vunpack.c.l.b16 %v119
  %v755 = vunpack.c.l.b16 %v120
  %v756 = vunpack.c.l.b16 %v121
  %v757 = vunpack.c.l.b16 %v122
  %v758 = vunpack.c.l.b16 %v123
  %v759 = vunpack.c.l.b16 %v124
  %v760 = vunpack.c.l.b16 %v125
  %v761 = vunpack.c.l.b16 %v126
  %v762 = vunpack.c.l.b16 %v127
  %v763 = vunpack.c.l.b16 %v128
  %v764 = vunpack.c.l.b16 %v129
  %v765 = vunpack.c.l.b16 %v130
  %v766 = vunpack.c.l.b16 %v131
  %v767 = vunpack.c.l.b16 %v132
  %v768 = vunpack.c.l.b16 %v133
  %v769 = vunpack.c.l.b16 %v134
  %v770 = vunpack.c.l.b16 %v135
  %v771 = vunpack.c.l.b16 %v136
  %v772 = vunpack.c.l.b16 %v137
  %v773 = vunpack.c.l.b16 %v138
  %v774 = vunpack.c.l.b16 %v139
  %v775 = vunpack.c.l.b16 %v140
  %v776 = vunpack.c.l.b16 %v141
  %v777 = vunpack.c.l.b16 %v142
  %v778 = vunpack.c.l.b16 %v143
  %v779 = vunpack.c.l.b16 %v144
  %v780 = vunpack.c.l.b16 %v145
  %v781 = vunpack.c.l.b16 %v146
  %v782 = vunpack.c.l.b16 %v147
  %v783 = vunpack.c.l.b16 %v148
  %v784 = vunpack.c.l.b16 %v149
  %v785 = vunpack.c.l.b16 %v150
  %v786 = vunpack.c.l.b16 %v151
  %v787 = vunpack.c.l.b16 %v152
  %v788 = vunpack.c.l.b16 %v153
  %v789 = vunpack.c.l.b16 %v154
  %v790 = vunpack.c.l.b16 %v155
  %v791 = vunpack.c.l.b16 %v156
  %v792 = vunpack.c.l.b16 %v157
  %v793 = vunpack.c.l.b16 %v158
  %v794 = vunpack.c.l.b16 %v159
  %v795 = vunpack.c.l.b16 %v160
  %v796 = vunpack.c.l.b16 %v161
  %v797 = vunpack.c.l.b16 %v162
  %v798 = vunpack.c.l.b16 %v163
  %v799 = vunpack.c.l.b16 %v164
  %v800 = vunpack.c.l.b16 %v165
  %v801 = vunpack.c.l.b16 %v166
  %v802 = vunpack.c.l.b16 %v167
  %v803 = vunpack.c.l.b16 %v168
  %v804 = vunpack.c.l.b16 %v169
  %v805 = vunpack.c.l.b16 %v170
  %v806 = vunpack.c.l.b16 %v171
  %v807 = vunpack.c.l.b16 %v172
  %v808 = vunpack.c.l.b16 %v173
  %v809 = vunpack.c.l.b16 %v174
  %v810 = vunpack.c.l.b16 %v175
  %v811 = vunpack.c.l.b16 %v176
  %v812 = vunpack.c.l.b16 %v177
  %v813 = vunpack.c.l.b16 %v178
  %v814 = vunpack.c.l.b16 %v179
  %v815 = vunpack.c.l.b16 %v180
  %v816 = vunpack.c.l.b16 %v181
  %v817 = vunpack.c.l.b16 %v182
  %v818 = vunpack.c.l.b16 %v183
  %v819 = vunpack.c.l.b16 %v184
  %v820 = vunpack.c.l.b16 %v185
  %v821 = vunpack.c.l.b16 %v186
  %v822 = vunpack.c.l.b16 %v187
  %v823 = vunpack.c.l.b16 %v188
  %v824 = vunpack.c.l.b16 %v189
  %v825 = vunpack.c.l.b16 %v190
  %v826 = vunpack.c.l.b16 %v191
  %v827 = vunpack.c.l.b16 %v192
  %v828 = vunpack.c.l.b16 %v193
  %v829 = vunpack.c.l.b16 %v194
  %v830 = vunpack.c.l.b16 %v195
  %v831 = vunpack.c.l.b16 %v196
  %v832 = vunpack.c.l.b16 %v197
  %v833 = vunpack.c.l.b16 %v198
  %v834 = vunpack.c.l.b16 %v199
  %v835 = vunpack.c.l.b16 %v200
  %v836 = vunpack.c.l.b16 %v201
  %v837 = vunpack.c.l.b16 %v202
  %v838 = vunpack.c.l.b16 %v203
  %v839 = vunpack.c.l.b16 %v204
  %v840 = vunpack.c.l.b16 %v205
  %v841 = vunpack.c.l.b16 %v206
  %v842 = vunpack.c.l.b16 %v207
  %v843 = vunpack.c.l.b16 %v208
  %v844 = vunpack.c.l.b16 %v209
  %v845 = vunpack.c.l.b16 %v210
  %v846 = vunpack.c.l.b16 %v211
  %v847 = vunpack.c.l.b16 %v212
  %v848 = vunpack.c.l.b16 %v213
  %v849 = vunpack.c.l.b16 %v214
  %v850 = vunpack.c.l.b16 %v215
  %v851 = vunpack.c.l.b16 %v216
  %v852 = vunpack.c.l.b16 %v217
  %v853 = vunpack.c.l.b16 %v218
  %v854 = vunpack.c.l.b16 %v219
  %v855 = vunpack.c.l.b16 %v220
  %v856 = vunpack.c.l.b16 %v221
  %v857 = vunpack.c.l.b16 %v222
  %v858 = vunpack.c.l.b16 %v223
  %v859 = vunpack.c.l.b16 %v224
  %v860 = vunpack.c.l.b16 %v225
  %v861 = vunpack.c.l.b16 %v226
  %v862 = vunpack.c.l.b16 %v227
  %v863 = vunpack.c.l.b16 %v228
  %v864 = vunpack.c.l.b16 %v229
  %v865 = vunpack.c.l.b16 %v230
  %v866 = vunpack.c.l.b16 %v231
  %v867 = vunpack.c.l.b16 %v232
  %v868 = vunpack.c.l.b16 %v233
  %v869 = vunpack.c.l.b16 %v234
  %v870 = vunpack.c.l.b16 %v235
  %v871 = vunpack.c.l.b16 %v236
  %v872 = vunpack.c.l.b16 %v237
  %v873 = vunpack.c.l.b16 %v238
  %v874 = vunpack.c.l.b16 %v239
  %v875 = vunpack.c.l.b16 %v240
  %v876 = vunpack.c.l.b16 %v241
  %v877 = vunpack.c.l.b16 %v242
  %v878 = vunpack.c.l.b16 %v243
  %v879 = vunpack.c.l.b16 %v244
  %v880 = vunpack.c.l.b16 %v245
  %v881 = vunpack.c.l.b16 %v246
  %v882 = vunpack.c.l.b16 %v247
  %v883 = vunpack.c.l.b16 %v248
  %v884 = vunpack.c.l.b16 %v249
  %v885 = vunpack.c.l.b16 %v250
  %v886 = vunpack.c.l.b16 %v251
  %v887 = vunpack.c.l.b16 %v252
  %v888 = vunpack.c.l.b16 %v253
  %v889 = vunpack.c.l.b16 %v254
  %v890 = vunpack.c.l.b16 %v255
  %v891 = vunpack.c.l.b16 %v256
  %v892 = vunpack.c.l.b16 %v257
  %v893 = vunpack.c.l.b16 %v258
  %v894 = vunpack.c.l.b16 %v259
  %v895 = vunpack.c.l.b16 %v260
  %v896 = vunpack.c.l.b16 %v261
  %v897 = vunpack.c.l.b16 %v262
  %v898 = vunpack.c.l.b16 %v263
  %v899 = vunpack.c.l.b16 %v264
  %v900 = vunpack.c.l.b16 %v265
  %v901 = vunpack.c.l.b16 %v266
  %v902 = vunpack.c.l.b16 %v267
  %v903 = vunpack.c.l.b16 %v268
  %v904 = vunpack.c.l.b16 %v269
  %v905 = vunpack.c.l.b16 %v270
  %v906 = vunpack.c.l.b16 %v271
  %v907 = vunpack.c.l.b16 %v272
  %v908 = vunpack.c.l.b16 %v273
  %v909 = vunpack.c.l.b16 %v274
  %v910 = vunpack.c.l.b16 %v275
  %v911 = vunpack.c.l.b16 %v276
  %v912 = vunpack.c.l.b16 %v277
  %v913 = vunpack.c.l.b16 %v278
  %v914 = vpack.c.b16 %v659, %v658
  %v915 = vpack.c.b16 %v661, %v660
  %v916 = vpack.c.b16 %v663, %v662
  %v917 = vpack.c.b16 %v665, %v664
  %v918 = vpack.c.b16 %v667, %v666
  %v919 = vpack.c.b16 %v669, %v668
  %v920 = vpack.c.b16 %v671, %v670
  %v921 = vpack.c.b16 %v673, %v672
  %v922 = vpack.c.b16 %v675, %v674
  %v923 = vpack.c.b16 %v677, %v676
  %v924 = vpack.c.b16 %v679, %v678
  %v925 = vpack.c.b16 %v681, %v680
  %v926 = vpack.c.b16 %v683, %v682
  %v927 = vpack.c.b16 %v685, %v684
  %v928 = vpack.c.b16 %v687, %v686
  %v929 = vpack.c.b16 %v689, %v688
  %v930 = vpack.c.b16 %v691, %v690
  %v931 = vpack.c.b16 %v693, %v692
  %v932 = vpack.c.b16 %v695, %v694
  %v933 = vpack.c.b16 %v697, %v696
  %v934 = vpack.c.b16 %v699, %v698
  %v935 = vpack.c.b16 %v701, %v700
  %v936 = vpack.c.b16 %v703, %v702
  %v937 = vpack.c.b16 %v705, %v704
  %v938 = vpack.c.b16 %v707, %v706
  %v939 = vpack.c.b16 %v709, %v708
  %v940 = vpack.c.b16 %v711, %v710
  %v941 = vpack.c.b16 %v713, %v712
  %v942 = vpack.c.b16 %v715, %v714
  %v943 = vpack.c.b16 %v717, %v716
  %v944 = vpack.c.b16 %v719, %v718
  %v945 = vpack.c.b16 %v721, %v720
  %v946 = vpack.c.b16 %v723, %v722
  %v947 = vpack.c.b16 %v725, %v724
  %v948 = vpack.c.b16 %v727, %v726
  %v949 = vpack.c.b16 %v729, %v728
  %v950 = vpack.c.b16 %v731, %v730
  %v951 = vpack.c.b16 %v733, %v732
  %v952 = vpack.c.b16 %v735, %v734
  %v953 = vpack.c.b16 %v737, %v736
  %v954 = vpack.c.b16 %v739, %v738
  %v955 = vpack.c.b16 %v741, %v740
  %v956 = vpack.c.b16 %v743, %v742
  %v957 = vpack.c.b16 %v745, %v744
  %v958 = vpack.c.b16 %v747, %v746
  %v959 = vpack.c.b16 %v749, %v748
  %v960 = vpack.c.b16 %v751, %v750
  %v961 = vpack.c.b16 %v753, %v752
  %v962 = vpack.c.b16 %v755, %v754
  %v963 = vpack.c.b16 %v757, %v756
  %v964 = vpack.c.b16 %v759, %v758
  %v965 = vpack.c.b16 %v761, %v760
  %v966 = vpack.c.b16 %v763, %v762
  %v967 = vpack.c.b16 %v765, %v764
  %v968 = vpack.c.b16 %v767, %v766
  %v969 = vpack.c.b16 %v769, %v768
  %v970 = vpack.c.b16 %v771, %v770
  %v971 = vpack.c.b16 %v773, %v772
  %v972 = vpack.c.b16 %v775, %v774
  %v973 = vpack.c.b16 %v777, %v776
  %v974 = vpack.c.b16 %v779, %v778
  %v975 = vpack.c.b16 %v781, %v780
  %v976 = vpack.c.b16 %v783, %v782
  %v977 = vpack.c.b16 %v785, %v784
  %v978 = vpack.c.b16 %v787, %v786
  %v979 = vpack.c.b16 %v789, %v788
  %v980 = vpack.c.b16 %v791, %v790
  %v981 = vpack.c.b16 %v793, %v792
  %v982 = vpack.c.b16 %v795, %v794
  %v983 = vpack.c.b16 %v797, %v796
  %v984 = vpack.c.b16 %v799, %v798
  %v985 = vpack.c.b16 %v801, %v800
  %v986 = vpack.c.b16 %v803, %v802
  %v987 = vpack.c.b16 %v805, %v804
  %v988 = vpack.c.b16 %v807, %v806
  %v989 = vpack.c.b16 %v809, %v808
  %v990 = vpack.c.b16 %v811, %v810
  %v991 = vpack.c.b16 %v813, %v812
  %v992 = vpack.c.b16 %v815, %v814
  %v993 = vpack.c.b16 %v817, %v816
  %v994 = vpack.c.b16 %v819, %v818
  %v995 = vpack.c.b16 %v821, %v820
  %v996 = vpack.c.b16 %v823, %v822
  %v997 = vpack.c.b16 %v825, %v824
  %v998 = vpack.c.b16 %v827, %v826
  %v999 = vpack.c.b16 %v829, %v828
  %v1000 = vpack.c.b16 %v831, %v830
  %v1001 = vpack.c.b16 %v833, %v832
  %v1002 = vpack.c.b16 %v835, %v834
  %v1003 = vpack.c.b16 %v837, %v836
  %v1004 = vpack.c.b16 %v839, %v838
  %v1005 = vpack.c.b16 %v841, %v840
  %v1006 = vpack.c.b16 %v843, %v842
  %v1007 = vpack.c.b16 %v845, %v844
  %v1008 = vpack.c.b16 %v847, %v846
  %v1009 = vpack.c.b16 %v849, %v848
  %v1010 = vpack.c.b16 %v851, %v850
  %v1011 = vpack.c.b16 %v853, %v852
  %v1012 = vpack.c.b16 %v855, %v854
  %v1013 = vpack.c.b16 %v857, %v856
  %v1014 = vpack.c.b16 %v859, %v858
  %v1015 = vpack.c.b16 %v861, %v860
  %v1016 = vpack.c.b16 %v863, %v862
  %v1017 = vpack.c.b16 %v865, %v864
  %v1018 = vpack.c.b16 %v867, %v866
  %v1019 = vpack.c.b16 %v869, %v868
  %v1020 = vpack.c.b16 %v871, %v870
  %v1021 = vpack.c.b16 %v873, %v872
  %v1022 = vpack.c.b16 %v875, %v874
  %v1023 = vpack.c.b16 %v877, %v876
  %v1024 = vpack.c.b16 %v879, %v878
  %v1025 = vpack.c.b16 %v881, %v880
  %v1026 = vpack.c.b16 %v883, %v882
  %v1027 = vpack.c.b16 %v885, %v884
  %v1028 = vpack.c.b16 %v887, %v886
  %v1029 = vpack.c.b16 %v889, %v888
  %v1030 = vpack.c.b16 %v891, %v890
  %v1031 = vpack.c.b16 %v893, %v892
  %v1032 = vpack.c.b16 %v895, %v894
  %v1033 = vpack.c.b16 %v897, %v896
  %v1034 = vpack.c.b16 %v899, %v898
  %v1035 = vpack.c.b16 %v901, %v900
  %v1036 = vpack.c.b16 %v903, %v902
  %v1037 = vpack.c.b16 %v905, %v904
  %v1038 = vpack.c.b16 %v907, %v906
  %v1039 = vpack.c.b16 %v909, %v908
  %v1040 = vpack.c.b16 %v911, %v910
  %v1041 = vpack.c.b16 %v913, %v912
  %1170 = vmatprep.subr.bf16.mxu0 0
  %1171 = vmatpush1.bf16.msra.mxu0 %v921
  %1172 = vmatprep.subr.bf16.mxu0 0
  %1173 = vmatpush1.bf16.msra.mxu0 %v920
  %1174 = vmatprep.subr.bf16.mxu0 0
  %1175 = vmatpush1.bf16.msra.mxu0 %v919
  %1176 = vmatprep.subr.bf16.mxu0 0
  %1177 = vmatpush1.bf16.msra.mxu0 %v918
  %1178 = vmatprep.subr.bf16.mxu0 0
  %1179 = vmatpush1.bf16.msra.mxu0 %v917
  %1180 = vmatprep.subr.bf16.mxu0 0
  %1181 = vmatpush1.bf16.msra.mxu0 %v916
  %1182 = vmatprep.subr.bf16.mxu0 0
  %1183 = vmatpush1.bf16.msra.mxu0 %v915
  %1184 = vmatprep.subr.bf16.mxu0 0
  %1185 = vmatpush1.bf16.msra.mxu0 %v914
  %1186 = vmatprep.subr.bf16.mxu0 0
  %1187 = vmatpush2.bf16.msra.mxu0 %v929
  %1188 = vmatprep.subr.bf16.mxu0 0
  %1189 = vmatpush2.bf16.msra.mxu0 %v928
  %1190 = vmatprep.subr.bf16.mxu0 0
  %1191 = vmatpush2.bf16.msra.mxu0 %v927
  %1192 = vmatprep.subr.bf16.mxu0 0
  %1193 = vmatpush2.bf16.msra.mxu0 %v926
  %1194 = vmatprep.subr.bf16.mxu0 0
  %1195 = vmatpush2.bf16.msra.mxu0 %v925
  %1196 = vmatprep.subr.bf16.mxu0 0
  %1197 = vmatpush2.bf16.msra.mxu0 %v924
  %1198 = vmatprep.subr.bf16.mxu0 0
  %1199 = vmatpush2.bf16.msra.mxu0 %v923
  %1200 = vmatprep.subr.bf16.mxu0 0
  %1201 = vmatpush2.bf16.msra.mxu0 %v922
  %1202 = vmatprep.mubr.bf16.mxu0 %v325
  %1203 = vmatmul.mubr.bf16.gmra.mxu0 %v311
  %v1204 = vpop.f32.mrf.mxu0
  %v1205 = vadd.f32 %v284, %v1204
  %v1206 = vpop.f32.mrf.mxu0
  %v1207 = vpop.f32.mrf.mxu0
  %v1208 = vpop.f32.mrf.mxu0
  %1209 = vdwg.mxu0
  %1210 = vmatprep.subr.bf16.mxu0 0
  %1211 = vmatpush1.bf16.msra.mxu0 %v937
  %1212 = vmatprep.subr.bf16.mxu0 0
  %1213 = vmatpush1.bf16.msra.mxu0 %v936
  %1214 = vmatprep.subr.bf16.mxu0 0
  %1215 = vmatpush1.bf16.msra.mxu0 %v935
  %1216 = vmatprep.subr.bf16.mxu0 0
  %1217 = vmatpush1.bf16.msra.mxu0 %v934
  %1218 = vmatprep.subr.bf16.mxu0 0
  %1219 = vmatpush1.bf16.msra.mxu0 %v933
  %1220 = vmatprep.subr.bf16.mxu0 0
  %1221 = vmatpush1.bf16.msra.mxu0 %v932
  %1222 = vmatprep.subr.bf16.mxu0 0
  %1223 = vmatpush1.bf16.msra.mxu0 %v931
  %1224 = vmatprep.subr.bf16.mxu0 0
  %1225 = vmatpush1.bf16.msra.mxu0 %v930
  %1226 = vmatprep.subr.bf16.mxu0 0
  %1227 = vmatpush2.bf16.msra.mxu0 %v945
  %1228 = vmatprep.subr.bf16.mxu0 0
  %1229 = vmatpush2.bf16.msra.mxu0 %v944
  %1230 = vmatprep.subr.bf16.mxu0 0
  %1231 = vmatpush2.bf16.msra.mxu0 %v943
  %1232 = vmatprep.subr.bf16.mxu0 0
  %1233 = vmatpush2.bf16.msra.mxu0 %v942
  %1234 = vmatprep.subr.bf16.mxu0 0
  %1235 = vmatpush2.bf16.msra.mxu0 %v941
  %1236 = vmatprep.subr.bf16.mxu0 0
  %1237 = vmatpush2.bf16.msra.mxu0 %v940
  %1238 = vmatprep.subr.bf16.mxu0 0
  %1239 = vmatpush2.bf16.msra.mxu0 %v939
  %1240 = vmatprep.subr.bf16.mxu0 0
  %1241 = vmatpush2.bf16.msra.mxu0 %v938
  %1242 = vmatprep.mubr.bf16.mxu0 %v335
  %1243 = vmatmul.mubr.bf16.gmra.mxu0 %v333
  %v1244 = vpop.f32.mrf.mxu0
  %v1245 = vadd.f32 %v1205, %v1244
  %v1246 = vpop.f32.mrf.mxu0
  %v1247 = vpop.f32.mrf.mxu0
  %v1248 = vpop.f32.mrf.mxu0
  %1249 = vdwg.mxu0
  %1250 = vmatprep.subr.bf16.mxu0 0
  %1251 = vmatpush1.bf16.msra.mxu0 %v953
  %1252 = vmatprep.subr.bf16.mxu0 0
  %1253 = vmatpush1.bf16.msra.mxu0 %v952
  %1254 = vmatprep.subr.bf16.mxu0 0
  %1255 = vmatpush1.bf16.msra.mxu0 %v951
  %1256 = vmatprep.subr.bf16.mxu0 0
  %1257 = vmatpush1.bf16.msra.mxu0 %v950
  %1258 = vmatprep.subr.bf16.mxu0 0
  %1259 = vmatpush1.bf16.msra.mxu0 %v949
  %1260 = vmatprep.subr.bf16.mxu0 0
  %1261 = vmatpush1.bf16.msra.mxu0 %v948
  %1262 = vmatprep.subr.bf16.mxu0 0
  %1263 = vmatpush1.bf16.msra.mxu0 %v947
  %1264 = vmatprep.subr.bf16.mxu0 0
  %1265 = vmatpush1.bf16.msra.mxu0 %v946
  %1266 = vmatprep.subr.bf16.mxu0 0
  %1267 = vmatpush2.bf16.msra.mxu0 %v961
  %1268 = vmatprep.subr.bf16.mxu0 0
  %1269 = vmatpush2.bf16.msra.mxu0 %v960
  %1270 = vmatprep.subr.bf16.mxu0 0
  %1271 = vmatpush2.bf16.msra.mxu0 %v959
  %1272 = vmatprep.subr.bf16.mxu0 0
  %1273 = vmatpush2.bf16.msra.mxu0 %v958
  %1274 = vmatprep.subr.bf16.mxu0 0
  %1275 = vmatpush2.bf16.msra.mxu0 %v957
  %1276 = vmatprep.subr.bf16.mxu0 0
  %1277 = vmatpush2.bf16.msra.mxu0 %v956
  %1278 = vmatprep.subr.bf16.mxu0 0
  %1279 = vmatpush2.bf16.msra.mxu0 %v955
  %1280 = vmatprep.subr.bf16.mxu0 0
  %1281 = vmatpush2.bf16.msra.mxu0 %v954
  %1282 = vmatprep.mubr.bf16.mxu0 %v332
  %1283 = vmatmul.mubr.bf16.gmra.mxu0 %v318
  %v1284 = vpop.f32.mrf.mxu0
  %v1285 = vadd.f32 %v1245, %v1284
  %v1286 = vpop.f32.mrf.mxu0
  %v1287 = vpop.f32.mrf.mxu0
  %v1288 = vpop.f32.mrf.mxu0
  %1289 = vdwg.mxu0
  %1290 = vmatprep.subr.bf16.mxu0 0
  %1291 = vmatpush1.bf16.msra.mxu0 %v969
  %1292 = vmatprep.subr.bf16.mxu0 0
  %1293 = vmatpush1.bf16.msra.mxu0 %v968
  %1294 = vmatprep.subr.bf16.mxu0 0
  %1295 = vmatpush1.bf16.msra.mxu0 %v967
  %1296 = vmatprep.subr.bf16.mxu0 0
  %1297 = vmatpush1.bf16.msra.mxu0 %v966
  %1298 = vmatprep.subr.bf16.mxu0 0
  %1299 = vmatpush1.bf16.msra.mxu0 %v965
  %1300 = vmatprep.subr.bf16.mxu0 0
  %1301 = vmatpush1.bf16.msra.mxu0 %v964
  %1302 = vmatprep.subr.bf16.mxu0 0
  %1303 = vmatpush1.bf16.msra.mxu0 %v963
  %1304 = vmatprep.subr.bf16.mxu0 0
  %1305 = vmatpush1.bf16.msra.mxu0 %v962
  %1306 = vmatprep.subr.bf16.mxu0 0
  %1307 = vmatpush2.bf16.msra.mxu0 %v977
  %1308 = vmatprep.subr.bf16.mxu0 0
  %1309 = vmatpush2.bf16.msra.mxu0 %v976
  %1310 = vmatprep.subr.bf16.mxu0 0
  %1311 = vmatpush2.bf16.msra.mxu0 %v975
  %1312 = vmatprep.subr.bf16.mxu0 0
  %1313 = vmatpush2.bf16.msra.mxu0 %v974
  %1314 = vmatprep.subr.bf16.mxu0 0
  %1315 = vmatpush2.bf16.msra.mxu0 %v973
  %1316 = vmatprep.subr.bf16.mxu0 0
  %1317 = vmatpush2.bf16.msra.mxu0 %v972
  %1318 = vmatprep.subr.bf16.mxu0 0
  %1319 = vmatpush2.bf16.msra.mxu0 %v971
  %1320 = vmatprep.subr.bf16.mxu0 0
  %1321 = vmatpush2.bf16.msra.mxu0 %v970
  %1322 = vmatprep.mubr.bf16.mxu0 %v336
  %1323 = vmatmul.mubr.bf16.gmra.mxu0 %v334
  %v1324 = vpop.f32.mrf.mxu0
  %v1325 = vadd.f32 %v1285, %v1324
  %v1326 = vpop.f32.mrf.mxu0
  %v1327 = vpop.f32.mrf.mxu0
  %v1328 = vpop.f32.mrf.mxu0
  %1329 = vdwg.mxu0
  %1330 = vmatprep.subr.bf16.mxu0 0
  %1331 = vmatpush1.bf16.msra.mxu0 %v985
  %1332 = vmatprep.subr.bf16.mxu0 0
  %1333 = vmatpush1.bf16.msra.mxu0 %v984
  %1334 = vmatprep.subr.bf16.mxu0 0
  %1335 = vmatpush1.bf16.msra.mxu0 %v983
  %1336 = vmatprep.subr.bf16.mxu0 0
  %1337 = vmatpush1.bf16.msra.mxu0 %v982
  %1338 = vmatprep.subr.bf16.mxu0 0
  %1339 = vmatpush1.bf16.msra.mxu0 %v981
  %1340 = vmatprep.subr.bf16.mxu0 0
  %1341 = vmatpush1.bf16.msra.mxu0 %v980
  %1342 = vmatprep.subr.bf16.mxu0 0
  %1343 = vmatpush1.bf16.msra.mxu0 %v979
  %1344 = vmatprep.subr.bf16.mxu0 0
  %1345 = vmatpush1.bf16.msra.mxu0 %v978
  %1346 = vmatprep.subr.bf16.mxu0 0
  %1347 = vmatpush2.bf16.msra.mxu0 %v993
  %1348 = vmatprep.subr.bf16.mxu0 0
  %1349 = vmatpush2.bf16.msra.mxu0 %v992
  %1350 = vmatprep.subr.bf16.mxu0 0
  %1351 = vmatpush2.bf16.msra.mxu0 %v991
  %1352 = vmatprep.subr.bf16.mxu0 0
  %1353 = vmatpush2.bf16.msra.mxu0 %v990
  %1354 = vmatprep.subr.bf16.mxu0 0
  %1355 = vmatpush2.bf16.msra.mxu0 %v989
  %1356 = vmatprep.subr.bf16.mxu0 0
  %1357 = vmatpush2.bf16.msra.mxu0 %v988
  %1358 = vmatprep.subr.bf16.mxu0 0
  %1359 = vmatpush2.bf16.msra.mxu0 %v987
  %1360 = vmatprep.subr.bf16.mxu0 0
  %1361 = vmatpush2.bf16.msra.mxu0 %v986
  %1362 = vmatprep.mubr.bf16.mxu0 %v374
  %1363 = vmatmul.mubr.bf16.gmra.mxu0 %v360
  %v1364 = vpop.f32.mrf.mxu0
  %v1365 = vadd.f32 %v1325, %v1364
  %v1366 = vpop.f32.mrf.mxu0
  %v1367 = vpop.f32.mrf.mxu0
  %v1368 = vpop.f32.mrf.mxu0
  %1369 = vdwg.mxu0
  %1370 = vmatprep.subr.bf16.mxu0 0
  %1371 = vmatpush1.bf16.msra.mxu0 %v1001
  %1372 = vmatprep.subr.bf16.mxu0 0
  %1373 = vmatpush1.bf16.msra.mxu0 %v1000
  %1374 = vmatprep.subr.bf16.mxu0 0
  %1375 = vmatpush1.bf16.msra.mxu0 %v999
  %1376 = vmatprep.subr.bf16.mxu0 0
  %1377 = vmatpush1.bf16.msra.mxu0 %v998
  %1378 = vmatprep.subr.bf16.mxu0 0
  %1379 = vmatpush1.bf16.msra.mxu0 %v997
  %1380 = vmatprep.subr.bf16.mxu0 0
  %1381 = vmatpush1.bf16.msra.mxu0 %v996
  %1382 = vmatprep.subr.bf16.mxu0 0
  %1383 = vmatpush1.bf16.msra.mxu0 %v995
  %1384 = vmatprep.subr.bf16.mxu0 0
  %1385 = vmatpush1.bf16.msra.mxu0 %v994
  %1386 = vmatprep.subr.bf16.mxu0 0
  %1387 = vmatpush2.bf16.msra.mxu0 %v1009
  %1388 = vmatprep.subr.bf16.mxu0 0
  %1389 = vmatpush2.bf16.msra.mxu0 %v1008
  %1390 = vmatprep.subr.bf16.mxu0 0
  %1391 = vmatpush2.bf16.msra.mxu0 %v1007
  %1392 = vmatprep.subr.bf16.mxu0 0
  %1393 = vmatpush2.bf16.msra.mxu0 %v1006
  %1394 = vmatprep.subr.bf16.mxu0 0
  %1395 = vmatpush2.bf16.msra.mxu0 %v1005
  %1396 = vmatprep.subr.bf16.mxu0 0
  %1397 = vmatpush2.bf16.msra.mxu0 %v1004
  %1398 = vmatprep.subr.bf16.mxu0 0
  %1399 = vmatpush2.bf16.msra.mxu0 %v1003
  %1400 = vmatprep.subr.bf16.mxu0 0
  %1401 = vmatpush2.bf16.msra.mxu0 %v1002
  %1402 = vmatprep.mubr.bf16.mxu0 %v384
  %1403 = vmatmul.mubr.bf16.gmra.mxu0 %v382
  %v1404 = vpop.f32.mrf.mxu0
  %v1405 = vadd.f32 %v1365, %v1404
  %v1406 = vpop.f32.mrf.mxu0
  %v1407 = vpop.f32.mrf.mxu0
  %v1408 = vpop.f32.mrf.mxu0
  %1409 = vdwg.mxu0
  %1410 = vmatprep.subr.bf16.mxu0 0
  %1411 = vmatpush1.bf16.msra.mxu0 %v1017
  %1412 = vmatprep.subr.bf16.mxu0 0
  %1413 = vmatpush1.bf16.msra.mxu0 %v1016
  %1414 = vmatprep.subr.bf16.mxu0 0
  %1415 = vmatpush1.bf16.msra.mxu0 %v1015
  %1416 = vmatprep.subr.bf16.mxu0 0
  %1417 = vmatpush1.bf16.msra.mxu0 %v1014
  %1418 = vmatprep.subr.bf16.mxu0 0
  %1419 = vmatpush1.bf16.msra.mxu0 %v1013
  %1420 = vmatprep.subr.bf16.mxu0 0
  %1421 = vmatpush1.bf16.msra.mxu0 %v1012
  %1422 = vmatprep.subr.bf16.mxu0 0
  %1423 = vmatpush1.bf16.msra.mxu0 %v1011
  %1424 = vmatprep.subr.bf16.mxu0 0
  %1425 = vmatpush1.bf16.msra.mxu0 %v1010
  %1426 = vmatprep.subr.bf16.mxu0 0
  %1427 = vmatpush2.bf16.msra.mxu0 %v1025
  %1428 = vmatprep.subr.bf16.mxu0 0
  %1429 = vmatpush2.bf16.msra.mxu0 %v1024
  %1430 = vmatprep.subr.bf16.mxu0 0
  %1431 = vmatpush2.bf16.msra.mxu0 %v1023
  %1432 = vmatprep.subr.bf16.mxu0 0
  %1433 = vmatpush2.bf16.msra.mxu0 %v1022
  %1434 = vmatprep.subr.bf16.mxu0 0
  %1435 = vmatpush2.bf16.msra.mxu0 %v1021
  %1436 = vmatprep.subr.bf16.mxu0 0
  %1437 = vmatpush2.bf16.msra.mxu0 %v1020
  %1438 = vmatprep.subr.bf16.mxu0 0
  %1439 = vmatpush2.bf16.msra.mxu0 %v1019
  %1440 = vmatprep.subr.bf16.mxu0 0
  %1441 = vmatpush2.bf16.msra.mxu0 %v1018
  %1442 = vmatprep.mubr.bf16.mxu0 %v381
  %1443 = vmatmul.mubr.bf16.gmra.mxu0 %v367
  %v1444 = vpop.f32.mrf.mxu0
  %v1445 = vadd.f32 %v1405, %v1444
  %v1446 = vpop.f32.mrf.mxu0
  %v1447 = vpop.f32.mrf.mxu0
  %v1448 = vpop.f32.mrf.mxu0
  %1449 = vdwg.mxu0
  %1450 = vmatprep.subr.bf16.mxu0 0
  %1451 = vmatpush1.bf16.msra.mxu0 %v1033
  %1452 = vmatprep.subr.bf16.mxu0 0
  %1453 = vmatpush1.bf16.msra.mxu0 %v1032
  %1454 = vmatprep.subr.bf16.mxu0 0
  %1455 = vmatpush1.bf16.msra.mxu0 %v1031
  %1456 = vmatprep.subr.bf16.mxu0 0
  %1457 = vmatpush1.bf16.msra.mxu0 %v1030
  %1458 = vmatprep.subr.bf16.mxu0 0
  %1459 = vmatpush1.bf16.msra.mxu0 %v1029
  %1460 = vmatprep.subr.bf16.mxu0 0
  %1461 = vmatpush1.bf16.msra.mxu0 %v1028
  %1462 = vmatprep.subr.bf16.mxu0 0
  %1463 = vmatpush1.bf16.msra.mxu0 %v1027
  %1464 = vmatprep.subr.bf16.mxu0 0
  %1465 = vmatpush1.bf16.msra.mxu0 %v1026
  %1466 = vmatprep.subr.bf16.mxu0 0
  %1467 = vmatpush2.bf16.msra.mxu0 %v1041
  %1468 = vmatprep.subr.bf16.mxu0 0
  %1469 = vmatpush2.bf16.msra.mxu0 %v1040
  %1470 = vmatprep.subr.bf16.mxu0 0
  %1471 = vmatpush2.bf16.msra.mxu0 %v1039
  %1472 = vmatprep.subr.bf16.mxu0 0
  %1473 = vmatpush2.bf16.msra.mxu0 %v1038
  %1474 = vmatprep.subr.bf16.mxu0 0
  %1475 = vmatpush2.bf16.msra.mxu0 %v1037
  %1476 = vmatprep.subr.bf16.mxu0 0
  %1477 = vmatpush2.bf16.msra.mxu0 %v1036
  %1478 = vmatprep.subr.bf16.mxu0 0
  %1479 = vmatpush2.bf16.msra.mxu0 %v1035
  %1480 = vmatprep.subr.bf16.mxu0 0
  %1481 = vmatpush2.bf16.msra.mxu0 %v1034
  %1482 = vmatprep.mubr.bf16.mxu0 %v385
  %1483 = vmatmul.mubr.bf16.gmra.mxu0 %v383
  %v1484 = vpop.f32.mrf.mxu0
  %v1485 = vadd.f32 %v1445, %v1484
  %v1486 = vpop.f32.mrf.mxu0
  %v1487 = vpop.f32.mrf.mxu0
  %v1488 = vpop.f32.mrf.mxu0
  %1489 = vdwg.mxu0
  %v1490 = vld [vmem:[%s3] sm:$0xff]
  %v1491 = vld [vmem:[%s3 + $0x8] sm:$0xff]
  %v1492 = vld [vmem:[%s3 + $0x10] sm:$0xff]
  %v1493 = vld [vmem:[%s3 + $0x18] sm:$0xff]
  %v1494 = vld [vmem:[%s3 + $0x20] sm:$0xff]
  %v1495 = vld [vmem:[%s3 + $0x28] sm:$0xff]
  %v1496 = vld [vmem:[%s3 + $0x30] sm:$0xff]
  %v1497 = vld [vmem:[%s3 + $0x38] sm:$0xff]
  %v1498 = vld [vmem:[%s3 + $0x40] sm:$0xff]
  %v1499 = vld [vmem:[%s3 + $0x48] sm:$0xff]
  %v1500 = vld [vmem:[%s3 + $0x50] sm:$0xff]
  %v1501 = vld [vmem:[%s3 + $0x58] sm:$0xff]
  %v1502 = vld [vmem:[%s3 + $0x60] sm:$0xff]
  %v1503 = vld [vmem:[%s3 + $0x68] sm:$0xff]
  %v1504 = vld [vmem:[%s3 + $0x70] sm:$0xff]
  %v1505 = vld [vmem:[%s3 + $0x78] sm:$0xff]
  %v1506 = vld [vmem:[%s3 + $0x80] sm:$0xff]
  %v1507 = vld [vmem:[%s3 + $0x88] sm:$0xff]
  %v1508 = vld [vmem:[%s3 + $0x90] sm:$0xff]
  %v1509 = vld [vmem:[%s3 + $0x98] sm:$0xff]
  %v1510 = vld [vmem:[%s3 + $0xa0] sm:$0xff]
  %v1511 = vld [vmem:[%s3 + $0xa8] sm:$0xff]
  %v1512 = vld [vmem:[%s3 + $0xb0] sm:$0xff]
  %v1513 = vld [vmem:[%s3 + $0xb8] sm:$0xff]
  %v1514 = vld [vmem:[%s3 + $0xc0] sm:$0xff]
  %v1515 = vld [vmem:[%s3 + $0xc8] sm:$0xff]
  %v1516 = vld [vmem:[%s3 + $0xd0] sm:$0xff]
  %v1517 = vld [vmem:[%s3 + $0xd8] sm:$0xff]
  %v1518 = vld [vmem:[%s3 + $0xe0] sm:$0xff]
  %v1519 = vld [vmem:[%s3 + $0xe8] sm:$0xff]
  %v1520 = vld [vmem:[%s3 + $0xf0] sm:$0xff]
  %v1521 = vld [vmem:[%s3 + $0xf8] sm:$0xff]
  %v1522 = vld [vmem:[%s3 + $0x100] sm:$0xff]
  %v1523 = vld [vmem:[%s3 + $0x108] sm:$0xff]
  %v1524 = vld [vmem:[%s3 + $0x110] sm:$0xff]
  %v1525 = vld [vmem:[%s3 + $0x118] sm:$0xff]
  %v1526 = vld [vmem:[%s3 + $0x120] sm:$0xff]
  %v1527 = vld [vmem:[%s3 + $0x128] sm:$0xff]
  %v1528 = vld [vmem:[%s3 + $0x130] sm:$0xff]
  %v1529 = vld [vmem:[%s3 + $0x138] sm:$0xff]
  %v1530 = vld [vmem:[%s3 + $0x140] sm:$0xff]
  %v1531 = vld [vmem:[%s3 + $0x148] sm:$0xff]
  %v1532 = vld [vmem:[%s3 + $0x150] sm:$0xff]
  %v1533 = vld [vmem:[%s3 + $0x158] sm:$0xff]
  %v1534 = vld [vmem:[%s3 + $0x160] sm:$0xff]
  %v1535 = vld [vmem:[%s3 + $0x168] sm:$0xff]
  %v1536 = vld [vmem:[%s3 + $0x170] sm:$0xff]
  %v1537 = vld [vmem:[%s3 + $0x178] sm:$0xff]
  %v1538 = vld [vmem:[%s3 + $0x180] sm:$0xff]
  %v1539 = vld [vmem:[%s3 + $0x188] sm:$0xff]
  %v1540 = vld [vmem:[%s3 + $0x190] sm:$0xff]
  %v1541 = vld [vmem:[%s3 + $0x198] sm:$0xff]
  %v1542 = vld [vmem:[%s3 + $0x1a0] sm:$0xff]
  %v1543 = vld [vmem:[%s3 + $0x1a8] sm:$0xff]
  %v1544 = vld [vmem:[%s3 + $0x1b0] sm:$0xff]
  %v1545 = vld [vmem:[%s3 + $0x1b8] sm:$0xff]
  %v1546 = vld [vmem:[%s3 + $0x1c0] sm:$0xff]
  %v1547 = vld [vmem:[%s3 + $0x1c8] sm:$0xff]
  %v1548 = vld [vmem:[%s3 + $0x1d0] sm:$0xff]
  %v1549 = vld [vmem:[%s3 + $0x1d8] sm:$0xff]
  %v1550 = vld [vmem:[%s3 + $0x1e0] sm:$0xff]
  %v1551 = vld [vmem:[%s3 + $0x1e8] sm:$0xff]
  %v1552 = vld [vmem:[%s3 + $0x1f0] sm:$0xff]
  %v1553 = vld [vmem:[%s3 + $0x1f8] sm:$0xff]
  %v1554 = vld [vmem:[%s3 + $0x200] sm:$0xff]
  %v1555 = vld [vmem:[%s3 + $0x208] sm:$0xff]
  %v1556 = vld [vmem:[%s3 + $0x210] sm:$0xff]
  %v1557 = vld [vmem:[%s3 + $0x218] sm:$0xff]
  %v1558 = vld [vmem:[%s3 + $0x220] sm:$0xff]
  %v1559 = vld [vmem:[%s3 + $0x228] sm:$0xff]
  %v1560 = vld [vmem:[%s3 + $0x230] sm:$0xff]
  %v1561 = vld [vmem:[%s3 + $0x238] sm:$0xff]
  %v1562 = vld [vmem:[%s3 + $0x240] sm:$0xff]
  %v1563 = vld [vmem:[%s3 + $0x248] sm:$0xff]
  %v1564 = vld [vmem:[%s3 + $0x250] sm:$0xff]
  %v1565 = vld [vmem:[%s3 + $0x258] sm:$0xff]
  %v1566 = vld [vmem:[%s3 + $0x260] sm:$0xff]
  %v1567 = vld [vmem:[%s3 + $0x268] sm:$0xff]
  %v1568 = vld [vmem:[%s3 + $0x270] sm:$0xff]
  %v1569 = vld [vmem:[%s3 + $0x278] sm:$0xff]
  %v1570 = vld [vmem:[%s3 + $0x280] sm:$0xff]
  %v1571 = vld [vmem:[%s3 + $0x288] sm:$0xff]
  %v1572 = vld [vmem:[%s3 + $0x290] sm:$0xff]
  %v1573 = vld [vmem:[%s3 + $0x298] sm:$0xff]
  %v1574 = vld [vmem:[%s3 + $0x2a0] sm:$0xff]
  %v1575 = vld [vmem:[%s3 + $0x2a8] sm:$0xff]
  %v1576 = vld [vmem:[%s3 + $0x2b0] sm:$0xff]
  %v1577 = vld [vmem:[%s3 + $0x2b8] sm:$0xff]
  %v1578 = vld [vmem:[%s3 + $0x2c0] sm:$0xff]
  %v1579 = vld [vmem:[%s3 + $0x2c8] sm:$0xff]
  %v1580 = vld [vmem:[%s3 + $0x2d0] sm:$0xff]
  %v1581 = vld [vmem:[%s3 + $0x2d8] sm:$0xff]
  %v1582 = vld [vmem:[%s3 + $0x2e0] sm:$0xff]
  %v1583 = vld [vmem:[%s3 + $0x2e8] sm:$0xff]
  %v1584 = vld [vmem:[%s3 + $0x2f0] sm:$0xff]
  %v1585 = vld [vmem:[%s3 + $0x2f8] sm:$0xff]
  %v1586 = vld [vmem:[%s3 + $0x300] sm:$0xff]
  %v1587 = vld [vmem:[%s3 + $0x308] sm:$0xff]
  %v1588 = vld [vmem:[%s3 + $0x310] sm:$0xff]
  %v1589 = vld [vmem:[%s3 + $0x318] sm:$0xff]
  %v1590 = vld [vmem:[%s3 + $0x320] sm:$0xff]
  %v1591 = vld [vmem:[%s3 + $0x328] sm:$0xff]
  %v1592 = vld [vmem:[%s3 + $0x330] sm:$0xff]
  %v1593 = vld [vmem:[%s3 + $0x338] sm:$0xff]
  %v1594 = vld [vmem:[%s3 + $0x340] sm:$0xff]
  %v1595 = vld [vmem:[%s3 + $0x348] sm:$0xff]
  %v1596 = vld [vmem:[%s3 + $0x350] sm:$0xff]
  %v1597 = vld [vmem:[%s3 + $0x358] sm:$0xff]
  %v1598 = vld [vmem:[%s3 + $0x360] sm:$0xff]
  %v1599 = vld [vmem:[%s3 + $0x368] sm:$0xff]
  %v1600 = vld [vmem:[%s3 + $0x370] sm:$0xff]
  %v1601 = vld [vmem:[%s3 + $0x378] sm:$0xff]
  %v1602 = vld [vmem:[%s3 + $0x380] sm:$0xff]
  %v1603 = vld [vmem:[%s3 + $0x388] sm:$0xff]
  %v1604 = vld [vmem:[%s3 + $0x390] sm:$0xff]
  %v1605 = vld [vmem:[%s3 + $0x398] sm:$0xff]
  %v1606 = vld [vmem:[%s3 + $0x3a0] sm:$0xff]
  %v1607 = vld [vmem:[%s3 + $0x3a8] sm:$0xff]
  %v1608 = vld [vmem:[%s3 + $0x3b0] sm:$0xff]
  %v1609 = vld [vmem:[%s3 + $0x3b8] sm:$0xff]
  %v1610 = vld [vmem:[%s3 + $0x3c0] sm:$0xff]
  %v1611 = vld [vmem:[%s3 + $0x3c8] sm:$0xff]
  %v1612 = vld [vmem:[%s3 + $0x3d0] sm:$0xff]
  %v1613 = vld [vmem:[%s3 + $0x3d8] sm:$0xff]
  %v1614 = vld [vmem:[%s3 + $0x3e0] sm:$0xff]
  %v1615 = vld [vmem:[%s3 + $0x3e8] sm:$0xff]
  %v1616 = vld [vmem:[%s3 + $0x3f0] sm:$0xff]
  %v1617 = vld [vmem:[%s3 + $0x3f8] sm:$0xff]
  %v1618 = vld [vmem:[%s3 + $0x400] sm:$0xff]
  %v1619 = vld [vmem:[%s3 + $0x408] sm:$0xff]
  %v1620 = vld [vmem:[%s3 + $0x410] sm:$0xff]
  %v1621 = vld [vmem:[%s3 + $0x418] sm:$0xff]
  %v1622 = vld [vmem:[%s3 + $0x420] sm:$0xff]
  %v1623 = vld [vmem:[%s3 + $0x428] sm:$0xff]
  %v1624 = vld [vmem:[%s3 + $0x430] sm:$0xff]
  %v1625 = vld [vmem:[%s3 + $0x438] sm:$0xff]
  %v1626 = vld [vmem:[%s3 + $0x440] sm:$0xff]
  %v1627 = vld [vmem:[%s3 + $0x448] sm:$0xff]
  %v1628 = vld [vmem:[%s3 + $0x450] sm:$0xff]
  %v1629 = vld [vmem:[%s3 + $0x458] sm:$0xff]
  %v1630 = vld [vmem:[%s3 + $0x460] sm:$0xff]
  %v1631 = vld [vmem:[%s3 + $0x468] sm:$0xff]
  %v1632 = vld [vmem:[%s3 + $0x470] sm:$0xff]
  %v1633 = vld [vmem:[%s3 + $0x478] sm:$0xff]
  %v1634 = vld [vmem:[%s3 + $0x480] sm:$0xff]
  %v1635 = vld [vmem:[%s3 + $0x488] sm:$0xff]
  %v1636 = vld [vmem:[%s3 + $0x490] sm:$0xff]
  %v1637 = vld [vmem:[%s3 + $0x498] sm:$0xff]
  %v1638 = vld [vmem:[%s3 + $0x4a0] sm:$0xff]
  %v1639 = vld [vmem:[%s3 + $0x4a8] sm:$0xff]
  %v1640 = vld [vmem:[%s3 + $0x4b0] sm:$0xff]
  %v1641 = vld [vmem:[%s3 + $0x4b8] sm:$0xff]
  %v1642 = vld [vmem:[%s3 + $0x4c0] sm:$0xff]
  %v1643 = vld [vmem:[%s3 + $0x4c8] sm:$0xff]
  %v1644 = vld [vmem:[%s3 + $0x4d0] sm:$0xff]
  %v1645 = vld [vmem:[%s3 + $0x4d8] sm:$0xff]
  %v1646 = vld [vmem:[%s3 + $0x4e0] sm:$0xff]
  %v1647 = vld [vmem:[%s3 + $0x4e8] sm:$0xff]
  %v1648 = vld [vmem:[%s3 + $0x4f0] sm:$0xff]
  %v1649 = vld [vmem:[%s3 + $0x4f8] sm:$0xff]
  %v1650 = vld [vmem:[%s3 + $0x500] sm:$0xff]
  %v1651 = vld [vmem:[%s3 + $0x508] sm:$0xff]
  %v1652 = vld [vmem:[%s3 + $0x510] sm:$0xff]
  %v1653 = vld [vmem:[%s3 + $0x518] sm:$0xff]
  %v1654 = vld [vmem:[%s3 + $0x520] sm:$0xff]
  %v1655 = vld [vmem:[%s3 + $0x528] sm:$0xff]
  %v1656 = vld [vmem:[%s3 + $0x530] sm:$0xff]
  %v1657 = vld [vmem:[%s3 + $0x538] sm:$0xff]
  %v1658 = vld [vmem:[%s3 + $0x540] sm:$0xff]
  %v1659 = vld [vmem:[%s3 + $0x548] sm:$0xff]
  %v1660 = vld [vmem:[%s3 + $0x550] sm:$0xff]
  %v1661 = vld [vmem:[%s3 + $0x558] sm:$0xff]
  %v1662 = vld [vmem:[%s3 + $0x560] sm:$0xff]
  %v1663 = vld [vmem:[%s3 + $0x568] sm:$0xff]
  %v1664 = vld [vmem:[%s3 + $0x570] sm:$0xff]
  %v1665 = vld [vmem:[%s3 + $0x578] sm:$0xff]
  %v1666 = vld [vmem:[%s3 + $0x580] sm:$0xff]
  %v1667 = vld [vmem:[%s3 + $0x588] sm:$0xff]
  %v1668 = vld [vmem:[%s3 + $0x590] sm:$0xff]
  %v1669 = vld [vmem:[%s3 + $0x598] sm:$0xff]
  %v1670 = vld [vmem:[%s3 + $0x5a0] sm:$0xff]
  %v1671 = vld [vmem:[%s3 + $0x5a8] sm:$0xff]
  %v1672 = vld [vmem:[%s3 + $0x5b0] sm:$0xff]
  %v1673 = vld [vmem:[%s3 + $0x5b8] sm:$0xff]
  %v1674 = vld [vmem:[%s3 + $0x5c0] sm:$0xff]
  %v1675 = vld [vmem:[%s3 + $0x5c8] sm:$0xff]
  %v1676 = vld [vmem:[%s3 + $0x5d0] sm:$0xff]
  %v1677 = vld [vmem:[%s3 + $0x5d8] sm:$0xff]
  %v1678 = vld [vmem:[%s3 + $0x5e0] sm:$0xff]
  %v1679 = vld [vmem:[%s3 + $0x5e8] sm:$0xff]
  %v1680 = vld [vmem:[%s3 + $0x5f0] sm:$0xff]
  %v1681 = vld [vmem:[%s3 + $0x5f8] sm:$0xff]
  %v1682 = vld [vmem:[%s3 + $0x600] sm:$0xff]
  %v1683 = vld [vmem:[%s3 + $0x608] sm:$0xff]
  %v1684 = vld [vmem:[%s3 + $0x610] sm:$0xff]
  %v1685 = vld [vmem:[%s3 + $0x618] sm:$0xff]
  %v1686 = vld [vmem:[%s3 + $0x620] sm:$0xff]
  %v1687 = vld [vmem:[%s3 + $0x628] sm:$0xff]
  %v1688 = vld [vmem:[%s3 + $0x630] sm:$0xff]
  %v1689 = vld [vmem:[%s3 + $0x638] sm:$0xff]
  %v1690 = vld [vmem:[%s3 + $0x640] sm:$0xff]
  %v1691 = vld [vmem:[%s3 + $0x648] sm:$0xff]
  %v1692 = vld [vmem:[%s3 + $0x650] sm:$0xff]
  %v1693 = vld [vmem:[%s3 + $0x658] sm:$0xff]
  %v1694 = vld [vmem:[%s3 + $0x660] sm:$0xff]
  %v1695 = vld [vmem:[%s3 + $0x668] sm:$0xff]
  %v1696 = vld [vmem:[%s3 + $0x670] sm:$0xff]
  %v1697 = vld [vmem:[%s3 + $0x678] sm:$0xff]
  %v1698 = vld [vmem:[%s3 + $0x680] sm:$0xff]
  %v1699 = vld [vmem:[%s3 + $0x688] sm:$0xff]
  %v1700 = vld [vmem:[%s3 + $0x690] sm:$0xff]
  %v1701 = vld [vmem:[%s3 + $0x698] sm:$0xff]
  %v1702 = vld [vmem:[%s3 + $0x6a0] sm:$0xff]
  %v1703 = vld [vmem:[%s3 + $0x6a8] sm:$0xff]
  %v1704 = vld [vmem:[%s3 + $0x6b0] sm:$0xff]
  %v1705 = vld [vmem:[%s3 + $0x6b8] sm:$0xff]
  %v1706 = vld [vmem:[%s3 + $0x6c0] sm:$0xff]
  %v1707 = vld [vmem:[%s3 + $0x6c8] sm:$0xff]
  %v1708 = vld [vmem:[%s3 + $0x6d0] sm:$0xff]
  %v1709 = vld [vmem:[%s3 + $0x6d8] sm:$0xff]
  %v1710 = vld [vmem:[%s3 + $0x6e0] sm:$0xff]
  %v1711 = vld [vmem:[%s3 + $0x6e8] sm:$0xff]
  %v1712 = vld [vmem:[%s3 + $0x6f0] sm:$0xff]
  %v1713 = vld [vmem:[%s3 + $0x6f8] sm:$0xff]
  %v1714 = vld [vmem:[%s3 + $0x700] sm:$0xff]
  %v1715 = vld [vmem:[%s3 + $0x708] sm:$0xff]
  %v1716 = vld [vmem:[%s3 + $0x710] sm:$0xff]
  %v1717 = vld [vmem:[%s3 + $0x718] sm:$0xff]
  %v1718 = vld [vmem:[%s3 + $0x720] sm:$0xff]
  %v1719 = vld [vmem:[%s3 + $0x728] sm:$0xff]
  %v1720 = vld [vmem:[%s3 + $0x730] sm:$0xff]
  %v1721 = vld [vmem:[%s3 + $0x738] sm:$0xff]
  %v1722 = vld [vmem:[%s3 + $0x740] sm:$0xff]
  %v1723 = vld [vmem:[%s3 + $0x748] sm:$0xff]
  %v1724 = vld [vmem:[%s3 + $0x750] sm:$0xff]
  %v1725 = vld [vmem:[%s3 + $0x758] sm:$0xff]
  %v1726 = vld [vmem:[%s3 + $0x760] sm:$0xff]
  %v1727 = vld [vmem:[%s3 + $0x768] sm:$0xff]
  %v1728 = vld [vmem:[%s3 + $0x770] sm:$0xff]
  %v1729 = vld [vmem:[%s3 + $0x778] sm:$0xff]
  %v1730 = vld [vmem:[%s3 + $0x780] sm:$0xff]
  %v1731 = vld [vmem:[%s3 + $0x788] sm:$0xff]
  %v1732 = vld [vmem:[%s3 + $0x790] sm:$0xff]
  %v1733 = vld [vmem:[%s3 + $0x798] sm:$0xff]
  %v1734 = vld [vmem:[%s3 + $0x7a0] sm:$0xff]
  %v1735 = vld [vmem:[%s3 + $0x7a8] sm:$0xff]
  %v1736 = vld [vmem:[%s3 + $0x7b0] sm:$0xff]
  %v1737 = vld [vmem:[%s3 + $0x7b8] sm:$0xff]
  %v1738 = vld [vmem:[%s3 + $0x7c0] sm:$0xff]
  %v1739 = vld [vmem:[%s3 + $0x7c8] sm:$0xff]
  %v1740 = vld [vmem:[%s3 + $0x7d0] sm:$0xff]
  %v1741 = vld [vmem:[%s3 + $0x7d8] sm:$0xff]
  %v1742 = vld [vmem:[%s3 + $0x7e0] sm:$0xff]
  %v1743 = vld [vmem:[%s3 + $0x7e8] sm:$0xff]
  %v1744 = vld [vmem:[%s3 + $0x7f0] sm:$0xff]
  %v1745 = vld [vmem:[%s3 + $0x7f8] sm:$0xff]
  %v1746 = vld [vmem:[%s4] sm:$0xff]
  %v1747 = vld [vmem:[%s4 + $0x8] sm:$0xff]
  %v1750 = vlaneseq
  %v1751 = vshrl.u32 %v1750, 7
  %v1752 = vsub.s32 0, %v1751
  %v1753 = vrot.slane %v1746, %v1752
  %v1754 = vlaneseq
  %v1755 = vshrl.u32 %v1754, 7
  %v1756 = vsub.s32 1, %v1755
  %v1757 = vrot.slane %v1746, %v1756
  %v1758 = vlaneseq
  %v1759 = vshrl.u32 %v1758, 7
  %v1760 = vsub.s32 2, %v1759
  %v1761 = vrot.slane %v1746, %v1760
  %v1762 = vlaneseq
  %v1763 = vshrl.u32 %v1762, 7
  %v1764 = vsub.s32 3, %v1763
  %v1765 = vrot.slane %v1746, %v1764
  %v1766 = vlaneseq
  %v1767 = vshrl.u32 %v1766, 7
  %v1768 = vsub.s32 4, %v1767
  %v1769 = vrot.slane %v1746, %v1768
  %v1770 = vlaneseq
  %v1771 = vshrl.u32 %v1770, 7
  %v1772 = vsub.s32 5, %v1771
  %v1773 = vrot.slane %v1746, %v1772
  %v1774 = vlaneseq
  %v1775 = vshrl.u32 %v1774, 7
  %v1776 = vsub.s32 6, %v1775
  %v1777 = vrot.slane %v1746, %v1776
  %v1778 = vlaneseq
  %v1779 = vshrl.u32 %v1778, 7
  %v1780 = vsub.s32 7, %v1779
  %v1781 = vrot.slane %v1746, %v1780
  %v1782 = vlaneseq
  %v1783 = vshrl.u32 %v1782, 7
  %v1784 = vsub.s32 0, %v1783
  %v1785 = vrot.slane %v1747, %v1784
  %v1786 = vlaneseq
  %v1787 = vshrl.u32 %v1786, 7
  %v1788 = vsub.s32 1, %v1787
  %v1789 = vrot.slane %v1747, %v1788
  %v1790 = vlaneseq
  %v1791 = vshrl.u32 %v1790, 7
  %v1792 = vsub.s32 2, %v1791
  %v1793 = vrot.slane %v1747, %v1792
  %v1794 = vlaneseq
  %v1795 = vshrl.u32 %v1794, 7
  %v1796 = vsub.s32 3, %v1795
  %v1797 = vrot.slane %v1747, %v1796
  %v1798 = vlaneseq
  %v1799 = vshrl.u32 %v1798, 7
  %v1800 = vsub.s32 4, %v1799
  %v1801 = vrot.slane %v1747, %v1800
  %v1802 = vlaneseq
  %v1803 = vshrl.u32 %v1802, 7
  %v1804 = vsub.s32 5, %v1803
  %v1805 = vrot.slane %v1747, %v1804
  %v1806 = vlaneseq
  %v1807 = vshrl.u32 %v1806, 7
  %v1808 = vsub.s32 6, %v1807
  %v1809 = vrot.slane %v1747, %v1808
  %v1810 = vlaneseq
  %v1811 = vshrl.u32 %v1810, 7
  %v1812 = vsub.s32 7, %v1811
  %v1813 = vrot.slane %v1747, %v1812
  %1830 = vmatprep.subr.mxu0 %v1731
  %1831 = vmatpush1.msra.mxu0 %v1730
  %1832 = vmatprep.subr.mxu0 %v1715
  %1833 = vmatpush1.msra.mxu0 %v1714
  %1834 = vmatprep.subr.mxu0 %v1699
  %1835 = vmatpush1.msra.mxu0 %v1698
  %1836 = vmatprep.subr.mxu0 %v1683
  %1837 = vmatpush1.msra.mxu0 %v1682
  %1838 = vmatprep.subr.mxu0 %v1667
  %1839 = vmatpush1.msra.mxu0 %v1666
  %1840 = vmatprep.subr.mxu0 %v1651
  %1841 = vmatpush1.msra.mxu0 %v1650
  %1842 = vmatprep.subr.mxu0 %v1635
  %1843 = vmatpush1.msra.mxu0 %v1634
  %1844 = vmatprep.subr.mxu0 %v1619
  %1845 = vmatpush1.msra.mxu0 %v1618
  %1846 = vmatprep.subr.mxu0 %v1603
  %1847 = vmatpush1.msra.mxu0 %v1602
  %1848 = vmatprep.subr.mxu0 %v1587
  %1849 = vmatpush1.msra.mxu0 %v1586
  %1850 = vmatprep.subr.mxu0 %v1571
  %1851 = vmatpush1.msra.mxu0 %v1570
  %1852 = vmatprep.subr.mxu0 %v1555
  %1853 = vmatpush1.msra.mxu0 %v1554
  %1854 = vmatprep.subr.mxu0 %v1539
  %1855 = vmatpush1.msra.mxu0 %v1538
  %1856 = vmatprep.subr.mxu0 %v1523
  %1857 = vmatpush1.msra.mxu0 %v1522
  %1858 = vmatprep.subr.mxu0 %v1507
  %1859 = vmatpush1.msra.mxu0 %v1506
  %1860 = vmatprep.subr.mxu0 %v1491
  %1861 = vmatpush1.msra.mxu0 %v1490
  %1862 = vmatprep.subr.mxu0 0.0
  %1863 = vmatpush2.msra.mxu0 0.0
  %1864 = vmatprep.subr.mxu0 0.0
  %1865 = vmatpush2.msra.mxu0 0.0
  %1866 = vmatprep.subr.mxu0 0.0
  %1867 = vmatpush2.msra.mxu0 0.0
  %1868 = vmatprep.subr.mxu0 0.0
  %1869 = vmatpush2.msra.mxu0 0.0
  %1870 = vmatprep.subr.mxu0 0.0
  %1871 = vmatpush2.msra.mxu0 0.0
  %1872 = vmatprep.subr.mxu0 0.0
  %1873 = vmatpush2.msra.mxu0 0.0
  %1874 = vmatprep.subr.mxu0 0.0
  %1875 = vmatpush2.msra.mxu0 0.0
  %1876 = vmatprep.subr.mxu0 0.0
  %1877 = vmatpush2.msra.mxu0 0.0
  %1878 = vmatprep.subr.mxu0 0.0
  %1879 = vmatpush2.msra.mxu0 0.0
  %1880 = vmatprep.subr.mxu0 0.0
  %1881 = vmatpush2.msra.mxu0 0.0
  %1882 = vmatprep.subr.mxu0 0.0
  %1883 = vmatpush2.msra.mxu0 0.0
  %1884 = vmatprep.subr.mxu0 0.0
  %1885 = vmatpush2.msra.mxu0 0.0
  %1886 = vmatprep.subr.mxu0 0.0
  %1887 = vmatpush2.msra.mxu0 0.0
  %1888 = vmatprep.subr.mxu0 0.0
  %1889 = vmatpush2.msra.mxu0 0.0
  %1890 = vmatprep.subr.mxu0 0.0
  %1891 = vmatpush2.msra.mxu0 0.0
  %1892 = vmatprep.subr.mxu0 0.0
  %1893 = vmatpush2.msra.mxu0 0.0
  %1894 = vmatprep.mubr.f32.mxu0 0.0
  %1895 = vmatmul.mubr.f32.gmra.mxu0 %v1485
  %v1896 = vpop.f32.mrf.mxu0
  %v1897 = vadd.f32 %v1753, %v1896
  %v1898 = vpop.f32.mrf.mxu0
  %v1899 = vadd.f32 %v1757, %v1898
  %1900 = vdwg.mxu0
  %1901 = vmatprep.subr.mxu0 %v1733
  %1902 = vmatpush1.msra.mxu0 %v1732
  %1903 = vmatprep.subr.mxu0 %v1717
  %1904 = vmatpush1.msra.mxu0 %v1716
  %1905 = vmatprep.subr.mxu0 %v1701
  %1906 = vmatpush1.msra.mxu0 %v1700
  %1907 = vmatprep.subr.mxu0 %v1685
  %1908 = vmatpush1.msra.mxu0 %v1684
  %1909 = vmatprep.subr.mxu0 %v1669
  %1910 = vmatpush1.msra.mxu0 %v1668
  %1911 = vmatprep.subr.mxu0 %v1653
  %1912 = vmatpush1.msra.mxu0 %v1652
  %1913 = vmatprep.subr.mxu0 %v1637
  %1914 = vmatpush1.msra.mxu0 %v1636
  %1915 = vmatprep.subr.mxu0 %v1621
  %1916 = vmatpush1.msra.mxu0 %v1620
  %1917 = vmatprep.subr.mxu0 %v1605
  %1918 = vmatpush1.msra.mxu0 %v1604
  %1919 = vmatprep.subr.mxu0 %v1589
  %1920 = vmatpush1.msra.mxu0 %v1588
  %1921 = vmatprep.subr.mxu0 %v1573
  %1922 = vmatpush1.msra.mxu0 %v1572
  %1923 = vmatprep.subr.mxu0 %v1557
  %1924 = vmatpush1.msra.mxu0 %v1556
  %1925 = vmatprep.subr.mxu0 %v1541
  %1926 = vmatpush1.msra.mxu0 %v1540
  %1927 = vmatprep.subr.mxu0 %v1525
  %1928 = vmatpush1.msra.mxu0 %v1524
  %1929 = vmatprep.subr.mxu0 %v1509
  %1930 = vmatpush1.msra.mxu0 %v1508
  %1931 = vmatprep.subr.mxu0 %v1493
  %1932 = vmatpush1.msra.mxu0 %v1492
  %1933 = vmatprep.subr.mxu0 0.0
  %1934 = vmatpush2.msra.mxu0 0.0
  %1935 = vmatprep.subr.mxu0 0.0
  %1936 = vmatpush2.msra.mxu0 0.0
  %1937 = vmatprep.subr.mxu0 0.0
  %1938 = vmatpush2.msra.mxu0 0.0
  %1939 = vmatprep.subr.mxu0 0.0
  %1940 = vmatpush2.msra.mxu0 0.0
  %1941 = vmatprep.subr.mxu0 0.0
  %1942 = vmatpush2.msra.mxu0 0.0
  %1943 = vmatprep.subr.mxu0 0.0
  %1944 = vmatpush2.msra.mxu0 0.0
  %1945 = vmatprep.subr.mxu0 0.0
  %1946 = vmatpush2.msra.mxu0 0.0
  %1947 = vmatprep.subr.mxu0 0.0
  %1948 = vmatpush2.msra.mxu0 0.0
  %1949 = vmatprep.subr.mxu0 0.0
  %1950 = vmatpush2.msra.mxu0 0.0
  %1951 = vmatprep.subr.mxu0 0.0
  %1952 = vmatpush2.msra.mxu0 0.0
  %1953 = vmatprep.subr.mxu0 0.0
  %1954 = vmatpush2.msra.mxu0 0.0
  %1955 = vmatprep.subr.mxu0 0.0
  %1956 = vmatpush2.msra.mxu0 0.0
  %1957 = vmatprep.subr.mxu0 0.0
  %1958 = vmatpush2.msra.mxu0 0.0
  %1959 = vmatprep.subr.mxu0 0.0
  %1960 = vmatpush2.msra.mxu0 0.0
  %1961 = vmatprep.subr.mxu0 0.0
  %1962 = vmatpush2.msra.mxu0 0.0
  %1963 = vmatprep.subr.mxu0 0.0
  %1964 = vmatpush2.msra.mxu0 0.0
  %1965 = vmatprep.mubr.f32.mxu0 0.0
  %1966 = vmatmul.mubr.f32.gmra.mxu0 %v1485
  %v1967 = vpop.f32.mrf.mxu0
  %v1968 = vadd.f32 %v1761, %v1967
  %v1969 = vpop.f32.mrf.mxu0
  %v1970 = vadd.f32 %v1765, %v1969
  %1971 = vdwg.mxu0
  %1972 = vmatprep.subr.mxu0 %v1735
  %1973 = vmatpush1.msra.mxu0 %v1734
  %1974 = vmatprep.subr.mxu0 %v1719
  %1975 = vmatpush1.msra.mxu0 %v1718
  %1976 = vmatprep.subr.mxu0 %v1703
  %1977 = vmatpush1.msra.mxu0 %v1702
  %1978 = vmatprep.subr.mxu0 %v1687
  %1979 = vmatpush1.msra.mxu0 %v1686
  %1980 = vmatprep.subr.mxu0 %v1671
  %1981 = vmatpush1.msra.mxu0 %v1670
  %1982 = vmatprep.subr.mxu0 %v1655
  %1983 = vmatpush1.msra.mxu0 %v1654
  %1984 = vmatprep.subr.mxu0 %v1639
  %1985 = vmatpush1.msra.mxu0 %v1638
  %1986 = vmatprep.subr.mxu0 %v1623
  %1987 = vmatpush1.msra.mxu0 %v1622
  %1988 = vmatprep.subr.mxu0 %v1607
  %1989 = vmatpush1.msra.mxu0 %v1606
  %1990 = vmatprep.subr.mxu0 %v1591
  %1991 = vmatpush1.msra.mxu0 %v1590
  %1992 = vmatprep.subr.mxu0 %v1575
  %1993 = vmatpush1.msra.mxu0 %v1574
  %1994 = vmatprep.subr.mxu0 %v1559
  %1995 = vmatpush1.msra.mxu0 %v1558
  %1996 = vmatprep.subr.mxu0 %v1543
  %1997 = vmatpush1.msra.mxu0 %v1542
  %1998 = vmatprep.subr.mxu0 %v1527
  %1999 = vmatpush1.msra.mxu0 %v1526
  %2000 = vmatprep.subr.mxu0 %v1511
  %2001 = vmatpush1.msra.mxu0 %v1510
  %2002 = vmatprep.subr.mxu0 %v1495
  %2003 = vmatpush1.msra.mxu0 %v1494
  %2004 = vmatprep.subr.mxu0 0.0
  %2005 = vmatpush2.msra.mxu0 0.0
  %2006 = vmatprep.subr.mxu0 0.0
  %2007 = vmatpush2.msra.mxu0 0.0
  %2008 = vmatprep.subr.mxu0 0.0
  %2009 = vmatpush2.msra.mxu0 0.0
  %2010 = vmatprep.subr.mxu0 0.0
  %2011 = vmatpush2.msra.mxu0 0.0
  %2012 = vmatprep.subr.mxu0 0.0
  %2013 = vmatpush2.msra.mxu0 0.0
  %2014 = vmatprep.subr.mxu0 0.0
  %2015 = vmatpush2.msra.mxu0 0.0
  %2016 = vmatprep.subr.mxu0 0.0
  %2017 = vmatpush2.msra.mxu0 0.0
  %2018 = vmatprep.subr.mxu0 0.0
  %2019 = vmatpush2.msra.mxu0 0.0
  %2020 = vmatprep.subr.mxu0 0.0
  %2021 = vmatpush2.msra.mxu0 0.0
  %2022 = vmatprep.subr.mxu0 0.0
  %2023 = vmatpush2.msra.mxu0 0.0
  %2024 = vmatprep.subr.mxu0 0.0
  %2025 = vmatpush2.msra.mxu0 0.0
  %2026 = vmatprep.subr.mxu0 0.0
  %2027 = vmatpush2.msra.mxu0 0.0
  %2028 = vmatprep.subr.mxu0 0.0
  %2029 = vmatpush2.msra.mxu0 0.0
  %2030 = vmatprep.subr.mxu0 0.0
  %2031 = vmatpush2.msra.mxu0 0.0
  %2032 = vmatprep.subr.mxu0 0.0
  %2033 = vmatpush2.msra.mxu0 0.0
  %2034 = vmatprep.subr.mxu0 0.0
  %2035 = vmatpush2.msra.mxu0 0.0
  %2036 = vmatprep.mubr.f32.mxu0 0.0
  %2037 = vmatmul.mubr.f32.gmra.mxu0 %v1485
  %v2038 = vpop.f32.mrf.mxu0
  %v2039 = vadd.f32 %v1769, %v2038
  %v2040 = vpop.f32.mrf.mxu0
  %v2041 = vadd.f32 %v1773, %v2040
  %2042 = vdwg.mxu0
  %2043 = vmatprep.subr.mxu0 %v1737
  %2044 = vmatpush1.msra.mxu0 %v1736
  %2045 = vmatprep.subr.mxu0 %v1721
  %2046 = vmatpush1.msra.mxu0 %v1720
  %2047 = vmatprep.subr.mxu0 %v1705
  %2048 = vmatpush1.msra.mxu0 %v1704
  %2049 = vmatprep.subr.mxu0 %v1689
  %2050 = vmatpush1.msra.mxu0 %v1688
  %2051 = vmatprep.subr.mxu0 %v1673
  %2052 = vmatpush1.msra.mxu0 %v1672
  %2053 = vmatprep.subr.mxu0 %v1657
  %2054 = vmatpush1.msra.mxu0 %v1656
  %2055 = vmatprep.subr.mxu0 %v1641
  %2056 = vmatpush1.msra.mxu0 %v1640
  %2057 = vmatprep.subr.mxu0 %v1625
  %2058 = vmatpush1.msra.mxu0 %v1624
  %2059 = vmatprep.subr.mxu0 %v1609
  %2060 = vmatpush1.msra.mxu0 %v1608
  %2061 = vmatprep.subr.mxu0 %v1593
  %2062 = vmatpush1.msra.mxu0 %v1592
  %2063 = vmatprep.subr.mxu0 %v1577
  %2064 = vmatpush1.msra.mxu0 %v1576
  %2065 = vmatprep.subr.mxu0 %v1561
  %2066 = vmatpush1.msra.mxu0 %v1560
  %2067 = vmatprep.subr.mxu0 %v1545
  %2068 = vmatpush1.msra.mxu0 %v1544
  %2069 = vmatprep.subr.mxu0 %v1529
  %2070 = vmatpush1.msra.mxu0 %v1528
  %2071 = vmatprep.subr.mxu0 %v1513
  %2072 = vmatpush1.msra.mxu0 %v1512
  %2073 = vmatprep.subr.mxu0 %v1497
  %2074 = vmatpush1.msra.mxu0 %v1496
  %2075 = vmatprep.subr.mxu0 0.0
  %2076 = vmatpush2.msra.mxu0 0.0
  %2077 = vmatprep.subr.mxu0 0.0
  %2078 = vmatpush2.msra.mxu0 0.0
  %2079 = vmatprep.subr.mxu0 0.0
  %2080 = vmatpush2.msra.mxu0 0.0
  %2081 = vmatprep.subr.mxu0 0.0
  %2082 = vmatpush2.msra.mxu0 0.0
  %2083 = vmatprep.subr.mxu0 0.0
  %2084 = vmatpush2.msra.mxu0 0.0
  %2085 = vmatprep.subr.mxu0 0.0
  %2086 = vmatpush2.msra.mxu0 0.0
  %2087 = vmatprep.subr.mxu0 0.0
  %2088 = vmatpush2.msra.mxu0 0.0
  %2089 = vmatprep.subr.mxu0 0.0
  %2090 = vmatpush2.msra.mxu0 0.0
  %2091 = vmatprep.subr.mxu0 0.0
  %2092 = vmatpush2.msra.mxu0 0.0
  %2093 = vmatprep.subr.mxu0 0.0
  %2094 = vmatpush2.msra.mxu0 0.0
  %2095 = vmatprep.subr.mxu0 0.0
  %2096 = vmatpush2.msra.mxu0 0.0
  %2097 = vmatprep.subr.mxu0 0.0
  %2098 = vmatpush2.msra.mxu0 0.0
  %2099 = vmatprep.subr.mxu0 0.0
  %2100 = vmatpush2.msra.mxu0 0.0
  %2101 = vmatprep.subr.mxu0 0.0
  %2102 = vmatpush2.msra.mxu0 0.0
  %2103 = vmatprep.subr.mxu0 0.0
  %2104 = vmatpush2.msra.mxu0 0.0
  %2105 = vmatprep.subr.mxu0 0.0
  %2106 = vmatpush2.msra.mxu0 0.0
  %2107 = vmatprep.mubr.f32.mxu0 0.0
  %2108 = vmatmul.mubr.f32.gmra.mxu0 %v1485
  %v2109 = vpop.f32.mrf.mxu0
  %v2110 = vadd.f32 %v1777, %v2109
  %v2111 = vpop.f32.mrf.mxu0
  %v2112 = vadd.f32 %v1781, %v2111
  %2113 = vdwg.mxu0
  %2114 = vmatprep.subr.mxu0 %v1739
  %2115 = vmatpush1.msra.mxu0 %v1738
  %2116 = vmatprep.subr.mxu0 %v1723
  %2117 = vmatpush1.msra.mxu0 %v1722
  %2118 = vmatprep.subr.mxu0 %v1707
  %2119 = vmatpush1.msra.mxu0 %v1706
  %2120 = vmatprep.subr.mxu0 %v1691
  %2121 = vmatpush1.msra.mxu0 %v1690
  %2122 = vmatprep.subr.mxu0 %v1675
  %2123 = vmatpush1.msra.mxu0 %v1674
  %2124 = vmatprep.subr.mxu0 %v1659
  %2125 = vmatpush1.msra.mxu0 %v1658
  %2126 = vmatprep.subr.mxu0 %v1643
  %2127 = vmatpush1.msra.mxu0 %v1642
  %2128 = vmatprep.subr.mxu0 %v1627
  %2129 = vmatpush1.msra.mxu0 %v1626
  %2130 = vmatprep.subr.mxu0 %v1611
  %2131 = vmatpush1.msra.mxu0 %v1610
  %2132 = vmatprep.subr.mxu0 %v1595
  %2133 = vmatpush1.msra.mxu0 %v1594
  %2134 = vmatprep.subr.mxu0 %v1579
  %2135 = vmatpush1.msra.mxu0 %v1578
  %2136 = vmatprep.subr.mxu0 %v1563
  %2137 = vmatpush1.msra.mxu0 %v1562
  %2138 = vmatprep.subr.mxu0 %v1547
  %2139 = vmatpush1.msra.mxu0 %v1546
  %2140 = vmatprep.subr.mxu0 %v1531
  %2141 = vmatpush1.msra.mxu0 %v1530
  %2142 = vmatprep.subr.mxu0 %v1515
  %2143 = vmatpush1.msra.mxu0 %v1514
  %2144 = vmatprep.subr.mxu0 %v1499
  %2145 = vmatpush1.msra.mxu0 %v1498
  %2146 = vmatprep.subr.mxu0 0.0
  %2147 = vmatpush2.msra.mxu0 0.0
  %2148 = vmatprep.subr.mxu0 0.0
  %2149 = vmatpush2.msra.mxu0 0.0
  %2150 = vmatprep.subr.mxu0 0.0
  %2151 = vmatpush2.msra.mxu0 0.0
  %2152 = vmatprep.subr.mxu0 0.0
  %2153 = vmatpush2.msra.mxu0 0.0
  %2154 = vmatprep.subr.mxu0 0.0
  %2155 = vmatpush2.msra.mxu0 0.0
  %2156 = vmatprep.subr.mxu0 0.0
  %2157 = vmatpush2.msra.mxu0 0.0
  %2158 = vmatprep.subr.mxu0 0.0
  %2159 = vmatpush2.msra.mxu0 0.0
  %2160 = vmatprep.subr.mxu0 0.0
  %2161 = vmatpush2.msra.mxu0 0.0
  %2162 = vmatprep.subr.mxu0 0.0
  %2163 = vmatpush2.msra.mxu0 0.0
  %2164 = vmatprep.subr.mxu0 0.0
  %2165 = vmatpush2.msra.mxu0 0.0
  %2166 = vmatprep.subr.mxu0 0.0
  %2167 = vmatpush2.msra.mxu0 0.0
  %2168 = vmatprep.subr.mxu0 0.0
  %2169 = vmatpush2.msra.mxu0 0.0
  %2170 = vmatprep.subr.mxu0 0.0
  %2171 = vmatpush2.msra.mxu0 0.0
  %2172 = vmatprep.subr.mxu0 0.0
  %2173 = vmatpush2.msra.mxu0 0.0
  %2174 = vmatprep.subr.mxu0 0.0
  %2175 = vmatpush2.msra.mxu0 0.0
  %2176 = vmatprep.subr.mxu0 0.0
  %2177 = vmatpush2.msra.mxu0 0.0
  %2178 = vmatprep.mubr.f32.mxu0 0.0
  %2179 = vmatmul.mubr.f32.gmra.mxu0 %v1485
  %v2180 = vpop.f32.mrf.mxu0
  %v2181 = vadd.f32 %v1785, %v2180
  %v2182 = vpop.f32.mrf.mxu0
  %v2183 = vadd.f32 %v1789, %v2182
  %2184 = vdwg.mxu0
  %2185 = vmatprep.subr.mxu0 %v1741
  %2186 = vmatpush1.msra.mxu0 %v1740
  %2187 = vmatprep.subr.mxu0 %v1725
  %2188 = vmatpush1.msra.mxu0 %v1724
  %2189 = vmatprep.subr.mxu0 %v1709
  %2190 = vmatpush1.msra.mxu0 %v1708
  %2191 = vmatprep.subr.mxu0 %v1693
  %2192 = vmatpush1.msra.mxu0 %v1692
  %2193 = vmatprep.subr.mxu0 %v1677
  %2194 = vmatpush1.msra.mxu0 %v1676
  %2195 = vmatprep.subr.mxu0 %v1661
  %2196 = vmatpush1.msra.mxu0 %v1660
  %2197 = vmatprep.subr.mxu0 %v1645
  %2198 = vmatpush1.msra.mxu0 %v1644
  %2199 = vmatprep.subr.mxu0 %v1629
  %2200 = vmatpush1.msra.mxu0 %v1628
  %2201 = vmatprep.subr.mxu0 %v1613
  %2202 = vmatpush1.msra.mxu0 %v1612
  %2203 = vmatprep.subr.mxu0 %v1597
  %2204 = vmatpush1.msra.mxu0 %v1596
  %2205 = vmatprep.subr.mxu0 %v1581
  %2206 = vmatpush1.msra.mxu0 %v1580
  %2207 = vmatprep.subr.mxu0 %v1565
  %2208 = vmatpush1.msra.mxu0 %v1564
  %2209 = vmatprep.subr.mxu0 %v1549
  %2210 = vmatpush1.msra.mxu0 %v1548
  %2211 = vmatprep.subr.mxu0 %v1533
  %2212 = vmatpush1.msra.mxu0 %v1532
  %2213 = vmatprep.subr.mxu0 %v1517
  %2214 = vmatpush1.msra.mxu0 %v1516
  %2215 = vmatprep.subr.mxu0 %v1501
  %2216 = vmatpush1.msra.mxu0 %v1500
  %2217 = vmatprep.subr.mxu0 0.0
  %2218 = vmatpush2.msra.mxu0 0.0
  %2219 = vmatprep.subr.mxu0 0.0
  %2220 = vmatpush2.msra.mxu0 0.0
  %2221 = vmatprep.subr.mxu0 0.0
  %2222 = vmatpush2.msra.mxu0 0.0
  %2223 = vmatprep.subr.mxu0 0.0
  %2224 = vmatpush2.msra.mxu0 0.0
  %2225 = vmatprep.subr.mxu0 0.0
  %2226 = vmatpush2.msra.mxu0 0.0
  %2227 = vmatprep.subr.mxu0 0.0
  %2228 = vmatpush2.msra.mxu0 0.0
  %2229 = vmatprep.subr.mxu0 0.0
  %2230 = vmatpush2.msra.mxu0 0.0
  %2231 = vmatprep.subr.mxu0 0.0
  %2232 = vmatpush2.msra.mxu0 0.0
  %2233 = vmatprep.subr.mxu0 0.0
  %2234 = vmatpush2.msra.mxu0 0.0
  %2235 = vmatprep.subr.mxu0 0.0
  %2236 = vmatpush2.msra.mxu0 0.0
  %2237 = vmatprep.subr.mxu0 0.0
  %2238 = vmatpush2.msra.mxu0 0.0
  %2239 = vmatprep.subr.mxu0 0.0
  %2240 = vmatpush2.msra.mxu0 0.0
  %2241 = vmatprep.subr.mxu0 0.0
  %2242 = vmatpush2.msra.mxu0 0.0
  %2243 = vmatprep.subr.mxu0 0.0
  %2244 = vmatpush2.msra.mxu0 0.0
  %2245 = vmatprep.subr.mxu0 0.0
  %2246 = vmatpush2.msra.mxu0 0.0
  %2247 = vmatprep.subr.mxu0 0.0
  %2248 = vmatpush2.msra.mxu0 0.0
  %2249 = vmatprep.mubr.f32.mxu0 0.0
  %2250 = vmatmul.mubr.f32.gmra.mxu0 %v1485
  %v2251 = vpop.f32.mrf.mxu0
  %v2252 = vadd.f32 %v1793, %v2251
  %v2253 = vpop.f32.mrf.mxu0
  %v2254 = vadd.f32 %v1797, %v2253
  %2255 = vdwg.mxu0
  %2256 = vmatprep.subr.mxu0 %v1743
  %2257 = vmatpush1.msra.mxu0 %v1742
  %2258 = vmatprep.subr.mxu0 %v1727
  %2259 = vmatpush1.msra.mxu0 %v1726
  %2260 = vmatprep.subr.mxu0 %v1711
  %2261 = vmatpush1.msra.mxu0 %v1710
  %2262 = vmatprep.subr.mxu0 %v1695
  %2263 = vmatpush1.msra.mxu0 %v1694
  %2264 = vmatprep.subr.mxu0 %v1679
  %2265 = vmatpush1.msra.mxu0 %v1678
  %2266 = vmatprep.subr.mxu0 %v1663
  %2267 = vmatpush1.msra.mxu0 %v1662
  %2268 = vmatprep.subr.mxu0 %v1647
  %2269 = vmatpush1.msra.mxu0 %v1646
  %2270 = vmatprep.subr.mxu0 %v1631
  %2271 = vmatpush1.msra.mxu0 %v1630
  %2272 = vmatprep.subr.mxu0 %v1615
  %2273 = vmatpush1.msra.mxu0 %v1614
  %2274 = vmatprep.subr.mxu0 %v1599
  %2275 = vmatpush1.msra.mxu0 %v1598
  %2276 = vmatprep.subr.mxu0 %v1583
  %2277 = vmatpush1.msra.mxu0 %v1582
  %2278 = vmatprep.subr.mxu0 %v1567
  %2279 = vmatpush1.msra.mxu0 %v1566
  %2280 = vmatprep.subr.mxu0 %v1551
  %2281 = vmatpush1.msra.mxu0 %v1550
  %2282 = vmatprep.subr.mxu0 %v1535
  %2283 = vmatpush1.msra.mxu0 %v1534
  %2284 = vmatprep.subr.mxu0 %v1519
  %2285 = vmatpush1.msra.mxu0 %v1518
  %2286 = vmatprep.subr.mxu0 %v1503
  %2287 = vmatpush1.msra.mxu0 %v1502
  %2288 = vmatprep.subr.mxu0 0.0
  %2289 = vmatpush2.msra.mxu0 0.0
  %2290 = vmatprep.subr.mxu0 0.0
  %2291 = vmatpush2.msra.mxu0 0.0
  %2292 = vmatprep.subr.mxu0 0.0
  %2293 = vmatpush2.msra.mxu0 0.0
  %2294 = vmatprep.subr.mxu0 0.0
  %2295 = vmatpush2.msra.mxu0 0.0
  %2296 = vmatprep.subr.mxu0 0.0
  %2297 = vmatpush2.msra.mxu0 0.0
  %2298 = vmatprep.subr.mxu0 0.0
  %2299 = vmatpush2.msra.mxu0 0.0
  %2300 = vmatprep.subr.mxu0 0.0
  %2301 = vmatpush2.msra.mxu0 0.0
  %2302 = vmatprep.subr.mxu0 0.0
  %2303 = vmatpush2.msra.mxu0 0.0
  %2304 = vmatprep.subr.mxu0 0.0
  %2305 = vmatpush2.msra.mxu0 0.0
  %2306 = vmatprep.subr.mxu0 0.0
  %2307 = vmatpush2.msra.mxu0 0.0
  %2308 = vmatprep.subr.mxu0 0.0
  %2309 = vmatpush2.msra.mxu0 0.0
  %2310 = vmatprep.subr.mxu0 0.0
  %2311 = vmatpush2.msra.mxu0 0.0
  %2312 = vmatprep.subr.mxu0 0.0
  %2313 = vmatpush2.msra.mxu0 0.0
  %2314 = vmatprep.subr.mxu0 0.0
  %2315 = vmatpush2.msra.mxu0 0.0
  %2316 = vmatprep.subr.mxu0 0.0
  %2317 = vmatpush2.msra.mxu0 0.0
  %2318 = vmatprep.subr.mxu0 0.0
  %2319 = vmatpush2.msra.mxu0 0.0
  %2320 = vmatprep.mubr.f32.mxu0 0.0
  %2321 = vmatmul.mubr.f32.gmra.mxu0 %v1485
  %v2322 = vpop.f32.mrf.mxu0
  %v2323 = vadd.f32 %v1801, %v2322
  %v2324 = vpop.f32.mrf.mxu0
  %v2325 = vadd.f32 %v1805, %v2324
  %2326 = vdwg.mxu0
  %2327 = vmatprep.subr.mxu0 %v1745
  %2328 = vmatpush1.msra.mxu0 %v1744
  %2329 = vmatprep.subr.mxu0 %v1729
  %2330 = vmatpush1.msra.mxu0 %v1728
  %2331 = vmatprep.subr.mxu0 %v1713
  %2332 = vmatpush1.msra.mxu0 %v1712
  %2333 = vmatprep.subr.mxu0 %v1697
  %2334 = vmatpush1.msra.mxu0 %v1696
  %2335 = vmatprep.subr.mxu0 %v1681
  %2336 = vmatpush1.msra.mxu0 %v1680
  %2337 = vmatprep.subr.mxu0 %v1665
  %2338 = vmatpush1.msra.mxu0 %v1664
  %2339 = vmatprep.subr.mxu0 %v1649
  %2340 = vmatpush1.msra.mxu0 %v1648
  %2341 = vmatprep.subr.mxu0 %v1633
  %2342 = vmatpush1.msra.mxu0 %v1632
  %2343 = vmatprep.subr.mxu0 %v1617
  %2344 = vmatpush1.msra.mxu0 %v1616
  %2345 = vmatprep.subr.mxu0 %v1601
  %2346 = vmatpush1.msra.mxu0 %v1600
  %2347 = vmatprep.subr.mxu0 %v1585
  %2348 = vmatpush1.msra.mxu0 %v1584
  %2349 = vmatprep.subr.mxu0 %v1569
  %2350 = vmatpush1.msra.mxu0 %v1568
  %2351 = vmatprep.subr.mxu0 %v1553
  %2352 = vmatpush1.msra.mxu0 %v1552
  %2353 = vmatprep.subr.mxu0 %v1537
  %2354 = vmatpush1.msra.mxu0 %v1536
  %2355 = vmatprep.subr.mxu0 %v1521
  %2356 = vmatpush1.msra.mxu0 %v1520
  %2357 = vmatprep.subr.mxu0 %v1505
  %2358 = vmatpush1.msra.mxu0 %v1504
  %2359 = vmatprep.subr.mxu0 0.0
  %2360 = vmatpush2.msra.mxu0 0.0
  %2361 = vmatprep.subr.mxu0 0.0
  %2362 = vmatpush2.msra.mxu0 0.0
  %2363 = vmatprep.subr.mxu0 0.0
  %2364 = vmatpush2.msra.mxu0 0.0
  %2365 = vmatprep.subr.mxu0 0.0
  %2366 = vmatpush2.msra.mxu0 0.0
  %2367 = vmatprep.subr.mxu0 0.0
  %2368 = vmatpush2.msra.mxu0 0.0
  %2369 = vmatprep.subr.mxu0 0.0
  %2370 = vmatpush2.msra.mxu0 0.0
  %2371 = vmatprep.subr.mxu0 0.0
  %2372 = vmatpush2.msra.mxu0 0.0
  %2373 = vmatprep.subr.mxu0 0.0
  %2374 = vmatpush2.msra.mxu0 0.0
  %2375 = vmatprep.subr.mxu0 0.0
  %2376 = vmatpush2.msra.mxu0 0.0
  %2377 = vmatprep.subr.mxu0 0.0
  %2378 = vmatpush2.msra.mxu0 0.0
  %2379 = vmatprep.subr.mxu0 0.0
  %2380 = vmatpush2.msra.mxu0 0.0
  %2381 = vmatprep.subr.mxu0 0.0
  %2382 = vmatpush2.msra.mxu0 0.0
  %2383 = vmatprep.subr.mxu0 0.0
  %2384 = vmatpush2.msra.mxu0 0.0
  %2385 = vmatprep.subr.mxu0 0.0
  %2386 = vmatpush2.msra.mxu0 0.0
  %2387 = vmatprep.subr.mxu0 0.0
  %2388 = vmatpush2.msra.mxu0 0.0
  %2389 = vmatprep.subr.mxu0 0.0
  %2390 = vmatpush2.msra.mxu0 0.0
  %2391 = vmatprep.mubr.f32.mxu0 0.0
  %2392 = vmatmul.mubr.f32.gmra.mxu0 %v1485
  %v2393 = vpop.f32.mrf.mxu0
  %v2394 = vadd.f32 %v1809, %v2393
  %v2395 = vpop.f32.mrf.mxu0
  %v2396 = vadd.f32 %v1813, %v2395
  %2397 = vdwg.mxu0
  %v2398 = vpack.c.bf16 %v1897, %v1897
  %v2399 = vpack.c.bf16 %v1899, %v1899
  %v2400 = vpack.c.bf16 %v1968, %v1968
  %v2401 = vpack.c.bf16 %v1970, %v1970
  %v2402 = vpack.c.bf16 %v2039, %v2039
  %v2403 = vpack.c.bf16 %v2041, %v2041
  %v2404 = vpack.c.bf16 %v2110, %v2110
  %v2405 = vpack.c.bf16 %v2112, %v2112
  %v2406 = vpack.c.bf16 %v2181, %v2181
  %v2407 = vpack.c.bf16 %v2183, %v2183
  %v2408 = vpack.c.bf16 %v2252, %v2252
  %v2409 = vpack.c.bf16 %v2254, %v2254
  %v2410 = vpack.c.bf16 %v2323, %v2323
  %v2411 = vpack.c.bf16 %v2325, %v2325
  %v2412 = vpack.c.bf16 %v2394, %v2394
  %v2413 = vpack.c.bf16 %v2396, %v2396
  %v2430 = vcombine.low %v2398, %v2399
  %v2431 = vcombine.low %v2400, %v2401
  %v2432 = vcombine.low %v2402, %v2403
  %v2433 = vcombine.low %v2404, %v2405
  %v2435 = vunpack.c.l.s4 1966171168
  %v2436 = vunpack.c.0.s8 %v2435
  %v2437 = vlaneseq
  %v2438 = vshrl.u32 %v2437, 7
  %v2439 = vsub.s32 %v2436, %v2438
  %v2440 = vrot.slane %v2430, %v2439
  %v2442 = vunpack.c.l.s4 1966171168
  %v2443 = vunpack.c.0.s8 %v2442
  %v2444 = vlaneseq
  %v2445 = vshrl.u32 %v2444, 7
  %v2446 = vsub.s32 %v2443, %v2445
  %v2447 = vrot.slane %v2431, %v2446
  %v2449 = vunpack.c.l.s4 1966171168
  %v2450 = vunpack.c.0.s8 %v2449
  %v2451 = vlaneseq
  %v2452 = vshrl.u32 %v2451, 7
  %v2453 = vsub.s32 %v2450, %v2452
  %v2454 = vrot.slane %v2432, %v2453
  %v2456 = vunpack.c.l.s4 1966171168
  %v2457 = vunpack.c.0.s8 %v2456
  %v2458 = vlaneseq
  %v2459 = vshrl.u32 %v2458, 7
  %v2460 = vsub.s32 %v2457, %v2459
  %v2461 = vrot.slane %v2433, %v2460
  %v2462 = vcombine.low %v2440, %v2447
  %v2463 = vcombine.low %v2454, %v2461
  %v2465 = vunpack.c.l.s4 1966171168
  %v2466 = vunpack.c.0.s8 %v2465
  %v2467 = vlaneseq
  %v2468 = vshrl.u32 %v2467, 7
  %v2469 = vsub.s32 %v2466, %v2468
  %v2470 = vrot.slane %v2462, %v2469
  %v2472 = vunpack.c.l.s4 1966171168
  %v2473 = vunpack.c.0.s8 %v2472
  %v2474 = vlaneseq
  %v2475 = vshrl.u32 %v2474, 7
  %v2476 = vsub.s32 %v2473, %v2475
  %v2477 = vrot.slane %v2463, %v2476
  %v2478 = vcombine.low %v2470, %v2477
  %v2479 = vcombine.low %v2406, %v2407
  %v2480 = vcombine.low %v2408, %v2409
  %v2481 = vcombine.low %v2410, %v2411
  %v2482 = vcombine.low %v2412, %v2413
  %v2484 = vunpack.c.l.s4 1966171168
  %v2485 = vunpack.c.0.s8 %v2484
  %v2486 = vlaneseq
  %v2487 = vshrl.u32 %v2486, 7
  %v2488 = vsub.s32 %v2485, %v2487
  %v2489 = vrot.slane %v2479, %v2488
  %v2491 = vunpack.c.l.s4 1966171168
  %v2492 = vunpack.c.0.s8 %v2491
  %v2493 = vlaneseq
  %v2494 = vshrl.u32 %v2493, 7
  %v2495 = vsub.s32 %v2492, %v2494
  %v2496 = vrot.slane %v2480, %v2495
  %v2498 = vunpack.c.l.s4 1966171168
  %v2499 = vunpack.c.0.s8 %v2498
  %v2500 = vlaneseq
  %v2501 = vshrl.u32 %v2500, 7
  %v2502 = vsub.s32 %v2499, %v2501
  %v2503 = vrot.slane %v2481, %v2502
  %v2505 = vunpack.c.l.s4 1966171168
  %v2506 = vunpack.c.0.s8 %v2505
  %v2507 = vlaneseq
  %v2508 = vshrl.u32 %v2507, 7
  %v2509 = vsub.s32 %v2506, %v2508
  %v2510 = vrot.slane %v2482, %v2509
  %v2511 = vcombine.low %v2489, %v2496
  %v2512 = vcombine.low %v2503, %v2510
  %v2514 = vunpack.c.l.s4 1966171168
  %v2515 = vunpack.c.0.s8 %v2514
  %v2516 = vlaneseq
  %v2517 = vshrl.u32 %v2516, 7
  %v2518 = vsub.s32 %v2515, %v2517
  %v2519 = vrot.slane %v2511, %v2518
  %v2521 = vunpack.c.l.s4 1966171168
  %v2522 = vunpack.c.0.s8 %v2521
  %v2523 = vlaneseq
  %v2524 = vshrl.u32 %v2523, 7
  %v2525 = vsub.s32 %v2522, %v2524
  %v2526 = vrot.slane %v2512, %v2525
  %v2527 = vcombine.low %v2519, %v2526
  %2530 = vst [vmem:[%s5] sm:$0xff] %v2478
  %2531 = vst [vmem:[%s5 + $0x8] sm:$0xff] %v2527
  // Predicated region
  $region22: #{_lambda_.11} parent=0 // pred_check
    _
  $region23: #{_lambda_.11} parent=0 // pred_check_branch
    %2533 = sbr.rel (0) target = $region25
  $region24: #{_lambda_.11} parent=0 // pred_region
    _
  $region25: #{_lambda_.11} parent=0 // pred_fallthru
    _
  // Predicated region
  $region26: #{_lambda_.11} parent=0 // pred_check
    _
  $region27: #{_lambda_.11} parent=0 // pred_check_branch
    %2535 = sbr.rel (0) target = $region29
  $region28: #{_lambda_.11} parent=0 // pred_region
    _
  $region29: #{_lambda_.11} parent=0 // pred_fallthru
    _

// kernel: _lambda_.13
$region0: #{_lambda_.13}
  #allocation0 [shape = 'u32[]', space=smem, size = 0x4, offset = 0x4, fixed_abs, tag = 'smem constant byte address 0x4 - core index']
  #allocation1 [shape = 'u32[144,128]{1,0:T(1,128)}', space=vmem, size = 0x12000, scoped, tag = 'internal scratch']
  %s0 = inlined_call_operand.vmem [shape: bf16[162,512], index: 0, kind: input, shape index: {}]
  %s1 = inlined_call_operand.vmem [shape: bf16[512,256], index: 1, kind: input, shape index: {}]
  %s2 = inlined_call_operand.vmem [shape: f32[1,256], index: 2, kind: input, shape index: {}]
  %s3 = inlined_call_operand.vmem [shape: bf16[162,256], index: 3, kind: output, shape index: {}]
  %s4 = sld [smem:[#allocation0]]
  $region22: #{_lambda_.13} parent=0
    _
  %s6 = ssub.s32 1, %s4
  %s7 = scalar_select 0, %s6, %s4
  // Predicated region
  $region2: #{_lambda_.13} parent=0 // pred_check
    _
  $region3: #{_lambda_.13} parent=0 // pred_check_branch
    %9 = sbr.rel (0) target = $region5
  $region4: #{_lambda_.13} parent=0 // pred_region
    _
  $region5: #{_lambda_.13} parent=0 // pred_fallthru
    _
  // Predicated region
  $region6: #{_lambda_.13} parent=0 // pred_check
    _
  $region7: #{_lambda_.13} parent=0 // pred_check_branch
    %11 = sbr.rel (0) target = $region9
  $region8: #{_lambda_.13} parent=0 // pred_region
    _
  $region9: #{_lambda_.13} parent=0 // pred_fallthru
    _
  // Predicated region
  $region10: #{_lambda_.13} parent=0 // pred_check
    _
  $region11: #{_lambda_.13} parent=0 // pred_check_branch
    %13 = sbr.rel (0) target = $region13
  $region12: #{_lambda_.13} parent=0 // pred_region
    _
  $region13: #{_lambda_.13} parent=0 // pred_fallthru
    _
  %v14 = vld [vmem:[%s0] sm:$0xff]
  %v15 = vld [vmem:[%s0 + $0x8] sm:$0xff]
  %v16 = vld [vmem:[%s0 + $0x10] sm:$0xff]
  %v17 = vld [vmem:[%s0 + $0x18] sm:$0xff]
  %v18 = vld [vmem:[%s0 + $0x20] sm:$0xff]
  %v19 = vld [vmem:[%s0 + $0x28] sm:$0xff]
  %v20 = vld [vmem:[%s0 + $0x30] sm:$0xff]
  %v21 = vld [vmem:[%s0 + $0x38] sm:$0xff]
  %v22 = vld [vmem:[%s0 + $0x40] sm:$0xff]
  %v23 = vld [vmem:[%s0 + $0x48] sm:$0xff]
  %v24 = vld [vmem:[%s0 + $0x50] sm:$0xff]
  %v25 = vld [vmem:[%s0 + $0x58] sm:$0xff]
  %v26 = vld [vmem:[%s0 + $0x60] sm:$0xff]
  %v27 = vld [vmem:[%s0 + $0x68] sm:$0xff]
  %v28 = vld [vmem:[%s0 + $0x70] sm:$0xff]
  %v29 = vld [vmem:[%s0 + $0x78] sm:$0xff]
  %v30 = vld [vmem:[%s0 + $0x80] sm:$0xff]
  %v31 = vld [vmem:[%s0 + $0x88] sm:$0xff]
  %v32 = vld [vmem:[%s0 + $0x90] sm:$0xff]
  %v33 = vld [vmem:[%s0 + $0x98] sm:$0xff]
  %v34 = vld [vmem:[%s0 + $0xa0] sm:$0xff]
  %v35 = vld [vmem:[%s0 + $0xa8] sm:$0xff]
  %v36 = vld [vmem:[%s0 + $0xb0] sm:$0xff]
  %v37 = vld [vmem:[%s0 + $0xb8] sm:$0xff]
  %v38 = vld [vmem:[%s0 + $0xc0] sm:$0xff]
  %v39 = vld [vmem:[%s0 + $0xc8] sm:$0xff]
  %v40 = vld [vmem:[%s0 + $0xd0] sm:$0xff]
  %v41 = vld [vmem:[%s0 + $0xd8] sm:$0xff]
  %v42 = vld [vmem:[%s0 + $0xe0] sm:$0xff]
  %v43 = vld [vmem:[%s0 + $0xe8] sm:$0xff]
  %v44 = vld [vmem:[%s0 + $0xf0] sm:$0xff]
  %v45 = vld [vmem:[%s0 + $0xf8] sm:$0xff]
  %v46 = vld [vmem:[%s0 + $0x100] sm:$0xff]
  %v47 = vld [vmem:[%s0 + $0x108] sm:$0xff]
  %v48 = vld [vmem:[%s0 + $0x110] sm:$0xff]
  %v49 = vld [vmem:[%s0 + $0x118] sm:$0xff]
  %v50 = vld [vmem:[%s0 + $0x120] sm:$0xff]
  %v51 = vld [vmem:[%s0 + $0x128] sm:$0xff]
  %v52 = vld [vmem:[%s0 + $0x130] sm:$0xff]
  %v53 = vld [vmem:[%s0 + $0x138] sm:$0xff]
  %v54 = vld [vmem:[%s0 + $0x140] sm:$0x11]
  %v55 = vld [vmem:[%s0 + $0x148] sm:$0x11]
  %v56 = vld [vmem:[%s1] sm:$0xff]
  %v57 = vld [vmem:[%s1 + $0x8] sm:$0xff]
  %v58 = vld [vmem:[%s1 + $0x10] sm:$0xff]
  %v59 = vld [vmem:[%s1 + $0x18] sm:$0xff]
  %v60 = vld [vmem:[%s1 + $0x20] sm:$0xff]
  %v61 = vld [vmem:[%s1 + $0x28] sm:$0xff]
  %v62 = vld [vmem:[%s1 + $0x30] sm:$0xff]
  %v63 = vld [vmem:[%s1 + $0x38] sm:$0xff]
  %v64 = vld [vmem:[%s1 + $0x40] sm:$0xff]
  %v65 = vld [vmem:[%s1 + $0x48] sm:$0xff]
  %v66 = vld [vmem:[%s1 + $0x50] sm:$0xff]
  %v67 = vld [vmem:[%s1 + $0x58] sm:$0xff]
  %v68 = vld [vmem:[%s1 + $0x60] sm:$0xff]
  %v69 = vld [vmem:[%s1 + $0x68] sm:$0xff]
  %v70 = vld [vmem:[%s1 + $0x70] sm:$0xff]
  %v71 = vld [vmem:[%s1 + $0x78] sm:$0xff]
  %v72 = vld [vmem:[%s1 + $0x80] sm:$0xff]
  %v73 = vld [vmem:[%s1 + $0x88] sm:$0xff]
  %v74 = vld [vmem:[%s1 + $0x90] sm:$0xff]
  %v75 = vld [vmem:[%s1 + $0x98] sm:$0xff]
  %v76 = vld [vmem:[%s1 + $0xa0] sm:$0xff]
  %v77 = vld [vmem:[%s1 + $0xa8] sm:$0xff]
  %v78 = vld [vmem:[%s1 + $0xb0] sm:$0xff]
  %v79 = vld [vmem:[%s1 + $0xb8] sm:$0xff]
  %v80 = vld [vmem:[%s1 + $0xc0] sm:$0xff]
  %v81 = vld [vmem:[%s1 + $0xc8] sm:$0xff]
  %v82 = vld [vmem:[%s1 + $0xd0] sm:$0xff]
  %v83 = vld [vmem:[%s1 + $0xd8] sm:$0xff]
  %v84 = vld [vmem:[%s1 + $0xe0] sm:$0xff]
  %v85 = vld [vmem:[%s1 + $0xe8] sm:$0xff]
  %v86 = vld [vmem:[%s1 + $0xf0] sm:$0xff]
  %v87 = vld [vmem:[%s1 + $0xf8] sm:$0xff]
  %v88 = vld [vmem:[%s1 + $0x100] sm:$0xff]
  %v89 = vld [vmem:[%s1 + $0x108] sm:$0xff]
  %v90 = vld [vmem:[%s1 + $0x110] sm:$0xff]
  %v91 = vld [vmem:[%s1 + $0x118] sm:$0xff]
  %v92 = vld [vmem:[%s1 + $0x120] sm:$0xff]
  %v93 = vld [vmem:[%s1 + $0x128] sm:$0xff]
  %v94 = vld [vmem:[%s1 + $0x130] sm:$0xff]
  %v95 = vld [vmem:[%s1 + $0x138] sm:$0xff]
  %v96 = vld [vmem:[%s1 + $0x140] sm:$0xff]
  %v97 = vld [vmem:[%s1 + $0x148] sm:$0xff]
  %v98 = vld [vmem:[%s1 + $0x150] sm:$0xff]
  %v99 = vld [vmem:[%s1 + $0x158] sm:$0xff]
  %v100 = vld [vmem:[%s1 + $0x160] sm:$0xff]
  %v101 = vld [vmem:[%s1 + $0x168] sm:$0xff]
  %v102 = vld [vmem:[%s1 + $0x170] sm:$0xff]
  %v103 = vld [vmem:[%s1 + $0x178] sm:$0xff]
  %v104 = vld [vmem:[%s1 + $0x180] sm:$0xff]
  %v105 = vld [vmem:[%s1 + $0x188] sm:$0xff]
  %v106 = vld [vmem:[%s1 + $0x190] sm:$0xff]
  %v107 = vld [vmem:[%s1 + $0x198] sm:$0xff]
  %v108 = vld [vmem:[%s1 + $0x1a0] sm:$0xff]
  %v109 = vld [vmem:[%s1 + $0x1a8] sm:$0xff]
  %v110 = vld [vmem:[%s1 + $0x1b0] sm:$0xff]
  %v111 = vld [vmem:[%s1 + $0x1b8] sm:$0xff]
  %v112 = vld [vmem:[%s1 + $0x1c0] sm:$0xff]
  %v113 = vld [vmem:[%s1 + $0x1c8] sm:$0xff]
  %v114 = vld [vmem:[%s1 + $0x1d0] sm:$0xff]
  %v115 = vld [vmem:[%s1 + $0x1d8] sm:$0xff]
  %v116 = vld [vmem:[%s1 + $0x1e0] sm:$0xff]
  %v117 = vld [vmem:[%s1 + $0x1e8] sm:$0xff]
  %v118 = vld [vmem:[%s1 + $0x1f0] sm:$0xff]
  %v119 = vld [vmem:[%s1 + $0x1f8] sm:$0xff]
  %v120 = vld [vmem:[%s2] sm:$0x3]
  %v122 = vlaneseq
  %v123 = vshrl.u32 %v122, 7
  %v124 = vsub.s32 0, %v123
  %v125 = vrot.slane %v120, %v124
  %v126 = vlaneseq
  %v127 = vshrl.u32 %v126, 7
  %v128 = vsub.s32 1, %v127
  %v129 = vrot.slane %v120, %v128
  %v174 = vunpack.c.l.b16 %v14
  %v175 = vunpack.c.h.b16 %v14
  %v176 = vunpack.c.l.b16 %v15
  %v177 = vunpack.c.h.b16 %v15
  %v178 = vunpack.c.l.b16 %v16
  %v179 = vunpack.c.h.b16 %v16
  %v180 = vunpack.c.l.b16 %v17
  %v181 = vunpack.c.h.b16 %v17
  %v182 = vunpack.c.l.b16 %v18
  %v183 = vunpack.c.h.b16 %v18
  %v184 = vunpack.c.l.b16 %v19
  %v185 = vunpack.c.h.b16 %v19
  %v186 = vunpack.c.l.b16 %v20
  %v187 = vunpack.c.h.b16 %v20
  %v188 = vunpack.c.l.b16 %v21
  %v189 = vunpack.c.h.b16 %v21
  %v190 = vunpack.c.l.b16 %v22
  %v191 = vunpack.c.h.b16 %v22
  %v192 = vunpack.c.l.b16 %v23
  %v193 = vunpack.c.h.b16 %v23
  %v194 = vunpack.c.l.b16 %v24
  %v195 = vunpack.c.h.b16 %v24
  %v196 = vunpack.c.l.b16 %v25
  %v197 = vunpack.c.h.b16 %v25
  %v198 = vunpack.c.l.b16 %v26
  %v199 = vunpack.c.h.b16 %v26
  %v200 = vunpack.c.l.b16 %v27
  %v201 = vunpack.c.h.b16 %v27
  %v202 = vunpack.c.l.b16 %v28
  %v203 = vunpack.c.h.b16 %v28
  %v204 = vunpack.c.l.b16 %v29
  %v205 = vunpack.c.h.b16 %v29
  %v206 = vunpack.c.l.b16 %v30
  %v207 = vunpack.c.h.b16 %v30
  %v208 = vunpack.c.l.b16 %v31
  %v209 = vunpack.c.h.b16 %v31
  %v210 = vunpack.c.l.b16 %v32
  %v211 = vunpack.c.h.b16 %v32
  %v212 = vunpack.c.l.b16 %v33
  %v213 = vunpack.c.h.b16 %v33
  %v214 = vunpack.c.l.b16 %v34
  %v215 = vunpack.c.h.b16 %v34
  %v216 = vunpack.c.l.b16 %v35
  %v217 = vunpack.c.h.b16 %v35
  %v218 = vunpack.c.l.b16 %v36
  %v219 = vunpack.c.h.b16 %v36
  %v220 = vunpack.c.l.b16 %v37
  %v221 = vunpack.c.h.b16 %v37
  %v222 = vunpack.c.l.b16 %v38
  %v223 = vunpack.c.h.b16 %v38
  %v224 = vunpack.c.l.b16 %v39
  %v225 = vunpack.c.h.b16 %v39
  %v226 = vunpack.c.l.b16 %v40
  %v227 = vunpack.c.h.b16 %v40
  %v228 = vunpack.c.l.b16 %v41
  %v229 = vunpack.c.h.b16 %v41
  %v230 = vunpack.c.l.b16 %v42
  %v231 = vunpack.c.h.b16 %v42
  %v232 = vunpack.c.l.b16 %v43
  %v233 = vunpack.c.h.b16 %v43
  %v234 = vunpack.c.l.b16 %v44
  %v235 = vunpack.c.h.b16 %v44
  %v236 = vunpack.c.l.b16 %v45
  %v237 = vunpack.c.h.b16 %v45
  %v238 = vunpack.c.l.b16 %v46
  %v239 = vunpack.c.h.b16 %v46
  %v240 = vunpack.c.l.b16 %v47
  %v241 = vunpack.c.h.b16 %v47
  %v242 = vunpack.c.l.b16 %v48
  %v243 = vunpack.c.h.b16 %v48
  %v244 = vunpack.c.l.b16 %v49
  %v245 = vunpack.c.h.b16 %v49
  %v246 = vunpack.c.l.b16 %v50
  %v247 = vunpack.c.h.b16 %v50
  %v248 = vunpack.c.l.b16 %v51
  %v249 = vunpack.c.h.b16 %v51
  %v250 = vunpack.c.l.b16 %v52
  %v251 = vunpack.c.h.b16 %v52
  %v252 = vunpack.c.l.b16 %v53
  %v253 = vunpack.c.h.b16 %v53
  %v254 = vunpack.c.l.b16 %v54
  %v255 = vunpack.c.h.b16 %v54
  %v256 = vunpack.c.l.b16 %v55
  %v257 = vunpack.c.h.b16 %v55
  %v258 = vpack.c.b16 %v178, %v174
  %v259 = vpack.c.b16 %v179, %v175
  %v260 = vpack.c.b16 %v180, %v176
  %v261 = vpack.c.b16 %v181, %v177
  %v262 = vpack.c.b16 %v186, %v182
  %v263 = vpack.c.b16 %v187, %v183
  %v264 = vpack.c.b16 %v188, %v184
  %v265 = vpack.c.b16 %v189, %v185
  %v266 = vpack.c.b16 %v194, %v190
  %v267 = vpack.c.b16 %v195, %v191
  %v268 = vpack.c.b16 %v196, %v192
  %v269 = vpack.c.b16 %v197, %v193
  %v270 = vpack.c.b16 %v202, %v198
  %v271 = vpack.c.b16 %v203, %v199
  %v272 = vpack.c.b16 %v204, %v200
  %v273 = vpack.c.b16 %v205, %v201
  %v274 = vpack.c.b16 %v210, %v206
  %v275 = vpack.c.b16 %v211, %v207
  %v276 = vpack.c.b16 %v212, %v208
  %v277 = vpack.c.b16 %v213, %v209
  %v278 = vpack.c.b16 %v218, %v214
  %v279 = vpack.c.b16 %v219, %v215
  %v280 = vpack.c.b16 %v220, %v216
  %v281 = vpack.c.b16 %v221, %v217
  %v282 = vpack.c.b16 %v226, %v222
  %v283 = vpack.c.b16 %v227, %v223
  %v284 = vpack.c.b16 %v228, %v224
  %v285 = vpack.c.b16 %v229, %v225
  %v286 = vpack.c.b16 %v234, %v230
  %v287 = vpack.c.b16 %v235, %v231
  %v288 = vpack.c.b16 %v236, %v232
  %v289 = vpack.c.b16 %v237, %v233
  %v290 = vpack.c.b16 %v242, %v238
  %v291 = vpack.c.b16 %v243, %v239
  %v292 = vpack.c.b16 %v244, %v240
  %v293 = vpack.c.b16 %v245, %v241
  %v294 = vpack.c.b16 %v250, %v246
  %v295 = vpack.c.b16 %v251, %v247
  %v296 = vpack.c.b16 %v252, %v248
  %v297 = vpack.c.b16 %v253, %v249
  %v298 = vpack.c.b16 %v254, %v254
  %v299 = vpack.c.b16 %v255, %v255
  %v300 = vpack.c.b16 %v256, %v256
  %v301 = vpack.c.b16 %v257, %v257
  %v410 = vunpack.c.l.b16 %v56
  %v411 = vunpack.c.h.b16 %v56
  %v412 = vunpack.c.l.b16 %v57
  %v413 = vunpack.c.h.b16 %v57
  %v414 = vunpack.c.l.b16 %v58
  %v415 = vunpack.c.h.b16 %v58
  %v416 = vunpack.c.l.b16 %v59
  %v417 = vunpack.c.h.b16 %v59
  %v418 = vunpack.c.l.b16 %v60
  %v419 = vunpack.c.h.b16 %v60
  %v420 = vunpack.c.l.b16 %v61
  %v421 = vunpack.c.h.b16 %v61
  %v422 = vunpack.c.l.b16 %v62
  %v423 = vunpack.c.h.b16 %v62
  %v424 = vunpack.c.l.b16 %v63
  %v425 = vunpack.c.h.b16 %v63
  %v426 = vunpack.c.l.b16 %v64
  %v427 = vunpack.c.h.b16 %v64
  %v428 = vunpack.c.l.b16 %v65
  %v429 = vunpack.c.h.b16 %v65
  %v430 = vunpack.c.l.b16 %v66
  %v431 = vunpack.c.h.b16 %v66
  %v432 = vunpack.c.l.b16 %v67
  %v433 = vunpack.c.h.b16 %v67
  %v434 = vunpack.c.l.b16 %v68
  %v435 = vunpack.c.h.b16 %v68
  %v436 = vunpack.c.l.b16 %v69
  %v437 = vunpack.c.h.b16 %v69
  %v438 = vunpack.c.l.b16 %v70
  %v439 = vunpack.c.h.b16 %v70
  %v440 = vunpack.c.l.b16 %v71
  %v441 = vunpack.c.h.b16 %v71
  %v442 = vunpack.c.l.b16 %v72
  %v443 = vunpack.c.h.b16 %v72
  %v444 = vunpack.c.l.b16 %v73
  %v445 = vunpack.c.h.b16 %v73
  %v446 = vunpack.c.l.b16 %v74
  %v447 = vunpack.c.h.b16 %v74
  %v448 = vunpack.c.l.b16 %v75
  %v449 = vunpack.c.h.b16 %v75
  %v450 = vunpack.c.l.b16 %v76
  %v451 = vunpack.c.h.b16 %v76
  %v452 = vunpack.c.l.b16 %v77
  %v453 = vunpack.c.h.b16 %v77
  %v454 = vunpack.c.l.b16 %v78
  %v455 = vunpack.c.h.b16 %v78
  %v456 = vunpack.c.l.b16 %v79
  %v457 = vunpack.c.h.b16 %v79
  %v458 = vunpack.c.l.b16 %v80
  %v459 = vunpack.c.h.b16 %v80
  %v460 = vunpack.c.l.b16 %v81
  %v461 = vunpack.c.h.b16 %v81
  %v462 = vunpack.c.l.b16 %v82
  %v463 = vunpack.c.h.b16 %v82
  %v464 = vunpack.c.l.b16 %v83
  %v465 = vunpack.c.h.b16 %v83
  %v466 = vunpack.c.l.b16 %v84
  %v467 = vunpack.c.h.b16 %v84
  %v468 = vunpack.c.l.b16 %v85
  %v469 = vunpack.c.h.b16 %v85
  %v470 = vunpack.c.l.b16 %v86
  %v471 = vunpack.c.h.b16 %v86
  %v472 = vunpack.c.l.b16 %v87
  %v473 = vunpack.c.h.b16 %v87
  %v474 = vunpack.c.l.b16 %v88
  %v475 = vunpack.c.h.b16 %v88
  %v476 = vunpack.c.l.b16 %v89
  %v477 = vunpack.c.h.b16 %v89
  %v478 = vunpack.c.l.b16 %v90
  %v479 = vunpack.c.h.b16 %v90
  %v480 = vunpack.c.l.b16 %v91
  %v481 = vunpack.c.h.b16 %v91
  %v482 = vunpack.c.l.b16 %v92
  %v483 = vunpack.c.h.b16 %v92
  %v484 = vunpack.c.l.b16 %v93
  %v485 = vunpack.c.h.b16 %v93
  %v486 = vunpack.c.l.b16 %v94
  %v487 = vunpack.c.h.b16 %v94
  %v488 = vunpack.c.l.b16 %v95
  %v489 = vunpack.c.h.b16 %v95
  %v490 = vunpack.c.l.b16 %v96
  %v491 = vunpack.c.h.b16 %v96
  %v492 = vunpack.c.l.b16 %v97
  %v493 = vunpack.c.h.b16 %v97
  %v494 = vunpack.c.l.b16 %v98
  %v495 = vunpack.c.h.b16 %v98
  %v496 = vunpack.c.l.b16 %v99
  %v497 = vunpack.c.h.b16 %v99
  %v498 = vunpack.c.l.b16 %v100
  %v499 = vunpack.c.h.b16 %v100
  %v500 = vunpack.c.l.b16 %v101
  %v501 = vunpack.c.h.b16 %v101
  %v502 = vunpack.c.l.b16 %v102
  %v503 = vunpack.c.h.b16 %v102
  %v504 = vunpack.c.l.b16 %v103
  %v505 = vunpack.c.h.b16 %v103
  %v506 = vunpack.c.l.b16 %v104
  %v507 = vunpack.c.h.b16 %v104
  %v508 = vunpack.c.l.b16 %v105
  %v509 = vunpack.c.h.b16 %v105
  %v510 = vunpack.c.l.b16 %v106
  %v511 = vunpack.c.h.b16 %v106
  %v512 = vunpack.c.l.b16 %v107
  %v513 = vunpack.c.h.b16 %v107
  %v514 = vunpack.c.l.b16 %v108
  %v515 = vunpack.c.h.b16 %v108
  %v516 = vunpack.c.l.b16 %v109
  %v517 = vunpack.c.h.b16 %v109
  %v518 = vunpack.c.l.b16 %v110
  %v519 = vunpack.c.h.b16 %v110
  %v520 = vunpack.c.l.b16 %v111
  %v521 = vunpack.c.h.b16 %v111
  %v522 = vunpack.c.l.b16 %v112
  %v523 = vunpack.c.h.b16 %v112
  %v524 = vunpack.c.l.b16 %v113
  %v525 = vunpack.c.h.b16 %v113
  %v526 = vunpack.c.l.b16 %v114
  %v527 = vunpack.c.h.b16 %v114
  %v528 = vunpack.c.l.b16 %v115
  %v529 = vunpack.c.h.b16 %v115
  %v530 = vunpack.c.l.b16 %v116
  %v531 = vunpack.c.h.b16 %v116
  %v532 = vunpack.c.l.b16 %v117
  %v533 = vunpack.c.h.b16 %v117
  %v534 = vunpack.c.l.b16 %v118
  %v535 = vunpack.c.h.b16 %v118
  %v536 = vunpack.c.l.b16 %v119
  %v537 = vunpack.c.h.b16 %v119
  %v538 = vpack.c.b16 %v412, %v410
  %v539 = vpack.c.b16 %v413, %v411
  %v540 = vpack.c.b16 %v416, %v414
  %v541 = vpack.c.b16 %v417, %v415
  %v542 = vpack.c.b16 %v420, %v418
  %v543 = vpack.c.b16 %v421, %v419
  %v544 = vpack.c.b16 %v424, %v422
  %v545 = vpack.c.b16 %v425, %v423
  %v546 = vpack.c.b16 %v428, %v426
  %v547 = vpack.c.b16 %v429, %v427
  %v548 = vpack.c.b16 %v432, %v430
  %v549 = vpack.c.b16 %v433, %v431
  %v550 = vpack.c.b16 %v436, %v434
  %v551 = vpack.c.b16 %v437, %v435
  %v552 = vpack.c.b16 %v440, %v438
  %v553 = vpack.c.b16 %v441, %v439
  %v554 = vpack.c.b16 %v444, %v442
  %v555 = vpack.c.b16 %v445, %v443
  %v556 = vpack.c.b16 %v448, %v446
  %v557 = vpack.c.b16 %v449, %v447
  %v558 = vpack.c.b16 %v452, %v450
  %v559 = vpack.c.b16 %v453, %v451
  %v560 = vpack.c.b16 %v456, %v454
  %v561 = vpack.c.b16 %v457, %v455
  %v562 = vpack.c.b16 %v460, %v458
  %v563 = vpack.c.b16 %v461, %v459
  %v564 = vpack.c.b16 %v464, %v462
  %v565 = vpack.c.b16 %v465, %v463
  %v566 = vpack.c.b16 %v468, %v466
  %v567 = vpack.c.b16 %v469, %v467
  %v568 = vpack.c.b16 %v472, %v470
  %v569 = vpack.c.b16 %v473, %v471
  %v570 = vpack.c.b16 %v476, %v474
  %v571 = vpack.c.b16 %v477, %v475
  %v572 = vpack.c.b16 %v480, %v478
  %v573 = vpack.c.b16 %v481, %v479
  %v574 = vpack.c.b16 %v484, %v482
  %v575 = vpack.c.b16 %v485, %v483
  %v576 = vpack.c.b16 %v488, %v486
  %v577 = vpack.c.b16 %v489, %v487
  %v578 = vpack.c.b16 %v492, %v490
  %v579 = vpack.c.b16 %v493, %v491
  %v580 = vpack.c.b16 %v496, %v494
  %v581 = vpack.c.b16 %v497, %v495
  %v582 = vpack.c.b16 %v500, %v498
  %v583 = vpack.c.b16 %v501, %v499
  %v584 = vpack.c.b16 %v504, %v502
  %v585 = vpack.c.b16 %v505, %v503
  %v586 = vpack.c.b16 %v508, %v506
  %v587 = vpack.c.b16 %v509, %v507
  %v588 = vpack.c.b16 %v512, %v510
  %v589 = vpack.c.b16 %v513, %v511
  %v590 = vpack.c.b16 %v516, %v514
  %v591 = vpack.c.b16 %v517, %v515
  %v592 = vpack.c.b16 %v520, %v518
  %v593 = vpack.c.b16 %v521, %v519
  %v594 = vpack.c.b16 %v524, %v522
  %v595 = vpack.c.b16 %v525, %v523
  %v596 = vpack.c.b16 %v528, %v526
  %v597 = vpack.c.b16 %v529, %v527
  %v598 = vpack.c.b16 %v532, %v530
  %v599 = vpack.c.b16 %v533, %v531
  %v600 = vpack.c.b16 %v536, %v534
  %v601 = vpack.c.b16 %v537, %v535
  %666 = vmatprep.subr.bf16.mxu0 %v553
  %667 = vmatpush1.bf16.msra.mxu0 %v552
  %668 = vmatprep.subr.bf16.mxu0 %v551
  %669 = vmatpush1.bf16.msra.mxu0 %v550
  %670 = vmatprep.subr.bf16.mxu0 %v549
  %671 = vmatpush1.bf16.msra.mxu0 %v548
  %672 = vmatprep.subr.bf16.mxu0 %v547
  %673 = vmatpush1.bf16.msra.mxu0 %v546
  %674 = vmatprep.subr.bf16.mxu0 %v545
  %675 = vmatpush1.bf16.msra.mxu0 %v544
  %676 = vmatprep.subr.bf16.mxu0 %v543
  %677 = vmatpush1.bf16.msra.mxu0 %v542
  %678 = vmatprep.subr.bf16.mxu0 %v541
  %679 = vmatpush1.bf16.msra.mxu0 %v540
  %680 = vmatprep.subr.bf16.mxu0 %v539
  %681 = vmatpush1.bf16.msra.mxu0 %v538
  %682 = vmatprep.subr.bf16.mxu0 %v569
  %683 = vmatpush2.bf16.msra.mxu0 %v568
  %684 = vmatprep.subr.bf16.mxu0 %v567
  %685 = vmatpush2.bf16.msra.mxu0 %v566
  %686 = vmatprep.subr.bf16.mxu0 %v565
  %687 = vmatpush2.bf16.msra.mxu0 %v564
  %688 = vmatprep.subr.bf16.mxu0 %v563
  %689 = vmatpush2.bf16.msra.mxu0 %v562
  %690 = vmatprep.subr.bf16.mxu0 %v561
  %691 = vmatpush2.bf16.msra.mxu0 %v560
  %692 = vmatprep.subr.bf16.mxu0 %v559
  %693 = vmatpush2.bf16.msra.mxu0 %v558
  %694 = vmatprep.subr.bf16.mxu0 %v557
  %695 = vmatpush2.bf16.msra.mxu0 %v556
  %696 = vmatprep.subr.bf16.mxu0 %v555
  %697 = vmatpush2.bf16.msra.mxu0 %v554
  %698 = vmatprep.mubr.bf16.mxu0 %v259
  %699 = vmatmul.mubr.bf16.gmra.mxu0 %v258
  %v700 = vpop.f32.mrf.mxu0
  %v701 = vadd.f32 %v125, %v700
  %v702 = vpop.f32.mrf.mxu0
  %v703 = vadd.f32 %v129, %v702
  %v704 = vpop.f32.mrf.mxu0
  %v705 = vadd.f32 %v125, %v704
  %v706 = vpop.f32.mrf.mxu0
  %v707 = vadd.f32 %v129, %v706
  %708 = vmatprep.mubr.bf16.mxu0 %v263
  %709 = vmatmul.mubr.bf16.gmra.mxu0 %v262
  %v710 = vpop.f32.mrf.mxu0
  %v711 = vadd.f32 %v125, %v710
  %v712 = vpop.f32.mrf.mxu0
  %v713 = vadd.f32 %v129, %v712
  %v714 = vpop.f32.mrf.mxu0
  %v715 = vadd.f32 %v125, %v714
  %v716 = vpop.f32.mrf.mxu0
  %v717 = vadd.f32 %v129, %v716
  %718 = vmatprep.mubr.bf16.mxu0 %v267
  %719 = vmatmul.mubr.bf16.gmra.mxu0 %v266
  %v720 = vpop.f32.mrf.mxu0
  %v721 = vadd.f32 %v125, %v720
  %v722 = vpop.f32.mrf.mxu0
  %v723 = vadd.f32 %v129, %v722
  %v724 = vpop.f32.mrf.mxu0
  %v725 = vadd.f32 %v125, %v724
  %v726 = vpop.f32.mrf.mxu0
  %v727 = vadd.f32 %v129, %v726
  %728 = vmatprep.mubr.bf16.mxu0 %v271
  %729 = vmatmul.mubr.bf16.gmra.mxu0 %v270
  %v730 = vpop.f32.mrf.mxu0
  %v731 = vadd.f32 %v125, %v730
  %v732 = vpop.f32.mrf.mxu0
  %v733 = vadd.f32 %v129, %v732
  %v734 = vpop.f32.mrf.mxu0
  %v735 = vadd.f32 %v125, %v734
  %v736 = vpop.f32.mrf.mxu0
  %v737 = vadd.f32 %v129, %v736
  %738 = vmatprep.mubr.bf16.mxu0 %v275
  %739 = vmatmul.mubr.bf16.gmra.mxu0 %v274
  %v740 = vpop.f32.mrf.mxu0
  %v741 = vadd.f32 %v125, %v740
  %v742 = vpop.f32.mrf.mxu0
  %v743 = vadd.f32 %v129, %v742
  %v744 = vpop.f32.mrf.mxu0
  %v745 = vadd.f32 %v125, %v744
  %v746 = vpop.f32.mrf.mxu0
  %v747 = vadd.f32 %v129, %v746
  %748 = vmatprep.mubr.bf16.mxu0 %v279
  %749 = vmatmul.mubr.bf16.gmra.mxu0 %v278
  %v750 = vpop.f32.mrf.mxu0
  %v751 = vadd.f32 %v125, %v750
  %v752 = vpop.f32.mrf.mxu0
  %v753 = vadd.f32 %v129, %v752
  %v754 = vpop.f32.mrf.mxu0
  %v755 = vadd.f32 %v125, %v754
  %v756 = vpop.f32.mrf.mxu0
  %v757 = vadd.f32 %v129, %v756
  %758 = vmatprep.mubr.bf16.mxu0 %v283
  %759 = vmatmul.mubr.bf16.gmra.mxu0 %v282
  %v760 = vpop.f32.mrf.mxu0
  %v761 = vadd.f32 %v125, %v760
  %v762 = vpop.f32.mrf.mxu0
  %v763 = vadd.f32 %v129, %v762
  %v764 = vpop.f32.mrf.mxu0
  %v765 = vadd.f32 %v125, %v764
  %v766 = vpop.f32.mrf.mxu0
  %v767 = vadd.f32 %v129, %v766
  %768 = vmatprep.mubr.bf16.mxu0 %v287
  %769 = vmatmul.mubr.bf16.gmra.mxu0 %v286
  %v770 = vpop.f32.mrf.mxu0
  %v771 = vadd.f32 %v125, %v770
  %v772 = vpop.f32.mrf.mxu0
  %v773 = vadd.f32 %v129, %v772
  %v774 = vpop.f32.mrf.mxu0
  %v775 = vadd.f32 %v125, %v774
  %v776 = vpop.f32.mrf.mxu0
  %v777 = vadd.f32 %v129, %v776
  %778 = vmatprep.mubr.bf16.mxu0 %v291
  %779 = vmatmul.mubr.bf16.gmra.mxu0 %v290
  %v780 = vpop.f32.mrf.mxu0
  %v781 = vadd.f32 %v125, %v780
  %v782 = vpop.f32.mrf.mxu0
  %v783 = vadd.f32 %v129, %v782
  %v784 = vpop.f32.mrf.mxu0
  %v785 = vadd.f32 %v125, %v784
  %v786 = vpop.f32.mrf.mxu0
  %v787 = vadd.f32 %v129, %v786
  %788 = vmatprep.mubr.bf16.mxu0 %v295
  %789 = vmatmul.mubr.bf16.gmra.mxu0 %v294
  %v790 = vpop.f32.mrf.mxu0
  %v791 = vadd.f32 %v125, %v790
  %v792 = vpop.f32.mrf.mxu0
  %v793 = vadd.f32 %v129, %v792
  %v794 = vpop.f32.mrf.mxu0
  %v795 = vadd.f32 %v125, %v794
  %v796 = vpop.f32.mrf.mxu0
  %v797 = vadd.f32 %v129, %v796
  %798 = vmatprep.mubr.bf16.mxu0 %v299
  %799 = vmatmul.mubr.bf16.gmra.mxu0 %v298
  %v800 = vpop.f32.mrf.mxu0
  %v801 = vadd.f32 %v125, %v800
  %v802 = vpop.f32.mrf.mxu0
  %v803 = vadd.f32 %v129, %v802
  %v804 = vpop.f32.mrf.mxu0
  %v805 = vpop.f32.mrf.mxu0
  %806 = vdwg.mxu0
  %807 = vmatprep.subr.bf16.mxu0 %v585
  %808 = vmatpush1.bf16.msra.mxu0 %v584
  %809 = vmatprep.subr.bf16.mxu0 %v583
  %810 = vmatpush1.bf16.msra.mxu0 %v582
  %811 = vmatprep.subr.bf16.mxu0 %v581
  %812 = vmatpush1.bf16.msra.mxu0 %v580
  %813 = vmatprep.subr.bf16.mxu0 %v579
  %814 = vmatpush1.bf16.msra.mxu0 %v578
  %815 = vmatprep.subr.bf16.mxu0 %v577
  %816 = vmatpush1.bf16.msra.mxu0 %v576
  %817 = vmatprep.subr.bf16.mxu0 %v575
  %818 = vmatpush1.bf16.msra.mxu0 %v574
  %819 = vmatprep.subr.bf16.mxu0 %v573
  %820 = vmatpush1.bf16.msra.mxu0 %v572
  %821 = vmatprep.subr.bf16.mxu0 %v571
  %822 = vmatpush1.bf16.msra.mxu0 %v570
  %823 = vmatprep.subr.bf16.mxu0 %v601
  %824 = vmatpush2.bf16.msra.mxu0 %v600
  %825 = vmatprep.subr.bf16.mxu0 %v599
  %826 = vmatpush2.bf16.msra.mxu0 %v598
  %827 = vmatprep.subr.bf16.mxu0 %v597
  %828 = vmatpush2.bf16.msra.mxu0 %v596
  %829 = vmatprep.subr.bf16.mxu0 %v595
  %830 = vmatpush2.bf16.msra.mxu0 %v594
  %831 = vmatprep.subr.bf16.mxu0 %v593
  %832 = vmatpush2.bf16.msra.mxu0 %v592
  %833 = vmatprep.subr.bf16.mxu0 %v591
  %834 = vmatpush2.bf16.msra.mxu0 %v590
  %835 = vmatprep.subr.bf16.mxu0 %v589
  %836 = vmatpush2.bf16.msra.mxu0 %v588
  %837 = vmatprep.subr.bf16.mxu0 %v587
  %838 = vmatpush2.bf16.msra.mxu0 %v586
  %839 = vmatprep.mubr.bf16.mxu0 %v261
  %840 = vmatmul.mubr.bf16.gmra.mxu0 %v260
  %v841 = vpop.f32.mrf.mxu0
  %v842 = vadd.f32 %v701, %v841
  %v843 = vpop.f32.mrf.mxu0
  %v844 = vadd.f32 %v703, %v843
  %v845 = vpop.f32.mrf.mxu0
  %v846 = vadd.f32 %v705, %v845
  %v847 = vpop.f32.mrf.mxu0
  %v848 = vadd.f32 %v707, %v847
  %849 = vmatprep.mubr.bf16.mxu0 %v265
  %850 = vmatmul.mubr.bf16.gmra.mxu0 %v264
  %v851 = vpop.f32.mrf.mxu0
  %v852 = vadd.f32 %v711, %v851
  %v853 = vpop.f32.mrf.mxu0
  %v854 = vadd.f32 %v713, %v853
  %v855 = vpop.f32.mrf.mxu0
  %v856 = vadd.f32 %v715, %v855
  %v857 = vpop.f32.mrf.mxu0
  %v858 = vadd.f32 %v717, %v857
  %859 = vmatprep.mubr.bf16.mxu0 %v269
  %860 = vmatmul.mubr.bf16.gmra.mxu0 %v268
  %v861 = vpop.f32.mrf.mxu0
  %v862 = vadd.f32 %v721, %v861
  %v863 = vpop.f32.mrf.mxu0
  %v864 = vadd.f32 %v723, %v863
  %v865 = vpop.f32.mrf.mxu0
  %v866 = vadd.f32 %v725, %v865
  %v867 = vpop.f32.mrf.mxu0
  %v868 = vadd.f32 %v727, %v867
  %869 = vmatprep.mubr.bf16.mxu0 %v273
  %870 = vmatmul.mubr.bf16.gmra.mxu0 %v272
  %v871 = vpop.f32.mrf.mxu0
  %v872 = vadd.f32 %v731, %v871
  %v873 = vpop.f32.mrf.mxu0
  %v874 = vadd.f32 %v733, %v873
  %v875 = vpop.f32.mrf.mxu0
  %v876 = vadd.f32 %v735, %v875
  %v877 = vpop.f32.mrf.mxu0
  %v878 = vadd.f32 %v737, %v877
  %879 = vmatprep.mubr.bf16.mxu0 %v277
  %880 = vmatmul.mubr.bf16.gmra.mxu0 %v276
  %v881 = vpop.f32.mrf.mxu0
  %v882 = vadd.f32 %v741, %v881
  %v883 = vpop.f32.mrf.mxu0
  %v884 = vadd.f32 %v743, %v883
  %v885 = vpop.f32.mrf.mxu0
  %v886 = vadd.f32 %v745, %v885
  %v887 = vpop.f32.mrf.mxu0
  %v888 = vadd.f32 %v747, %v887
  %889 = vmatprep.mubr.bf16.mxu0 %v281
  %890 = vmatmul.mubr.bf16.gmra.mxu0 %v280
  %v891 = vpop.f32.mrf.mxu0
  %v892 = vadd.f32 %v751, %v891
  %v893 = vpop.f32.mrf.mxu0
  %v894 = vadd.f32 %v753, %v893
  %v895 = vpop.f32.mrf.mxu0
  %v896 = vadd.f32 %v755, %v895
  %v897 = vpop.f32.mrf.mxu0
  %v898 = vadd.f32 %v757, %v897
  %899 = vmatprep.mubr.bf16.mxu0 %v285
  %900 = vmatmul.mubr.bf16.gmra.mxu0 %v284
  %v901 = vpop.f32.mrf.mxu0
  %v902 = vadd.f32 %v761, %v901
  %v903 = vpop.f32.mrf.mxu0
  %v904 = vadd.f32 %v763, %v903
  %v905 = vpop.f32.mrf.mxu0
  %v906 = vadd.f32 %v765, %v905
  %v907 = vpop.f32.mrf.mxu0
  %v908 = vadd.f32 %v767, %v907
  %909 = vmatprep.mubr.bf16.mxu0 %v289
  %910 = vmatmul.mubr.bf16.gmra.mxu0 %v288
  %v911 = vpop.f32.mrf.mxu0
  %v912 = vadd.f32 %v771, %v911
  %v913 = vpop.f32.mrf.mxu0
  %v914 = vadd.f32 %v773, %v913
  %v915 = vpop.f32.mrf.mxu0
  %v916 = vadd.f32 %v775, %v915
  %v917 = vpop.f32.mrf.mxu0
  %v918 = vadd.f32 %v777, %v917
  %919 = vmatprep.mubr.bf16.mxu0 %v293
  %920 = vmatmul.mubr.bf16.gmra.mxu0 %v292
  %v921 = vpop.f32.mrf.mxu0
  %v922 = vadd.f32 %v781, %v921
  %v923 = vpop.f32.mrf.mxu0
  %v924 = vadd.f32 %v783, %v923
  %v925 = vpop.f32.mrf.mxu0
  %v926 = vadd.f32 %v785, %v925
  %v927 = vpop.f32.mrf.mxu0
  %v928 = vadd.f32 %v787, %v927
  %929 = vmatprep.mubr.bf16.mxu0 %v297
  %930 = vmatmul.mubr.bf16.gmra.mxu0 %v296
  %v931 = vpop.f32.mrf.mxu0
  %v932 = vadd.f32 %v791, %v931
  %v933 = vpop.f32.mrf.mxu0
  %v934 = vadd.f32 %v793, %v933
  %v935 = vpop.f32.mrf.mxu0
  %v936 = vadd.f32 %v795, %v935
  %v937 = vpop.f32.mrf.mxu0
  %v938 = vadd.f32 %v797, %v937
  %939 = vmatprep.mubr.bf16.mxu0 %v301
  %940 = vmatmul.mubr.bf16.gmra.mxu0 %v300
  %v941 = vpop.f32.mrf.mxu0
  %v942 = vadd.f32 %v801, %v941
  %v943 = vpop.f32.mrf.mxu0
  %v944 = vadd.f32 %v803, %v943
  %v945 = vpop.f32.mrf.mxu0
  %v946 = vpop.f32.mrf.mxu0
  %947 = vdwg.mxu0
  %v948 = vmax.f32 %v842, 0.0
  %v949 = vmax.f32 %v844, 0.0
  %v950 = vmax.f32 %v846, 0.0
  %v951 = vmax.f32 %v848, 0.0
  %v952 = vmax.f32 %v852, 0.0
  %v953 = vmax.f32 %v854, 0.0
  %v954 = vmax.f32 %v856, 0.0
  %v955 = vmax.f32 %v858, 0.0
  %v956 = vmax.f32 %v862, 0.0
  %v957 = vmax.f32 %v864, 0.0
  %v958 = vmax.f32 %v866, 0.0
  %v959 = vmax.f32 %v868, 0.0
  %v960 = vmax.f32 %v872, 0.0
  %v961 = vmax.f32 %v874, 0.0
  %v962 = vmax.f32 %v876, 0.0
  %v963 = vmax.f32 %v878, 0.0
  %v964 = vmax.f32 %v882, 0.0
  %v965 = vmax.f32 %v884, 0.0
  %v966 = vmax.f32 %v886, 0.0
  %v967 = vmax.f32 %v888, 0.0
  %v968 = vmax.f32 %v892, 0.0
  %v969 = vmax.f32 %v894, 0.0
  %v970 = vmax.f32 %v896, 0.0
  %v971 = vmax.f32 %v898, 0.0
  %v972 = vmax.f32 %v902, 0.0
  %v973 = vmax.f32 %v904, 0.0
  %v974 = vmax.f32 %v906, 0.0
  %v975 = vmax.f32 %v908, 0.0
  %v976 = vmax.f32 %v912, 0.0
  %v977 = vmax.f32 %v914, 0.0
  %v978 = vmax.f32 %v916, 0.0
  %v979 = vmax.f32 %v918, 0.0
  %v980 = vmax.f32 %v922, 0.0
  %v981 = vmax.f32 %v924, 0.0
  %v982 = vmax.f32 %v926, 0.0
  %v983 = vmax.f32 %v928, 0.0
  %v984 = vmax.f32 %v932, 0.0
  %v985 = vmax.f32 %v934, 0.0
  %v986 = vmax.f32 %v936, 0.0
  %v987 = vmax.f32 %v938, 0.0
  %v988 = vmax.f32 %v942, 0.0
  %v989 = vmax.f32 %v944, 0.0
  %v990 = vpack.c.bf16 %v950, %v948
  %v991 = vpack.c.bf16 %v951, %v949
  %v992 = vpack.c.bf16 %v954, %v952
  %v993 = vpack.c.bf16 %v955, %v953
  %v994 = vpack.c.bf16 %v958, %v956
  %v995 = vpack.c.bf16 %v959, %v957
  %v996 = vpack.c.bf16 %v962, %v960
  %v997 = vpack.c.bf16 %v963, %v961
  %v998 = vpack.c.bf16 %v966, %v964
  %v999 = vpack.c.bf16 %v967, %v965
  %v1000 = vpack.c.bf16 %v970, %v968
  %v1001 = vpack.c.bf16 %v971, %v969
  %v1002 = vpack.c.bf16 %v974, %v972
  %v1003 = vpack.c.bf16 %v975, %v973
  %v1004 = vpack.c.bf16 %v978, %v976
  %v1005 = vpack.c.bf16 %v979, %v977
  %v1006 = vpack.c.bf16 %v982, %v980
  %v1007 = vpack.c.bf16 %v983, %v981
  %v1008 = vpack.c.bf16 %v986, %v984
  %v1009 = vpack.c.bf16 %v987, %v985
  %v1010 = vpack.c.bf16 %v988, %v988
  %v1011 = vpack.c.bf16 %v989, %v989
  %v1034 = vunpack.c.l.b16 %v990
  %v1035 = vunpack.c.l.b16 %v991
  %v1036 = vunpack.c.h.b16 %v990
  %v1037 = vunpack.c.h.b16 %v991
  %v1038 = vunpack.c.l.b16 %v992
  %v1039 = vunpack.c.l.b16 %v993
  %v1040 = vunpack.c.h.b16 %v992
  %v1041 = vunpack.c.h.b16 %v993
  %v1042 = vunpack.c.l.b16 %v994
  %v1043 = vunpack.c.l.b16 %v995
  %v1044 = vunpack.c.h.b16 %v994
  %v1045 = vunpack.c.h.b16 %v995
  %v1046 = vunpack.c.l.b16 %v996
  %v1047 = vunpack.c.l.b16 %v997
  %v1048 = vunpack.c.h.b16 %v996
  %v1049 = vunpack.c.h.b16 %v997
  %v1050 = vunpack.c.l.b16 %v998
  %v1051 = vunpack.c.l.b16 %v999
  %v1052 = vunpack.c.h.b16 %v998
  %v1053 = vunpack.c.h.b16 %v999
  %v1054 = vunpack.c.l.b16 %v1000
  %v1055 = vunpack.c.l.b16 %v1001
  %v1056 = vunpack.c.h.b16 %v1000
  %v1057 = vunpack.c.h.b16 %v1001
  %v1058 = vunpack.c.l.b16 %v1002
  %v1059 = vunpack.c.l.b16 %v1003
  %v1060 = vunpack.c.h.b16 %v1002
  %v1061 = vunpack.c.h.b16 %v1003
  %v1062 = vunpack.c.l.b16 %v1004
  %v1063 = vunpack.c.l.b16 %v1005
  %v1064 = vunpack.c.h.b16 %v1004
  %v1065 = vunpack.c.h.b16 %v1005
  %v1066 = vunpack.c.l.b16 %v1006
  %v1067 = vunpack.c.l.b16 %v1007
  %v1068 = vunpack.c.h.b16 %v1006
  %v1069 = vunpack.c.h.b16 %v1007
  %v1070 = vunpack.c.l.b16 %v1008
  %v1071 = vunpack.c.l.b16 %v1009
  %v1072 = vunpack.c.h.b16 %v1008
  %v1073 = vunpack.c.h.b16 %v1009
  %v1074 = vunpack.c.l.b16 %v1010
  %v1075 = vunpack.c.l.b16 %v1011
  %v1076 = vpack.c.b16 %v1035, %v1034
  %v1077 = vpack.c.b16 %v1037, %v1036
  %v1078 = vpack.c.b16 %v1039, %v1038
  %v1079 = vpack.c.b16 %v1041, %v1040
  %v1080 = vpack.c.b16 %v1043, %v1042
  %v1081 = vpack.c.b16 %v1045, %v1044
  %v1082 = vpack.c.b16 %v1047, %v1046
  %v1083 = vpack.c.b16 %v1049, %v1048
  %v1084 = vpack.c.b16 %v1051, %v1050
  %v1085 = vpack.c.b16 %v1053, %v1052
  %v1086 = vpack.c.b16 %v1055, %v1054
  %v1087 = vpack.c.b16 %v1057, %v1056
  %v1088 = vpack.c.b16 %v1059, %v1058
  %v1089 = vpack.c.b16 %v1061, %v1060
  %v1090 = vpack.c.b16 %v1063, %v1062
  %v1091 = vpack.c.b16 %v1065, %v1064
  %v1092 = vpack.c.b16 %v1067, %v1066
  %v1093 = vpack.c.b16 %v1069, %v1068
  %v1094 = vpack.c.b16 %v1071, %v1070
  %v1095 = vpack.c.b16 %v1073, %v1072
  %v1096 = vpack.c.b16 %v1075, %v1074
  %1118 = vst [vmem:[%s3] sm:$0xff] %v1076
  %1119 = vst [vmem:[%s3 + $0x8] sm:$0xff] %v1077
  %1120 = vst [vmem:[%s3 + $0x10] sm:$0xff] %v1078
  %1121 = vst [vmem:[%s3 + $0x18] sm:$0xff] %v1079
  %1122 = vst [vmem:[%s3 + $0x20] sm:$0xff] %v1080
  %1123 = vst [vmem:[%s3 + $0x28] sm:$0xff] %v1081
  %1124 = vst [vmem:[%s3 + $0x30] sm:$0xff] %v1082
  %1125 = vst [vmem:[%s3 + $0x38] sm:$0xff] %v1083
  %1126 = vst [vmem:[%s3 + $0x40] sm:$0xff] %v1084
  %1127 = vst [vmem:[%s3 + $0x48] sm:$0xff] %v1085
  %1128 = vst [vmem:[%s3 + $0x50] sm:$0xff] %v1086
  %1129 = vst [vmem:[%s3 + $0x58] sm:$0xff] %v1087
  %1130 = vst [vmem:[%s3 + $0x60] sm:$0xff] %v1088
  %1131 = vst [vmem:[%s3 + $0x68] sm:$0xff] %v1089
  %1132 = vst [vmem:[%s3 + $0x70] sm:$0xff] %v1090
  %1133 = vst [vmem:[%s3 + $0x78] sm:$0xff] %v1091
  %1134 = vst [vmem:[%s3 + $0x80] sm:$0xff] %v1092
  %1135 = vst [vmem:[%s3 + $0x88] sm:$0xff] %v1093
  %1136 = vst [vmem:[%s3 + $0x90] sm:$0xff] %v1094
  %1137 = vst [vmem:[%s3 + $0x98] sm:$0xff] %v1095
  %1138 = vst [vmem:[%s3 + $0xa0] sm:$0x11] %v1096
  // Predicated region
  $region14: #{_lambda_.13} parent=0 // pred_check
    _
  $region15: #{_lambda_.13} parent=0 // pred_check_branch
    %1140 = sbr.rel (0) target = $region17
  $region16: #{_lambda_.13} parent=0 // pred_region
    _
  $region17: #{_lambda_.13} parent=0 // pred_fallthru
    _
  // Predicated region
  $region18: #{_lambda_.13} parent=0 // pred_check
    _
  $region19: #{_lambda_.13} parent=0 // pred_check_branch
    %1142 = sbr.rel (0) target = $region21
  $region20: #{_lambda_.13} parent=0 // pred_region
    _
  $region21: #{_lambda_.13} parent=0 // pred_fallthru
    _

// kernel: _lambda_.14
$region0: #{_lambda_.14}
  #allocation0 [shape = 'u32[]', space=smem, size = 0x4, offset = 0x4, fixed_abs, tag = 'smem constant byte address 0x4 - core index']
  #allocation1 [shape = 'u32[144,128]{1,0:T(1,128)}', space=vmem, size = 0x12000, scoped, tag = 'internal scratch']
  %s0 = inlined_call_operand.vmem [shape: bf16[578,256], index: 0, kind: input, shape index: {}]
  %s1 = inlined_call_operand.vmem [shape: bf16[256,128], index: 1, kind: input, shape index: {}]
  %s2 = inlined_call_operand.vmem [shape: f32[1,128], index: 2, kind: input, shape index: {}]
  %s3 = inlined_call_operand.vmem [shape: bf16[578,128], index: 3, kind: output, shape index: {}]
  %s4 = sld [smem:[#allocation0]]
  $region89: #{_lambda_.14} parent=0
    _
  %s6 = ssub.s32 1, %s4
  %s7 = scalar_select 0, %s6, %s4
  $region1: #{_lambda_.14} parent=0
    #allocation2 [shape = 'u8[131072]{0}', space=vmem, size = 0x20000, scoped, tag = 'output window, operand 0']
    loop: start=0, step=1, limit=5
    $region2: #{_lambda_.14} parent=1 // loop_pre_header
      _
    $region3: #{_lambda_.14} parent=1 // loop_header
      %s9 = sphi 0, %s13
      %p10 = scmp.ge.s32.totalorder %s9, 5
      %s19 = sphi 0, %s21
      %s22 = sphi 0, %s19
      %s23 = sphi 0, %s22
      %s39 = sphi 0, %s23
      %s43 = sphi 0, %s43
      %s45 = sphi 0, %s43
      %s46 = sphi 0, %s45
      %s60 = sphi 0, %s46
      %s64 = sphi 0, %s64
      %s66 = sphi 0, %s64
      %s67 = sphi 0, %s66
      %s81 = sphi 0, %s67
      %s87 = sphi 0, %s89
      %s90 = sphi 0, %s87
      %s91 = sphi 0, %s90
      %s107 = sphi 0, %s91
    $region4: #{_lambda_.14} parent=1 // loop_header_branch
      %12 = sbr.rel (%p10) target = $region8
    $region5: #{_lambda_.14} parent=1 // loop_body
      %s14 = ssub.s32 %s9, 1
      %s15 = ssub.s32 %s9, 2
      %s16 = sadd.s32 %s9, 1
      %s17 = ssub.s32 %s9, %s16
      %p18 = scmp.eq.s32.totalorder %s17, 0
      %s20 = sadd.s32 %s19, 1
      %s21 = scalar_select %p18, %s19, %s20
      %p24 = pneg %p18
      %p25 = scmp.eq.s32.totalorder %s9, 2
      %p26 = por %p24, %p25
      %p27 = scmp.ne.s32.totalorder %s19, %s22
      %p28 = scmp.eq.s32.totalorder %s9, 0
      %p29 = por %p27, %p28
      %p30 = scmp.ne.s32.totalorder %s19, %s22
      %p31 = scmp.eq.s32.totalorder %s14, 2
      %p32 = por %p30, %p31
      %p33 = scmp.ne.s32.totalorder %s22, %s23
      %p34 = scmp.eq.s32.totalorder %s14, 0
      %p35 = por %p33, %p34
      %p36 = scmp.ne.s32.totalorder %s22, %s23
      %p37 = scmp.eq.s32.totalorder %s15, 2
      %p38 = por %p36, %p37
      %p40 = scmp.ne.s32.totalorder %s23, %s39
      %p41 = scmp.eq.s32.totalorder %s15, 0
      %p42 = por %p40, %p41
      %s44 = sadd.s32 %s43, 1
      %p47 = scmp.eq.s32.totalorder %s9, 2
      %p48 = scmp.ne.s32.totalorder %s43, %s45
      %p49 = scmp.eq.s32.totalorder %s9, 0
      %p50 = por %p48, %p49
      %p51 = scmp.ne.s32.totalorder %s43, %s45
      %p52 = scmp.eq.s32.totalorder %s14, 2
      %p53 = por %p51, %p52
      %p54 = scmp.ne.s32.totalorder %s45, %s46
      %p55 = scmp.eq.s32.totalorder %s14, 0
      %p56 = por %p54, %p55
      %p57 = scmp.ne.s32.totalorder %s45, %s46
      %p58 = scmp.eq.s32.totalorder %s15, 2
      %p59 = por %p57, %p58
      %p61 = scmp.ne.s32.totalorder %s46, %s60
      %p62 = scmp.eq.s32.totalorder %s15, 0
      %p63 = por %p61, %p62
      %s65 = sadd.s32 %s64, 1
      %p68 = scmp.eq.s32.totalorder %s9, 2
      %p69 = scmp.ne.s32.totalorder %s64, %s66
      %p70 = scmp.eq.s32.totalorder %s9, 0
      %p71 = por %p69, %p70
      %p72 = scmp.ne.s32.totalorder %s64, %s66
      %p73 = scmp.eq.s32.totalorder %s14, 2
      %p74 = por %p72, %p73
      %p75 = scmp.ne.s32.totalorder %s66, %s67
      %p76 = scmp.eq.s32.totalorder %s14, 0
      %p77 = por %p75, %p76
      %p78 = scmp.ne.s32.totalorder %s66, %s67
      %p79 = scmp.eq.s32.totalorder %s15, 2
      %p80 = por %p78, %p79
      %p82 = scmp.ne.s32.totalorder %s67, %s81
      %p83 = scmp.eq.s32.totalorder %s15, 0
      %p84 = por %p82, %p83
      %s85 = ssub.s32 %s9, %s16
      %p86 = scmp.eq.s32.totalorder %s85, 0
      %s88 = sadd.s32 %s87, 1
      %s89 = scalar_select %p86, %s87, %s88
      %p92 = pneg %p86
      %p93 = scmp.eq.s32.totalorder %s9, 2
      %p94 = por %p92, %p93
      %p95 = scmp.ne.s32.totalorder %s87, %s90
      %p96 = scmp.eq.s32.totalorder %s9, 0
      %p97 = por %p95, %p96
      %p98 = scmp.ne.s32.totalorder %s87, %s90
      %p99 = scmp.eq.s32.totalorder %s14, 2
      %p100 = por %p98, %p99
      %p101 = scmp.ne.s32.totalorder %s90, %s91
      %p102 = scmp.eq.s32.totalorder %s14, 0
      %p103 = por %p101, %p102
      %p104 = scmp.ne.s32.totalorder %s90, %s91
      %p105 = scmp.eq.s32.totalorder %s15, 2
      %p106 = por %p104, %p105
      %p108 = scmp.ne.s32.totalorder %s91, %s107
      %p109 = scmp.eq.s32.totalorder %s15, 0
      %p110 = por %p108, %p109
      %p111 = scmp.le.s32.totalorder 1, %s9
      %p112 = scmp.lt.s32.totalorder %s9, 4
      %p113 = pnand %p111, %p112
      %p114 = pneg %p113
      // Predicated region
      $region9: #{_lambda_.14} parent=5 // pred_check
        _
      $region10: #{_lambda_.14} parent=5 // pred_check_branch
        %116 = sbr.rel (%p113) target = $region12
      $region11: #{_lambda_.14} parent=5 // pred_region
        %s117 = ssub.s32 %s9, 1
        // Predicated region
        $region13: #{_lambda_.14} parent=11 // pred_check
          %p118 = pneg %p56
        $region14: #{_lambda_.14} parent=11 // pred_check_branch
          %120 = sbr.rel (%p118) target = $region16
        $region15: #{_lambda_.14} parent=11 // pred_region
          _
        $region16: #{_lambda_.14} parent=11 // pred_fallthru
          _
        // Predicated region
        $region17: #{_lambda_.14} parent=11 // pred_check
          %p121 = pneg %p77
        $region18: #{_lambda_.14} parent=11 // pred_check_branch
          %123 = sbr.rel (%p121) target = $region20
        $region19: #{_lambda_.14} parent=11 // pred_region
          _
        $region20: #{_lambda_.14} parent=11 // pred_fallthru
          _
      $region12: #{_lambda_.14} parent=5 // pred_fallthru
        _
      %p124 = scmp.lt.s32.totalorder %s9, 3
      // Predicated region
      $region21: #{_lambda_.14} parent=5 // pred_check
        %p125 = pneg %p124
      $region22: #{_lambda_.14} parent=5 // pred_check_branch
        %127 = sbr.rel (%p125) target = $region24
      $region23: #{_lambda_.14} parent=5 // pred_region
        // Predicated region
        $region25: #{_lambda_.14} parent=23 // pred_check
          %p128 = pneg %p29
        $region26: #{_lambda_.14} parent=23 // pred_check_branch
          %130 = sbr.rel (%p128) target = $region28
        $region27: #{_lambda_.14} parent=23 // pred_region
          %s131 = smul.u32 32, %s9
          %s132 = ssub.s32 73, %s131
          %p133 = scmp.lt.s32.totalorder %s132, 32
          %s134 = scalar_select %p133, %s132, 32
          %s135 = smul.u32 64, %s134
          %s136 = smul.u32 %s135, 2
          %p137 = scmp.lt.s32.totalorder %s131, 72
          %s138 = scalar_select %p137, %s131, 72
          %s139 = smul.addr %s138, 2
          %s140 = smul.addr %s139, 4
          %s141 = scalar_lea.vmem %s0, %s140
          %s142 = smul.u32 32, %s9
          %s143 = ssub.s32 73, %s142
          %p144 = scmp.lt.s32.totalorder %s143, 32
          %s145 = scalar_select %p144, %s143, 32
          %s146 = smul.u32 64, %s145
          %s147 = smul.u32 %s146, 2
        $region28: #{_lambda_.14} parent=23 // pred_fallthru
          _
      $region24: #{_lambda_.14} parent=5 // pred_fallthru
        _
      %p148 = scmp.le.s32.totalorder 1, %s9
      %p149 = scmp.lt.s32.totalorder %s9, 4
      %p150 = pnand %p148, %p149
      %p151 = pneg %p150
      // Predicated region
      $region29: #{_lambda_.14} parent=5 // pred_check
        _
      $region30: #{_lambda_.14} parent=5 // pred_check_branch
        %153 = sbr.rel (%p150) target = $region32
      $region31: #{_lambda_.14} parent=5 // pred_region
        %s154 = ssub.s32 %s9, 1
        %s155 = smul.u32 32, %s14
        %s156 = ssub.s32 73, %s155
        %p157 = scmp.lt.s32.totalorder %s156, 32
        %s158 = scalar_select %p157, %s156, 32
        %s159 = smul.u32 64, %s158
        %s160 = smul.u32 %s159, 2
        %p161 = scmp.lt.s32.totalorder %s155, 72
        %s162 = scalar_select %p161, %s155, 72
        %s163 = smul.addr %s162, 2
        %s164 = smul.addr %s163, 4
        %s165 = scalar_lea.vmem %s0, %s164
        %p166 = pneg %p35
        %p167 = pneg %p32
        %p168 = pneg %p56
        %p169 = pneg %p53
        %p170 = pneg %p77
        %p171 = pneg %p74
        %p172 = pneg %p103
        %p173 = pneg %p100
        %s174 = sand.u32 %s90, 1
        %s175 = sand.u32 %s90, 1
        %s176 = smul.addr %s175, 128
        %s177 = scalar_lea.vmem [#allocation2], %s176
        %s178 = smul.u32 32, %s14
        %s179 = ssub.s32 73, %s178
        %p180 = scmp.lt.s32.totalorder %s179, 32
        %s181 = scalar_select %p180, %s179, 32
        %s182 = smul.u32 64, %s181
        %s183 = smul.u32 %s182, 2
        %p184 = scmp.lt.s32.totalorder %s178, 72
        %s185 = scalar_select %p184, %s178, 72
        %s186 = smul.addr %s185, 2
        %s187 = smul.addr %s186, 4
        %s188 = scalar_lea.vmem %s0, %s187
        %s189 = smul.u32 32, %s14
        %s190 = ssub.s32 73, %s189
        %p191 = scmp.lt.s32.totalorder %s190, 32
        %s192 = scalar_select %p191, %s190, 32
        %s193 = smul.u32 64, %s192
        %s194 = smul.u32 %s193, 2
        %s195 = smul.u32 32, %s14
        %s196 = ssub.s32 73, %s195
        %p197 = scmp.lt.s32.totalorder %s196, 32
        %s198 = scalar_select %p197, %s196, 32
        %s199 = smul.u32 64, %s198
        %v201 = vld [vmem:[%s188] sm:$0xff]
        %v202 = vld [vmem:[%s188 + $0x8] sm:$0xff]
        %v203 = vld [vmem:[%s188 + $0x10] sm:$0xff]
        %v204 = vld [vmem:[%s188 + $0x18] sm:$0xff]
        %v205 = vld [vmem:[%s188 + $0x20] sm:$0xff]
        %v206 = vld [vmem:[%s188 + $0x28] sm:$0xff]
        %v207 = vld [vmem:[%s188 + $0x30] sm:$0xff]
        %v208 = vld [vmem:[%s188 + $0x38] sm:$0xff]
        %v209 = vld [vmem:[%s188 + $0x40] sm:$0xff]
        %v210 = vld [vmem:[%s188 + $0x48] sm:$0xff]
        %v211 = vld [vmem:[%s188 + $0x50] sm:$0xff]
        %v212 = vld [vmem:[%s188 + $0x58] sm:$0xff]
        %v213 = vld [vmem:[%s188 + $0x60] sm:$0xff]
        %v214 = vld [vmem:[%s188 + $0x68] sm:$0xff]
        %v215 = vld [vmem:[%s188 + $0x70] sm:$0xff]
        %v216 = vld [vmem:[%s188 + $0x78] sm:$0xff]
        %v217 = vld [vmem:[%s188 + $0x80] sm:$0xff]
        %v218 = vld [vmem:[%s188 + $0x88] sm:$0xff]
        %v219 = vld [vmem:[%s188 + $0x90] sm:$0xff]
        %v220 = vld [vmem:[%s188 + $0x98] sm:$0xff]
        %v221 = vld [vmem:[%s188 + $0xa0] sm:$0xff]
        %v222 = vld [vmem:[%s188 + $0xa8] sm:$0xff]
        %v223 = vld [vmem:[%s188 + $0xb0] sm:$0xff]
        %v224 = vld [vmem:[%s188 + $0xb8] sm:$0xff]
        %v225 = vld [vmem:[%s188 + $0xc0] sm:$0xff]
        %v226 = vld [vmem:[%s188 + $0xc8] sm:$0xff]
        %v227 = vld [vmem:[%s188 + $0xd0] sm:$0xff]
        %v228 = vld [vmem:[%s188 + $0xd8] sm:$0xff]
        %v229 = vld [vmem:[%s188 + $0xe0] sm:$0xff]
        %v230 = vld [vmem:[%s188 + $0xe8] sm:$0xff]
        %v231 = vld [vmem:[%s188 + $0xf0] sm:$0xff]
        %v232 = vld [vmem:[%s188 + $0xf8] sm:$0xff]
        %v233 = vld [vmem:[%s1] sm:$0xf]
        %v234 = vld [vmem:[%s1 + $0x4] sm:$0xf]
        %v235 = vld [vmem:[%s1 + $0x8] sm:$0xf]
        %v236 = vld [vmem:[%s1 + $0xc] sm:$0xf]
        %v237 = vld [vmem:[%s1 + $0x10] sm:$0xf]
        %v238 = vld [vmem:[%s1 + $0x14] sm:$0xf]
        %v239 = vld [vmem:[%s1 + $0x18] sm:$0xf]
        %v240 = vld [vmem:[%s1 + $0x1c] sm:$0xf]
        %v241 = vld [vmem:[%s1 + $0x20] sm:$0xf]
        %v242 = vld [vmem:[%s1 + $0x24] sm:$0xf]
        %v243 = vld [vmem:[%s1 + $0x28] sm:$0xf]
        %v244 = vld [vmem:[%s1 + $0x2c] sm:$0xf]
        %v245 = vld [vmem:[%s1 + $0x30] sm:$0xf]
        %v246 = vld [vmem:[%s1 + $0x34] sm:$0xf]
        %v247 = vld [vmem:[%s1 + $0x38] sm:$0xf]
        %v248 = vld [vmem:[%s1 + $0x3c] sm:$0xf]
        %v249 = vld [vmem:[%s1 + $0x40] sm:$0xf]
        %v250 = vld [vmem:[%s1 + $0x44] sm:$0xf]
        %v251 = vld [vmem:[%s1 + $0x48] sm:$0xf]
        %v252 = vld [vmem:[%s1 + $0x4c] sm:$0xf]
        %v253 = vld [vmem:[%s1 + $0x50] sm:$0xf]
        %v254 = vld [vmem:[%s1 + $0x54] sm:$0xf]
        %v255 = vld [vmem:[%s1 + $0x58] sm:$0xf]
        %v256 = vld [vmem:[%s1 + $0x5c] sm:$0xf]
        %v257 = vld [vmem:[%s1 + $0x60] sm:$0xf]
        %v258 = vld [vmem:[%s1 + $0x64] sm:$0xf]
        %v259 = vld [vmem:[%s1 + $0x68] sm:$0xf]
        %v260 = vld [vmem:[%s1 + $0x6c] sm:$0xf]
        %v261 = vld [vmem:[%s1 + $0x70] sm:$0xf]
        %v262 = vld [vmem:[%s1 + $0x74] sm:$0xf]
        %v263 = vld [vmem:[%s1 + $0x78] sm:$0xf]
        %v264 = vld [vmem:[%s1 + $0x7c] sm:$0xf]
        %v265 = vld [vmem:[%s2] sm:$0x1]
        %v267 = vlaneseq
        %v268 = vshrl.u32 %v267, 7
        %v269 = vsub.s32 0, %v268
        %v270 = vrot.slane %v265, %v269
        %v304 = vunpack.c.l.b16 %v201
        %v305 = vunpack.c.h.b16 %v201
        %v306 = vunpack.c.l.b16 %v202
        %v307 = vunpack.c.h.b16 %v202
        %v308 = vunpack.c.l.b16 %v203
        %v309 = vunpack.c.h.b16 %v203
        %v310 = vunpack.c.l.b16 %v204
        %v311 = vunpack.c.h.b16 %v204
        %v312 = vunpack.c.l.b16 %v205
        %v313 = vunpack.c.h.b16 %v205
        %v314 = vunpack.c.l.b16 %v206
        %v315 = vunpack.c.h.b16 %v206
        %v316 = vunpack.c.l.b16 %v207
        %v317 = vunpack.c.h.b16 %v207
        %v318 = vunpack.c.l.b16 %v208
        %v319 = vunpack.c.h.b16 %v208
        %v320 = vunpack.c.l.b16 %v209
        %v321 = vunpack.c.h.b16 %v209
        %v322 = vunpack.c.l.b16 %v210
        %v323 = vunpack.c.h.b16 %v210
        %v324 = vunpack.c.l.b16 %v211
        %v325 = vunpack.c.h.b16 %v211
        %v326 = vunpack.c.l.b16 %v212
        %v327 = vunpack.c.h.b16 %v212
        %v328 = vunpack.c.l.b16 %v213
        %v329 = vunpack.c.h.b16 %v213
        %v330 = vunpack.c.l.b16 %v214
        %v331 = vunpack.c.h.b16 %v214
        %v332 = vunpack.c.l.b16 %v215
        %v333 = vunpack.c.h.b16 %v215
        %v334 = vunpack.c.l.b16 %v216
        %v335 = vunpack.c.h.b16 %v216
        %v336 = vunpack.c.l.b16 %v217
        %v337 = vunpack.c.h.b16 %v217
        %v338 = vunpack.c.l.b16 %v218
        %v339 = vunpack.c.h.b16 %v218
        %v340 = vunpack.c.l.b16 %v219
        %v341 = vunpack.c.h.b16 %v219
        %v342 = vunpack.c.l.b16 %v220
        %v343 = vunpack.c.h.b16 %v220
        %v344 = vunpack.c.l.b16 %v221
        %v345 = vunpack.c.h.b16 %v221
        %v346 = vunpack.c.l.b16 %v222
        %v347 = vunpack.c.h.b16 %v222
        %v348 = vunpack.c.l.b16 %v223
        %v349 = vunpack.c.h.b16 %v223
        %v350 = vunpack.c.l.b16 %v224
        %v351 = vunpack.c.h.b16 %v224
        %v352 = vunpack.c.l.b16 %v225
        %v353 = vunpack.c.h.b16 %v225
        %v354 = vunpack.c.l.b16 %v226
        %v355 = vunpack.c.h.b16 %v226
        %v356 = vunpack.c.l.b16 %v227
        %v357 = vunpack.c.h.b16 %v227
        %v358 = vunpack.c.l.b16 %v228
        %v359 = vunpack.c.h.b16 %v228
        %v360 = vunpack.c.l.b16 %v229
        %v361 = vunpack.c.h.b16 %v229
        %v362 = vunpack.c.l.b16 %v230
        %v363 = vunpack.c.h.b16 %v230
        %v364 = vunpack.c.l.b16 %v231
        %v365 = vunpack.c.h.b16 %v231
        %v366 = vunpack.c.l.b16 %v232
        %v367 = vunpack.c.h.b16 %v232
        %v368 = vpack.c.b16 %v306, %v304
        %v369 = vpack.c.b16 %v307, %v305
        %v370 = vpack.c.b16 %v310, %v308
        %v371 = vpack.c.b16 %v311, %v309
        %v372 = vpack.c.b16 %v314, %v312
        %v373 = vpack.c.b16 %v315, %v313
        %v374 = vpack.c.b16 %v318, %v316
        %v375 = vpack.c.b16 %v319, %v317
        %v376 = vpack.c.b16 %v322, %v320
        %v377 = vpack.c.b16 %v323, %v321
        %v378 = vpack.c.b16 %v326, %v324
        %v379 = vpack.c.b16 %v327, %v325
        %v380 = vpack.c.b16 %v330, %v328
        %v381 = vpack.c.b16 %v331, %v329
        %v382 = vpack.c.b16 %v334, %v332
        %v383 = vpack.c.b16 %v335, %v333
        %v384 = vpack.c.b16 %v338, %v336
        %v385 = vpack.c.b16 %v339, %v337
        %v386 = vpack.c.b16 %v342, %v340
        %v387 = vpack.c.b16 %v343, %v341
        %v388 = vpack.c.b16 %v346, %v344
        %v389 = vpack.c.b16 %v347, %v345
        %v390 = vpack.c.b16 %v350, %v348
        %v391 = vpack.c.b16 %v351, %v349
        %v392 = vpack.c.b16 %v354, %v352
        %v393 = vpack.c.b16 %v355, %v353
        %v394 = vpack.c.b16 %v358, %v356
        %v395 = vpack.c.b16 %v359, %v357
        %v396 = vpack.c.b16 %v362, %v360
        %v397 = vpack.c.b16 %v363, %v361
        %v398 = vpack.c.b16 %v366, %v364
        %v399 = vpack.c.b16 %v367, %v365
        %v464 = vunpack.c.l.b16 %v233
        %v465 = vunpack.c.l.b16 %v234
        %v466 = vunpack.c.l.b16 %v235
        %v467 = vunpack.c.l.b16 %v236
        %v468 = vunpack.c.l.b16 %v237
        %v469 = vunpack.c.l.b16 %v238
        %v470 = vunpack.c.l.b16 %v239
        %v471 = vunpack.c.l.b16 %v240
        %v472 = vunpack.c.l.b16 %v241
        %v473 = vunpack.c.l.b16 %v242
        %v474 = vunpack.c.l.b16 %v243
        %v475 = vunpack.c.l.b16 %v244
        %v476 = vunpack.c.l.b16 %v245
        %v477 = vunpack.c.l.b16 %v246
        %v478 = vunpack.c.l.b16 %v247
        %v479 = vunpack.c.l.b16 %v248
        %v480 = vunpack.c.l.b16 %v249
        %v481 = vunpack.c.l.b16 %v250
        %v482 = vunpack.c.l.b16 %v251
        %v483 = vunpack.c.l.b16 %v252
        %v484 = vunpack.c.l.b16 %v253
        %v485 = vunpack.c.l.b16 %v254
        %v486 = vunpack.c.l.b16 %v255
        %v487 = vunpack.c.l.b16 %v256
        %v488 = vunpack.c.l.b16 %v257
        %v489 = vunpack.c.l.b16 %v258
        %v490 = vunpack.c.l.b16 %v259
        %v491 = vunpack.c.l.b16 %v260
        %v492 = vunpack.c.l.b16 %v261
        %v493 = vunpack.c.l.b16 %v262
        %v494 = vunpack.c.l.b16 %v263
        %v495 = vunpack.c.l.b16 %v264
        %v496 = vpack.c.b16 %v465, %v464
        %v497 = vpack.c.b16 %v467, %v466
        %v498 = vpack.c.b16 %v469, %v468
        %v499 = vpack.c.b16 %v471, %v470
        %v500 = vpack.c.b16 %v473, %v472
        %v501 = vpack.c.b16 %v475, %v474
        %v502 = vpack.c.b16 %v477, %v476
        %v503 = vpack.c.b16 %v479, %v478
        %v504 = vpack.c.b16 %v481, %v480
        %v505 = vpack.c.b16 %v483, %v482
        %v506 = vpack.c.b16 %v485, %v484
        %v507 = vpack.c.b16 %v487, %v486
        %v508 = vpack.c.b16 %v489, %v488
        %v509 = vpack.c.b16 %v491, %v490
        %v510 = vpack.c.b16 %v493, %v492
        %v511 = vpack.c.b16 %v495, %v494
        %528 = vmatprep.subr.bf16.mxu0 0
        %529 = vmatpush1.bf16.msra.mxu0 %v503
        %530 = vmatprep.subr.bf16.mxu0 0
        %531 = vmatpush1.bf16.msra.mxu0 %v502
        %532 = vmatprep.subr.bf16.mxu0 0
        %533 = vmatpush1.bf16.msra.mxu0 %v501
        %534 = vmatprep.subr.bf16.mxu0 0
        %535 = vmatpush1.bf16.msra.mxu0 %v500
        %536 = vmatprep.subr.bf16.mxu0 0
        %537 = vmatpush1.bf16.msra.mxu0 %v499
        %538 = vmatprep.subr.bf16.mxu0 0
        %539 = vmatpush1.bf16.msra.mxu0 %v498
        %540 = vmatprep.subr.bf16.mxu0 0
        %541 = vmatpush1.bf16.msra.mxu0 %v497
        %542 = vmatprep.subr.bf16.mxu0 0
        %543 = vmatpush1.bf16.msra.mxu0 %v496
        %544 = vmatprep.subr.bf16.mxu0 0
        %545 = vmatpush2.bf16.msra.mxu0 %v511
        %546 = vmatprep.subr.bf16.mxu0 0
        %547 = vmatpush2.bf16.msra.mxu0 %v510
        %548 = vmatprep.subr.bf16.mxu0 0
        %549 = vmatpush2.bf16.msra.mxu0 %v509
        %550 = vmatprep.subr.bf16.mxu0 0
        %551 = vmatpush2.bf16.msra.mxu0 %v508
        %552 = vmatprep.subr.bf16.mxu0 0
        %553 = vmatpush2.bf16.msra.mxu0 %v507
        %554 = vmatprep.subr.bf16.mxu0 0
        %555 = vmatpush2.bf16.msra.mxu0 %v506
        %556 = vmatprep.subr.bf16.mxu0 0
        %557 = vmatpush2.bf16.msra.mxu0 %v505
        %558 = vmatprep.subr.bf16.mxu0 0
        %559 = vmatpush2.bf16.msra.mxu0 %v504
        %560 = vmatprep.mubr.bf16.mxu0 %v369
        %561 = vmatmul.mubr.bf16.gmra.mxu0 %v368
        %v562 = vpop.f32.mrf.mxu0
        %v563 = vadd.f32 %v270, %v562
        %v564 = vpop.f32.mrf.mxu0
        %v565 = vpop.f32.mrf.mxu0
        %v566 = vadd.f32 %v270, %v565
        %v567 = vpop.f32.mrf.mxu0
        %568 = vmatprep.mubr.bf16.mxu0 %v371
        %569 = vmatmul.mubr.bf16.gmra.mxu0 %v370
        %v570 = vpop.f32.mrf.mxu0
        %v571 = vadd.f32 %v270, %v570
        %v572 = vpop.f32.mrf.mxu0
        %v573 = vpop.f32.mrf.mxu0
        %v574 = vadd.f32 %v270, %v573
        %v575 = vpop.f32.mrf.mxu0
        %576 = vmatprep.mubr.bf16.mxu0 %v373
        %577 = vmatmul.mubr.bf16.gmra.mxu0 %v372
        %v578 = vpop.f32.mrf.mxu0
        %v579 = vadd.f32 %v270, %v578
        %v580 = vpop.f32.mrf.mxu0
        %v581 = vpop.f32.mrf.mxu0
        %v582 = vadd.f32 %v270, %v581
        %v583 = vpop.f32.mrf.mxu0
        %584 = vmatprep.mubr.bf16.mxu0 %v375
        %585 = vmatmul.mubr.bf16.gmra.mxu0 %v374
        %v586 = vpop.f32.mrf.mxu0
        %v587 = vadd.f32 %v270, %v586
        %v588 = vpop.f32.mrf.mxu0
        %v589 = vpop.f32.mrf.mxu0
        %v590 = vadd.f32 %v270, %v589
        %v591 = vpop.f32.mrf.mxu0
        %592 = vmatprep.mubr.bf16.mxu0 %v377
        %593 = vmatmul.mubr.bf16.gmra.mxu0 %v376
        %v594 = vpop.f32.mrf.mxu0
        %v595 = vadd.f32 %v270, %v594
        %v596 = vpop.f32.mrf.mxu0
        %v597 = vpop.f32.mrf.mxu0
        %v598 = vadd.f32 %v270, %v597
        %v599 = vpop.f32.mrf.mxu0
        %600 = vmatprep.mubr.bf16.mxu0 %v379
        %601 = vmatmul.mubr.bf16.gmra.mxu0 %v378
        %v602 = vpop.f32.mrf.mxu0
        %v603 = vadd.f32 %v270, %v602
        %v604 = vpop.f32.mrf.mxu0
        %v605 = vpop.f32.mrf.mxu0
        %v606 = vadd.f32 %v270, %v605
        %v607 = vpop.f32.mrf.mxu0
        %608 = vmatprep.mubr.bf16.mxu0 %v381
        %609 = vmatmul.mubr.bf16.gmra.mxu0 %v380
        %v610 = vpop.f32.mrf.mxu0
        %v611 = vadd.f32 %v270, %v610
        %v612 = vpop.f32.mrf.mxu0
        %v613 = vpop.f32.mrf.mxu0
        %v614 = vadd.f32 %v270, %v613
        %v615 = vpop.f32.mrf.mxu0
        %616 = vmatprep.mubr.bf16.mxu0 %v383
        %617 = vmatmul.mubr.bf16.gmra.mxu0 %v382
        %v618 = vpop.f32.mrf.mxu0
        %v619 = vadd.f32 %v270, %v618
        %v620 = vpop.f32.mrf.mxu0
        %v621 = vpop.f32.mrf.mxu0
        %v622 = vadd.f32 %v270, %v621
        %v623 = vpop.f32.mrf.mxu0
        %624 = vmatprep.mubr.bf16.mxu0 %v385
        %625 = vmatmul.mubr.bf16.gmra.mxu0 %v384
        %v626 = vpop.f32.mrf.mxu0
        %v627 = vadd.f32 %v270, %v626
        %v628 = vpop.f32.mrf.mxu0
        %v629 = vpop.f32.mrf.mxu0
        %v630 = vadd.f32 %v270, %v629
        %v631 = vpop.f32.mrf.mxu0
        %632 = vmatprep.mubr.bf16.mxu0 %v387
        %633 = vmatmul.mubr.bf16.gmra.mxu0 %v386
        %v634 = vpop.f32.mrf.mxu0
        %v635 = vadd.f32 %v270, %v634
        %v636 = vpop.f32.mrf.mxu0
        %v637 = vpop.f32.mrf.mxu0
        %v638 = vadd.f32 %v270, %v637
        %v639 = vpop.f32.mrf.mxu0
        %640 = vmatprep.mubr.bf16.mxu0 %v389
        %641 = vmatmul.mubr.bf16.gmra.mxu0 %v388
        %v642 = vpop.f32.mrf.mxu0
        %v643 = vadd.f32 %v270, %v642
        %v644 = vpop.f32.mrf.mxu0
        %v645 = vpop.f32.mrf.mxu0
        %v646 = vadd.f32 %v270, %v645
        %v647 = vpop.f32.mrf.mxu0
        %648 = vmatprep.mubr.bf16.mxu0 %v391
        %649 = vmatmul.mubr.bf16.gmra.mxu0 %v390
        %v650 = vpop.f32.mrf.mxu0
        %v651 = vadd.f32 %v270, %v650
        %v652 = vpop.f32.mrf.mxu0
        %v653 = vpop.f32.mrf.mxu0
        %v654 = vadd.f32 %v270, %v653
        %v655 = vpop.f32.mrf.mxu0
        %656 = vmatprep.mubr.bf16.mxu0 %v393
        %657 = vmatmul.mubr.bf16.gmra.mxu0 %v392
        %v658 = vpop.f32.mrf.mxu0
        %v659 = vadd.f32 %v270, %v658
        %v660 = vpop.f32.mrf.mxu0
        %v661 = vpop.f32.mrf.mxu0
        %v662 = vadd.f32 %v270, %v661
        %v663 = vpop.f32.mrf.mxu0
        %664 = vmatprep.mubr.bf16.mxu0 %v395
        %665 = vmatmul.mubr.bf16.gmra.mxu0 %v394
        %v666 = vpop.f32.mrf.mxu0
        %v667 = vadd.f32 %v270, %v666
        %v668 = vpop.f32.mrf.mxu0
        %v669 = vpop.f32.mrf.mxu0
        %v670 = vadd.f32 %v270, %v669
        %v671 = vpop.f32.mrf.mxu0
        %672 = vmatprep.mubr.bf16.mxu0 %v397
        %673 = vmatmul.mubr.bf16.gmra.mxu0 %v396
        %v674 = vpop.f32.mrf.mxu0
        %v675 = vadd.f32 %v270, %v674
        %v676 = vpop.f32.mrf.mxu0
        %v677 = vpop.f32.mrf.mxu0
        %v678 = vadd.f32 %v270, %v677
        %v679 = vpop.f32.mrf.mxu0
        %680 = vmatprep.mubr.bf16.mxu0 %v399
        %681 = vmatmul.mubr.bf16.gmra.mxu0 %v398
        %v682 = vpop.f32.mrf.mxu0
        %v683 = vadd.f32 %v270, %v682
        %v684 = vpop.f32.mrf.mxu0
        %v685 = vpop.f32.mrf.mxu0
        %v686 = vadd.f32 %v270, %v685
        %v687 = vpop.f32.mrf.mxu0
        %688 = vdwg.mxu0
        %v689 = vmax.f32 %v563, 0.0
        %v690 = vmax.f32 %v566, 0.0
        %v691 = vmax.f32 %v571, 0.0
        %v692 = vmax.f32 %v574, 0.0
        %v693 = vmax.f32 %v579, 0.0
        %v694 = vmax.f32 %v582, 0.0
        %v695 = vmax.f32 %v587, 0.0
        %v696 = vmax.f32 %v590, 0.0
        %v697 = vmax.f32 %v595, 0.0
        %v698 = vmax.f32 %v598, 0.0
        %v699 = vmax.f32 %v603, 0.0
        %v700 = vmax.f32 %v606, 0.0
        %v701 = vmax.f32 %v611, 0.0
        %v702 = vmax.f32 %v614, 0.0
        %v703 = vmax.f32 %v619, 0.0
        %v704 = vmax.f32 %v622, 0.0
        %v705 = vmax.f32 %v627, 0.0
        %v706 = vmax.f32 %v630, 0.0
        %v707 = vmax.f32 %v635, 0.0
        %v708 = vmax.f32 %v638, 0.0
        %v709 = vmax.f32 %v643, 0.0
        %v710 = vmax.f32 %v646, 0.0
        %v711 = vmax.f32 %v651, 0.0
        %v712 = vmax.f32 %v654, 0.0
        %v713 = vmax.f32 %v659, 0.0
        %v714 = vmax.f32 %v662, 0.0
        %v715 = vmax.f32 %v667, 0.0
        %v716 = vmax.f32 %v670, 0.0
        %v717 = vmax.f32 %v675, 0.0
        %v718 = vmax.f32 %v678, 0.0
        %v719 = vmax.f32 %v683, 0.0
        %v720 = vmax.f32 %v686, 0.0
        %v721 = vpack.c.bf16 %v690, %v689
        %v722 = vpack.c.bf16 %v692, %v691
        %v723 = vpack.c.bf16 %v694, %v693
        %v724 = vpack.c.bf16 %v696, %v695
        %v725 = vpack.c.bf16 %v698, %v697
        %v726 = vpack.c.bf16 %v700, %v699
        %v727 = vpack.c.bf16 %v702, %v701
        %v728 = vpack.c.bf16 %v704, %v703
        %v729 = vpack.c.bf16 %v706, %v705
        %v730 = vpack.c.bf16 %v708, %v707
        %v731 = vpack.c.bf16 %v710, %v709
        %v732 = vpack.c.bf16 %v712, %v711
        %v733 = vpack.c.bf16 %v714, %v713
        %v734 = vpack.c.bf16 %v716, %v715
        %v735 = vpack.c.bf16 %v718, %v717
        %v736 = vpack.c.bf16 %v720, %v719
        %v753 = vunpack.c.l.b16 %v721
        %v754 = vunpack.c.h.b16 %v721
        %v755 = vunpack.c.l.b16 %v722
        %v756 = vunpack.c.h.b16 %v722
        %v757 = vunpack.c.l.b16 %v723
        %v758 = vunpack.c.h.b16 %v723
        %v759 = vunpack.c.l.b16 %v724
        %v760 = vunpack.c.h.b16 %v724
        %v761 = vunpack.c.l.b16 %v725
        %v762 = vunpack.c.h.b16 %v725
        %v763 = vunpack.c.l.b16 %v726
        %v764 = vunpack.c.h.b16 %v726
        %v765 = vunpack.c.l.b16 %v727
        %v766 = vunpack.c.h.b16 %v727
        %v767 = vunpack.c.l.b16 %v728
        %v768 = vunpack.c.h.b16 %v728
        %v769 = vunpack.c.l.b16 %v729
        %v770 = vunpack.c.h.b16 %v729
        %v771 = vunpack.c.l.b16 %v730
        %v772 = vunpack.c.h.b16 %v730
        %v773 = vunpack.c.l.b16 %v731
        %v774 = vunpack.c.h.b16 %v731
        %v775 = vunpack.c.l.b16 %v732
        %v776 = vunpack.c.h.b16 %v732
        %v777 = vunpack.c.l.b16 %v733
        %v778 = vunpack.c.h.b16 %v733
        %v779 = vunpack.c.l.b16 %v734
        %v780 = vunpack.c.h.b16 %v734
        %v781 = vunpack.c.l.b16 %v735
        %v782 = vunpack.c.h.b16 %v735
        %v783 = vunpack.c.l.b16 %v736
        %v784 = vunpack.c.h.b16 %v736
        %v785 = vpack.c.b16 %v753, %v753
        %v786 = vpack.c.b16 %v754, %v754
        %v787 = vpack.c.b16 %v755, %v755
        %v788 = vpack.c.b16 %v756, %v756
        %v789 = vpack.c.b16 %v757, %v757
        %v790 = vpack.c.b16 %v758, %v758
        %v791 = vpack.c.b16 %v759, %v759
        %v792 = vpack.c.b16 %v760, %v760
        %v793 = vpack.c.b16 %v761, %v761
        %v794 = vpack.c.b16 %v762, %v762
        %v795 = vpack.c.b16 %v763, %v763
        %v796 = vpack.c.b16 %v764, %v764
        %v797 = vpack.c.b16 %v765, %v765
        %v798 = vpack.c.b16 %v766, %v766
        %v799 = vpack.c.b16 %v767, %v767
        %v800 = vpack.c.b16 %v768, %v768
        %v801 = vpack.c.b16 %v769, %v769
        %v802 = vpack.c.b16 %v770, %v770
        %v803 = vpack.c.b16 %v771, %v771
        %v804 = vpack.c.b16 %v772, %v772
        %v805 = vpack.c.b16 %v773, %v773
        %v806 = vpack.c.b16 %v774, %v774
        %v807 = vpack.c.b16 %v775, %v775
        %v808 = vpack.c.b16 %v776, %v776
        %v809 = vpack.c.b16 %v777, %v777
        %v810 = vpack.c.b16 %v778, %v778
        %v811 = vpack.c.b16 %v779, %v779
        %v812 = vpack.c.b16 %v780, %v780
        %v813 = vpack.c.b16 %v781, %v781
        %v814 = vpack.c.b16 %v782, %v782
        %v815 = vpack.c.b16 %v783, %v783
        %v816 = vpack.c.b16 %v784, %v784
        %849 = vst [vmem:[%s177] sm:$0xf] %v785
        %850 = vst [vmem:[%s177 + $0x4] sm:$0xf] %v786
        %851 = vst [vmem:[%s177 + $0x8] sm:$0xf] %v787
        %852 = vst [vmem:[%s177 + $0xc] sm:$0xf] %v788
        %853 = vst [vmem:[%s177 + $0x10] sm:$0xf] %v789
        %854 = vst [vmem:[%s177 + $0x14] sm:$0xf] %v790
        %855 = vst [vmem:[%s177 + $0x18] sm:$0xf] %v791
        %856 = vst [vmem:[%s177 + $0x1c] sm:$0xf] %v792
        %857 = vst [vmem:[%s177 + $0x20] sm:$0xf] %v793
        %858 = vst [vmem:[%s177 + $0x24] sm:$0xf] %v794
        %859 = vst [vmem:[%s177 + $0x28] sm:$0xf] %v795
        %860 = vst [vmem:[%s177 + $0x2c] sm:$0xf] %v796
        %861 = vst [vmem:[%s177 + $0x30] sm:$0xf] %v797
        %862 = vst [vmem:[%s177 + $0x34] sm:$0xf] %v798
        %863 = vst [vmem:[%s177 + $0x38] sm:$0xf] %v799
        %864 = vst [vmem:[%s177 + $0x3c] sm:$0xf] %v800
        %865 = vst [vmem:[%s177 + $0x40] sm:$0xf] %v801
        %866 = vst [vmem:[%s177 + $0x44] sm:$0xf] %v802
        %867 = vst [vmem:[%s177 + $0x48] sm:$0xf] %v803
        %868 = vst [vmem:[%s177 + $0x4c] sm:$0xf] %v804
        %869 = vst [vmem:[%s177 + $0x50] sm:$0xf] %v805
        %870 = vst [vmem:[%s177 + $0x54] sm:$0xf] %v806
        %871 = vst [vmem:[%s177 + $0x58] sm:$0xf] %v807
        %872 = vst [vmem:[%s177 + $0x5c] sm:$0xf] %v808
        %873 = vst [vmem:[%s177 + $0x60] sm:$0xf] %v809
        %874 = vst [vmem:[%s177 + $0x64] sm:$0xf] %v810
        %875 = vst [vmem:[%s177 + $0x68] sm:$0xf] %v811
        %876 = vst [vmem:[%s177 + $0x6c] sm:$0xf] %v812
        %877 = vst [vmem:[%s177 + $0x70] sm:$0xf] %v813
        %878 = vst [vmem:[%s177 + $0x74] sm:$0xf] %v814
        %879 = vst [vmem:[%s177 + $0x78] sm:$0xf] %v815
        %880 = vst [vmem:[%s177 + $0x7c] sm:$0xf] %v816
        %s881 = sand.u32 %s90, 1
        %s882 = sand.u32 %s90, 1
        %s883 = smul.addr %s882, 128
        %s884 = scalar_lea.vmem [#allocation2], %s883
        // Predicated region
        $region33: #{_lambda_.14} parent=31 // pred_check
          %p885 = pneg %p100
        $region34: #{_lambda_.14} parent=31 // pred_check_branch
          %887 = sbr.rel (%p885) target = $region36
        $region35: #{_lambda_.14} parent=31 // pred_region
          %s888 = smul.u32 32, %s14
          %s889 = ssub.s32 73, %s888
          %p890 = scmp.lt.s32.totalorder %s889, 32
          %s891 = scalar_select %p890, %s889, 32
          %s892 = smul.u32 64, %s891
          %p893 = scmp.ne.s32.totalorder 0, %s892
          %s894 = smul.addr %s888, 4
          %s895 = scalar_lea.vmem %s3, %s894
          // Predicated region
          $region37: #{_lambda_.14} parent=35 // pred_check
            %p896 = pneg %p893
          $region38: #{_lambda_.14} parent=35 // pred_check_branch
            %898 = sbr.rel (%p896) target = $region40
          $region39: #{_lambda_.14} parent=35 // pred_region
            // Predicated region
            $region41: #{_lambda_.14} parent=39 // pred_check
              _
            $region42: #{_lambda_.14} parent=39 // pred_check_branch
              %900 = sbr.rel target = $region44
            $region43: #{_lambda_.14} parent=39 // pred_region
              // Predicated region
              $region63: #{_lambda_.14} parent=43 // pred_check
                _
              $region64: #{_lambda_.14} parent=43 // pred_check_branch
                %1012 = sbr.rel (0) target = $region66
              $region65: #{_lambda_.14} parent=43 // pred_region
                %s1014 = ssub.s32 16, 1
                %s1015 = sshrl.u32 %s891, 5
                // While loop
                $region67: #{_lambda_.14} parent=65 // loop_pre_header
                  _
                $region68: #{_lambda_.14} parent=65 // loop_header
                  %s1017 = sphi 0, %s1019
                  %p1018 = scmp.ge.s32.totalorder %s1017, %s1015
                  %s1022 = sphi 0, %s1091
                  %s1023 = sphi %s884, %s1094
                  %s1024 = sphi %s895, %s1095
                $region69: #{_lambda_.14} parent=65 // loop_header_branch
                  %1021 = sbr.rel (%p1018) target = $region73
                $region70: #{_lambda_.14} parent=65 // loop_body
                  %v1025 = vld [vmem:[%s1023] sm:%s1014]
                  %1026 = vst [vmem:[%s1024] sm:%s1014] %v1025
                  %v1027 = vld [vmem:[%s1023 + $0x4] sm:%s1014]
                  %1028 = vst [vmem:[%s1024 + $0x4] sm:%s1014] %v1027
                  %v1029 = vld [vmem:[%s1023 + $0x8] sm:%s1014]
                  %1030 = vst [vmem:[%s1024 + $0x8] sm:%s1014] %v1029
                  %v1031 = vld [vmem:[%s1023 + $0xc] sm:%s1014]
                  %1032 = vst [vmem:[%s1024 + $0xc] sm:%s1014] %v1031
                  %v1033 = vld [vmem:[%s1023 + $0x10] sm:%s1014]
                  %1034 = vst [vmem:[%s1024 + $0x10] sm:%s1014] %v1033
                  %v1035 = vld [vmem:[%s1023 + $0x14] sm:%s1014]
                  %1036 = vst [vmem:[%s1024 + $0x14] sm:%s1014] %v1035
                  %v1037 = vld [vmem:[%s1023 + $0x18] sm:%s1014]
                  %1038 = vst [vmem:[%s1024 + $0x18] sm:%s1014] %v1037
                  %v1039 = vld [vmem:[%s1023 + $0x1c] sm:%s1014]
                  %1040 = vst [vmem:[%s1024 + $0x1c] sm:%s1014] %v1039
                  %v1041 = vld [vmem:[%s1023 + $0x20] sm:%s1014]
                  %1042 = vst [vmem:[%s1024 + $0x20] sm:%s1014] %v1041
                  %v1043 = vld [vmem:[%s1023 + $0x24] sm:%s1014]
                  %1044 = vst [vmem:[%s1024 + $0x24] sm:%s1014] %v1043
                  %v1045 = vld [vmem:[%s1023 + $0x28] sm:%s1014]
                  %1046 = vst [vmem:[%s1024 + $0x28] sm:%s1014] %v1045
                  %v1047 = vld [vmem:[%s1023 + $0x2c] sm:%s1014]
                  %1048 = vst [vmem:[%s1024 + $0x2c] sm:%s1014] %v1047
                  %v1049 = vld [vmem:[%s1023 + $0x30] sm:%s1014]
                  %1050 = vst [vmem:[%s1024 + $0x30] sm:%s1014] %v1049
                  %v1051 = vld [vmem:[%s1023 + $0x34] sm:%s1014]
                  %1052 = vst [vmem:[%s1024 + $0x34] sm:%s1014] %v1051
                  %v1053 = vld [vmem:[%s1023 + $0x38] sm:%s1014]
                  %1054 = vst [vmem:[%s1024 + $0x38] sm:%s1014] %v1053
                  %v1055 = vld [vmem:[%s1023 + $0x3c] sm:%s1014]
                  %1056 = vst [vmem:[%s1024 + $0x3c] sm:%s1014] %v1055
                  %v1057 = vld [vmem:[%s1023 + $0x40] sm:%s1014]
                  %1058 = vst [vmem:[%s1024 + $0x40] sm:%s1014] %v1057
                  %v1059 = vld [vmem:[%s1023 + $0x44] sm:%s1014]
                  %1060 = vst [vmem:[%s1024 + $0x44] sm:%s1014] %v1059
                  %v1061 = vld [vmem:[%s1023 + $0x48] sm:%s1014]
                  %1062 = vst [vmem:[%s1024 + $0x48] sm:%s1014] %v1061
                  %v1063 = vld [vmem:[%s1023 + $0x4c] sm:%s1014]
                  %1064 = vst [vmem:[%s1024 + $0x4c] sm:%s1014] %v1063
                  %v1065 = vld [vmem:[%s1023 + $0x50] sm:%s1014]
                  %1066 = vst [vmem:[%s1024 + $0x50] sm:%s1014] %v1065
                  %v1067 = vld [vmem:[%s1023 + $0x54] sm:%s1014]
                  %1068 = vst [vmem:[%s1024 + $0x54] sm:%s1014] %v1067
                  %v1069 = vld [vmem:[%s1023 + $0x58] sm:%s1014]
                  %1070 = vst [vmem:[%s1024 + $0x58] sm:%s1014] %v1069
                  %v1071 = vld [vmem:[%s1023 + $0x5c] sm:%s1014]
                  %1072 = vst [vmem:[%s1024 + $0x5c] sm:%s1014] %v1071
                  %v1073 = vld [vmem:[%s1023 + $0x60] sm:%s1014]
                  %1074 = vst [vmem:[%s1024 + $0x60] sm:%s1014] %v1073
                  %v1075 = vld [vmem:[%s1023 + $0x64] sm:%s1014]
                  %1076 = vst [vmem:[%s1024 + $0x64] sm:%s1014] %v1075
                  %v1077 = vld [vmem:[%s1023 + $0x68] sm:%s1014]
                  %1078 = vst [vmem:[%s1024 + $0x68] sm:%s1014] %v1077
                  %v1079 = vld [vmem:[%s1023 + $0x6c] sm:%s1014]
                  %1080 = vst [vmem:[%s1024 + $0x6c] sm:%s1014] %v1079
                  %v1081 = vld [vmem:[%s1023 + $0x70] sm:%s1014]
                  %1082 = vst [vmem:[%s1024 + $0x70] sm:%s1014] %v1081
                  %v1083 = vld [vmem:[%s1023 + $0x74] sm:%s1014]
                  %1084 = vst [vmem:[%s1024 + $0x74] sm:%s1014] %v1083
                  %v1085 = vld [vmem:[%s1023 + $0x78] sm:%s1014]
                  %1086 = vst [vmem:[%s1024 + $0x78] sm:%s1014] %v1085
                  %v1087 = vld [vmem:[%s1023 + $0x7c] sm:%s1014]
                  %1088 = vst [vmem:[%s1024 + $0x7c] sm:%s1014] %v1087
                  %s1089 = sadd.s32 1, %s1022
                  %p1090 = scmp.ge.s32.totalorder %s1089, %s1015
                  %s1091 = scalar_select %p1090, 0, %s1089
                  %s1092 = smul.u32 %s1091, 128
                  %s1093 = smul.u32 %s1091, 128
                  %s1094 = scalar_lea.vmem %s884, %s1092 [#allocation2]
                  %s1095 = scalar_lea.vmem %s895, %s1093
                $region71: #{_lambda_.14} parent=65 // loop_footer
                  %s1019 = sadd.s32 %s1017, 1
                $region72: #{_lambda_.14} parent=65 // loop_footer_branch
                  %1016 = sbr.rel target = $region68
                $region73: #{_lambda_.14} parent=65 // loop_exit
                  _
                %s1096 = sshrl.u32 %s891, 5
                %s1097 = sand.u32 %s891, 31
                %s1098 = smul.u32 %s1096, 32
                %s1099 = smul.u32 4, %s1098
                %s1100 = scalar_lea.vmem %s884, %s1099 [#allocation2]
                %s1101 = smul.u32 4, %s1098
                %s1102 = scalar_lea.vmem %s895, %s1101
                // While loop
                $region74: #{_lambda_.14} parent=65 // loop_pre_header
                  _
                $region75: #{_lambda_.14} parent=65 // loop_header
                  %s1104 = sphi 0, %s1106
                  %p1105 = scmp.ge.s32.totalorder %s1104, %s1097
                  %s1109 = sphi 0, %s1116
                  %s1110 = sphi %s1100, %s1119
                  %s1111 = sphi %s1102, %s1120
                $region76: #{_lambda_.14} parent=65 // loop_header_branch
                  %1108 = sbr.rel (%p1105) target = $region80
                $region77: #{_lambda_.14} parent=65 // loop_body
                  %v1112 = vld [vmem:[%s1110] sm:%s1014]
                  %1113 = vst [vmem:[%s1111] sm:%s1014] %v1112
                  %s1114 = sadd.s32 1, %s1109
                  %p1115 = scmp.ge.s32.totalorder %s1114, %s1097
                  %s1116 = scalar_select %p1115, 0, %s1114
                  %s1117 = smul.u32 %s1116, 4
                  %s1118 = smul.u32 %s1116, 4
                  %s1119 = scalar_lea.vmem %s1100, %s1117 [#allocation2]
                  %s1120 = scalar_lea.vmem %s1102, %s1118
                $region78: #{_lambda_.14} parent=65 // loop_footer
                  %s1106 = sadd.s32 %s1104, 1
                $region79: #{_lambda_.14} parent=65 // loop_footer_branch
                  %1103 = sbr.rel target = $region75
                $region80: #{_lambda_.14} parent=65 // loop_exit
                  _
              $region66: #{_lambda_.14} parent=43 // pred_fallthru
                _
            $region44: #{_lambda_.14} parent=39 // pred_fallthru
              _
            // Predicated region
            $region45: #{_lambda_.14} parent=39 // pred_check
              _
            $region46: #{_lambda_.14} parent=39 // pred_check_branch
              %902 = sbr.rel (0) target = $region48
            $region47: #{_lambda_.14} parent=39 // pred_region
              %s904 = ssub.s32 16, 1
              %s905 = sshrl.u32 %s891, 5
              // While loop
              $region49: #{_lambda_.14} parent=47 // loop_pre_header
                _
              $region50: #{_lambda_.14} parent=47 // loop_header
                %s907 = sphi 0, %s909
                %p908 = scmp.ge.s32.totalorder %s907, %s905
                %s912 = sphi 0, %s981
                %s913 = sphi %s884, %s984
                %s914 = sphi %s895, %s985
              $region51: #{_lambda_.14} parent=47 // loop_header_branch
                %911 = sbr.rel (%p908) target = $region55
              $region52: #{_lambda_.14} parent=47 // loop_body
                %v915 = vld [vmem:[%s913] sm:%s904]
                %916 = vst [vmem:[%s914] sm:%s904] %v915
                %v917 = vld [vmem:[%s913 + $0x4] sm:%s904]
                %918 = vst [vmem:[%s914 + $0x4] sm:%s904] %v917
                %v919 = vld [vmem:[%s913 + $0x8] sm:%s904]
                %920 = vst [vmem:[%s914 + $0x8] sm:%s904] %v919
                %v921 = vld [vmem:[%s913 + $0xc] sm:%s904]
                %922 = vst [vmem:[%s914 + $0xc] sm:%s904] %v921
                %v923 = vld [vmem:[%s913 + $0x10] sm:%s904]
                %924 = vst [vmem:[%s914 + $0x10] sm:%s904] %v923
                %v925 = vld [vmem:[%s913 + $0x14] sm:%s904]
                %926 = vst [vmem:[%s914 + $0x14] sm:%s904] %v925
                %v927 = vld [vmem:[%s913 + $0x18] sm:%s904]
                %928 = vst [vmem:[%s914 + $0x18] sm:%s904] %v927
                %v929 = vld [vmem:[%s913 + $0x1c] sm:%s904]
                %930 = vst [vmem:[%s914 + $0x1c] sm:%s904] %v929
                %v931 = vld [vmem:[%s913 + $0x20] sm:%s904]
                %932 = vst [vmem:[%s914 + $0x20] sm:%s904] %v931
                %v933 = vld [vmem:[%s913 + $0x24] sm:%s904]
                %934 = vst [vmem:[%s914 + $0x24] sm:%s904] %v933
                %v935 = vld [vmem:[%s913 + $0x28] sm:%s904]
                %936 = vst [vmem:[%s914 + $0x28] sm:%s904] %v935
                %v937 = vld [vmem:[%s913 + $0x2c] sm:%s904]
                %938 = vst [vmem:[%s914 + $0x2c] sm:%s904] %v937
                %v939 = vld [vmem:[%s913 + $0x30] sm:%s904]
                %940 = vst [vmem:[%s914 + $0x30] sm:%s904] %v939
                %v941 = vld [vmem:[%s913 + $0x34] sm:%s904]
                %942 = vst [vmem:[%s914 + $0x34] sm:%s904] %v941
                %v943 = vld [vmem:[%s913 + $0x38] sm:%s904]
                %944 = vst [vmem:[%s914 + $0x38] sm:%s904] %v943
                %v945 = vld [vmem:[%s913 + $0x3c] sm:%s904]
                %946 = vst [vmem:[%s914 + $0x3c] sm:%s904] %v945
                %v947 = vld [vmem:[%s913 + $0x40] sm:%s904]
                %948 = vst [vmem:[%s914 + $0x40] sm:%s904] %v947
                %v949 = vld [vmem:[%s913 + $0x44] sm:%s904]
                %950 = vst [vmem:[%s914 + $0x44] sm:%s904] %v949
                %v951 = vld [vmem:[%s913 + $0x48] sm:%s904]
                %952 = vst [vmem:[%s914 + $0x48] sm:%s904] %v951
                %v953 = vld [vmem:[%s913 + $0x4c] sm:%s904]
                %954 = vst [vmem:[%s914 + $0x4c] sm:%s904] %v953
                %v955 = vld [vmem:[%s913 + $0x50] sm:%s904]
                %956 = vst [vmem:[%s914 + $0x50] sm:%s904] %v955
                %v957 = vld [vmem:[%s913 + $0x54] sm:%s904]
                %958 = vst [vmem:[%s914 + $0x54] sm:%s904] %v957
                %v959 = vld [vmem:[%s913 + $0x58] sm:%s904]
                %960 = vst [vmem:[%s914 + $0x58] sm:%s904] %v959
                %v961 = vld [vmem:[%s913 + $0x5c] sm:%s904]
                %962 = vst [vmem:[%s914 + $0x5c] sm:%s904] %v961
                %v963 = vld [vmem:[%s913 + $0x60] sm:%s904]
                %964 = vst [vmem:[%s914 + $0x60] sm:%s904] %v963
                %v965 = vld [vmem:[%s913 + $0x64] sm:%s904]
                %966 = vst [vmem:[%s914 + $0x64] sm:%s904] %v965
                %v967 = vld [vmem:[%s913 + $0x68] sm:%s904]
                %968 = vst [vmem:[%s914 + $0x68] sm:%s904] %v967
                %v969 = vld [vmem:[%s913 + $0x6c] sm:%s904]
                %970 = vst [vmem:[%s914 + $0x6c] sm:%s904] %v969
                %v971 = vld [vmem:[%s913 + $0x70] sm:%s904]
                %972 = vst [vmem:[%s914 + $0x70] sm:%s904] %v971
                %v973 = vld [vmem:[%s913 + $0x74] sm:%s904]
                %974 = vst [vmem:[%s914 + $0x74] sm:%s904] %v973
                %v975 = vld [vmem:[%s913 + $0x78] sm:%s904]
                %976 = vst [vmem:[%s914 + $0x78] sm:%s904] %v975
                %v977 = vld [vmem:[%s913 + $0x7c] sm:%s904]
                %978 = vst [vmem:[%s914 + $0x7c] sm:%s904] %v977
                %s979 = sadd.s32 1, %s912
                %p980 = scmp.ge.s32.totalorder %s979, %s905
                %s981 = scalar_select %p980, 0, %s979
                %s982 = smul.u32 %s981, 128
                %s983 = smul.u32 %s981, 128
                %s984 = scalar_lea.vmem %s884, %s982 [#allocation2]
                %s985 = scalar_lea.vmem %s895, %s983
              $region53: #{_lambda_.14} parent=47 // loop_footer
                %s909 = sadd.s32 %s907, 1
              $region54: #{_lambda_.14} parent=47 // loop_footer_branch
                %906 = sbr.rel target = $region50
              $region55: #{_lambda_.14} parent=47 // loop_exit
                _
              %s986 = sshrl.u32 %s891, 5
              %s987 = sand.u32 %s891, 31
              %s988 = smul.u32 %s986, 32
              %s989 = smul.u32 4, %s988
              %s990 = scalar_lea.vmem %s884, %s989 [#allocation2]
              %s991 = smul.u32 4, %s988
              %s992 = scalar_lea.vmem %s895, %s991
              // While loop
              $region56: #{_lambda_.14} parent=47 // loop_pre_header
                _
              $region57: #{_lambda_.14} parent=47 // loop_header
                %s994 = sphi 0, %s996
                %p995 = scmp.ge.s32.totalorder %s994, %s987
                %s999 = sphi 0, %s1006
                %s1000 = sphi %s990, %s1009
                %s1001 = sphi %s992, %s1010
              $region58: #{_lambda_.14} parent=47 // loop_header_branch
                %998 = sbr.rel (%p995) target = $region62
              $region59: #{_lambda_.14} parent=47 // loop_body
                %v1002 = vld [vmem:[%s1000] sm:%s904]
                %1003 = vst [vmem:[%s1001] sm:%s904] %v1002
                %s1004 = sadd.s32 1, %s999
                %p1005 = scmp.ge.s32.totalorder %s1004, %s987
                %s1006 = scalar_select %p1005, 0, %s1004
                %s1007 = smul.u32 %s1006, 4
                %s1008 = smul.u32 %s1006, 4
                %s1009 = scalar_lea.vmem %s990, %s1007 [#allocation2]
                %s1010 = scalar_lea.vmem %s992, %s1008
              $region60: #{_lambda_.14} parent=47 // loop_footer
                %s996 = sadd.s32 %s994, 1
              $region61: #{_lambda_.14} parent=47 // loop_footer_branch
                %993 = sbr.rel target = $region57
              $region62: #{_lambda_.14} parent=47 // loop_exit
                _
            $region48: #{_lambda_.14} parent=39 // pred_fallthru
              _
          $region40: #{_lambda_.14} parent=35 // pred_fallthru
            _
          %1121 = vnop
        $region36: #{_lambda_.14} parent=31 // pred_fallthru
          _
      $region32: #{_lambda_.14} parent=5 // pred_fallthru
        _
      %p1122 = scmp.le.s32.totalorder 2, %s9
      // Predicated region
      $region81: #{_lambda_.14} parent=5 // pred_check
        %p1123 = pneg %p1122
      $region82: #{_lambda_.14} parent=5 // pred_check_branch
        %1125 = sbr.rel (%p1123) target = $region84
      $region83: #{_lambda_.14} parent=5 // pred_region
        %s1126 = ssub.s32 %s9, 2
        // Predicated region
        $region85: #{_lambda_.14} parent=83 // pred_check
          %p1127 = pneg %p106
        $region86: #{_lambda_.14} parent=83 // pred_check_branch
          %1129 = sbr.rel (%p1127) target = $region88
        $region87: #{_lambda_.14} parent=83 // pred_region
          %s1130 = sand.u32 %s91, 1
          %s1131 = sand.u32 %s91, 1
          %s1132 = smul.addr %s1131, 128
          %s1133 = scalar_lea.vmem [#allocation2], %s1132
        $region88: #{_lambda_.14} parent=83 // pred_fallthru
          _
      $region84: #{_lambda_.14} parent=5 // pred_fallthru
        _
    $region6: #{_lambda_.14} parent=1 // loop_footer
      %s13 = sadd.s32 1, %s9
    $region7: #{_lambda_.14} parent=1 // loop_footer_branch
      %8 = sbr.rel target = $region3
    $region8: #{_lambda_.14} parent=1 // loop_exit
      _

// kernel: _lambda_.15
$region0: #{_lambda_.15}
  #allocation0 [shape = 'u32[]', space=smem, size = 0x4, offset = 0x4, fixed_abs, tag = 'smem constant byte address 0x4 - core index']
  #allocation1 [shape = 'u32[144,128]{1,0:T(1,128)}', space=vmem, size = 0x12000, scoped, tag = 'internal scratch']
  %s0 = inlined_call_operand.vmem [shape: bf16[2048,288], index: 0, kind: input, shape index: {}]
  %s1 = inlined_call_operand.vmem [shape: bf16[288,128], index: 1, kind: input, shape index: {}]
  %s2 = inlined_call_operand.vmem [shape: f32[1,128], index: 2, kind: input, shape index: {}]
  %s3 = inlined_call_operand.vmem [shape: f32[2048,1], index: 3, kind: output, shape index: {}]
  %s4 = sld [smem:[#allocation0]]
  $region45: #{_lambda_.15} parent=0
    _
  %s6 = ssub.s32 1, %s4
  %s7 = scalar_select 0, %s6, %s4
  loop: start=0, step=1, limit=10
  $region2: #{_lambda_.15} parent=0 // loop_pre_header
    _
  $region3: #{_lambda_.15} parent=0 // loop_header
    %s9 = sphi 0, %s13
    %p10 = scmp.ge.s32.totalorder %s9, 10
    %s19 = sphi 0, %s21
    %s22 = sphi 0, %s19
    %s23 = sphi 0, %s22
    %s39 = sphi 0, %s23
    %s43 = sphi 0, %s43
    %s45 = sphi 0, %s43
    %s46 = sphi 0, %s45
    %s60 = sphi 0, %s46
    %s64 = sphi 0, %s64
    %s66 = sphi 0, %s64
    %s67 = sphi 0, %s66
    %s81 = sphi 0, %s67
    %s87 = sphi 0, %s89
    %s90 = sphi 0, %s87
    %s91 = sphi 0, %s90
    %s107 = sphi 0, %s91
  $region4: #{_lambda_.15} parent=0 // loop_header_branch
    %12 = sbr.rel (%p10) target = $region8
  $region5: #{_lambda_.15} parent=0 // loop_body
    %s14 = ssub.s32 %s9, 1
    %s15 = ssub.s32 %s9, 2
    %s16 = sadd.s32 %s9, 1
    %s17 = ssub.s32 %s9, %s16
    %p18 = scmp.eq.s32.totalorder %s17, 0
    %s20 = sadd.s32 %s19, 1
    %s21 = scalar_select %p18, %s19, %s20
    %p24 = pneg %p18
    %p25 = scmp.eq.s32.totalorder %s9, 7
    %p26 = por %p24, %p25
    %p27 = scmp.ne.s32.totalorder %s19, %s22
    %p28 = scmp.eq.s32.totalorder %s9, 0
    %p29 = por %p27, %p28
    %p30 = scmp.ne.s32.totalorder %s19, %s22
    %p31 = scmp.eq.s32.totalorder %s14, 7
    %p32 = por %p30, %p31
    %p33 = scmp.ne.s32.totalorder %s22, %s23
    %p34 = scmp.eq.s32.totalorder %s14, 0
    %p35 = por %p33, %p34
    %p36 = scmp.ne.s32.totalorder %s22, %s23
    %p37 = scmp.eq.s32.totalorder %s15, 7
    %p38 = por %p36, %p37
    %p40 = scmp.ne.s32.totalorder %s23, %s39
    %p41 = scmp.eq.s32.totalorder %s15, 0
    %p42 = por %p40, %p41
    %s44 = sadd.s32 %s43, 1
    %p47 = scmp.eq.s32.totalorder %s9, 7
    %p48 = scmp.ne.s32.totalorder %s43, %s45
    %p49 = scmp.eq.s32.totalorder %s9, 0
    %p50 = por %p48, %p49
    %p51 = scmp.ne.s32.totalorder %s43, %s45
    %p52 = scmp.eq.s32.totalorder %s14, 7
    %p53 = por %p51, %p52
    %p54 = scmp.ne.s32.totalorder %s45, %s46
    %p55 = scmp.eq.s32.totalorder %s14, 0
    %p56 = por %p54, %p55
    %p57 = scmp.ne.s32.totalorder %s45, %s46
    %p58 = scmp.eq.s32.totalorder %s15, 7
    %p59 = por %p57, %p58
    %p61 = scmp.ne.s32.totalorder %s46, %s60
    %p62 = scmp.eq.s32.totalorder %s15, 0
    %p63 = por %p61, %p62
    %s65 = sadd.s32 %s64, 1
    %p68 = scmp.eq.s32.totalorder %s9, 7
    %p69 = scmp.ne.s32.totalorder %s64, %s66
    %p70 = scmp.eq.s32.totalorder %s9, 0
    %p71 = por %p69, %p70
    %p72 = scmp.ne.s32.totalorder %s64, %s66
    %p73 = scmp.eq.s32.totalorder %s14, 7
    %p74 = por %p72, %p73
    %p75 = scmp.ne.s32.totalorder %s66, %s67
    %p76 = scmp.eq.s32.totalorder %s14, 0
    %p77 = por %p75, %p76
    %p78 = scmp.ne.s32.totalorder %s66, %s67
    %p79 = scmp.eq.s32.totalorder %s15, 7
    %p80 = por %p78, %p79
    %p82 = scmp.ne.s32.totalorder %s67, %s81
    %p83 = scmp.eq.s32.totalorder %s15, 0
    %p84 = por %p82, %p83
    %s85 = ssub.s32 %s9, %s16
    %p86 = scmp.eq.s32.totalorder %s85, 0
    %s88 = sadd.s32 %s87, 1
    %s89 = scalar_select %p86, %s87, %s88
    %p92 = pneg %p86
    %p93 = scmp.eq.s32.totalorder %s9, 7
    %p94 = por %p92, %p93
    %p95 = scmp.ne.s32.totalorder %s87, %s90
    %p96 = scmp.eq.s32.totalorder %s9, 0
    %p97 = por %p95, %p96
    %p98 = scmp.ne.s32.totalorder %s87, %s90
    %p99 = scmp.eq.s32.totalorder %s14, 7
    %p100 = por %p98, %p99
    %p101 = scmp.ne.s32.totalorder %s90, %s91
    %p102 = scmp.eq.s32.totalorder %s14, 0
    %p103 = por %p101, %p102
    %p104 = scmp.ne.s32.totalorder %s90, %s91
    %p105 = scmp.eq.s32.totalorder %s15, 7
    %p106 = por %p104, %p105
    %p108 = scmp.ne.s32.totalorder %s91, %s107
    %p109 = scmp.eq.s32.totalorder %s15, 0
    %p110 = por %p108, %p109
    %p111 = scmp.le.s32.totalorder 1, %s9
    %p112 = scmp.lt.s32.totalorder %s9, 9
    %p113 = pnand %p111, %p112
    %p114 = pneg %p113
    // Predicated region
    $region9: #{_lambda_.15} parent=5 // pred_check
      _
    $region10: #{_lambda_.15} parent=5 // pred_check_branch
      %116 = sbr.rel (%p113) target = $region12
    $region11: #{_lambda_.15} parent=5 // pred_region
      %s117 = ssub.s32 %s9, 1
      // Predicated region
      $region13: #{_lambda_.15} parent=11 // pred_check
        %p118 = pneg %p56
      $region14: #{_lambda_.15} parent=11 // pred_check_branch
        %120 = sbr.rel (%p118) target = $region16
      $region15: #{_lambda_.15} parent=11 // pred_region
        _
      $region16: #{_lambda_.15} parent=11 // pred_fallthru
        _
      // Predicated region
      $region17: #{_lambda_.15} parent=11 // pred_check
        %p121 = pneg %p77
      $region18: #{_lambda_.15} parent=11 // pred_check_branch
        %123 = sbr.rel (%p121) target = $region20
      $region19: #{_lambda_.15} parent=11 // pred_region
        _
      $region20: #{_lambda_.15} parent=11 // pred_fallthru
        _
    $region12: #{_lambda_.15} parent=5 // pred_fallthru
      _
    %p124 = scmp.lt.s32.totalorder %s9, 8
    // Predicated region
    $region21: #{_lambda_.15} parent=5 // pred_check
      %p125 = pneg %p124
    $region22: #{_lambda_.15} parent=5 // pred_check_branch
      %127 = sbr.rel (%p125) target = $region24
    $region23: #{_lambda_.15} parent=5 // pred_region
      // Predicated region
      $region25: #{_lambda_.15} parent=23 // pred_check
        %p128 = pneg %p29
      $region26: #{_lambda_.15} parent=23 // pred_check_branch
        %130 = sbr.rel (%p128) target = $region28
      $region27: #{_lambda_.15} parent=23 // pred_region
        %s131 = smul.u32 32, %s9
        %p132 = scmp.lt.s32.totalorder %s131, 255
        %s133 = scalar_select %p132, %s131, 255
        %s134 = smul.addr %s133, 3
        %s135 = smul.addr %s134, 4
        %s136 = scalar_lea.vmem %s0, %s135
        %s137 = smul.u32 32, %s9
      $region28: #{_lambda_.15} parent=23 // pred_fallthru
        _
    $region24: #{_lambda_.15} parent=5 // pred_fallthru
      _
    %p138 = scmp.le.s32.totalorder 1, %s9
    %p139 = scmp.lt.s32.totalorder %s9, 9
    %p140 = pnand %p138, %p139
    %p141 = pneg %p140
    // Predicated region
    $region29: #{_lambda_.15} parent=5 // pred_check
      _
    $region30: #{_lambda_.15} parent=5 // pred_check_branch
      %143 = sbr.rel (%p140) target = $region32
    $region31: #{_lambda_.15} parent=5 // pred_region
      %s144 = ssub.s32 %s9, 1
      %s145 = smul.u32 32, %s14
      %p146 = scmp.lt.s32.totalorder %s145, 255
      %s147 = scalar_select %p146, %s145, 255
      %s148 = smul.addr %s147, 3
      %s149 = smul.addr %s148, 4
      %s150 = scalar_lea.vmem %s0, %s149
      %p151 = pneg %p35
      %p152 = pneg %p32
      %p153 = pneg %p56
      %p154 = pneg %p53
      %p155 = pneg %p77
      %p156 = pneg %p74
      %p157 = pneg %p103
      %p158 = pneg %p100
      %s159 = smul.u32 32, %s14
      %p160 = scmp.lt.s32.totalorder %s159, 255
      %s161 = scalar_select %p160, %s159, 255
      %s162 = smul.addr %s161, 8
      %s163 = scalar_lea.vmem %s3, %s162
      %s164 = smul.u32 32, %s14
      %p165 = scmp.lt.s32.totalorder %s164, 255
      %s166 = scalar_select %p165, %s164, 255
      %s167 = smul.addr %s166, 3
      %s168 = smul.addr %s167, 4
      %s169 = scalar_lea.vmem %s0, %s168
      %s170 = smul.u32 32, %s14
      %s171 = smul.u32 32, %s14
      %p172 = scmp.lt.s32.totalorder %s171, 255
      %s173 = scalar_select %p172, %s171, 255
      %s174 = smul.addr %s173, 8
      %s175 = scalar_lea.vmem %s3, %s174
      %s176 = smul.u32 32, %s14
      %v178 = vld [vmem:[%s169] sm:$0xff]
      %v179 = vld [vmem:[%s169 + $0x8] sm:$0xf]
      %v180 = vld [vmem:[%s169 + $0xc] sm:$0xff]
      %v181 = vld [vmem:[%s169 + $0x14] sm:$0xf]
      %v182 = vld [vmem:[%s169 + $0x18] sm:$0xff]
      %v183 = vld [vmem:[%s169 + $0x20] sm:$0xf]
      %v184 = vld [vmem:[%s169 + $0x24] sm:$0xff]
      %v185 = vld [vmem:[%s169 + $0x2c] sm:$0xf]
      %v186 = vld [vmem:[%s169 + $0x30] sm:$0xff]
      %v187 = vld [vmem:[%s169 + $0x38] sm:$0xf]
      %v188 = vld [vmem:[%s169 + $0x3c] sm:$0xff]
      %v189 = vld [vmem:[%s169 + $0x44] sm:$0xf]
      %v190 = vld [vmem:[%s169 + $0x48] sm:$0xff]
      %v191 = vld [vmem:[%s169 + $0x50] sm:$0xf]
      %v192 = vld [vmem:[%s169 + $0x54] sm:$0xff]
      %v193 = vld [vmem:[%s169 + $0x5c] sm:$0xf]
      %v194 = vld [vmem:[%s169 + $0x60] sm:$0xff]
      %v195 = vld [vmem:[%s169 + $0x68] sm:$0xf]
      %v196 = vld [vmem:[%s169 + $0x6c] sm:$0xff]
      %v197 = vld [vmem:[%s169 + $0x74] sm:$0xf]
      %v198 = vld [vmem:[%s169 + $0x78] sm:$0xff]
      %v199 = vld [vmem:[%s169 + $0x80] sm:$0xf]
      %v200 = vld [vmem:[%s169 + $0x84] sm:$0xff]
      %v201 = vld [vmem:[%s169 + $0x8c] sm:$0xf]
      %v202 = vld [vmem:[%s169 + $0x90] sm:$0xff]
      %v203 = vld [vmem:[%s169 + $0x98] sm:$0xf]
      %v204 = vld [vmem:[%s169 + $0x9c] sm:$0xff]
      %v205 = vld [vmem:[%s169 + $0xa4] sm:$0xf]
      %v206 = vld [vmem:[%s169 + $0xa8] sm:$0xff]
      %v207 = vld [vmem:[%s169 + $0xb0] sm:$0xf]
      %v208 = vld [vmem:[%s169 + $0xb4] sm:$0xff]
      %v209 = vld [vmem:[%s169 + $0xbc] sm:$0xf]
      %v210 = vld [vmem:[%s169 + $0xc0] sm:$0xff]
      %v211 = vld [vmem:[%s169 + $0xc8] sm:$0xf]
      %v212 = vld [vmem:[%s169 + $0xcc] sm:$0xff]
      %v213 = vld [vmem:[%s169 + $0xd4] sm:$0xf]
      %v214 = vld [vmem:[%s169 + $0xd8] sm:$0xff]
      %v215 = vld [vmem:[%s169 + $0xe0] sm:$0xf]
      %v216 = vld [vmem:[%s169 + $0xe4] sm:$0xff]
      %v217 = vld [vmem:[%s169 + $0xec] sm:$0xf]
      %v218 = vld [vmem:[%s169 + $0xf0] sm:$0xff]
      %v219 = vld [vmem:[%s169 + $0xf8] sm:$0xf]
      %v220 = vld [vmem:[%s169 + $0xfc] sm:$0xff]
      %v221 = vld [vmem:[%s169 + $0x104] sm:$0xf]
      %v222 = vld [vmem:[%s169 + $0x108] sm:$0xff]
      %v223 = vld [vmem:[%s169 + $0x110] sm:$0xf]
      %v224 = vld [vmem:[%s169 + $0x114] sm:$0xff]
      %v225 = vld [vmem:[%s169 + $0x11c] sm:$0xf]
      %v226 = vld [vmem:[%s169 + $0x120] sm:$0xff]
      %v227 = vld [vmem:[%s169 + $0x128] sm:$0xf]
      %v228 = vld [vmem:[%s169 + $0x12c] sm:$0xff]
      %v229 = vld [vmem:[%s169 + $0x134] sm:$0xf]
      %v230 = vld [vmem:[%s169 + $0x138] sm:$0xff]
      %v231 = vld [vmem:[%s169 + $0x140] sm:$0xf]
      %v232 = vld [vmem:[%s169 + $0x144] sm:$0xff]
      %v233 = vld [vmem:[%s169 + $0x14c] sm:$0xf]
      %v234 = vld [vmem:[%s169 + $0x150] sm:$0xff]
      %v235 = vld [vmem:[%s169 + $0x158] sm:$0xf]
      %v236 = vld [vmem:[%s169 + $0x15c] sm:$0xff]
      %v237 = vld [vmem:[%s169 + $0x164] sm:$0xf]
      %v238 = vld [vmem:[%s169 + $0x168] sm:$0xff]
      %v239 = vld [vmem:[%s169 + $0x170] sm:$0xf]
      %v240 = vld [vmem:[%s169 + $0x174] sm:$0xff]
      %v241 = vld [vmem:[%s169 + $0x17c] sm:$0xf]
      %v242 = vld [vmem:[%s1] sm:$0xf]
      %v243 = vld [vmem:[%s1 + $0x4] sm:$0xf]
      %v244 = vld [vmem:[%s1 + $0x8] sm:$0xf]
      %v245 = vld [vmem:[%s1 + $0xc] sm:$0xf]
      %v246 = vld [vmem:[%s1 + $0x10] sm:$0xf]
      %v247 = vld [vmem:[%s1 + $0x14] sm:$0xf]
      %v248 = vld [vmem:[%s1 + $0x18] sm:$0xf]
      %v249 = vld [vmem:[%s1 + $0x1c] sm:$0xf]
      %v250 = vld [vmem:[%s1 + $0x20] sm:$0xf]
      %v251 = vld [vmem:[%s1 + $0x24] sm:$0xf]
      %v252 = vld [vmem:[%s1 + $0x28] sm:$0xf]
      %v253 = vld [vmem:[%s1 + $0x2c] sm:$0xf]
      %v254 = vld [vmem:[%s1 + $0x30] sm:$0xf]
      %v255 = vld [vmem:[%s1 + $0x34] sm:$0xf]
      %v256 = vld [vmem:[%s1 + $0x38] sm:$0xf]
      %v257 = vld [vmem:[%s1 + $0x3c] sm:$0xf]
      %v258 = vld [vmem:[%s1 + $0x40] sm:$0xf]
      %v259 = vld [vmem:[%s1 + $0x44] sm:$0xf]
      %v260 = vld [vmem:[%s1 + $0x48] sm:$0xf]
      %v261 = vld [vmem:[%s1 + $0x4c] sm:$0xf]
      %v262 = vld [vmem:[%s1 + $0x50] sm:$0xf]
      %v263 = vld [vmem:[%s1 + $0x54] sm:$0xf]
      %v264 = vld [vmem:[%s1 + $0x58] sm:$0xf]
      %v265 = vld [vmem:[%s1 + $0x5c] sm:$0xf]
      %v266 = vld [vmem:[%s1 + $0x60] sm:$0xf]
      %v267 = vld [vmem:[%s1 + $0x64] sm:$0xf]
      %v268 = vld [vmem:[%s1 + $0x68] sm:$0xf]
      %v269 = vld [vmem:[%s1 + $0x6c] sm:$0xf]
      %v270 = vld [vmem:[%s1 + $0x70] sm:$0xf]
      %v271 = vld [vmem:[%s1 + $0x74] sm:$0xf]
      %v272 = vld [vmem:[%s1 + $0x78] sm:$0xf]
      %v273 = vld [vmem:[%s1 + $0x7c] sm:$0xf]
      %v274 = vld [vmem:[%s1 + $0x80] sm:$0xf]
      %v275 = vld [vmem:[%s1 + $0x84] sm:$0xf]
      %v276 = vld [vmem:[%s1 + $0x88] sm:$0xf]
      %v277 = vld [vmem:[%s1 + $0x8c] sm:$0xf]
      %v278 = vld [vmem:[%s2] sm:$0x1]
      %v280 = vlaneseq
      %v281 = vshrl.u32 %v280, 7
      %v282 = vsub.s32 0, %v281
      %v283 = vrot.slane %v278, %v282
      %v349 = vunpack.c.l.b16 %v178
      %v350 = vunpack.c.h.b16 %v178
      %v351 = vunpack.c.l.b16 %v179
      %v352 = vunpack.c.l.b16 %v180
      %v353 = vunpack.c.h.b16 %v180
      %v354 = vunpack.c.l.b16 %v181
      %v355 = vunpack.c.l.b16 %v182
      %v356 = vunpack.c.h.b16 %v182
      %v357 = vunpack.c.l.b16 %v183
      %v358 = vunpack.c.l.b16 %v184
      %v359 = vunpack.c.h.b16 %v184
      %v360 = vunpack.c.l.b16 %v185
      %v361 = vunpack.c.l.b16 %v186
      %v362 = vunpack.c.h.b16 %v186
      %v363 = vunpack.c.l.b16 %v187
      %v364 = vunpack.c.l.b16 %v188
      %v365 = vunpack.c.h.b16 %v188
      %v366 = vunpack.c.l.b16 %v189
      %v367 = vunpack.c.l.b16 %v190
      %v368 = vunpack.c.h.b16 %v190
      %v369 = vunpack.c.l.b16 %v191
      %v370 = vunpack.c.l.b16 %v192
      %v371 = vunpack.c.h.b16 %v192
      %v372 = vunpack.c.l.b16 %v193
      %v373 = vunpack.c.l.b16 %v194
      %v374 = vunpack.c.h.b16 %v194
      %v375 = vunpack.c.l.b16 %v195
      %v376 = vunpack.c.l.b16 %v196
      %v377 = vunpack.c.h.b16 %v196
      %v378 = vunpack.c.l.b16 %v197
      %v379 = vunpack.c.l.b16 %v198
      %v380 = vunpack.c.h.b16 %v198
      %v381 = vunpack.c.l.b16 %v199
      %v382 = vunpack.c.l.b16 %v200
      %v383 = vunpack.c.h.b16 %v200
      %v384 = vunpack.c.l.b16 %v201
      %v385 = vunpack.c.l.b16 %v202
      %v386 = vunpack.c.h.b16 %v202
      %v387 = vunpack.c.l.b16 %v203
      %v388 = vunpack.c.l.b16 %v204
      %v389 = vunpack.c.h.b16 %v204
      %v390 = vunpack.c.l.b16 %v205
      %v391 = vunpack.c.l.b16 %v206
      %v392 = vunpack.c.h.b16 %v206
      %v393 = vunpack.c.l.b16 %v207
      %v394 = vunpack.c.l.b16 %v208
      %v395 = vunpack.c.h.b16 %v208
      %v396 = vunpack.c.l.b16 %v209
      %v397 = vunpack.c.l.b16 %v210
      %v398 = vunpack.c.h.b16 %v210
      %v399 = vunpack.c.l.b16 %v211
      %v400 = vunpack.c.l.b16 %v212
      %v401 = vunpack.c.h.b16 %v212
      %v402 = vunpack.c.l.b16 %v213
      %v403 = vunpack.c.l.b16 %v214
      %v404 = vunpack.c.h.b16 %v214
      %v405 = vunpack.c.l.b16 %v215
      %v406 = vunpack.c.l.b16 %v216
      %v407 = vunpack.c.h.b16 %v216
      %v408 = vunpack.c.l.b16 %v217
      %v409 = vunpack.c.l.b16 %v218
      %v410 = vunpack.c.h.b16 %v218
      %v411 = vunpack.c.l.b16 %v219
      %v412 = vunpack.c.l.b16 %v220
      %v413 = vunpack.c.h.b16 %v220
      %v414 = vunpack.c.l.b16 %v221
      %v415 = vunpack.c.l.b16 %v222
      %v416 = vunpack.c.h.b16 %v222
      %v417 = vunpack.c.l.b16 %v223
      %v418 = vunpack.c.l.b16 %v224
      %v419 = vunpack.c.h.b16 %v224
      %v420 = vunpack.c.l.b16 %v225
      %v421 = vunpack.c.l.b16 %v226
      %v422 = vunpack.c.h.b16 %v226
      %v423 = vunpack.c.l.b16 %v227
      %v424 = vunpack.c.l.b16 %v228
      %v425 = vunpack.c.h.b16 %v228
      %v426 = vunpack.c.l.b16 %v229
      %v427 = vunpack.c.l.b16 %v230
      %v428 = vunpack.c.h.b16 %v230
      %v429 = vunpack.c.l.b16 %v231
      %v430 = vunpack.c.l.b16 %v232
      %v431 = vunpack.c.h.b16 %v232
      %v432 = vunpack.c.l.b16 %v233
      %v433 = vunpack.c.l.b16 %v234
      %v434 = vunpack.c.h.b16 %v234
      %v435 = vunpack.c.l.b16 %v235
      %v436 = vunpack.c.l.b16 %v236
      %v437 = vunpack.c.h.b16 %v236
      %v438 = vunpack.c.l.b16 %v237
      %v439 = vunpack.c.l.b16 %v238
      %v440 = vunpack.c.h.b16 %v238
      %v441 = vunpack.c.l.b16 %v239
      %v442 = vunpack.c.l.b16 %v240
      %v443 = vunpack.c.h.b16 %v240
      %v444 = vunpack.c.l.b16 %v241
      %v445 = vpack.c.b16 %v352, %v349
      %v446 = vpack.c.b16 %v353, %v350
      %v447 = vpack.c.b16 %v354, %v351
      %v448 = vpack.c.b16 %v358, %v355
      %v449 = vpack.c.b16 %v359, %v356
      %v450 = vpack.c.b16 %v360, %v357
      %v451 = vpack.c.b16 %v364, %v361
      %v452 = vpack.c.b16 %v365, %v362
      %v453 = vpack.c.b16 %v366, %v363
      %v454 = vpack.c.b16 %v370, %v367
      %v455 = vpack.c.b16 %v371, %v368
      %v456 = vpack.c.b16 %v372, %v369
      %v457 = vpack.c.b16 %v376, %v373
      %v458 = vpack.c.b16 %v377, %v374
      %v459 = vpack.c.b16 %v378, %v375
      %v460 = vpack.c.b16 %v382, %v379
      %v461 = vpack.c.b16 %v383, %v380
      %v462 = vpack.c.b16 %v384, %v381
      %v463 = vpack.c.b16 %v388, %v385
      %v464 = vpack.c.b16 %v389, %v386
      %v465 = vpack.c.b16 %v390, %v387
      %v466 = vpack.c.b16 %v394, %v391
      %v467 = vpack.c.b16 %v395, %v392
      %v468 = vpack.c.b16 %v396, %v393
      %v469 = vpack.c.b16 %v400, %v397
      %v470 = vpack.c.b16 %v401, %v398
      %v471 = vpack.c.b16 %v402, %v399
      %v472 = vpack.c.b16 %v406, %v403
      %v473 = vpack.c.b16 %v407, %v404
      %v474 = vpack.c.b16 %v408, %v405
      %v475 = vpack.c.b16 %v412, %v409
      %v476 = vpack.c.b16 %v413, %v410
      %v477 = vpack.c.b16 %v414, %v411
      %v478 = vpack.c.b16 %v418, %v415
      %v479 = vpack.c.b16 %v419, %v416
      %v480 = vpack.c.b16 %v420, %v417
      %v481 = vpack.c.b16 %v424, %v421
      %v482 = vpack.c.b16 %v425, %v422
      %v483 = vpack.c.b16 %v426, %v423
      %v484 = vpack.c.b16 %v430, %v427
      %v485 = vpack.c.b16 %v431, %v428
      %v486 = vpack.c.b16 %v432, %v429
      %v487 = vpack.c.b16 %v436, %v433
      %v488 = vpack.c.b16 %v437, %v434
      %v489 = vpack.c.b16 %v438, %v435
      %v490 = vpack.c.b16 %v442, %v439
      %v491 = vpack.c.b16 %v443, %v440
      %v492 = vpack.c.b16 %v444, %v441
      %v561 = vunpack.c.l.b16 %v242
      %v562 = vunpack.c.l.b16 %v243
      %v563 = vunpack.c.l.b16 %v244
      %v564 = vunpack.c.l.b16 %v245
      %v565 = vunpack.c.l.b16 %v246
      %v566 = vunpack.c.l.b16 %v247
      %v567 = vunpack.c.l.b16 %v248
      %v568 = vunpack.c.l.b16 %v249
      %v569 = vunpack.c.l.b16 %v250
      %v570 = vunpack.c.l.b16 %v251
      %v571 = vunpack.c.l.b16 %v252
      %v572 = vunpack.c.l.b16 %v253
      %v573 = vunpack.c.l.b16 %v254
      %v574 = vunpack.c.l.b16 %v255
      %v575 = vunpack.c.l.b16 %v256
      %v576 = vunpack.c.l.b16 %v257
      %v577 = vunpack.c.l.b16 %v258
      %v578 = vunpack.c.l.b16 %v259
      %v579 = vunpack.c.l.b16 %v260
      %v580 = vunpack.c.l.b16 %v261
      %v581 = vunpack.c.l.b16 %v262
      %v582 = vunpack.c.l.b16 %v263
      %v583 = vunpack.c.l.b16 %v264
      %v584 = vunpack.c.l.b16 %v265
      %v585 = vunpack.c.l.b16 %v266
      %v586 = vunpack.c.l.b16 %v267
      %v587 = vunpack.c.l.b16 %v268
      %v588 = vunpack.c.l.b16 %v269
      %v589 = vunpack.c.l.b16 %v270
      %v590 = vunpack.c.l.b16 %v271
      %v591 = vunpack.c.l.b16 %v272
      %v592 = vunpack.c.l.b16 %v273
      %v593 = vunpack.c.l.b16 %v274
      %v594 = vunpack.c.l.b16 %v275
      %v595 = vunpack.c.l.b16 %v276
      %v596 = vunpack.c.l.b16 %v277
      %v597 = vpack.c.b16 %v562, %v561
      %v598 = vpack.c.b16 %v564, %v563
      %v599 = vpack.c.b16 %v566, %v565
      %v600 = vpack.c.b16 %v568, %v567
      %v601 = vpack.c.b16 %v570, %v569
      %v602 = vpack.c.b16 %v572, %v571
      %v603 = vpack.c.b16 %v574, %v573
      %v604 = vpack.c.b16 %v576, %v575
      %v605 = vpack.c.b16 %v578, %v577
      %v606 = vpack.c.b16 %v580, %v579
      %v607 = vpack.c.b16 %v582, %v581
      %v608 = vpack.c.b16 %v584, %v583
      %v609 = vpack.c.b16 %v586, %v585
      %v610 = vpack.c.b16 %v588, %v587
      %v611 = vpack.c.b16 %v590, %v589
      %v612 = vpack.c.b16 %v592, %v591
      %v613 = vpack.c.b16 %v594, %v593
      %v614 = vpack.c.b16 %v596, %v595
      %vm633 = vcmask 261120
      %v635 = vsel %vm633, %v447, 0
      %v638 = vsel %vm633, %v450, 0
      %v641 = vsel %vm633, %v453, 0
      %v644 = vsel %vm633, %v456, 0
      %v647 = vsel %vm633, %v459, 0
      %v650 = vsel %vm633, %v462, 0
      %v653 = vsel %vm633, %v465, 0
      %v656 = vsel %vm633, %v468, 0
      %v659 = vsel %vm633, %v471, 0
      %v662 = vsel %vm633, %v474, 0
      %v665 = vsel %vm633, %v477, 0
      %v668 = vsel %vm633, %v480, 0
      %v671 = vsel %vm633, %v483, 0
      %v674 = vsel %vm633, %v486, 0
      %v677 = vsel %vm633, %v489, 0
      %v680 = vsel %vm633, %v492, 0
      %682 = vmatprep.subr.bf16.mxu0 0
      %683 = vmatpush1.bf16.msra.mxu0 %v604
      %684 = vmatprep.subr.bf16.mxu0 0
      %685 = vmatpush1.bf16.msra.mxu0 %v603
      %686 = vmatprep.subr.bf16.mxu0 0
      %687 = vmatpush1.bf16.msra.mxu0 %v602
      %688 = vmatprep.subr.bf16.mxu0 0
      %689 = vmatpush1.bf16.msra.mxu0 %v601
      %690 = vmatprep.subr.bf16.mxu0 0
      %691 = vmatpush1.bf16.msra.mxu0 %v600
      %692 = vmatprep.subr.bf16.mxu0 0
      %693 = vmatpush1.bf16.msra.mxu0 %v599
      %694 = vmatprep.subr.bf16.mxu0 0
      %695 = vmatpush1.bf16.msra.mxu0 %v598
      %696 = vmatprep.subr.bf16.mxu0 0
      %697 = vmatpush1.bf16.msra.mxu0 %v597
      %698 = vmatprep.subr.bf16.mxu0 0
      %699 = vmatpush2.bf16.msra.mxu0 %v612
      %700 = vmatprep.subr.bf16.mxu0 0
      %701 = vmatpush2.bf16.msra.mxu0 %v611
      %702 = vmatprep.subr.bf16.mxu0 0
      %703 = vmatpush2.bf16.msra.mxu0 %v610
      %704 = vmatprep.subr.bf16.mxu0 0
      %705 = vmatpush2.bf16.msra.mxu0 %v609
      %706 = vmatprep.subr.bf16.mxu0 0
      %707 = vmatpush2.bf16.msra.mxu0 %v608
      %708 = vmatprep.subr.bf16.mxu0 0
      %709 = vmatpush2.bf16.msra.mxu0 %v607
      %710 = vmatprep.subr.bf16.mxu0 0
      %711 = vmatpush2.bf16.msra.mxu0 %v606
      %712 = vmatprep.subr.bf16.mxu0 0
      %713 = vmatpush2.bf16.msra.mxu0 %v605
      %714 = vmatprep.mubr.bf16.mxu0 %v446
      %715 = vmatmul.mubr.bf16.gmra.mxu0 %v445
      %v716 = vpop.f32.mrf.mxu0
      %v717 = vadd.f32 %v283, %v716
      %v718 = vpop.f32.mrf.mxu0
      %v719 = vpop.f32.mrf.mxu0
      %v720 = vadd.f32 %v283, %v719
      %v721 = vpop.f32.mrf.mxu0
      %722 = vmatprep.mubr.bf16.mxu0 %v449
      %723 = vmatmul.mubr.bf16.gmra.mxu0 %v448
      %v724 = vpop.f32.mrf.mxu0
      %v725 = vadd.f32 %v283, %v724
      %v726 = vpop.f32.mrf.mxu0
      %v727 = vpop.f32.mrf.mxu0
      %v728 = vadd.f32 %v283, %v727
      %v729 = vpop.f32.mrf.mxu0
      %730 = vmatprep.mubr.bf16.mxu0 %v452
      %731 = vmatmul.mubr.bf16.gmra.mxu0 %v451
      %v732 = vpop.f32.mrf.mxu0
      %v733 = vadd.f32 %v283, %v732
      %v734 = vpop.f32.mrf.mxu0
      %v735 = vpop.f32.mrf.mxu0
      %v736 = vadd.f32 %v283, %v735
      %v737 = vpop.f32.mrf.mxu0
      %738 = vmatprep.mubr.bf16.mxu0 %v455
      %739 = vmatmul.mubr.bf16.gmra.mxu0 %v454
      %v740 = vpop.f32.mrf.mxu0
      %v741 = vadd.f32 %v283, %v740
      %v742 = vpop.f32.mrf.mxu0
      %v743 = vpop.f32.mrf.mxu0
      %v744 = vadd.f32 %v283, %v743
      %v745 = vpop.f32.mrf.mxu0
      %746 = vmatprep.mubr.bf16.mxu0 %v458
      %747 = vmatmul.mubr.bf16.gmra.mxu0 %v457
      %v748 = vpop.f32.mrf.mxu0
      %v749 = vadd.f32 %v283, %v748
      %v750 = vpop.f32.mrf.mxu0
      %v751 = vpop.f32.mrf.mxu0
      %v752 = vadd.f32 %v283, %v751
      %v753 = vpop.f32.mrf.mxu0
      %754 = vmatprep.mubr.bf16.mxu0 %v461
      %755 = vmatmul.mubr.bf16.gmra.mxu0 %v460
      %v756 = vpop.f32.mrf.mxu0
      %v757 = vadd.f32 %v283, %v756
      %v758 = vpop.f32.mrf.mxu0
      %v759 = vpop.f32.mrf.mxu0
      %v760 = vadd.f32 %v283, %v759
      %v761 = vpop.f32.mrf.mxu0
      %762 = vmatprep.mubr.bf16.mxu0 %v464
      %763 = vmatmul.mubr.bf16.gmra.mxu0 %v463
      %v764 = vpop.f32.mrf.mxu0
      %v765 = vadd.f32 %v283, %v764
      %v766 = vpop.f32.mrf.mxu0
      %v767 = vpop.f32.mrf.mxu0
      %v768 = vadd.f32 %v283, %v767
      %v769 = vpop.f32.mrf.mxu0
      %770 = vmatprep.mubr.bf16.mxu0 %v467
      %771 = vmatmul.mubr.bf16.gmra.mxu0 %v466
      %v772 = vpop.f32.mrf.mxu0
      %v773 = vadd.f32 %v283, %v772
      %v774 = vpop.f32.mrf.mxu0
      %v775 = vpop.f32.mrf.mxu0
      %v776 = vadd.f32 %v283, %v775
      %v777 = vpop.f32.mrf.mxu0
      %778 = vmatprep.mubr.bf16.mxu0 %v470
      %779 = vmatmul.mubr.bf16.gmra.mxu0 %v469
      %v780 = vpop.f32.mrf.mxu0
      %v781 = vadd.f32 %v283, %v780
      %v782 = vpop.f32.mrf.mxu0
      %v783 = vpop.f32.mrf.mxu0
      %v784 = vadd.f32 %v283, %v783
      %v785 = vpop.f32.mrf.mxu0
      %786 = vmatprep.mubr.bf16.mxu0 %v473
      %787 = vmatmul.mubr.bf16.gmra.mxu0 %v472
      %v788 = vpop.f32.mrf.mxu0
      %v789 = vadd.f32 %v283, %v788
      %v790 = vpop.f32.mrf.mxu0
      %v791 = vpop.f32.mrf.mxu0
      %v792 = vadd.f32 %v283, %v791
      %v793 = vpop.f32.mrf.mxu0
      %794 = vmatprep.mubr.bf16.mxu0 %v476
      %795 = vmatmul.mubr.bf16.gmra.mxu0 %v475
      %v796 = vpop.f32.mrf.mxu0
      %v797 = vadd.f32 %v283, %v796
      %v798 = vpop.f32.mrf.mxu0
      %v799 = vpop.f32.mrf.mxu0
      %v800 = vadd.f32 %v283, %v799
      %v801 = vpop.f32.mrf.mxu0
      %802 = vmatprep.mubr.bf16.mxu0 %v479
      %803 = vmatmul.mubr.bf16.gmra.mxu0 %v478
      %v804 = vpop.f32.mrf.mxu0
      %v805 = vadd.f32 %v283, %v804
      %v806 = vpop.f32.mrf.mxu0
      %v807 = vpop.f32.mrf.mxu0
      %v808 = vadd.f32 %v283, %v807
      %v809 = vpop.f32.mrf.mxu0
      %810 = vmatprep.mubr.bf16.mxu0 %v482
      %811 = vmatmul.mubr.bf16.gmra.mxu0 %v481
      %v812 = vpop.f32.mrf.mxu0
      %v813 = vadd.f32 %v283, %v812
      %v814 = vpop.f32.mrf.mxu0
      %v815 = vpop.f32.mrf.mxu0
      %v816 = vadd.f32 %v283, %v815
      %v817 = vpop.f32.mrf.mxu0
      %818 = vmatprep.mubr.bf16.mxu0 %v485
      %819 = vmatmul.mubr.bf16.gmra.mxu0 %v484
      %v820 = vpop.f32.mrf.mxu0
      %v821 = vadd.f32 %v283, %v820
      %v822 = vpop.f32.mrf.mxu0
      %v823 = vpop.f32.mrf.mxu0
      %v824 = vadd.f32 %v283, %v823
      %v825 = vpop.f32.mrf.mxu0
      %826 = vmatprep.mubr.bf16.mxu0 %v488
      %827 = vmatmul.mubr.bf16.gmra.mxu0 %v487
      %v828 = vpop.f32.mrf.mxu0
      %v829 = vadd.f32 %v283, %v828
      %v830 = vpop.f32.mrf.mxu0
      %v831 = vpop.f32.mrf.mxu0
      %v832 = vadd.f32 %v283, %v831
      %v833 = vpop.f32.mrf.mxu0
      %834 = vmatprep.mubr.bf16.mxu0 %v491
      %835 = vmatmul.mubr.bf16.gmra.mxu0 %v490
      %v836 = vpop.f32.mrf.mxu0
      %v837 = vadd.f32 %v283, %v836
      %v838 = vpop.f32.mrf.mxu0
      %v839 = vpop.f32.mrf.mxu0
      %v840 = vadd.f32 %v283, %v839
      %v841 = vpop.f32.mrf.mxu0
      %842 = vdwg.mxu0
      %843 = vmatprep.subr.bf16.mxu0 0
      %844 = vmatpush1.bf16.msra.mxu0 0
      %845 = vmatprep.subr.bf16.mxu0 0
      %846 = vmatpush1.bf16.msra.mxu0 0
      %847 = vmatprep.subr.bf16.mxu0 0
      %848 = vmatpush1.bf16.msra.mxu0 0
      %849 = vmatprep.subr.bf16.mxu0 0
      %850 = vmatpush1.bf16.msra.mxu0 0
      %851 = vmatprep.subr.bf16.mxu0 0
      %852 = vmatpush1.bf16.msra.mxu0 0
      %853 = vmatprep.subr.bf16.mxu0 0
      %854 = vmatpush1.bf16.msra.mxu0 0
      %855 = vmatprep.subr.bf16.mxu0 0
      %856 = vmatpush1.bf16.msra.mxu0 %v614
      %857 = vmatprep.subr.bf16.mxu0 0
      %858 = vmatpush1.bf16.msra.mxu0 %v613
      %859 = vmatprep.subr.bf16.mxu0 0
      %860 = vmatpush2.bf16.msra.mxu0 0
      %861 = vmatprep.subr.bf16.mxu0 0
      %862 = vmatpush2.bf16.msra.mxu0 0
      %863 = vmatprep.subr.bf16.mxu0 0
      %864 = vmatpush2.bf16.msra.mxu0 0
      %865 = vmatprep.subr.bf16.mxu0 0
      %866 = vmatpush2.bf16.msra.mxu0 0
      %867 = vmatprep.subr.bf16.mxu0 0
      %868 = vmatpush2.bf16.msra.mxu0 0
      %869 = vmatprep.subr.bf16.mxu0 0
      %870 = vmatpush2.bf16.msra.mxu0 0
      %871 = vmatprep.subr.bf16.mxu0 0
      %872 = vmatpush2.bf16.msra.mxu0 0
      %873 = vmatprep.subr.bf16.mxu0 0
      %874 = vmatpush2.bf16.msra.mxu0 0
      %875 = vmatprep.mubr.bf16.mxu0 0
      %876 = vmatmul.mubr.bf16.gmra.mxu0 %v635
      %v877 = vpop.f32.mrf.mxu0
      %v878 = vadd.f32 %v717, %v877
      %v879 = vpop.f32.mrf.mxu0
      %v880 = vpop.f32.mrf.mxu0
      %v881 = vadd.f32 %v720, %v880
      %v882 = vpop.f32.mrf.mxu0
      %883 = vmatprep.mubr.bf16.mxu0 0
      %884 = vmatmul.mubr.bf16.gmra.mxu0 %v638
      %v885 = vpop.f32.mrf.mxu0
      %v886 = vadd.f32 %v725, %v885
      %v887 = vpop.f32.mrf.mxu0
      %v888 = vpop.f32.mrf.mxu0
      %v889 = vadd.f32 %v728, %v888
      %v890 = vpop.f32.mrf.mxu0
      %891 = vmatprep.mubr.bf16.mxu0 0
      %892 = vmatmul.mubr.bf16.gmra.mxu0 %v641
      %v893 = vpop.f32.mrf.mxu0
      %v894 = vadd.f32 %v733, %v893
      %v895 = vpop.f32.mrf.mxu0
      %v896 = vpop.f32.mrf.mxu0
      %v897 = vadd.f32 %v736, %v896
      %v898 = vpop.f32.mrf.mxu0
      %899 = vmatprep.mubr.bf16.mxu0 0
      %900 = vmatmul.mubr.bf16.gmra.mxu0 %v644
      %v901 = vpop.f32.mrf.mxu0
      %v902 = vadd.f32 %v741, %v901
      %v903 = vpop.f32.mrf.mxu0
      %v904 = vpop.f32.mrf.mxu0
      %v905 = vadd.f32 %v744, %v904
      %v906 = vpop.f32.mrf.mxu0
      %907 = vmatprep.mubr.bf16.mxu0 0
      %908 = vmatmul.mubr.bf16.gmra.mxu0 %v647
      %v909 = vpop.f32.mrf.mxu0
      %v910 = vadd.f32 %v749, %v909
      %v911 = vpop.f32.mrf.mxu0
      %v912 = vpop.f32.mrf.mxu0
      %v913 = vadd.f32 %v752, %v912
      %v914 = vpop.f32.mrf.mxu0
      %915 = vmatprep.mubr.bf16.mxu0 0
      %916 = vmatmul.mubr.bf16.gmra.mxu0 %v650
      %v917 = vpop.f32.mrf.mxu0
      %v918 = vadd.f32 %v757, %v917
      %v919 = vpop.f32.mrf.mxu0
      %v920 = vpop.f32.mrf.mxu0
      %v921 = vadd.f32 %v760, %v920
      %v922 = vpop.f32.mrf.mxu0
      %923 = vmatprep.mubr.bf16.mxu0 0
      %924 = vmatmul.mubr.bf16.gmra.mxu0 %v653
      %v925 = vpop.f32.mrf.mxu0
      %v926 = vadd.f32 %v765, %v925
      %v927 = vpop.f32.mrf.mxu0
      %v928 = vpop.f32.mrf.mxu0
      %v929 = vadd.f32 %v768, %v928
      %v930 = vpop.f32.mrf.mxu0
      %931 = vmatprep.mubr.bf16.mxu0 0
      %932 = vmatmul.mubr.bf16.gmra.mxu0 %v656
      %v933 = vpop.f32.mrf.mxu0
      %v934 = vadd.f32 %v773, %v933
      %v935 = vpop.f32.mrf.mxu0
      %v936 = vpop.f32.mrf.mxu0
      %v937 = vadd.f32 %v776, %v936
      %v938 = vpop.f32.mrf.mxu0
      %939 = vmatprep.mubr.bf16.mxu0 0
      %940 = vmatmul.mubr.bf16.gmra.mxu0 %v659
      %v941 = vpop.f32.mrf.mxu0
      %v942 = vadd.f32 %v781, %v941
      %v943 = vpop.f32.mrf.mxu0
      %v944 = vpop.f32.mrf.mxu0
      %v945 = vadd.f32 %v784, %v944
      %v946 = vpop.f32.mrf.mxu0
      %947 = vmatprep.mubr.bf16.mxu0 0
      %948 = vmatmul.mubr.bf16.gmra.mxu0 %v662
      %v949 = vpop.f32.mrf.mxu0
      %v950 = vadd.f32 %v789, %v949
      %v951 = vpop.f32.mrf.mxu0
      %v952 = vpop.f32.mrf.mxu0
      %v953 = vadd.f32 %v792, %v952
      %v954 = vpop.f32.mrf.mxu0
      %955 = vmatprep.mubr.bf16.mxu0 0
      %956 = vmatmul.mubr.bf16.gmra.mxu0 %v665
      %v957 = vpop.f32.mrf.mxu0
      %v958 = vadd.f32 %v797, %v957
      %v959 = vpop.f32.mrf.mxu0
      %v960 = vpop.f32.mrf.mxu0
      %v961 = vadd.f32 %v800, %v960
      %v962 = vpop.f32.mrf.mxu0
      %963 = vmatprep.mubr.bf16.mxu0 0
      %964 = vmatmul.mubr.bf16.gmra.mxu0 %v668
      %v965 = vpop.f32.mrf.mxu0
      %v966 = vadd.f32 %v805, %v965
      %v967 = vpop.f32.mrf.mxu0
      %v968 = vpop.f32.mrf.mxu0
      %v969 = vadd.f32 %v808, %v968
      %v970 = vpop.f32.mrf.mxu0
      %971 = vmatprep.mubr.bf16.mxu0 0
      %972 = vmatmul.mubr.bf16.gmra.mxu0 %v671
      %v973 = vpop.f32.mrf.mxu0
      %v974 = vadd.f32 %v813, %v973
      %v975 = vpop.f32.mrf.mxu0
      %v976 = vpop.f32.mrf.mxu0
      %v977 = vadd.f32 %v816, %v976
      %v978 = vpop.f32.mrf.mxu0
      %979 = vmatprep.mubr.bf16.mxu0 0
      %980 = vmatmul.mubr.bf16.gmra.mxu0 %v674
      %v981 = vpop.f32.mrf.mxu0
      %v982 = vadd.f32 %v821, %v981
      %v983 = vpop.f32.mrf.mxu0
      %v984 = vpop.f32.mrf.mxu0
      %v985 = vadd.f32 %v824, %v984
      %v986 = vpop.f32.mrf.mxu0
      %987 = vmatprep.mubr.bf16.mxu0 0
      %988 = vmatmul.mubr.bf16.gmra.mxu0 %v677
      %v989 = vpop.f32.mrf.mxu0
      %v990 = vadd.f32 %v829, %v989
      %v991 = vpop.f32.mrf.mxu0
      %v992 = vpop.f32.mrf.mxu0
      %v993 = vadd.f32 %v832, %v992
      %v994 = vpop.f32.mrf.mxu0
      %995 = vmatprep.mubr.bf16.mxu0 0
      %996 = vmatmul.mubr.bf16.gmra.mxu0 %v680
      %v997 = vpop.f32.mrf.mxu0
      %v998 = vadd.f32 %v837, %v997
      %v999 = vpop.f32.mrf.mxu0
      %v1000 = vpop.f32.mrf.mxu0
      %v1001 = vadd.f32 %v840, %v1000
      %v1002 = vpop.f32.mrf.mxu0
      %1003 = vdwg.mxu0
      %v1004 = vsub.f32 0.0, %v878
      %v1005 = vsub.f32 0.0, %v881
      %v1006 = vsub.f32 0.0, %v886
      %v1007 = vsub.f32 0.0, %v889
      %v1008 = vsub.f32 0.0, %v894
      %v1009 = vsub.f32 0.0, %v897
      %v1010 = vsub.f32 0.0, %v902
      %v1011 = vsub.f32 0.0, %v905
      %v1012 = vsub.f32 0.0, %v910
      %v1013 = vsub.f32 0.0, %v913
      %v1014 = vsub.f32 0.0, %v918
      %v1015 = vsub.f32 0.0, %v921
      %v1016 = vsub.f32 0.0, %v926
      %v1017 = vsub.f32 0.0, %v929
      %v1018 = vsub.f32 0.0, %v934
      %v1019 = vsub.f32 0.0, %v937
      %v1020 = vsub.f32 0.0, %v942
      %v1021 = vsub.f32 0.0, %v945
      %v1022 = vsub.f32 0.0, %v950
      %v1023 = vsub.f32 0.0, %v953
      %v1024 = vsub.f32 0.0, %v958
      %v1025 = vsub.f32 0.0, %v961
      %v1026 = vsub.f32 0.0, %v966
      %v1027 = vsub.f32 0.0, %v969
      %v1028 = vsub.f32 0.0, %v974
      %v1029 = vsub.f32 0.0, %v977
      %v1030 = vsub.f32 0.0, %v982
      %v1031 = vsub.f32 0.0, %v985
      %v1032 = vsub.f32 0.0, %v990
      %v1033 = vsub.f32 0.0, %v993
      %v1034 = vsub.f32 0.0, %v998
      %v1035 = vsub.f32 0.0, %v1001
      %v1036 = vmul.f32 %v1004, 1.442695
      %v1037 = vpow.pop %v1036
      %v1038 = vmul.f32 %v1005, 1.442695
      %v1039 = vpow.pop %v1038
      %v1040 = vmul.f32 %v1006, 1.442695
      %v1041 = vpow.pop %v1040
      %v1042 = vmul.f32 %v1007, 1.442695
      %v1043 = vpow.pop %v1042
      %v1044 = vmul.f32 %v1008, 1.442695
      %v1045 = vpow.pop %v1044
      %v1046 = vmul.f32 %v1009, 1.442695
      %v1047 = vpow.pop %v1046
      %v1048 = vmul.f32 %v1010, 1.442695
      %v1049 = vpow.pop %v1048
      %v1050 = vmul.f32 %v1011, 1.442695
      %v1051 = vpow.pop %v1050
      %v1052 = vmul.f32 %v1012, 1.442695
      %v1053 = vpow.pop %v1052
      %v1054 = vmul.f32 %v1013, 1.442695
      %v1055 = vpow.pop %v1054
      %v1056 = vmul.f32 %v1014, 1.442695
      %v1057 = vpow.pop %v1056
      %v1058 = vmul.f32 %v1015, 1.442695
      %v1059 = vpow.pop %v1058
      %v1060 = vmul.f32 %v1016, 1.442695
      %v1061 = vpow.pop %v1060
      %v1062 = vmul.f32 %v1017, 1.442695
      %v1063 = vpow.pop %v1062
      %v1064 = vmul.f32 %v1018, 1.442695
      %v1065 = vpow.pop %v1064
      %v1066 = vmul.f32 %v1019, 1.442695
      %v1067 = vpow.pop %v1066
      %v1068 = vmul.f32 %v1020, 1.442695
      %v1069 = vpow.pop %v1068
      %v1070 = vmul.f32 %v1021, 1.442695
      %v1071 = vpow.pop %v1070
      %v1072 = vmul.f32 %v1022, 1.442695
      %v1073 = vpow.pop %v1072
      %v1074 = vmul.f32 %v1023, 1.442695
      %v1075 = vpow.pop %v1074
      %v1076 = vmul.f32 %v1024, 1.442695
      %v1077 = vpow.pop %v1076
      %v1078 = vmul.f32 %v1025, 1.442695
      %v1079 = vpow.pop %v1078
      %v1080 = vmul.f32 %v1026, 1.442695
      %v1081 = vpow.pop %v1080
      %v1082 = vmul.f32 %v1027, 1.442695
      %v1083 = vpow.pop %v1082
      %v1084 = vmul.f32 %v1028, 1.442695
      %v1085 = vpow.pop %v1084
      %v1086 = vmul.f32 %v1029, 1.442695
      %v1087 = vpow.pop %v1086
      %v1088 = vmul.f32 %v1030, 1.442695
      %v1089 = vpow.pop %v1088
      %v1090 = vmul.f32 %v1031, 1.442695
      %v1091 = vpow.pop %v1090
      %v1092 = vmul.f32 %v1032, 1.442695
      %v1093 = vpow.pop %v1092
      %v1094 = vmul.f32 %v1033, 1.442695
      %v1095 = vpow.pop %v1094
      %v1096 = vmul.f32 %v1034, 1.442695
      %v1097 = vpow.pop %v1096
      %v1098 = vmul.f32 %v1035, 1.442695
      %v1099 = vpow.pop %v1098
      %v1100 = vadd.f32 %v1037, 1.0
      %v1101 = vadd.f32 %v1039, 1.0
      %v1102 = vadd.f32 %v1041, 1.0
      %v1103 = vadd.f32 %v1043, 1.0
      %v1104 = vadd.f32 %v1045, 1.0
      %v1105 = vadd.f32 %v1047, 1.0
      %v1106 = vadd.f32 %v1049, 1.0
      %v1107 = vadd.f32 %v1051, 1.0
      %v1108 = vadd.f32 %v1053, 1.0
      %v1109 = vadd.f32 %v1055, 1.0
      %v1110 = vadd.f32 %v1057, 1.0
      %v1111 = vadd.f32 %v1059, 1.0
      %v1112 = vadd.f32 %v1061, 1.0
      %v1113 = vadd.f32 %v1063, 1.0
      %v1114 = vadd.f32 %v1065, 1.0
      %v1115 = vadd.f32 %v1067, 1.0
      %v1116 = vadd.f32 %v1069, 1.0
      %v1117 = vadd.f32 %v1071, 1.0
      %v1118 = vadd.f32 %v1073, 1.0
      %v1119 = vadd.f32 %v1075, 1.0
      %v1120 = vadd.f32 %v1077, 1.0
      %v1121 = vadd.f32 %v1079, 1.0
      %v1122 = vadd.f32 %v1081, 1.0
      %v1123 = vadd.f32 %v1083, 1.0
      %v1124 = vadd.f32 %v1085, 1.0
      %v1125 = vadd.f32 %v1087, 1.0
      %v1126 = vadd.f32 %v1089, 1.0
      %v1127 = vadd.f32 %v1091, 1.0
      %v1128 = vadd.f32 %v1093, 1.0
      %v1129 = vadd.f32 %v1095, 1.0
      %v1130 = vadd.f32 %v1097, 1.0
      %v1131 = vadd.f32 %v1099, 1.0
      %v1132 = vrcp.pop %v1100
      %v1133 = vmul.f32 1.0, %v1132
      %v1134 = vrcp.pop %v1101
      %v1135 = vmul.f32 1.0, %v1134
      %v1136 = vrcp.pop %v1102
      %v1137 = vmul.f32 1.0, %v1136
      %v1138 = vrcp.pop %v1103
      %v1139 = vmul.f32 1.0, %v1138
      %v1140 = vrcp.pop %v1104
      %v1141 = vmul.f32 1.0, %v1140
      %v1142 = vrcp.pop %v1105
      %v1143 = vmul.f32 1.0, %v1142
      %v1144 = vrcp.pop %v1106
      %v1145 = vmul.f32 1.0, %v1144
      %v1146 = vrcp.pop %v1107
      %v1147 = vmul.f32 1.0, %v1146
      %v1148 = vrcp.pop %v1108
      %v1149 = vmul.f32 1.0, %v1148
      %v1150 = vrcp.pop %v1109
      %v1151 = vmul.f32 1.0, %v1150
      %v1152 = vrcp.pop %v1110
      %v1153 = vmul.f32 1.0, %v1152
      %v1154 = vrcp.pop %v1111
      %v1155 = vmul.f32 1.0, %v1154
      %v1156 = vrcp.pop %v1112
      %v1157 = vmul.f32 1.0, %v1156
      %v1158 = vrcp.pop %v1113
      %v1159 = vmul.f32 1.0, %v1158
      %v1160 = vrcp.pop %v1114
      %v1161 = vmul.f32 1.0, %v1160
      %v1162 = vrcp.pop %v1115
      %v1163 = vmul.f32 1.0, %v1162
      %v1164 = vrcp.pop %v1116
      %v1165 = vmul.f32 1.0, %v1164
      %v1166 = vrcp.pop %v1117
      %v1167 = vmul.f32 1.0, %v1166
      %v1168 = vrcp.pop %v1118
      %v1169 = vmul.f32 1.0, %v1168
      %v1170 = vrcp.pop %v1119
      %v1171 = vmul.f32 1.0, %v1170
      %v1172 = vrcp.pop %v1120
      %v1173 = vmul.f32 1.0, %v1172
      %v1174 = vrcp.pop %v1121
      %v1175 = vmul.f32 1.0, %v1174
      %v1176 = vrcp.pop %v1122
      %v1177 = vmul.f32 1.0, %v1176
      %v1178 = vrcp.pop %v1123
      %v1179 = vmul.f32 1.0, %v1178
      %v1180 = vrcp.pop %v1124
      %v1181 = vmul.f32 1.0, %v1180
      %v1182 = vrcp.pop %v1125
      %v1183 = vmul.f32 1.0, %v1182
      %v1184 = vrcp.pop %v1126
      %v1185 = vmul.f32 1.0, %v1184
      %v1186 = vrcp.pop %v1127
      %v1187 = vmul.f32 1.0, %v1186
      %v1188 = vrcp.pop %v1128
      %v1189 = vmul.f32 1.0, %v1188
      %v1190 = vrcp.pop %v1129
      %v1191 = vmul.f32 1.0, %v1190
      %v1192 = vrcp.pop %v1130
      %v1193 = vmul.f32 1.0, %v1192
      %v1194 = vrcp.pop %v1131
      %v1195 = vmul.f32 1.0, %v1194
      %vm1196 = vcmask 7168
      %1197 = vst.msk [vmem:[%s175] sm:$0xff] %vm1196, %v1133
      %1198 = vst.msk [vmem:[%s175 + $0x8] sm:$0xff] %vm1196, %v1135
      %1199 = vst.msk [vmem:[%s175 + $0x10] sm:$0xff] %vm1196, %v1137
      %1200 = vst.msk [vmem:[%s175 + $0x18] sm:$0xff] %vm1196, %v1139
      %1201 = vst.msk [vmem:[%s175 + $0x20] sm:$0xff] %vm1196, %v1141
      %1202 = vst.msk [vmem:[%s175 + $0x28] sm:$0xff] %vm1196, %v1143
      %1203 = vst.msk [vmem:[%s175 + $0x30] sm:$0xff] %vm1196, %v1145
      %1204 = vst.msk [vmem:[%s175 + $0x38] sm:$0xff] %vm1196, %v1147
      %1205 = vst.msk [vmem:[%s175 + $0x40] sm:$0xff] %vm1196, %v1149
      %1206 = vst.msk [vmem:[%s175 + $0x48] sm:$0xff] %vm1196, %v1151
      %1207 = vst.msk [vmem:[%s175 + $0x50] sm:$0xff] %vm1196, %v1153
      %1208 = vst.msk [vmem:[%s175 + $0x58] sm:$0xff] %vm1196, %v1155
      %1209 = vst.msk [vmem:[%s175 + $0x60] sm:$0xff] %vm1196, %v1157
      %1210 = vst.msk [vmem:[%s175 + $0x68] sm:$0xff] %vm1196, %v1159
      %1211 = vst.msk [vmem:[%s175 + $0x70] sm:$0xff] %vm1196, %v1161
      %1212 = vst.msk [vmem:[%s175 + $0x78] sm:$0xff] %vm1196, %v1163
      %1213 = vst.msk [vmem:[%s175 + $0x80] sm:$0xff] %vm1196, %v1165
      %1214 = vst.msk [vmem:[%s175 + $0x88] sm:$0xff] %vm1196, %v1167
      %1215 = vst.msk [vmem:[%s175 + $0x90] sm:$0xff] %vm1196, %v1169
      %1216 = vst.msk [vmem:[%s175 + $0x98] sm:$0xff] %vm1196, %v1171
      %1217 = vst.msk [vmem:[%s175 + $0xa0] sm:$0xff] %vm1196, %v1173
      %1218 = vst.msk [vmem:[%s175 + $0xa8] sm:$0xff] %vm1196, %v1175
      %1219 = vst.msk [vmem:[%s175 + $0xb0] sm:$0xff] %vm1196, %v1177
      %1220 = vst.msk [vmem:[%s175 + $0xb8] sm:$0xff] %vm1196, %v1179
      %1221 = vst.msk [vmem:[%s175 + $0xc0] sm:$0xff] %vm1196, %v1181
      %1222 = vst.msk [vmem:[%s175 + $0xc8] sm:$0xff] %vm1196, %v1183
      %1223 = vst.msk [vmem:[%s175 + $0xd0] sm:$0xff] %vm1196, %v1185
      %1224 = vst.msk [vmem:[%s175 + $0xd8] sm:$0xff] %vm1196, %v1187
      %1225 = vst.msk [vmem:[%s175 + $0xe0] sm:$0xff] %vm1196, %v1189
      %1226 = vst.msk [vmem:[%s175 + $0xe8] sm:$0xff] %vm1196, %v1191
      %1227 = vst.msk [vmem:[%s175 + $0xf0] sm:$0xff] %vm1196, %v1193
      %1228 = vst.msk [vmem:[%s175 + $0xf8] sm:$0xff] %vm1196, %v1195
      %s1229 = smul.u32 32, %s14
      %p1230 = scmp.lt.s32.totalorder %s1229, 255
      %s1231 = scalar_select %p1230, %s1229, 255
      %s1232 = smul.addr %s1231, 8
      %s1233 = scalar_lea.vmem %s3, %s1232
      // Predicated region
      $region33: #{_lambda_.15} parent=31 // pred_check
        %p1234 = pneg %p100
      $region34: #{_lambda_.15} parent=31 // pred_check_branch
        %1236 = sbr.rel (%p1234) target = $region36
      $region35: #{_lambda_.15} parent=31 // pred_region
        %s1237 = smul.u32 32, %s14
      $region36: #{_lambda_.15} parent=31 // pred_fallthru
        _
    $region32: #{_lambda_.15} parent=5 // pred_fallthru
      _
    %p1238 = scmp.le.s32.totalorder 2, %s9
    // Predicated region
    $region37: #{_lambda_.15} parent=5 // pred_check
      %p1239 = pneg %p1238
    $region38: #{_lambda_.15} parent=5 // pred_check_branch
      %1241 = sbr.rel (%p1239) target = $region40
    $region39: #{_lambda_.15} parent=5 // pred_region
      %s1242 = ssub.s32 %s9, 2
      // Predicated region
      $region41: #{_lambda_.15} parent=39 // pred_check
        %p1243 = pneg %p106
      $region42: #{_lambda_.15} parent=39 // pred_check_branch
        %1245 = sbr.rel (%p1243) target = $region44
      $region43: #{_lambda_.15} parent=39 // pred_region
        %s1246 = smul.u32 32, %s15
        %p1247 = scmp.lt.s32.totalorder %s1246, 255
        %s1248 = scalar_select %p1247, %s1246, 255
        %s1249 = smul.addr %s1248, 8
        %s1250 = scalar_lea.vmem %s3, %s1249
      $region44: #{_lambda_.15} parent=39 // pred_fallthru
        _
    $region40: #{_lambda_.15} parent=5 // pred_fallthru
      _
  $region6: #{_lambda_.15} parent=0 // loop_footer
    %s13 = sadd.s32 1, %s9
  $region7: #{_lambda_.15} parent=0 // loop_footer_branch
    %8 = sbr.rel target = $region3
  $region8: #{_lambda_.15} parent=0 // loop_exit
    _

</llo_original>
